<compile_context>
chip_gen: v5e
topology: v5e:2x2
jax: 0.10.0
libtpu: 0.0.40
codegen_flags: <defaults>
</compile_context>

<pallas_src>
import functools
import math

import jax
import jax.numpy as jnp
from jax.experimental import pallas as pl
from jax.experimental.pallas import tpu as pltpu

F32 = jnp.float32

# ---------------------------------------------------------------------------
# row indices inside the packed per-layer (1,D)-vector slab  vd: (L, 28, D)
# ---------------------------------------------------------------------------
VD_LN1_G, VD_LN1_B, VD_LN2_G, VD_LN2_B = 0, 1, 2, 3
VD_F1Q_LNG, VD_F1Q_LNB, VD_F1Q_B = 4, 5, 6
VD_F2Q_LNG, VD_F2Q_LNB, VD_F2Q_B = 7, 8, 9
VD_GQT_SPEC, VD_GQT_SHARE = 10, 17            # 7 rows each
GQ_ENC1_B, GQ_ENC1_G, GQ_ENC1_BETA = 0, 1, 2
GQ_DEC1_B, GQ_DEC1_G, GQ_DEC1_BETA, GQ_DEC2_B = 3, 4, 5, 6
VD_MLP_CI_B, VD_MLP_CS_B, VD_MLP_I_B, VD_MLP_S_B = 24, 25, 26, 27
# vhd: (L, 6, D//2) rows: [spec enc2_b, enc2_g, enc2_beta, share enc2_b, enc2_g, enc2_beta]


def _ln(x, g, b, eps=1e-5):
    mu = jnp.mean(x, axis=-1, keepdims=True)
    var = jnp.mean(jnp.square(x - mu), axis=-1, keepdims=True)
    return (x - mu) * jax.lax.rsqrt(var + eps) * g + b


# ---------------------------------------------------------------------------
# fully fused kernel: 3 unrolled IndependentFeatureExtractBlocks + OutputBlock
# ---------------------------------------------------------------------------
def _lrenet_fused_kernel(src_ref, shr_ref, tok_ref,
                         qw_ref, kvw_ref, g1w_ref, g2w_ref, g3w_ref, g4w_ref,
                         mlpw_ref, vd_ref, v2d_ref, vhd_ref,
                         bw_ref, bb_ref, cw_ref, cb_ref,
                         outs_ref, logits_ref, hz_ref):
    L, T, D = tok_ref.shape
    C = logits_ref.shape[1]
    inv_dk = 1.0 / float(D)

    def attn(q, k, vv):
        # PyTorch: P = softmax(K @ Q^T / d_k, dim=-1); out = P^T @ V / d_k.
        # Transposed layout (T, N): the softmax normalization runs over the
        # token axis, which is the (cheap) sublane axis here.
        s = jax.lax.dot_general(q, k, (((1,), (1,)), ((), ())),
                                preferred_element_type=F32) * inv_dk   # (T, N)
        s = s - jnp.max(s, axis=0, keepdims=True)
        p = jnp.exp(s)
        p = p * pl.reciprocal(jnp.sum(p, axis=0, keepdims=True), approx=True)
        return jnp.dot(p, vv, preferred_element_type=F32) * inv_dk      # (T, D)

    spec_in = src_ref[...]          # layer-0 specific features (N_src, D)
    shr_in = shr_ref[...]           # layer-0 share features    (N_shr, D)

    inter_S_pieces = []
    c_s_last = None
    c_i_last = None

    for l in range(L):              # unrolled — carries stay in values/vregs
        vd = vd_ref[l]              # (28, D)
        vhd = vhd_ref[l]            # (6, D//2)
        v2d = v2d_ref[l]            # (2, 2D)

        def v(i):
            return vd[i:i + 1, :]

        def vh(i):
            return vhd[i:i + 1, :]

        toks = tok_ref[l]           # (T, D)

        # -- LayerNorm of the feature streams --------------------------------
        spec = _ln(spec_in, v(VD_LN1_G), v(VD_LN1_B))
        shr = _ln(shr_in, v(VD_LN2_G), v(VD_LN2_B))

        # -- Q projections (LN -> Linear on the learned tokens) --------------
        q_spec = jnp.dot(_ln(toks, v(VD_F1Q_LNG), v(VD_F1Q_LNB)), qw_ref[l, 0],
                         preferred_element_type=F32) + v(VD_F1Q_B)
        q_shar = jnp.dot(_ln(toks, v(VD_F2Q_LNG), v(VD_F2Q_LNB)), qw_ref[l, 1],
                         preferred_element_type=F32) + v(VD_F2Q_B)

        # -- fused K|V projections: one lane-dense (D, 2D) matmul per branch -
        kv_spec = jnp.dot(spec, kvw_ref[l, 0],
                          preferred_element_type=F32) + v2d[0:1, :]
        kv_shar = jnp.dot(shr, kvw_ref[l, 1],
                          preferred_element_type=F32) + v2d[1:2, :]
        k_spec, v_spec = kv_spec[:, :D], kv_spec[:, D:]
        k_shar, v_shar = kv_shar[:, :D], kv_shar[:, D:]

        def gqt(qtok, b):
            # genQureyToken: enc (Linear->LN->ReLU)x2 -> avgpool over tokens
            #                -> dec (Linear->LN->ReLU) -> Linear
            base = VD_GQT_SPEC if b == 0 else VD_GQT_SHARE
            hb = 3 * b
            x = jnp.dot(qtok, g1w_ref[l, b],
                        preferred_element_type=F32) + v(base + GQ_ENC1_B)
            x = jnp.maximum(_ln(x, v(base + GQ_ENC1_G), v(base + GQ_ENC1_BETA)), 0.0)
            x = jnp.dot(x, g2w_ref[l, b],
                        preferred_element_type=F32) + vh(hb + 0)
            x = jnp.maximum(_ln(x, vh(hb + 1), vh(hb + 2)), 0.0)        # (T, D//2)
            g = jnp.broadcast_to(jnp.mean(x, axis=0, keepdims=True), x.shape)
            y = jnp.dot(g, g3w_ref[l, b],
                        preferred_element_type=F32) + v(base + GQ_DEC1_B)
            y = jnp.maximum(_ln(y, v(base + GQ_DEC1_G), v(base + GQ_DEC1_BETA)), 0.0)
            return jnp.dot(y, g4w_ref[l, b],
                           preferred_element_type=F32) + v(base + GQ_DEC2_B)

        i_kqv = attn(q_spec, k_spec, v_spec)
        s_kqv = attn(q_shar, k_shar, v_shar)
        c_tok_spec = gqt(q_spec, 0)
        c_tok_shar = gqt(q_shar, 1)
        c_i_kqv = attn(c_tok_spec, k_spec, v_spec)
        c_s_kqv = attn(c_tok_shar, k_shar, v_shar)

        c_i = jnp.dot(c_i_kqv, mlpw_ref[l, 0],
                      preferred_element_type=F32) + v(VD_MLP_CI_B)
        c_s = jnp.dot(c_s_kqv, mlpw_ref[l, 1],
                      preferred_element_type=F32) + v(VD_MLP_CS_B)
        i_i = jnp.dot(i_kqv, mlpw_ref[l, 2],
                      preferred_element_type=F32) + v(VD_MLP_I_B)
        i_s = jnp.dot(s_kqv, mlpw_ref[l, 3],
                      preferred_element_type=F32) + v(VD_MLP_S_B)

        # one lane-dense (T, 4D) store per layer: [c_I | c_S | inter_I | inter_S]
        outs_ref[l] = jnp.concatenate([c_i, c_s, i_i, i_s], axis=-1)

        inter_S_pieces.append(i_s)
        c_s_last, c_i_last = c_s, c_i
        spec_in, shr_in = c_i, c_s        # carries for the next layer

    # -- OutputBlock epilogue (fused) -----------------------------------------
    # fusion row order: [c_S last layer | inter_S layers 0..L-1 | c_I last layer]
    fusion = jnp.concatenate([c_s_last] + inter_S_pieces + [c_i_last], axis=0)
    h = jnp.dot(fusion, bw_ref[...], preferred_element_type=F32) + bb_ref[...]
    # h: ((2+L)*T, 256) == the butter output whose row-major flatten feeds the
    # classifier. Classifier weights are packed as (C, (2+L)*T, 256), so
    # logits[c] = sum(h * W[c]) + b[c]  (VPU multiply-reduce, no tiny matmuls).
    cb = cb_ref[...]                      # (1, C)
    for c in range(C):
        per_row = jnp.sum(h * cw_ref[c], axis=-1, keepdims=True)   # (RT, 1)
        logit = jnp.sum(per_row, axis=0, keepdims=True) + cb[:, c:c + 1]
        logits_ref[:, c:c + 1] = logit
        hz_ref[:, c:c + 1] = 0.5 * jnp.tanh(0.5 * logit) + 0.5     # stable sigmoid


def run_lrenet_fused(packed, tokens, src, shr, butter_w, butter_b, cls_w3, cls_b):
    L, T, D = tokens.shape
    n_classes = cls_b.shape[1]
    vmem = pl.BlockSpec(memory_space=pltpu.MemorySpace.VMEM)
    outs, logits, hazards = pl.pallas_call(
        _lrenet_fused_kernel,
        out_shape=(jax.ShapeDtypeStruct((L, T, 4 * D), F32),
                   jax.ShapeDtypeStruct((1, n_classes), F32),
                   jax.ShapeDtypeStruct((1, n_classes), F32)),
        in_specs=[vmem] * 17,
        out_specs=(vmem, vmem, vmem),
    )(src, shr, tokens, packed["qw"], packed["kvw"], packed["g1w"],
      packed["g2w"], packed["g3w"], packed["g4w"], packed["mlpw"],
      packed["vd"], packed["v2d"], packed["vhd"],
      butter_w, butter_b, cls_w3, cls_b)
    return outs, logits, hazards


# ---------------------------------------------------------------------------
# Parameter initialization (deterministic, PyTorch-default-like)
# ---------------------------------------------------------------------------
def init_ln(d):
    return jnp.ones((1, d), F32), jnp.zeros((1, d), F32)


def init_linear(key, d_in, d_out):
    k1, k2 = jax.random.split(key)
    bound = 1.0 / math.sqrt(d_in)
    # stored pre-transposed: (d_in, d_out) so kernels compute x @ W
    w = jax.random.uniform(k1, (d_in, d_out), F32, -bound, bound)
    b = jax.random.uniform(k2, (1, d_out), F32, -bound, bound)
    return w, b


def init_gqt(key, d):
    keys = jax.random.split(key, 4)
    p = {}
    p["enc1_w"], p["enc1_b"] = init_linear(keys[0], d, d)
    p["enc1_g"], p["enc1_beta"] = init_ln(d)
    p["enc2_w"], p["enc2_b"] = init_linear(keys[1], d, d // 2)
    p["enc2_g"], p["enc2_beta"] = init_ln(d // 2)
    p["dec1_w"], p["dec1_b"] = init_linear(keys[2], d // 2, d)
    p["dec1_g"], p["dec1_beta"] = init_ln(d)
    p["dec2_w"], p["dec2_b"] = init_linear(keys[3], d, d)
    return p


def init_ind_block(key, d):
    keys = jax.random.split(key, 12)
    p = {}
    p["ln1_g"], p["ln1_b"] = init_ln(d)
    p["ln2_g"], p["ln2_b"] = init_ln(d)
    p["fc1q_ln_g"], p["fc1q_ln_b"] = init_ln(d)
    p["fc1q_w"], p["fc1q_b"] = init_linear(keys[0], d, d)
    p["fc1k_w"], p["fc1k_b"] = init_linear(keys[1], d, d)
    p["fc1v_w"], p["fc1v_b"] = init_linear(keys[2], d, d)
    p["fc2q_ln_g"], p["fc2q_ln_b"] = init_ln(d)
    p["fc2q_w"], p["fc2q_b"] = init_linear(keys[3], d, d)
    p["fc2k_w"], p["fc2k_b"] = init_linear(keys[4], d, d)
    p["fc2v_w"], p["fc2v_b"] = init_linear(keys[5], d, d)
    p["gqt_spec"] = init_gqt(keys[6], d)
    p["gqt_share"] = init_gqt(keys[7], d)
    p["mlp_I_w"], p["mlp_I_b"] = init_linear(keys[8], d, d)
    p["mlp_S_w"], p["mlp_S_b"] = init_linear(keys[9], d, d)
    p["mlp_cI_w"], p["mlp_cI_b"] = init_linear(keys[10], d, d)
    p["mlp_cS_w"], p["mlp_cS_b"] = init_linear(keys[11], d, d)
    return p


def pack_block_params(blocks):
    """Stack per-block params along a leading L axis in the packed layout the
    fused kernel expects (K/V weights concatenated to (D, 2D))."""
    def stk(fn):
        return jnp.stack([fn(b) for b in blocks], axis=0)

    def gqt_vd(g):
        return [g["enc1_b"], g["enc1_g"], g["enc1_beta"],
                g["dec1_b"], g["dec1_g"], g["dec1_beta"], g["dec2_b"]]

    packed = {
        "qw": stk(lambda b: jnp.stack([b["fc1q_w"], b["fc2q_w"]], 0)),
        "kvw": stk(lambda b: jnp.stack(
            [jnp.concatenate([b["fc1k_w"], b["fc1v_w"]], axis=1),
             jnp.concatenate([b["fc2k_w"], b["fc2v_w"]], axis=1)], 0)),
        "g1w": stk(lambda b: jnp.stack(
            [b["gqt_spec"]["enc1_w"], b["gqt_share"]["enc1_w"]], 0)),
        "g2w": stk(lambda b: jnp.stack(
            [b["gqt_spec"]["enc2_w"], b["gqt_share"]["enc2_w"]], 0)),
        "g3w": stk(lambda b: jnp.stack(
            [b["gqt_spec"]["dec1_w"], b["gqt_share"]["dec1_w"]], 0)),
        "g4w": stk(lambda b: jnp.stack(
            [b["gqt_spec"]["dec2_w"], b["gqt_share"]["dec2_w"]], 0)),
        "mlpw": stk(lambda b: jnp.stack(
            [b["mlp_cI_w"], b["mlp_cS_w"], b["mlp_I_w"], b["mlp_S_w"]], 0)),
        "vd": stk(lambda b: jnp.concatenate(
            [b["ln1_g"], b["ln1_b"], b["ln2_g"], b["ln2_b"],
             b["fc1q_ln_g"], b["fc1q_ln_b"], b["fc1q_b"],
             b["fc2q_ln_g"], b["fc2q_ln_b"], b["fc2q_b"]]
            + gqt_vd(b["gqt_spec"]) + gqt_vd(b["gqt_share"])
            + [b["mlp_cI_b"], b["mlp_cS_b"], b["mlp_I_b"], b["mlp_S_b"]],
            axis=0)),
        "v2d": stk(lambda b: jnp.concatenate(
            [jnp.concatenate([b["fc1k_b"], b["fc1v_b"]], axis=1),
             jnp.concatenate([b["fc2k_b"], b["fc2v_b"]], axis=1)], axis=0)),
        "vhd": stk(lambda b: jnp.concatenate(
            [b["gqt_spec"]["enc2_b"], b["gqt_spec"]["enc2_g"],
             b["gqt_spec"]["enc2_beta"],
             b["gqt_share"]["enc2_b"], b["gqt_share"]["enc2_g"],
             b["gqt_share"]["enc2_beta"]], axis=0)),
    }
    return packed


def init_lrenet(key, d, num_tokens, n_classes, layers_num=3):
    keys = jax.random.split(key, layers_num + 3)
    tokens = (d ** -0.5) * jax.random.normal(
        keys[0], (layers_num, num_tokens, d), F32)
    blocks = [init_ind_block(keys[1 + i], d) for i in range(layers_num)]
    butter_w, butter_b = init_linear(keys[layers_num + 1], d, 256)
    rt = num_tokens * (2 + layers_num)
    cls_w, cls_b = init_linear(keys[layers_num + 2], rt * 256, n_classes)
    # classifier weight repacked lane-dense as (C, RT, 256): cls_w3[c, r, k]
    # multiplies h[r, k] of the butter output (row-major flatten match).
    cls_w3 = jnp.transpose(cls_w.reshape(rt, 256, n_classes), (2, 0, 1))
    return {
        "layers_num": layers_num,
        "num_tokens": num_tokens,
        "tokens": tokens,
        "packed": pack_block_params(blocks),
        "butter_w": butter_w,
        "butter_b": butter_b,
        "cls_w3": cls_w3,
        "cls_b": cls_b,
    }


# ---------------------------------------------------------------------------
# Model forward
# ---------------------------------------------------------------------------
def lrenet_forward(params, share_feature, source_feature):
    tokens = params["tokens"]
    L, T, D = tokens.shape

    outs, logits, hazards = run_lrenet_fused(
        params["packed"], tokens, source_feature, share_feature,
        params["butter_w"], params["butter_b"],
        params["cls_w3"], params["cls_b"])

    # split the lane-dense (L, T, 4D) slab back into the four result streams
    c_I = outs[:, :, 0:D].reshape(L * T, D)
    c_S = outs[:, :, D:2 * D].reshape(L * T, D)
    inter_I = outs[:, :, 2 * D:3 * D].reshape(L * T, D)
    inter_S = outs[:, :, 3 * D:4 * D].reshape(L * T, D)

    y_hat = jnp.argmax(logits, axis=1, keepdims=True)   # torch.topk(logits,1)[1]
    moe_aux_loss = 0.0
    return logits, hazards, y_hat, moe_aux_loss, inter_I, inter_S, c_I, c_S


# ---------------------------------------------------------------------------
if __name__ == "__main__":
    D = 64            # wsi_size (small)
    T = 4             # num_tokens (small)
    N_CLASSES = 2
    N_SHARE, N_SRC = 16, 8
    LAYERS = 3

    key = jax.random.PRNGKey(0)
    k_par, k_share, k_src = jax.random.split(key, 3)

    params = init_lrenet(k_par, D, T, N_CLASSES, layers_num=LAYERS)
    share_feature = jax.random.normal(k_share, (N_SHARE, D), F32)
    source_feature = jax.random.normal(k_src, (N_SRC, D), F32)

    fwd = jax.jit(lrenet_forward)
    logits, hazards, y_hat, moe_aux_loss, inter_I, inter_S, c_I, c_S = fwd(
        params, share_feature, source_feature)

    jax.block_until_ready((logits, hazards, y_hat, inter_I, inter_S, c_I, c_S))

    assert logits.shape == (1, N_CLASSES)
    assert hazards.shape == (1, N_CLASSES)
    assert y_hat.shape == (1, 1)
    assert inter_I.shape == (LAYERS * T, D) and inter_S.shape == (LAYERS * T, D)
    assert c_I.shape == (LAYERS * T, D) and c_S.shape == (LAYERS * T, D)
    assert bool(jnp.all(jnp.isfinite(logits))) and bool(jnp.all(jnp.isfinite(hazards)))
    print("KERNEL_OK")
</pallas_src>

<mosaic_0001>
module attributes {stable_mosaic.version = 11 : i64} {
  func.func @_lrenet_fused_kernel(%arg0: memref<8x64xf32, #tpu.memory_space<vmem>>, %arg1: memref<16x64xf32, #tpu.memory_space<vmem>>, %arg2: memref<3x4x64xf32, #tpu.memory_space<vmem>>, %arg3: memref<3x2x64x64xf32, #tpu.memory_space<vmem>>, %arg4: memref<3x2x64x128xf32, #tpu.memory_space<vmem>>, %arg5: memref<3x2x64x64xf32, #tpu.memory_space<vmem>>, %arg6: memref<3x2x64x32xf32, #tpu.memory_space<vmem>>, %arg7: memref<3x2x32x64xf32, #tpu.memory_space<vmem>>, %arg8: memref<3x2x64x64xf32, #tpu.memory_space<vmem>>, %arg9: memref<3x4x64x64xf32, #tpu.memory_space<vmem>>, %arg10: memref<3x28x64xf32, #tpu.memory_space<vmem>>, %arg11: memref<3x2x128xf32, #tpu.memory_space<vmem>>, %arg12: memref<3x6x32xf32, #tpu.memory_space<vmem>>, %arg13: memref<64x256xf32, #tpu.memory_space<vmem>>, %arg14: memref<1x256xf32, #tpu.memory_space<vmem>>, %arg15: memref<2x20x256xf32, #tpu.memory_space<vmem>>, %arg16: memref<1x2xf32, #tpu.memory_space<vmem>>, %arg17: memref<3x4x256xf32, #tpu.memory_space<vmem>>, %arg18: memref<1x2xf32, #tpu.memory_space<vmem>>, %arg19: memref<1x2xf32, #tpu.memory_space<vmem>>) attributes {dimension_semantics = [], scalar_prefetch = 0 : i64, scratch_operands = 0 : i64, tpu.core_type = #tpu.core_type<tc>} {
    %c0 = arith.constant 0 : index
    %c0_0 = arith.constant 0 : index
    %0 = vector.load %arg0[%c0, %c0_0] : memref<8x64xf32, #tpu.memory_space<vmem>>, vector<8x64xf32>
    %c0_1 = arith.constant 0 : index
    %c0_2 = arith.constant 0 : index
    %1 = vector.load %arg1[%c0_1, %c0_2] : memref<16x64xf32, #tpu.memory_space<vmem>>, vector<16x64xf32>
    %c0_3 = arith.constant 0 : index
    %c0_4 = arith.constant 0 : index
    %c0_5 = arith.constant 0 : index
    %2 = vector.load %arg10[%c0_3, %c0_4, %c0_5] : memref<3x28x64xf32, #tpu.memory_space<vmem>>, vector<1x28x64xf32>
    %3 = vector.shape_cast %2 : vector<1x28x64xf32> to vector<28x64xf32>
    %c0_6 = arith.constant 0 : index
    %c0_7 = arith.constant 0 : index
    %c0_8 = arith.constant 0 : index
    %4 = vector.load %arg12[%c0_6, %c0_7, %c0_8] : memref<3x6x32xf32, #tpu.memory_space<vmem>>, vector<1x6x32xf32>
    %5 = vector.shape_cast %4 : vector<1x6x32xf32> to vector<6x32xf32>
    %c0_9 = arith.constant 0 : index
    %c0_10 = arith.constant 0 : index
    %c0_11 = arith.constant 0 : index
    %6 = vector.load %arg11[%c0_9, %c0_10, %c0_11] : memref<3x2x128xf32, #tpu.memory_space<vmem>>, vector<1x2x128xf32>
    %7 = vector.shape_cast %6 : vector<1x2x128xf32> to vector<2x128xf32>
    %c0_12 = arith.constant 0 : index
    %c0_13 = arith.constant 0 : index
    %c0_14 = arith.constant 0 : index
    %8 = vector.load %arg2[%c0_12, %c0_13, %c0_14] : memref<3x4x64xf32, #tpu.memory_space<vmem>>, vector<1x4x64xf32>
    %9 = vector.shape_cast %8 : vector<1x4x64xf32> to vector<4x64xf32>
    %10 = vector.extract_strided_slice %3 {offsets = [0, 0], sizes = [1, 64], strides = [1, 1]} : vector<28x64xf32> to vector<1x64xf32>
    %11 = vector.extract_strided_slice %3 {offsets = [1, 0], sizes = [1, 64], strides = [1, 1]} : vector<28x64xf32> to vector<1x64xf32>
    %cst = arith.constant dense<0.000000e+00> : vector<8xf32>
    %12 = vector.multi_reduction <add>, %0, %cst [1] : vector<8x64xf32> to vector<8xf32>
    %13 = vector.shape_cast %12 : vector<8xf32> to vector<8x1xf32>
    %cst_15 = arith.constant 6.400000e+01 : f32
    %14 = vector.broadcast %cst_15 : f32 to vector<8x1xf32>
    %15 = arith.divf %13, %14 : vector<8x1xf32>
    %16 = vector.broadcast %15 : vector<8x1xf32> to vector<8x64xf32>
    %17 = arith.subf %0, %16 : vector<8x64xf32>
    %18 = arith.mulf %17, %17 : vector<8x64xf32>
    %cst_16 = arith.constant dense<0.000000e+00> : vector<8xf32>
    %19 = vector.multi_reduction <add>, %18, %cst_16 [1] : vector<8x64xf32> to vector<8xf32>
    %20 = vector.shape_cast %19 : vector<8xf32> to vector<8x1xf32>
    %cst_17 = arith.constant 6.400000e+01 : f32
    %21 = vector.broadcast %cst_17 : f32 to vector<8x1xf32>
    %22 = arith.divf %20, %21 : vector<8x1xf32>
    %23 = vector.broadcast %15 : vector<8x1xf32> to vector<8x64xf32>
    %24 = arith.subf %0, %23 : vector<8x64xf32>
    %cst_18 = arith.constant 9.99999974E-6 : f32
    %25 = vector.broadcast %cst_18 : f32 to vector<8x1xf32>
    %26 = arith.addf %22, %25 : vector<8x1xf32>
    %27 = math.rsqrt %26 : vector<8x1xf32>
    %28 = vector.broadcast %27 : vector<8x1xf32> to vector<8x64xf32>
    %29 = arith.mulf %24, %28 : vector<8x64xf32>
    %30 = vector.broadcast %10 : vector<1x64xf32> to vector<8x64xf32>
    %31 = arith.mulf %29, %30 : vector<8x64xf32>
    %32 = vector.broadcast %11 : vector<1x64xf32> to vector<8x64xf32>
    %33 = arith.addf %31, %32 : vector<8x64xf32>
    %34 = vector.extract_strided_slice %3 {offsets = [2, 0], sizes = [1, 64], strides = [1, 1]} : vector<28x64xf32> to vector<1x64xf32>
    %35 = vector.extract_strided_slice %3 {offsets = [3, 0], sizes = [1, 64], strides = [1, 1]} : vector<28x64xf32> to vector<1x64xf32>
    %cst_19 = arith.constant dense<0.000000e+00> : vector<16xf32>
    %36 = vector.multi_reduction <add>, %1, %cst_19 [1] : vector<16x64xf32> to vector<16xf32>
    %37 = vector.shape_cast %36 : vector<16xf32> to vector<16x1xf32>
    %cst_20 = arith.constant 6.400000e+01 : f32
    %38 = vector.broadcast %cst_20 : f32 to vector<16x1xf32>
    %39 = arith.divf %37, %38 : vector<16x1xf32>
    %40 = vector.broadcast %39 : vector<16x1xf32> to vector<16x64xf32>
    %41 = arith.subf %1, %40 : vector<16x64xf32>
    %42 = arith.mulf %41, %41 : vector<16x64xf32>
    %cst_21 = arith.constant dense<0.000000e+00> : vector<16xf32>
    %43 = vector.multi_reduction <add>, %42, %cst_21 [1] : vector<16x64xf32> to vector<16xf32>
    %44 = vector.shape_cast %43 : vector<16xf32> to vector<16x1xf32>
    %cst_22 = arith.constant 6.400000e+01 : f32
    %45 = vector.broadcast %cst_22 : f32 to vector<16x1xf32>
    %46 = arith.divf %44, %45 : vector<16x1xf32>
    %47 = vector.broadcast %39 : vector<16x1xf32> to vector<16x64xf32>
    %48 = arith.subf %1, %47 : vector<16x64xf32>
    %cst_23 = arith.constant 9.99999974E-6 : f32
    %49 = vector.broadcast %cst_23 : f32 to vector<16x1xf32>
    %50 = arith.addf %46, %49 : vector<16x1xf32>
    %51 = math.rsqrt %50 : vector<16x1xf32>
    %52 = vector.broadcast %51 : vector<16x1xf32> to vector<16x64xf32>
    %53 = arith.mulf %48, %52 : vector<16x64xf32>
    %54 = vector.broadcast %34 : vector<1x64xf32> to vector<16x64xf32>
    %55 = arith.mulf %53, %54 : vector<16x64xf32>
    %56 = vector.broadcast %35 : vector<1x64xf32> to vector<16x64xf32>
    %57 = arith.addf %55, %56 : vector<16x64xf32>
    %58 = vector.extract_strided_slice %3 {offsets = [4, 0], sizes = [1, 64], strides = [1, 1]} : vector<28x64xf32> to vector<1x64xf32>
    %59 = vector.extract_strided_slice %3 {offsets = [5, 0], sizes = [1, 64], strides = [1, 1]} : vector<28x64xf32> to vector<1x64xf32>
    %cst_24 = arith.constant dense<0.000000e+00> : vector<4xf32>
    %60 = vector.multi_reduction <add>, %9, %cst_24 [1] : vector<4x64xf32> to vector<4xf32>
    %61 = vector.shape_cast %60 : vector<4xf32> to vector<4x1xf32>
    %cst_25 = arith.constant 6.400000e+01 : f32
    %62 = vector.broadcast %cst_25 : f32 to vector<4x1xf32>
    %63 = arith.divf %61, %62 : vector<4x1xf32>
    %64 = vector.broadcast %63 : vector<4x1xf32> to vector<4x64xf32>
    %65 = arith.subf %9, %64 : vector<4x64xf32>
    %66 = arith.mulf %65, %65 : vector<4x64xf32>
    %cst_26 = arith.constant dense<0.000000e+00> : vector<4xf32>
    %67 = vector.multi_reduction <add>, %66, %cst_26 [1] : vector<4x64xf32> to vector<4xf32>
    %68 = vector.shape_cast %67 : vector<4xf32> to vector<4x1xf32>
    %cst_27 = arith.constant 6.400000e+01 : f32
    %69 = vector.broadcast %cst_27 : f32 to vector<4x1xf32>
    %70 = arith.divf %68, %69 : vector<4x1xf32>
    %71 = vector.broadcast %63 : vector<4x1xf32> to vector<4x64xf32>
    %72 = arith.subf %9, %71 : vector<4x64xf32>
    %cst_28 = arith.constant 9.99999974E-6 : f32
    %73 = vector.broadcast %cst_28 : f32 to vector<4x1xf32>
    %74 = arith.addf %70, %73 : vector<4x1xf32>
    %75 = math.rsqrt %74 : vector<4x1xf32>
    %76 = vector.broadcast %75 : vector<4x1xf32> to vector<4x64xf32>
    %77 = arith.mulf %72, %76 : vector<4x64xf32>
    %78 = vector.broadcast %58 : vector<1x64xf32> to vector<4x64xf32>
    %79 = arith.mulf %77, %78 : vector<4x64xf32>
    %80 = vector.broadcast %59 : vector<1x64xf32> to vector<4x64xf32>
    %81 = arith.addf %79, %80 : vector<4x64xf32>
    %c0_29 = arith.constant 0 : index
    %c0_30 = arith.constant 0 : index
    %c0_31 = arith.constant 0 : index
    %c0_32 = arith.constant 0 : index
    %82 = vector.load %arg3[%c0_29, %c0_30, %c0_31, %c0_32] : memref<3x2x64x64xf32, #tpu.memory_space<vmem>>, vector<1x1x64x64xf32>
    %83 = vector.shape_cast %82 : vector<1x1x64x64xf32> to vector<64x64xf32>
    %cst_33 = arith.constant dense<0.000000e+00> : vector<4x64xf32>
    %84 = tpu.matmul %81, %83, %cst_33 {dimension_numbers = #tpu.dot_dimension_numbers<[1], [0], [0], [1], [0, 0, 1, 1], [], []>} : vector<4x64xf32>, vector<64x64xf32>, vector<4x64xf32> -> vector<4x64xf32>
    %85 = vector.extract_strided_slice %3 {offsets = [6, 0], sizes = [1, 64], strides = [1, 1]} : vector<28x64xf32> to vector<1x64xf32>
    %86 = vector.broadcast %85 : vector<1x64xf32> to vector<4x64xf32>
    %87 = arith.addf %84, %86 : vector<4x64xf32>
    %88 = vector.extract_strided_slice %3 {offsets = [7, 0], sizes = [1, 64], strides = [1, 1]} : vector<28x64xf32> to vector<1x64xf32>
    %89 = vector.extract_strided_slice %3 {offsets = [8, 0], sizes = [1, 64], strides = [1, 1]} : vector<28x64xf32> to vector<1x64xf32>
    %cst_34 = arith.constant dense<0.000000e+00> : vector<4xf32>
    %90 = vector.multi_reduction <add>, %9, %cst_34 [1] : vector<4x64xf32> to vector<4xf32>
    %91 = vector.shape_cast %90 : vector<4xf32> to vector<4x1xf32>
    %cst_35 = arith.constant 6.400000e+01 : f32
    %92 = vector.broadcast %cst_35 : f32 to vector<4x1xf32>
    %93 = arith.divf %91, %92 : vector<4x1xf32>
    %94 = vector.broadcast %93 : vector<4x1xf32> to vector<4x64xf32>
    %95 = arith.subf %9, %94 : vector<4x64xf32>
    %96 = arith.mulf %95, %95 : vector<4x64xf32>
    %cst_36 = arith.constant dense<0.000000e+00> : vector<4xf32>
    %97 = vector.multi_reduction <add>, %96, %cst_36 [1] : vector<4x64xf32> to vector<4xf32>
    %98 = vector.shape_cast %97 : vector<4xf32> to vector<4x1xf32>
    %cst_37 = arith.constant 6.400000e+01 : f32
    %99 = vector.broadcast %cst_37 : f32 to vector<4x1xf32>
    %100 = arith.divf %98, %99 : vector<4x1xf32>
    %101 = vector.broadcast %93 : vector<4x1xf32> to vector<4x64xf32>
    %102 = arith.subf %9, %101 : vector<4x64xf32>
    %cst_38 = arith.constant 9.99999974E-6 : f32
    %103 = vector.broadcast %cst_38 : f32 to vector<4x1xf32>
    %104 = arith.addf %100, %103 : vector<4x1xf32>
    %105 = math.rsqrt %104 : vector<4x1xf32>
    %106 = vector.broadcast %105 : vector<4x1xf32> to vector<4x64xf32>
    %107 = arith.mulf %102, %106 : vector<4x64xf32>
    %108 = vector.broadcast %88 : vector<1x64xf32> to vector<4x64xf32>
    %109 = arith.mulf %107, %108 : vector<4x64xf32>
    %110 = vector.broadcast %89 : vector<1x64xf32> to vector<4x64xf32>
    %111 = arith.addf %109, %110 : vector<4x64xf32>
    %c0_39 = arith.constant 0 : index
    %c1 = arith.constant 1 : index
    %c0_40 = arith.constant 0 : index
    %c0_41 = arith.constant 0 : index
    %112 = vector.load %arg3[%c0_39, %c1, %c0_40, %c0_41] : memref<3x2x64x64xf32, #tpu.memory_space<vmem>>, vector<1x1x64x64xf32>
    %113 = vector.shape_cast %112 : vector<1x1x64x64xf32> to vector<64x64xf32>
    %cst_42 = arith.constant dense<0.000000e+00> : vector<4x64xf32>
    %114 = tpu.matmul %111, %113, %cst_42 {dimension_numbers = #tpu.dot_dimension_numbers<[1], [0], [0], [1], [0, 0, 1, 1], [], []>} : vector<4x64xf32>, vector<64x64xf32>, vector<4x64xf32> -> vector<4x64xf32>
    %115 = vector.extract_strided_slice %3 {offsets = [9, 0], sizes = [1, 64], strides = [1, 1]} : vector<28x64xf32> to vector<1x64xf32>
    %116 = vector.broadcast %115 : vector<1x64xf32> to vector<4x64xf32>
    %117 = arith.addf %114, %116 : vector<4x64xf32>
    %c0_43 = arith.constant 0 : index
    %c0_44 = arith.constant 0 : index
    %c0_45 = arith.constant 0 : index
    %c0_46 = arith.constant 0 : index
    %118 = vector.load %arg4[%c0_43, %c0_44, %c0_45, %c0_46] : memref<3x2x64x128xf32, #tpu.memory_space<vmem>>, vector<1x1x64x128xf32>
    %119 = vector.shape_cast %118 : vector<1x1x64x128xf32> to vector<64x128xf32>
    %cst_47 = arith.constant dense<0.000000e+00> : vector<8x128xf32>
    %120 = tpu.matmul %33, %119, %cst_47 {dimension_numbers = #tpu.dot_dimension_numbers<[1], [0], [0], [1], [0, 0, 1, 1], [], []>} : vector<8x64xf32>, vector<64x128xf32>, vector<8x128xf32> -> vector<8x128xf32>
    %121 = vector.extract_strided_slice %7 {offsets = [0, 0], sizes = [1, 128], strides = [1, 1]} : vector<2x128xf32> to vector<1x128xf32>
    %122 = vector.broadcast %121 : vector<1x128xf32> to vector<8x128xf32>
    %123 = arith.addf %120, %122 : vector<8x128xf32>
    %c0_48 = arith.constant 0 : index
    %c1_49 = arith.constant 1 : index
    %c0_50 = arith.constant 0 : index
    %c0_51 = arith.constant 0 : index
    %124 = vector.load %arg4[%c0_48, %c1_49, %c0_50, %c0_51] : memref<3x2x64x128xf32, #tpu.memory_space<vmem>>, vector<1x1x64x128xf32>
    %125 = vector.shape_cast %124 : vector<1x1x64x128xf32> to vector<64x128xf32>
    %cst_52 = arith.constant dense<0.000000e+00> : vector<16x128xf32>
    %126 = tpu.matmul %57, %125, %cst_52 {dimension_numbers = #tpu.dot_dimension_numbers<[1], [0], [0], [1], [0, 0, 1, 1], [], []>} : vector<16x64xf32>, vector<64x128xf32>, vector<16x128xf32> -> vector<16x128xf32>
    %127 = vector.extract_strided_slice %7 {offsets = [1, 0], sizes = [1, 128], strides = [1, 1]} : vector<2x128xf32> to vector<1x128xf32>
    %128 = vector.broadcast %127 : vector<1x128xf32> to vector<16x128xf32>
    %129 = arith.addf %126, %128 : vector<16x128xf32>
    %130 = vector.extract_strided_slice %123 {offsets = [0, 0], sizes = [8, 64], strides = [1, 1]} : vector<8x128xf32> to vector<8x64xf32>
    %131 = vector.extract_strided_slice %123 {offsets = [0, 64], sizes = [8, 64], strides = [1, 1]} : vector<8x128xf32> to vector<8x64xf32>
    %132 = vector.extract_strided_slice %129 {offsets = [0, 0], sizes = [16, 64], strides = [1, 1]} : vector<16x128xf32> to vector<16x64xf32>
    %133 = vector.extract_strided_slice %129 {offsets = [0, 64], sizes = [16, 64], strides = [1, 1]} : vector<16x128xf32> to vector<16x64xf32>
    %cst_53 = arith.constant dense<0.000000e+00> : vector<4x8xf32>
    %134 = tpu.matmul %87, %130, %cst_53 {dimension_numbers = #tpu.dot_dimension_numbers<[1], [1], [0], [0], [0, 0, 1, 0], [], []>} : vector<4x64xf32>, vector<8x64xf32>, vector<4x8xf32> -> vector<4x8xf32>
    %cst_54 = arith.constant 1.562500e-02 : f32
    %135 = vector.broadcast %cst_54 : f32 to vector<4x8xf32>
    %136 = arith.mulf %134, %135 : vector<4x8xf32>
    %cst_55 = arith.constant dense<0xFF800000> : vector<8xf32>
    %137 = vector.multi_reduction <maximumf>, %136, %cst_55 [0] : vector<4x8xf32> to vector<8xf32>
    %138 = vector.shape_cast %137 : vector<8xf32> to vector<1x8xf32>
    %139 = vector.broadcast %138 : vector<1x8xf32> to vector<4x8xf32>
    %140 = arith.subf %136, %139 : vector<4x8xf32>
    %141 = math.exp %140 : vector<4x8xf32>
    %cst_56 = arith.constant dense<0.000000e+00> : vector<8xf32>
    %142 = vector.multi_reduction <add>, %141, %cst_56 [0] : vector<4x8xf32> to vector<8xf32>
    %143 = vector.shape_cast %142 : vector<8xf32> to vector<1x8xf32>
    %144 = tpu.reciprocal %143 {approx = true} : vector<1x8xf32> -> vector<1x8xf32>
    %145 = vector.broadcast %144 : vector<1x8xf32> to vector<4x8xf32>
    %146 = arith.mulf %141, %145 : vector<4x8xf32>
    %cst_57 = arith.constant dense<0.000000e+00> : vector<4x64xf32>
    %147 = tpu.matmul %146, %131, %cst_57 {dimension_numbers = #tpu.dot_dimension_numbers<[1], [0], [0], [1], [0, 0, 1, 1], [], []>} : vector<4x8xf32>, vector<8x64xf32>, vector<4x64xf32> -> vector<4x64xf32>
    %cst_58 = arith.constant 1.562500e-02 : f32
    %148 = vector.broadcast %cst_58 : f32 to vector<4x64xf32>
    %149 = arith.mulf %147, %148 : vector<4x64xf32>
    %cst_59 = arith.constant dense<0.000000e+00> : vector<4x16xf32>
    %150 = tpu.matmul %117, %132, %cst_59 {dimension_numbers = #tpu.dot_dimension_numbers<[1], [1], [0], [0], [0, 0, 1, 0], [], []>} : vector<4x64xf32>, vector<16x64xf32>, vector<4x16xf32> -> vector<4x16xf32>
    %cst_60 = arith.constant 1.562500e-02 : f32
    %151 = vector.broadcast %cst_60 : f32 to vector<4x16xf32>
    %152 = arith.mulf %150, %151 : vector<4x16xf32>
    %cst_61 = arith.constant dense<0xFF800000> : vector<16xf32>
    %153 = vector.multi_reduction <maximumf>, %152, %cst_61 [0] : vector<4x16xf32> to vector<16xf32>
    %154 = vector.shape_cast %153 : vector<16xf32> to vector<1x16xf32>
    %155 = vector.broadcast %154 : vector<1x16xf32> to vector<4x16xf32>
    %156 = arith.subf %152, %155 : vector<4x16xf32>
    %157 = math.exp %156 : vector<4x16xf32>
    %cst_62 = arith.constant dense<0.000000e+00> : vector<16xf32>
    %158 = vector.multi_reduction <add>, %157, %cst_62 [0] : vector<4x16xf32> to vector<16xf32>
    %159 = vector.shape_cast %158 : vector<16xf32> to vector<1x16xf32>
    %160 = tpu.reciprocal %159 {approx = true} : vector<1x16xf32> -> vector<1x16xf32>
    %161 = vector.broadcast %160 : vector<1x16xf32> to vector<4x16xf32>
    %162 = arith.mulf %157, %161 : vector<4x16xf32>
    %cst_63 = arith.constant dense<0.000000e+00> : vector<4x64xf32>
    %163 = tpu.matmul %162, %133, %cst_63 {dimension_numbers = #tpu.dot_dimension_numbers<[1], [0], [0], [1], [0, 0, 1, 1], [], []>} : vector<4x16xf32>, vector<16x64xf32>, vector<4x64xf32> -> vector<4x64xf32>
    %cst_64 = arith.constant 1.562500e-02 : f32
    %164 = vector.broadcast %cst_64 : f32 to vector<4x64xf32>
    %165 = arith.mulf %163, %164 : vector<4x64xf32>
    %c0_65 = arith.constant 0 : index
    %c0_66 = arith.constant 0 : index
    %c0_67 = arith.constant 0 : index
    %c0_68 = arith.constant 0 : index
    %166 = vector.load %arg5[%c0_65, %c0_66, %c0_67, %c0_68] : memref<3x2x64x64xf32, #tpu.memory_space<vmem>>, vector<1x1x64x64xf32>
    %167 = vector.shape_cast %166 : vector<1x1x64x64xf32> to vector<64x64xf32>
    %cst_69 = arith.constant dense<0.000000e+00> : vector<4x64xf32>
    %168 = tpu.matmul %87, %167, %cst_69 {dimension_numbers = #tpu.dot_dimension_numbers<[1], [0], [0], [1], [0, 0, 1, 1], [], []>} : vector<4x64xf32>, vector<64x64xf32>, vector<4x64xf32> -> vector<4x64xf32>
    %169 = vector.extract_strided_slice %3 {offsets = [10, 0], sizes = [1, 64], strides = [1, 1]} : vector<28x64xf32> to vector<1x64xf32>
    %170 = vector.broadcast %169 : vector<1x64xf32> to vector<4x64xf32>
    %171 = arith.addf %168, %170 : vector<4x64xf32>
    %172 = vector.extract_strided_slice %3 {offsets = [11, 0], sizes = [1, 64], strides = [1, 1]} : vector<28x64xf32> to vector<1x64xf32>
    %173 = vector.extract_strided_slice %3 {offsets = [12, 0], sizes = [1, 64], strides = [1, 1]} : vector<28x64xf32> to vector<1x64xf32>
    %cst_70 = arith.constant dense<0.000000e+00> : vector<4xf32>
    %174 = vector.multi_reduction <add>, %171, %cst_70 [1] : vector<4x64xf32> to vector<4xf32>
    %175 = vector.shape_cast %174 : vector<4xf32> to vector<4x1xf32>
    %cst_71 = arith.constant 6.400000e+01 : f32
    %176 = vector.broadcast %cst_71 : f32 to vector<4x1xf32>
    %177 = arith.divf %175, %176 : vector<4x1xf32>
    %178 = vector.broadcast %177 : vector<4x1xf32> to vector<4x64xf32>
    %179 = arith.subf %171, %178 : vector<4x64xf32>
    %180 = arith.mulf %179, %179 : vector<4x64xf32>
    %cst_72 = arith.constant dense<0.000000e+00> : vector<4xf32>
    %181 = vector.multi_reduction <add>, %180, %cst_72 [1] : vector<4x64xf32> to vector<4xf32>
    %182 = vector.shape_cast %181 : vector<4xf32> to vector<4x1xf32>
    %cst_73 = arith.constant 6.400000e+01 : f32
    %183 = vector.broadcast %cst_73 : f32 to vector<4x1xf32>
    %184 = arith.divf %182, %183 : vector<4x1xf32>
    %185 = vector.broadcast %177 : vector<4x1xf32> to vector<4x64xf32>
    %186 = arith.subf %171, %185 : vector<4x64xf32>
    %cst_74 = arith.constant 9.99999974E-6 : f32
    %187 = vector.broadcast %cst_74 : f32 to vector<4x1xf32>
    %188 = arith.addf %184, %187 : vector<4x1xf32>
    %189 = math.rsqrt %188 : vector<4x1xf32>
    %190 = vector.broadcast %189 : vector<4x1xf32> to vector<4x64xf32>
    %191 = arith.mulf %186, %190 : vector<4x64xf32>
    %192 = vector.broadcast %172 : vector<1x64xf32> to vector<4x64xf32>
    %193 = arith.mulf %191, %192 : vector<4x64xf32>
    %194 = vector.broadcast %173 : vector<1x64xf32> to vector<4x64xf32>
    %195 = arith.addf %193, %194 : vector<4x64xf32>
    %cst_75 = arith.constant 0.000000e+00 : f32
    %196 = vector.broadcast %cst_75 : f32 to vector<4x64xf32>
    %197 = arith.maximumf %195, %196 : vector<4x64xf32>
    %c0_76 = arith.constant 0 : index
    %c0_77 = arith.constant 0 : index
    %c0_78 = arith.constant 0 : index
    %c0_79 = arith.constant 0 : index
    %198 = vector.load %arg6[%c0_76, %c0_77, %c0_78, %c0_79] : memref<3x2x64x32xf32, #tpu.memory_space<vmem>>, vector<1x1x64x32xf32>
    %199 = vector.shape_cast %198 : vector<1x1x64x32xf32> to vector<64x32xf32>
    %cst_80 = arith.constant dense<0.000000e+00> : vector<4x32xf32>
    %200 = tpu.matmul %197, %199, %cst_80 {dimension_numbers = #tpu.dot_dimension_numbers<[1], [0], [0], [1], [0, 0, 1, 1], [], []>} : vector<4x64xf32>, vector<64x32xf32>, vector<4x32xf32> -> vector<4x32xf32>
    %201 = vector.extract_strided_slice %5 {offsets = [0, 0], sizes = [1, 32], strides = [1, 1]} : vector<6x32xf32> to vector<1x32xf32>
    %202 = vector.broadcast %201 : vector<1x32xf32> to vector<4x32xf32>
    %203 = arith.addf %200, %202 : vector<4x32xf32>
    %204 = vector.extract_strided_slice %5 {offsets = [1, 0], sizes = [1, 32], strides = [1, 1]} : vector<6x32xf32> to vector<1x32xf32>
    %205 = vector.extract_strided_slice %5 {offsets = [2, 0], sizes = [1, 32], strides = [1, 1]} : vector<6x32xf32> to vector<1x32xf32>
    %cst_81 = arith.constant dense<0.000000e+00> : vector<4xf32>
    %206 = vector.multi_reduction <add>, %203, %cst_81 [1] : vector<4x32xf32> to vector<4xf32>
    %207 = vector.shape_cast %206 : vector<4xf32> to vector<4x1xf32>
    %cst_82 = arith.constant 3.200000e+01 : f32
    %208 = vector.broadcast %cst_82 : f32 to vector<4x1xf32>
    %209 = arith.divf %207, %208 : vector<4x1xf32>
    %210 = vector.broadcast %209 : vector<4x1xf32> to vector<4x32xf32>
    %211 = arith.subf %203, %210 : vector<4x32xf32>
    %212 = arith.mulf %211, %211 : vector<4x32xf32>
    %cst_83 = arith.constant dense<0.000000e+00> : vector<4xf32>
    %213 = vector.multi_reduction <add>, %212, %cst_83 [1] : vector<4x32xf32> to vector<4xf32>
    %214 = vector.shape_cast %213 : vector<4xf32> to vector<4x1xf32>
    %cst_84 = arith.constant 3.200000e+01 : f32
    %215 = vector.broadcast %cst_84 : f32 to vector<4x1xf32>
    %216 = arith.divf %214, %215 : vector<4x1xf32>
    %217 = vector.broadcast %209 : vector<4x1xf32> to vector<4x32xf32>
    %218 = arith.subf %203, %217 : vector<4x32xf32>
    %cst_85 = arith.constant 9.99999974E-6 : f32
    %219 = vector.broadcast %cst_85 : f32 to vector<4x1xf32>
    %220 = arith.addf %216, %219 : vector<4x1xf32>
    %221 = math.rsqrt %220 : vector<4x1xf32>
    %222 = vector.broadcast %221 : vector<4x1xf32> to vector<4x32xf32>
    %223 = arith.mulf %218, %222 : vector<4x32xf32>
    %224 = vector.broadcast %204 : vector<1x32xf32> to vector<4x32xf32>
    %225 = arith.mulf %223, %224 : vector<4x32xf32>
    %226 = vector.broadcast %205 : vector<1x32xf32> to vector<4x32xf32>
    %227 = arith.addf %225, %226 : vector<4x32xf32>
    %cst_86 = arith.constant 0.000000e+00 : f32
    %228 = vector.broadcast %cst_86 : f32 to vector<4x32xf32>
    %229 = arith.maximumf %227, %228 : vector<4x32xf32>
    %cst_87 = arith.constant dense<0.000000e+00> : vector<32xf32>
    %230 = vector.multi_reduction <add>, %229, %cst_87 [0] : vector<4x32xf32> to vector<32xf32>
    %231 = vector.shape_cast %230 : vector<32xf32> to vector<1x32xf32>
    %cst_88 = arith.constant 4.000000e+00 : f32
    %232 = vector.broadcast %cst_88 : f32 to vector<1x32xf32>
    %233 = arith.divf %231, %232 : vector<1x32xf32>
    %234 = vector.shape_cast %233 : vector<1x32xf32> to vector<1x32xf32>
    %235 = vector.broadcast %234 : vector<1x32xf32> to vector<4x32xf32>
    %c0_89 = arith.constant 0 : index
    %c0_90 = arith.constant 0 : index
    %c0_91 = arith.constant 0 : index
    %c0_92 = arith.constant 0 : index
    %236 = vector.load %arg7[%c0_89, %c0_90, %c0_91, %c0_92] : memref<3x2x32x64xf32, #tpu.memory_space<vmem>>, vector<1x1x32x64xf32>
    %237 = vector.shape_cast %236 : vector<1x1x32x64xf32> to vector<32x64xf32>
    %cst_93 = arith.constant dense<0.000000e+00> : vector<4x64xf32>
    %238 = tpu.matmul %235, %237, %cst_93 {dimension_numbers = #tpu.dot_dimension_numbers<[1], [0], [0], [1], [0, 0, 1, 1], [], []>} : vector<4x32xf32>, vector<32x64xf32>, vector<4x64xf32> -> vector<4x64xf32>
    %239 = vector.extract_strided_slice %3 {offsets = [13, 0], sizes = [1, 64], strides = [1, 1]} : vector<28x64xf32> to vector<1x64xf32>
    %240 = vector.broadcast %239 : vector<1x64xf32> to vector<4x64xf32>
    %241 = arith.addf %238, %240 : vector<4x64xf32>
    %242 = vector.extract_strided_slice %3 {offsets = [14, 0], sizes = [1, 64], strides = [1, 1]} : vector<28x64xf32> to vector<1x64xf32>
    %243 = vector.extract_strided_slice %3 {offsets = [15, 0], sizes = [1, 64], strides = [1, 1]} : vector<28x64xf32> to vector<1x64xf32>
    %cst_94 = arith.constant dense<0.000000e+00> : vector<4xf32>
    %244 = vector.multi_reduction <add>, %241, %cst_94 [1] : vector<4x64xf32> to vector<4xf32>
    %245 = vector.shape_cast %244 : vector<4xf32> to vector<4x1xf32>
    %cst_95 = arith.constant 6.400000e+01 : f32
    %246 = vector.broadcast %cst_95 : f32 to vector<4x1xf32>
    %247 = arith.divf %245, %246 : vector<4x1xf32>
    %248 = vector.broadcast %247 : vector<4x1xf32> to vector<4x64xf32>
    %249 = arith.subf %241, %248 : vector<4x64xf32>
    %250 = arith.mulf %249, %249 : vector<4x64xf32>
    %cst_96 = arith.constant dense<0.000000e+00> : vector<4xf32>
    %251 = vector.multi_reduction <add>, %250, %cst_96 [1] : vector<4x64xf32> to vector<4xf32>
    %252 = vector.shape_cast %251 : vector<4xf32> to vector<4x1xf32>
    %cst_97 = arith.constant 6.400000e+01 : f32
    %253 = vector.broadcast %cst_97 : f32 to vector<4x1xf32>
    %254 = arith.divf %252, %253 : vector<4x1xf32>
    %255 = vector.broadcast %247 : vector<4x1xf32> to vector<4x64xf32>
    %256 = arith.subf %241, %255 : vector<4x64xf32>
    %cst_98 = arith.constant 9.99999974E-6 : f32
    %257 = vector.broadcast %cst_98 : f32 to vector<4x1xf32>
    %258 = arith.addf %254, %257 : vector<4x1xf32>
    %259 = math.rsqrt %258 : vector<4x1xf32>
    %260 = vector.broadcast %259 : vector<4x1xf32> to vector<4x64xf32>
    %261 = arith.mulf %256, %260 : vector<4x64xf32>
    %262 = vector.broadcast %242 : vector<1x64xf32> to vector<4x64xf32>
    %263 = arith.mulf %261, %262 : vector<4x64xf32>
    %264 = vector.broadcast %243 : vector<1x64xf32> to vector<4x64xf32>
    %265 = arith.addf %263, %264 : vector<4x64xf32>
    %cst_99 = arith.constant 0.000000e+00 : f32
    %266 = vector.broadcast %cst_99 : f32 to vector<4x64xf32>
    %267 = arith.maximumf %265, %266 : vector<4x64xf32>
    %c0_100 = arith.constant 0 : index
    %c0_101 = arith.constant 0 : index
    %c0_102 = arith.constant 0 : index
    %c0_103 = arith.constant 0 : index
    %268 = vector.load %arg8[%c0_100, %c0_101, %c0_102, %c0_103] : memref<3x2x64x64xf32, #tpu.memory_space<vmem>>, vector<1x1x64x64xf32>
    %269 = vector.shape_cast %268 : vector<1x1x64x64xf32> to vector<64x64xf32>
    %cst_104 = arith.constant dense<0.000000e+00> : vector<4x64xf32>
    %270 = tpu.matmul %267, %269, %cst_104 {dimension_numbers = #tpu.dot_dimension_numbers<[1], [0], [0], [1], [0, 0, 1, 1], [], []>} : vector<4x64xf32>, vector<64x64xf32>, vector<4x64xf32> -> vector<4x64xf32>
    %271 = vector.extract_strided_slice %3 {offsets = [16, 0], sizes = [1, 64], strides = [1, 1]} : vector<28x64xf32> to vector<1x64xf32>
    %272 = vector.broadcast %271 : vector<1x64xf32> to vector<4x64xf32>
    %273 = arith.addf %270, %272 : vector<4x64xf32>
    %c0_105 = arith.constant 0 : index
    %c1_106 = arith.constant 1 : index
    %c0_107 = arith.constant 0 : index
    %c0_108 = arith.constant 0 : index
    %274 = vector.load %arg5[%c0_105, %c1_106, %c0_107, %c0_108] : memref<3x2x64x64xf32, #tpu.memory_space<vmem>>, vector<1x1x64x64xf32>
    %275 = vector.shape_cast %274 : vector<1x1x64x64xf32> to vector<64x64xf32>
    %cst_109 = arith.constant dense<0.000000e+00> : vector<4x64xf32>
    %276 = tpu.matmul %117, %275, %cst_109 {dimension_numbers = #tpu.dot_dimension_numbers<[1], [0], [0], [1], [0, 0, 1, 1], [], []>} : vector<4x64xf32>, vector<64x64xf32>, vector<4x64xf32> -> vector<4x64xf32>
    %277 = vector.extract_strided_slice %3 {offsets = [17, 0], sizes = [1, 64], strides = [1, 1]} : vector<28x64xf32> to vector<1x64xf32>
    %278 = vector.broadcast %277 : vector<1x64xf32> to vector<4x64xf32>
    %279 = arith.addf %276, %278 : vector<4x64xf32>
    %280 = vector.extract_strided_slice %3 {offsets = [18, 0], sizes = [1, 64], strides = [1, 1]} : vector<28x64xf32> to vector<1x64xf32>
    %281 = vector.extract_strided_slice %3 {offsets = [19, 0], sizes = [1, 64], strides = [1, 1]} : vector<28x64xf32> to vector<1x64xf32>
    %cst_110 = arith.constant dense<0.000000e+00> : vector<4xf32>
    %282 = vector.multi_reduction <add>, %279, %cst_110 [1] : vector<4x64xf32> to vector<4xf32>
    %283 = vector.shape_cast %282 : vector<4xf32> to vector<4x1xf32>
    %cst_111 = arith.constant 6.400000e+01 : f32
    %284 = vector.broadcast %cst_111 : f32 to vector<4x1xf32>
    %285 = arith.divf %283, %284 : vector<4x1xf32>
    %286 = vector.broadcast %285 : vector<4x1xf32> to vector<4x64xf32>
    %287 = arith.subf %279, %286 : vector<4x64xf32>
    %288 = arith.mulf %287, %287 : vector<4x64xf32>
    %cst_112 = arith.constant dense<0.000000e+00> : vector<4xf32>
    %289 = vector.multi_reduction <add>, %288, %cst_112 [1] : vector<4x64xf32> to vector<4xf32>
    %290 = vector.shape_cast %289 : vector<4xf32> to vector<4x1xf32>
    %cst_113 = arith.constant 6.400000e+01 : f32
    %291 = vector.broadcast %cst_113 : f32 to vector<4x1xf32>
    %292 = arith.divf %290, %291 : vector<4x1xf32>
    %293 = vector.broadcast %285 : vector<4x1xf32> to vector<4x64xf32>
    %294 = arith.subf %279, %293 : vector<4x64xf32>
    %cst_114 = arith.constant 9.99999974E-6 : f32
    %295 = vector.broadcast %cst_114 : f32 to vector<4x1xf32>
    %296 = arith.addf %292, %295 : vector<4x1xf32>
    %297 = math.rsqrt %296 : vector<4x1xf32>
    %298 = vector.broadcast %297 : vector<4x1xf32> to vector<4x64xf32>
    %299 = arith.mulf %294, %298 : vector<4x64xf32>
    %300 = vector.broadcast %280 : vector<1x64xf32> to vector<4x64xf32>
    %301 = arith.mulf %299, %300 : vector<4x64xf32>
    %302 = vector.broadcast %281 : vector<1x64xf32> to vector<4x64xf32>
    %303 = arith.addf %301, %302 : vector<4x64xf32>
    %cst_115 = arith.constant 0.000000e+00 : f32
    %304 = vector.broadcast %cst_115 : f32 to vector<4x64xf32>
    %305 = arith.maximumf %303, %304 : vector<4x64xf32>
    %c0_116 = arith.constant 0 : index
    %c1_117 = arith.constant 1 : index
    %c0_118 = arith.constant 0 : index
    %c0_119 = arith.constant 0 : index
    %306 = vector.load %arg6[%c0_116, %c1_117, %c0_118, %c0_119] : memref<3x2x64x32xf32, #tpu.memory_space<vmem>>, vector<1x1x64x32xf32>
    %307 = vector.shape_cast %306 : vector<1x1x64x32xf32> to vector<64x32xf32>
    %cst_120 = arith.constant dense<0.000000e+00> : vector<4x32xf32>
    %308 = tpu.matmul %305, %307, %cst_120 {dimension_numbers = #tpu.dot_dimension_numbers<[1], [0], [0], [1], [0, 0, 1, 1], [], []>} : vector<4x64xf32>, vector<64x32xf32>, vector<4x32xf32> -> vector<4x32xf32>
    %309 = vector.extract_strided_slice %5 {offsets = [3, 0], sizes = [1, 32], strides = [1, 1]} : vector<6x32xf32> to vector<1x32xf32>
    %310 = vector.broadcast %309 : vector<1x32xf32> to vector<4x32xf32>
    %311 = arith.addf %308, %310 : vector<4x32xf32>
    %312 = vector.extract_strided_slice %5 {offsets = [4, 0], sizes = [1, 32], strides = [1, 1]} : vector<6x32xf32> to vector<1x32xf32>
    %313 = vector.extract_strided_slice %5 {offsets = [5, 0], sizes = [1, 32], strides = [1, 1]} : vector<6x32xf32> to vector<1x32xf32>
    %cst_121 = arith.constant dense<0.000000e+00> : vector<4xf32>
    %314 = vector.multi_reduction <add>, %311, %cst_121 [1] : vector<4x32xf32> to vector<4xf32>
    %315 = vector.shape_cast %314 : vector<4xf32> to vector<4x1xf32>
    %cst_122 = arith.constant 3.200000e+01 : f32
    %316 = vector.broadcast %cst_122 : f32 to vector<4x1xf32>
    %317 = arith.divf %315, %316 : vector<4x1xf32>
    %318 = vector.broadcast %317 : vector<4x1xf32> to vector<4x32xf32>
    %319 = arith.subf %311, %318 : vector<4x32xf32>
    %320 = arith.mulf %319, %319 : vector<4x32xf32>
    %cst_123 = arith.constant dense<0.000000e+00> : vector<4xf32>
    %321 = vector.multi_reduction <add>, %320, %cst_123 [1] : vector<4x32xf32> to vector<4xf32>
    %322 = vector.shape_cast %321 : vector<4xf32> to vector<4x1xf32>
    %cst_124 = arith.constant 3.200000e+01 : f32
    %323 = vector.broadcast %cst_124 : f32 to vector<4x1xf32>
    %324 = arith.divf %322, %323 : vector<4x1xf32>
    %325 = vector.broadcast %317 : vector<4x1xf32> to vector<4x32xf32>
    %326 = arith.subf %311, %325 : vector<4x32xf32>
    %cst_125 = arith.constant 9.99999974E-6 : f32
    %327 = vector.broadcast %cst_125 : f32 to vector<4x1xf32>
    %328 = arith.addf %324, %327 : vector<4x1xf32>
    %329 = math.rsqrt %328 : vector<4x1xf32>
    %330 = vector.broadcast %329 : vector<4x1xf32> to vector<4x32xf32>
    %331 = arith.mulf %326, %330 : vector<4x32xf32>
    %332 = vector.broadcast %312 : vector<1x32xf32> to vector<4x32xf32>
    %333 = arith.mulf %331, %332 : vector<4x32xf32>
    %334 = vector.broadcast %313 : vector<1x32xf32> to vector<4x32xf32>
    %335 = arith.addf %333, %334 : vector<4x32xf32>
    %cst_126 = arith.constant 0.000000e+00 : f32
    %336 = vector.broadcast %cst_126 : f32 to vector<4x32xf32>
    %337 = arith.maximumf %335, %336 : vector<4x32xf32>
    %cst_127 = arith.constant dense<0.000000e+00> : vector<32xf32>
    %338 = vector.multi_reduction <add>, %337, %cst_127 [0] : vector<4x32xf32> to vector<32xf32>
    %339 = vector.shape_cast %338 : vector<32xf32> to vector<1x32xf32>
    %cst_128 = arith.constant 4.000000e+00 : f32
    %340 = vector.broadcast %cst_128 : f32 to vector<1x32xf32>
    %341 = arith.divf %339, %340 : vector<1x32xf32>
    %342 = vector.shape_cast %341 : vector<1x32xf32> to vector<1x32xf32>
    %343 = vector.broadcast %342 : vector<1x32xf32> to vector<4x32xf32>
    %c0_129 = arith.constant 0 : index
    %c1_130 = arith.constant 1 : index
    %c0_131 = arith.constant 0 : index
    %c0_132 = arith.constant 0 : index
    %344 = vector.load %arg7[%c0_129, %c1_130, %c0_131, %c0_132] : memref<3x2x32x64xf32, #tpu.memory_space<vmem>>, vector<1x1x32x64xf32>
    %345 = vector.shape_cast %344 : vector<1x1x32x64xf32> to vector<32x64xf32>
    %cst_133 = arith.constant dense<0.000000e+00> : vector<4x64xf32>
    %346 = tpu.matmul %343, %345, %cst_133 {dimension_numbers = #tpu.dot_dimension_numbers<[1], [0], [0], [1], [0, 0, 1, 1], [], []>} : vector<4x32xf32>, vector<32x64xf32>, vector<4x64xf32> -> vector<4x64xf32>
    %347 = vector.extract_strided_slice %3 {offsets = [20, 0], sizes = [1, 64], strides = [1, 1]} : vector<28x64xf32> to vector<1x64xf32>
    %348 = vector.broadcast %347 : vector<1x64xf32> to vector<4x64xf32>
    %349 = arith.addf %346, %348 : vector<4x64xf32>
    %350 = vector.extract_strided_slice %3 {offsets = [21, 0], sizes = [1, 64], strides = [1, 1]} : vector<28x64xf32> to vector<1x64xf32>
    %351 = vector.extract_strided_slice %3 {offsets = [22, 0], sizes = [1, 64], strides = [1, 1]} : vector<28x64xf32> to vector<1x64xf32>
    %cst_134 = arith.constant dense<0.000000e+00> : vector<4xf32>
    %352 = vector.multi_reduction <add>, %349, %cst_134 [1] : vector<4x64xf32> to vector<4xf32>
    %353 = vector.shape_cast %352 : vector<4xf32> to vector<4x1xf32>
    %cst_135 = arith.constant 6.400000e+01 : f32
    %354 = vector.broadcast %cst_135 : f32 to vector<4x1xf32>
    %355 = arith.divf %353, %354 : vector<4x1xf32>
    %356 = vector.broadcast %355 : vector<4x1xf32> to vector<4x64xf32>
    %357 = arith.subf %349, %356 : vector<4x64xf32>
    %358 = arith.mulf %357, %357 : vector<4x64xf32>
    %cst_136 = arith.constant dense<0.000000e+00> : vector<4xf32>
    %359 = vector.multi_reduction <add>, %358, %cst_136 [1] : vector<4x64xf32> to vector<4xf32>
    %360 = vector.shape_cast %359 : vector<4xf32> to vector<4x1xf32>
    %cst_137 = arith.constant 6.400000e+01 : f32
    %361 = vector.broadcast %cst_137 : f32 to vector<4x1xf32>
    %362 = arith.divf %360, %361 : vector<4x1xf32>
    %363 = vector.broadcast %355 : vector<4x1xf32> to vector<4x64xf32>
    %364 = arith.subf %349, %363 : vector<4x64xf32>
    %cst_138 = arith.constant 9.99999974E-6 : f32
    %365 = vector.broadcast %cst_138 : f32 to vector<4x1xf32>
    %366 = arith.addf %362, %365 : vector<4x1xf32>
    %367 = math.rsqrt %366 : vector<4x1xf32>
    %368 = vector.broadcast %367 : vector<4x1xf32> to vector<4x64xf32>
    %369 = arith.mulf %364, %368 : vector<4x64xf32>
    %370 = vector.broadcast %350 : vector<1x64xf32> to vector<4x64xf32>
    %371 = arith.mulf %369, %370 : vector<4x64xf32>
    %372 = vector.broadcast %351 : vector<1x64xf32> to vector<4x64xf32>
    %373 = arith.addf %371, %372 : vector<4x64xf32>
    %cst_139 = arith.constant 0.000000e+00 : f32
    %374 = vector.broadcast %cst_139 : f32 to vector<4x64xf32>
    %375 = arith.maximumf %373, %374 : vector<4x64xf32>
    %c0_140 = arith.constant 0 : index
    %c1_141 = arith.constant 1 : index
    %c0_142 = arith.constant 0 : index
    %c0_143 = arith.constant 0 : index
    %376 = vector.load %arg8[%c0_140, %c1_141, %c0_142, %c0_143] : memref<3x2x64x64xf32, #tpu.memory_space<vmem>>, vector<1x1x64x64xf32>
    %377 = vector.shape_cast %376 : vector<1x1x64x64xf32> to vector<64x64xf32>
    %cst_144 = arith.constant dense<0.000000e+00> : vector<4x64xf32>
    %378 = tpu.matmul %375, %377, %cst_144 {dimension_numbers = #tpu.dot_dimension_numbers<[1], [0], [0], [1], [0, 0, 1, 1], [], []>} : vector<4x64xf32>, vector<64x64xf32>, vector<4x64xf32> -> vector<4x64xf32>
    %379 = vector.extract_strided_slice %3 {offsets = [23, 0], sizes = [1, 64], strides = [1, 1]} : vector<28x64xf32> to vector<1x64xf32>
    %380 = vector.broadcast %379 : vector<1x64xf32> to vector<4x64xf32>
    %381 = arith.addf %378, %380 : vector<4x64xf32>
    %cst_145 = arith.constant dense<0.000000e+00> : vector<4x8xf32>
    %382 = tpu.matmul %273, %130, %cst_145 {dimension_numbers = #tpu.dot_dimension_numbers<[1], [1], [0], [0], [0, 0, 1, 0], [], []>} : vector<4x64xf32>, vector<8x64xf32>, vector<4x8xf32> -> vector<4x8xf32>
    %cst_146 = arith.constant 1.562500e-02 : f32
    %383 = vector.broadcast %cst_146 : f32 to vector<4x8xf32>
    %384 = arith.mulf %382, %383 : vector<4x8xf32>
    %cst_147 = arith.constant dense<0xFF800000> : vector<8xf32>
    %385 = vector.multi_reduction <maximumf>, %384, %cst_147 [0] : vector<4x8xf32> to vector<8xf32>
    %386 = vector.shape_cast %385 : vector<8xf32> to vector<1x8xf32>
    %387 = vector.broadcast %386 : vector<1x8xf32> to vector<4x8xf32>
    %388 = arith.subf %384, %387 : vector<4x8xf32>
    %389 = math.exp %388 : vector<4x8xf32>
    %cst_148 = arith.constant dense<0.000000e+00> : vector<8xf32>
    %390 = vector.multi_reduction <add>, %389, %cst_148 [0] : vector<4x8xf32> to vector<8xf32>
    %391 = vector.shape_cast %390 : vector<8xf32> to vector<1x8xf32>
    %392 = tpu.reciprocal %391 {approx = true} : vector<1x8xf32> -> vector<1x8xf32>
    %393 = vector.broadcast %392 : vector<1x8xf32> to vector<4x8xf32>
    %394 = arith.mulf %389, %393 : vector<4x8xf32>
    %cst_149 = arith.constant dense<0.000000e+00> : vector<4x64xf32>
    %395 = tpu.matmul %394, %131, %cst_149 {dimension_numbers = #tpu.dot_dimension_numbers<[1], [0], [0], [1], [0, 0, 1, 1], [], []>} : vector<4x8xf32>, vector<8x64xf32>, vector<4x64xf32> -> vector<4x64xf32>
    %cst_150 = arith.constant 1.562500e-02 : f32
    %396 = vector.broadcast %cst_150 : f32 to vector<4x64xf32>
    %397 = arith.mulf %395, %396 : vector<4x64xf32>
    %cst_151 = arith.constant dense<0.000000e+00> : vector<4x16xf32>
    %398 = tpu.matmul %381, %132, %cst_151 {dimension_numbers = #tpu.dot_dimension_numbers<[1], [1], [0], [0], [0, 0, 1, 0], [], []>} : vector<4x64xf32>, vector<16x64xf32>, vector<4x16xf32> -> vector<4x16xf32>
    %cst_152 = arith.constant 1.562500e-02 : f32
    %399 = vector.broadcast %cst_152 : f32 to vector<4x16xf32>
    %400 = arith.mulf %398, %399 : vector<4x16xf32>
    %cst_153 = arith.constant dense<0xFF800000> : vector<16xf32>
    %401 = vector.multi_reduction <maximumf>, %400, %cst_153 [0] : vector<4x16xf32> to vector<16xf32>
    %402 = vector.shape_cast %401 : vector<16xf32> to vector<1x16xf32>
    %403 = vector.broadcast %402 : vector<1x16xf32> to vector<4x16xf32>
    %404 = arith.subf %400, %403 : vector<4x16xf32>
    %405 = math.exp %404 : vector<4x16xf32>
    %cst_154 = arith.constant dense<0.000000e+00> : vector<16xf32>
    %406 = vector.multi_reduction <add>, %405, %cst_154 [0] : vector<4x16xf32> to vector<16xf32>
    %407 = vector.shape_cast %406 : vector<16xf32> to vector<1x16xf32>
    %408 = tpu.reciprocal %407 {approx = true} : vector<1x16xf32> -> vector<1x16xf32>
    %409 = vector.broadcast %408 : vector<1x16xf32> to vector<4x16xf32>
    %410 = arith.mulf %405, %409 : vector<4x16xf32>
    %cst_155 = arith.constant dense<0.000000e+00> : vector<4x64xf32>
    %411 = tpu.matmul %410, %133, %cst_155 {dimension_numbers = #tpu.dot_dimension_numbers<[1], [0], [0], [1], [0, 0, 1, 1], [], []>} : vector<4x16xf32>, vector<16x64xf32>, vector<4x64xf32> -> vector<4x64xf32>
    %cst_156 = arith.constant 1.562500e-02 : f32
    %412 = vector.broadcast %cst_156 : f32 to vector<4x64xf32>
    %413 = arith.mulf %411, %412 : vector<4x64xf32>
    %c0_157 = arith.constant 0 : index
    %c0_158 = arith.constant 0 : index
    %c0_159 = arith.constant 0 : index
    %c0_160 = arith.constant 0 : index
    %414 = vector.load %arg9[%c0_157, %c0_158, %c0_159, %c0_160] : memref<3x4x64x64xf32, #tpu.memory_space<vmem>>, vector<1x1x64x64xf32>
    %415 = vector.shape_cast %414 : vector<1x1x64x64xf32> to vector<64x64xf32>
    %cst_161 = arith.constant dense<0.000000e+00> : vector<4x64xf32>
    %416 = tpu.matmul %397, %415, %cst_161 {dimension_numbers = #tpu.dot_dimension_numbers<[1], [0], [0], [1], [0, 0, 1, 1], [], []>} : vector<4x64xf32>, vector<64x64xf32>, vector<4x64xf32> -> vector<4x64xf32>
    %417 = vector.extract_strided_slice %3 {offsets = [24, 0], sizes = [1, 64], strides = [1, 1]} : vector<28x64xf32> to vector<1x64xf32>
    %418 = vector.broadcast %417 : vector<1x64xf32> to vector<4x64xf32>
    %419 = arith.addf %416, %418 : vector<4x64xf32>
    %c0_162 = arith.constant 0 : index
    %c1_163 = arith.constant 1 : index
    %c0_164 = arith.constant 0 : index
    %c0_165 = arith.constant 0 : index
    %420 = vector.load %arg9[%c0_162, %c1_163, %c0_164, %c0_165] : memref<3x4x64x64xf32, #tpu.memory_space<vmem>>, vector<1x1x64x64xf32>
    %421 = vector.shape_cast %420 : vector<1x1x64x64xf32> to vector<64x64xf32>
    %cst_166 = arith.constant dense<0.000000e+00> : vector<4x64xf32>
    %422 = tpu.matmul %413, %421, %cst_166 {dimension_numbers = #tpu.dot_dimension_numbers<[1], [0], [0], [1], [0, 0, 1, 1], [], []>} : vector<4x64xf32>, vector<64x64xf32>, vector<4x64xf32> -> vector<4x64xf32>
    %423 = vector.extract_strided_slice %3 {offsets = [25, 0], sizes = [1, 64], strides = [1, 1]} : vector<28x64xf32> to vector<1x64xf32>
    %424 = vector.broadcast %423 : vector<1x64xf32> to vector<4x64xf32>
    %425 = arith.addf %422, %424 : vector<4x64xf32>
    %c0_167 = arith.constant 0 : index
    %c2 = arith.constant 2 : index
    %c0_168 = arith.constant 0 : index
    %c0_169 = arith.constant 0 : index
    %426 = vector.load %arg9[%c0_167, %c2, %c0_168, %c0_169] : memref<3x4x64x64xf32, #tpu.memory_space<vmem>>, vector<1x1x64x64xf32>
    %427 = vector.shape_cast %426 : vector<1x1x64x64xf32> to vector<64x64xf32>
    %cst_170 = arith.constant dense<0.000000e+00> : vector<4x64xf32>
    %428 = tpu.matmul %149, %427, %cst_170 {dimension_numbers = #tpu.dot_dimension_numbers<[1], [0], [0], [1], [0, 0, 1, 1], [], []>} : vector<4x64xf32>, vector<64x64xf32>, vector<4x64xf32> -> vector<4x64xf32>
    %429 = vector.extract_strided_slice %3 {offsets = [26, 0], sizes = [1, 64], strides = [1, 1]} : vector<28x64xf32> to vector<1x64xf32>
    %430 = vector.broadcast %429 : vector<1x64xf32> to vector<4x64xf32>
    %431 = arith.addf %428, %430 : vector<4x64xf32>
    %c0_171 = arith.constant 0 : index
    %c3 = arith.constant 3 : index
    %c0_172 = arith.constant 0 : index
    %c0_173 = arith.constant 0 : index
    %432 = vector.load %arg9[%c0_171, %c3, %c0_172, %c0_173] : memref<3x4x64x64xf32, #tpu.memory_space<vmem>>, vector<1x1x64x64xf32>
    %433 = vector.shape_cast %432 : vector<1x1x64x64xf32> to vector<64x64xf32>
    %cst_174 = arith.constant dense<0.000000e+00> : vector<4x64xf32>
    %434 = tpu.matmul %165, %433, %cst_174 {dimension_numbers = #tpu.dot_dimension_numbers<[1], [0], [0], [1], [0, 0, 1, 1], [], []>} : vector<4x64xf32>, vector<64x64xf32>, vector<4x64xf32> -> vector<4x64xf32>
    %435 = vector.extract_strided_slice %3 {offsets = [27, 0], sizes = [1, 64], strides = [1, 1]} : vector<28x64xf32> to vector<1x64xf32>
    %436 = vector.broadcast %435 : vector<1x64xf32> to vector<4x64xf32>
    %437 = arith.addf %434, %436 : vector<4x64xf32>
    %438 = tpu.concatenate %419, %425, %431, %437 in 1 : vector<4x64xf32>, vector<4x64xf32>, vector<4x64xf32>, vector<4x64xf32> -> vector<4x256xf32>
    %c0_175 = arith.constant 0 : index
    %c0_176 = arith.constant 0 : index
    %c0_177 = arith.constant 0 : index
    %439 = vector.load %arg17[%c0_175, %c0_176, %c0_177] : memref<3x4x256xf32, #tpu.memory_space<vmem>>, vector<1x4x256xf32>
    %440 = vector.shape_cast %439 : vector<1x4x256xf32> to vector<4x256xf32>
    %441 = vector.shape_cast %438 : vector<4x256xf32> to vector<1x4x256xf32>
    tpu.vector_store %arg17[%c0_175, %c0_176, %c0_177], %441 {strides = array<i32>} : memref<3x4x256xf32, #tpu.memory_space<vmem>>, vector<1x4x256xf32>,
    %c1_178 = arith.constant 1 : index
    %c0_179 = arith.constant 0 : index
    %c0_180 = arith.constant 0 : index
    %442 = vector.load %arg10[%c1_178, %c0_179, %c0_180] : memref<3x28x64xf32, #tpu.memory_space<vmem>>, vector<1x28x64xf32>
    %443 = vector.shape_cast %442 : vector<1x28x64xf32> to vector<28x64xf32>
    %c1_181 = arith.constant 1 : index
    %c0_182 = arith.constant 0 : index
    %c0_183 = arith.constant 0 : index
    %444 = vector.load %arg12[%c1_181, %c0_182, %c0_183] : memref<3x6x32xf32, #tpu.memory_space<vmem>>, vector<1x6x32xf32>
    %445 = vector.shape_cast %444 : vector<1x6x32xf32> to vector<6x32xf32>
    %c1_184 = arith.constant 1 : index
    %c0_185 = arith.constant 0 : index
    %c0_186 = arith.constant 0 : index
    %446 = vector.load %arg11[%c1_184, %c0_185, %c0_186] : memref<3x2x128xf32, #tpu.memory_space<vmem>>, vector<1x2x128xf32>
    %447 = vector.shape_cast %446 : vector<1x2x128xf32> to vector<2x128xf32>
    %c1_187 = arith.constant 1 : index
    %c0_188 = arith.constant 0 : index
    %c0_189 = arith.constant 0 : index
    %448 = vector.load %arg2[%c1_187, %c0_188, %c0_189] : memref<3x4x64xf32, #tpu.memory_space<vmem>>, vector<1x4x64xf32>
    %449 = vector.shape_cast %448 : vector<1x4x64xf32> to vector<4x64xf32>
    %450 = vector.extract_strided_slice %443 {offsets = [0, 0], sizes = [1, 64], strides = [1, 1]} : vector<28x64xf32> to vector<1x64xf32>
    %451 = vector.extract_strided_slice %443 {offsets = [1, 0], sizes = [1, 64], strides = [1, 1]} : vector<28x64xf32> to vector<1x64xf32>
    %cst_190 = arith.constant dense<0.000000e+00> : vector<4xf32>
    %452 = vector.multi_reduction <add>, %419, %cst_190 [1] : vector<4x64xf32> to vector<4xf32>
    %453 = vector.shape_cast %452 : vector<4xf32> to vector<4x1xf32>
    %cst_191 = arith.constant 6.400000e+01 : f32
    %454 = vector.broadcast %cst_191 : f32 to vector<4x1xf32>
    %455 = arith.divf %453, %454 : vector<4x1xf32>
    %456 = vector.broadcast %455 : vector<4x1xf32> to vector<4x64xf32>
    %457 = arith.subf %419, %456 : vector<4x64xf32>
    %458 = arith.mulf %457, %457 : vector<4x64xf32>
    %cst_192 = arith.constant dense<0.000000e+00> : vector<4xf32>
    %459 = vector.multi_reduction <add>, %458, %cst_192 [1] : vector<4x64xf32> to vector<4xf32>
    %460 = vector.shape_cast %459 : vector<4xf32> to vector<4x1xf32>
    %cst_193 = arith.constant 6.400000e+01 : f32
    %461 = vector.broadcast %cst_193 : f32 to vector<4x1xf32>
    %462 = arith.divf %460, %461 : vector<4x1xf32>
    %463 = vector.broadcast %455 : vector<4x1xf32> to vector<4x64xf32>
    %464 = arith.subf %419, %463 : vector<4x64xf32>
    %cst_194 = arith.constant 9.99999974E-6 : f32
    %465 = vector.broadcast %cst_194 : f32 to vector<4x1xf32>
    %466 = arith.addf %462, %465 : vector<4x1xf32>
    %467 = math.rsqrt %466 : vector<4x1xf32>
    %468 = vector.broadcast %467 : vector<4x1xf32> to vector<4x64xf32>
    %469 = arith.mulf %464, %468 : vector<4x64xf32>
    %470 = vector.broadcast %450 : vector<1x64xf32> to vector<4x64xf32>
    %471 = arith.mulf %469, %470 : vector<4x64xf32>
    %472 = vector.broadcast %451 : vector<1x64xf32> to vector<4x64xf32>
    %473 = arith.addf %471, %472 : vector<4x64xf32>
    %474 = vector.extract_strided_slice %443 {offsets = [2, 0], sizes = [1, 64], strides = [1, 1]} : vector<28x64xf32> to vector<1x64xf32>
    %475 = vector.extract_strided_slice %443 {offsets = [3, 0], sizes = [1, 64], strides = [1, 1]} : vector<28x64xf32> to vector<1x64xf32>
    %cst_195 = arith.constant dense<0.000000e+00> : vector<4xf32>
    %476 = vector.multi_reduction <add>, %425, %cst_195 [1] : vector<4x64xf32> to vector<4xf32>
    %477 = vector.shape_cast %476 : vector<4xf32> to vector<4x1xf32>
    %cst_196 = arith.constant 6.400000e+01 : f32
    %478 = vector.broadcast %cst_196 : f32 to vector<4x1xf32>
    %479 = arith.divf %477, %478 : vector<4x1xf32>
    %480 = vector.broadcast %479 : vector<4x1xf32> to vector<4x64xf32>
    %481 = arith.subf %425, %480 : vector<4x64xf32>
    %482 = arith.mulf %481, %481 : vector<4x64xf32>
    %cst_197 = arith.constant dense<0.000000e+00> : vector<4xf32>
    %483 = vector.multi_reduction <add>, %482, %cst_197 [1] : vector<4x64xf32> to vector<4xf32>
    %484 = vector.shape_cast %483 : vector<4xf32> to vector<4x1xf32>
    %cst_198 = arith.constant 6.400000e+01 : f32
    %485 = vector.broadcast %cst_198 : f32 to vector<4x1xf32>
    %486 = arith.divf %484, %485 : vector<4x1xf32>
    %487 = vector.broadcast %479 : vector<4x1xf32> to vector<4x64xf32>
    %488 = arith.subf %425, %487 : vector<4x64xf32>
    %cst_199 = arith.constant 9.99999974E-6 : f32
    %489 = vector.broadcast %cst_199 : f32 to vector<4x1xf32>
    %490 = arith.addf %486, %489 : vector<4x1xf32>
    %491 = math.rsqrt %490 : vector<4x1xf32>
    %492 = vector.broadcast %491 : vector<4x1xf32> to vector<4x64xf32>
    %493 = arith.mulf %488, %492 : vector<4x64xf32>
    %494 = vector.broadcast %474 : vector<1x64xf32> to vector<4x64xf32>
    %495 = arith.mulf %493, %494 : vector<4x64xf32>
    %496 = vector.broadcast %475 : vector<1x64xf32> to vector<4x64xf32>
    %497 = arith.addf %495, %496 : vector<4x64xf32>
    %498 = vector.extract_strided_slice %443 {offsets = [4, 0], sizes = [1, 64], strides = [1, 1]} : vector<28x64xf32> to vector<1x64xf32>
    %499 = vector.extract_strided_slice %443 {offsets = [5, 0], sizes = [1, 64], strides = [1, 1]} : vector<28x64xf32> to vector<1x64xf32>
    %cst_200 = arith.constant dense<0.000000e+00> : vector<4xf32>
    %500 = vector.multi_reduction <add>, %449, %cst_200 [1] : vector<4x64xf32> to vector<4xf32>
    %501 = vector.shape_cast %500 : vector<4xf32> to vector<4x1xf32>
    %cst_201 = arith.constant 6.400000e+01 : f32
    %502 = vector.broadcast %cst_201 : f32 to vector<4x1xf32>
    %503 = arith.divf %501, %502 : vector<4x1xf32>
    %504 = vector.broadcast %503 : vector<4x1xf32> to vector<4x64xf32>
    %505 = arith.subf %449, %504 : vector<4x64xf32>
    %506 = arith.mulf %505, %505 : vector<4x64xf32>
    %cst_202 = arith.constant dense<0.000000e+00> : vector<4xf32>
    %507 = vector.multi_reduction <add>, %506, %cst_202 [1] : vector<4x64xf32> to vector<4xf32>
    %508 = vector.shape_cast %507 : vector<4xf32> to vector<4x1xf32>
    %cst_203 = arith.constant 6.400000e+01 : f32
    %509 = vector.broadcast %cst_203 : f32 to vector<4x1xf32>
    %510 = arith.divf %508, %509 : vector<4x1xf32>
    %511 = vector.broadcast %503 : vector<4x1xf32> to vector<4x64xf32>
    %512 = arith.subf %449, %511 : vector<4x64xf32>
    %cst_204 = arith.constant 9.99999974E-6 : f32
    %513 = vector.broadcast %cst_204 : f32 to vector<4x1xf32>
    %514 = arith.addf %510, %513 : vector<4x1xf32>
    %515 = math.rsqrt %514 : vector<4x1xf32>
    %516 = vector.broadcast %515 : vector<4x1xf32> to vector<4x64xf32>
    %517 = arith.mulf %512, %516 : vector<4x64xf32>
    %518 = vector.broadcast %498 : vector<1x64xf32> to vector<4x64xf32>
    %519 = arith.mulf %517, %518 : vector<4x64xf32>
    %520 = vector.broadcast %499 : vector<1x64xf32> to vector<4x64xf32>
    %521 = arith.addf %519, %520 : vector<4x64xf32>
    %c1_205 = arith.constant 1 : index
    %c0_206 = arith.constant 0 : index
    %c0_207 = arith.constant 0 : index
    %c0_208 = arith.constant 0 : index
    %522 = vector.load %arg3[%c1_205, %c0_206, %c0_207, %c0_208] : memref<3x2x64x64xf32, #tpu.memory_space<vmem>>, vector<1x1x64x64xf32>
    %523 = vector.shape_cast %522 : vector<1x1x64x64xf32> to vector<64x64xf32>
    %cst_209 = arith.constant dense<0.000000e+00> : vector<4x64xf32>
    %524 = tpu.matmul %521, %523, %cst_209 {dimension_numbers = #tpu.dot_dimension_numbers<[1], [0], [0], [1], [0, 0, 1, 1], [], []>} : vector<4x64xf32>, vector<64x64xf32>, vector<4x64xf32> -> vector<4x64xf32>
    %525 = vector.extract_strided_slice %443 {offsets = [6, 0], sizes = [1, 64], strides = [1, 1]} : vector<28x64xf32> to vector<1x64xf32>
    %526 = vector.broadcast %525 : vector<1x64xf32> to vector<4x64xf32>
    %527 = arith.addf %524, %526 : vector<4x64xf32>
    %528 = vector.extract_strided_slice %443 {offsets = [7, 0], sizes = [1, 64], strides = [1, 1]} : vector<28x64xf32> to vector<1x64xf32>
    %529 = vector.extract_strided_slice %443 {offsets = [8, 0], sizes = [1, 64], strides = [1, 1]} : vector<28x64xf32> to vector<1x64xf32>
    %cst_210 = arith.constant dense<0.000000e+00> : vector<4xf32>
    %530 = vector.multi_reduction <add>, %449, %cst_210 [1] : vector<4x64xf32> to vector<4xf32>
    %531 = vector.shape_cast %530 : vector<4xf32> to vector<4x1xf32>
    %cst_211 = arith.constant 6.400000e+01 : f32
    %532 = vector.broadcast %cst_211 : f32 to vector<4x1xf32>
    %533 = arith.divf %531, %532 : vector<4x1xf32>
    %534 = vector.broadcast %533 : vector<4x1xf32> to vector<4x64xf32>
    %535 = arith.subf %449, %534 : vector<4x64xf32>
    %536 = arith.mulf %535, %535 : vector<4x64xf32>
    %cst_212 = arith.constant dense<0.000000e+00> : vector<4xf32>
    %537 = vector.multi_reduction <add>, %536, %cst_212 [1] : vector<4x64xf32> to vector<4xf32>
    %538 = vector.shape_cast %537 : vector<4xf32> to vector<4x1xf32>
    %cst_213 = arith.constant 6.400000e+01 : f32
    %539 = vector.broadcast %cst_213 : f32 to vector<4x1xf32>
    %540 = arith.divf %538, %539 : vector<4x1xf32>
    %541 = vector.broadcast %533 : vector<4x1xf32> to vector<4x64xf32>
    %542 = arith.subf %449, %541 : vector<4x64xf32>
    %cst_214 = arith.constant 9.99999974E-6 : f32
    %543 = vector.broadcast %cst_214 : f32 to vector<4x1xf32>
    %544 = arith.addf %540, %543 : vector<4x1xf32>
    %545 = math.rsqrt %544 : vector<4x1xf32>
    %546 = vector.broadcast %545 : vector<4x1xf32> to vector<4x64xf32>
    %547 = arith.mulf %542, %546 : vector<4x64xf32>
    %548 = vector.broadcast %528 : vector<1x64xf32> to vector<4x64xf32>
    %549 = arith.mulf %547, %548 : vector<4x64xf32>
    %550 = vector.broadcast %529 : vector<1x64xf32> to vector<4x64xf32>
    %551 = arith.addf %549, %550 : vector<4x64xf32>
    %c1_215 = arith.constant 1 : index
    %c1_216 = arith.constant 1 : index
    %c0_217 = arith.constant 0 : index
    %c0_218 = arith.constant 0 : index
    %552 = vector.load %arg3[%c1_215, %c1_216, %c0_217, %c0_218] : memref<3x2x64x64xf32, #tpu.memory_space<vmem>>, vector<1x1x64x64xf32>
    %553 = vector.shape_cast %552 : vector<1x1x64x64xf32> to vector<64x64xf32>
    %cst_219 = arith.constant dense<0.000000e+00> : vector<4x64xf32>
    %554 = tpu.matmul %551, %553, %cst_219 {dimension_numbers = #tpu.dot_dimension_numbers<[1], [0], [0], [1], [0, 0, 1, 1], [], []>} : vector<4x64xf32>, vector<64x64xf32>, vector<4x64xf32> -> vector<4x64xf32>
    %555 = vector.extract_strided_slice %443 {offsets = [9, 0], sizes = [1, 64], strides = [1, 1]} : vector<28x64xf32> to vector<1x64xf32>
    %556 = vector.broadcast %555 : vector<1x64xf32> to vector<4x64xf32>
    %557 = arith.addf %554, %556 : vector<4x64xf32>
    %c1_220 = arith.constant 1 : index
    %c0_221 = arith.constant 0 : index
    %c0_222 = arith.constant 0 : index
    %c0_223 = arith.constant 0 : index
    %558 = vector.load %arg4[%c1_220, %c0_221, %c0_222, %c0_223] : memref<3x2x64x128xf32, #tpu.memory_space<vmem>>, vector<1x1x64x128xf32>
    %559 = vector.shape_cast %558 : vector<1x1x64x128xf32> to vector<64x128xf32>
    %cst_224 = arith.constant dense<0.000000e+00> : vector<4x128xf32>
    %560 = tpu.matmul %473, %559, %cst_224 {dimension_numbers = #tpu.dot_dimension_numbers<[1], [0], [0], [1], [0, 0, 1, 1], [], []>} : vector<4x64xf32>, vector<64x128xf32>, vector<4x128xf32> -> vector<4x128xf32>
    %561 = vector.extract_strided_slice %447 {offsets = [0, 0], sizes = [1, 128], strides = [1, 1]} : vector<2x128xf32> to vector<1x128xf32>
    %562 = vector.broadcast %561 : vector<1x128xf32> to vector<4x128xf32>
    %563 = arith.addf %560, %562 : vector<4x128xf32>
    %c1_225 = arith.constant 1 : index
    %c1_226 = arith.constant 1 : index
    %c0_227 = arith.constant 0 : index
    %c0_228 = arith.constant 0 : index
    %564 = vector.load %arg4[%c1_225, %c1_226, %c0_227, %c0_228] : memref<3x2x64x128xf32, #tpu.memory_space<vmem>>, vector<1x1x64x128xf32>
    %565 = vector.shape_cast %564 : vector<1x1x64x128xf32> to vector<64x128xf32>
    %cst_229 = arith.constant dense<0.000000e+00> : vector<4x128xf32>
    %566 = tpu.matmul %497, %565, %cst_229 {dimension_numbers = #tpu.dot_dimension_numbers<[1], [0], [0], [1], [0, 0, 1, 1], [], []>} : vector<4x64xf32>, vector<64x128xf32>, vector<4x128xf32> -> vector<4x128xf32>
    %567 = vector.extract_strided_slice %447 {offsets = [1, 0], sizes = [1, 128], strides = [1, 1]} : vector<2x128xf32> to vector<1x128xf32>
    %568 = vector.broadcast %567 : vector<1x128xf32> to vector<4x128xf32>
    %569 = arith.addf %566, %568 : vector<4x128xf32>
    %570 = vector.extract_strided_slice %563 {offsets = [0, 0], sizes = [4, 64], strides = [1, 1]} : vector<4x128xf32> to vector<4x64xf32>
    %571 = vector.extract_strided_slice %563 {offsets = [0, 64], sizes = [4, 64], strides = [1, 1]} : vector<4x128xf32> to vector<4x64xf32>
    %572 = vector.extract_strided_slice %569 {offsets = [0, 0], sizes = [4, 64], strides = [1, 1]} : vector<4x128xf32> to vector<4x64xf32>
    %573 = vector.extract_strided_slice %569 {offsets = [0, 64], sizes = [4, 64], strides = [1, 1]} : vector<4x128xf32> to vector<4x64xf32>
    %cst_230 = arith.constant dense<0.000000e+00> : vector<4x4xf32>
    %574 = tpu.matmul %527, %570, %cst_230 {dimension_numbers = #tpu.dot_dimension_numbers<[1], [1], [0], [0], [0, 0, 1, 0], [], []>} : vector<4x64xf32>, vector<4x64xf32>, vector<4x4xf32> -> vector<4x4xf32>
    %cst_231 = arith.constant 1.562500e-02 : f32
    %575 = vector.broadcast %cst_231 : f32 to vector<4x4xf32>
    %576 = arith.mulf %574, %575 : vector<4x4xf32>
    %cst_232 = arith.constant dense<0xFF800000> : vector<4xf32>
    %577 = vector.multi_reduction <maximumf>, %576, %cst_232 [0] : vector<4x4xf32> to vector<4xf32>
    %578 = vector.shape_cast %577 : vector<4xf32> to vector<1x4xf32>
    %579 = vector.broadcast %578 : vector<1x4xf32> to vector<4x4xf32>
    %580 = arith.subf %576, %579 : vector<4x4xf32>
    %581 = math.exp %580 : vector<4x4xf32>
    %cst_233 = arith.constant dense<0.000000e+00> : vector<4xf32>
    %582 = vector.multi_reduction <add>, %581, %cst_233 [0] : vector<4x4xf32> to vector<4xf32>
    %583 = vector.shape_cast %582 : vector<4xf32> to vector<1x4xf32>
    %584 = tpu.reciprocal %583 {approx = true} : vector<1x4xf32> -> vector<1x4xf32>
    %585 = vector.broadcast %584 : vector<1x4xf32> to vector<4x4xf32>
    %586 = arith.mulf %581, %585 : vector<4x4xf32>
    %cst_234 = arith.constant dense<0.000000e+00> : vector<4x64xf32>
    %587 = tpu.matmul %586, %571, %cst_234 {dimension_numbers = #tpu.dot_dimension_numbers<[1], [0], [0], [1], [0, 0, 1, 1], [], []>} : vector<4x4xf32>, vector<4x64xf32>, vector<4x64xf32> -> vector<4x64xf32>
    %cst_235 = arith.constant 1.562500e-02 : f32
    %588 = vector.broadcast %cst_235 : f32 to vector<4x64xf32>
    %589 = arith.mulf %587, %588 : vector<4x64xf32>
    %cst_236 = arith.constant dense<0.000000e+00> : vector<4x4xf32>
    %590 = tpu.matmul %557, %572, %cst_236 {dimension_numbers = #tpu.dot_dimension_numbers<[1], [1], [0], [0], [0, 0, 1, 0], [], []>} : vector<4x64xf32>, vector<4x64xf32>, vector<4x4xf32> -> vector<4x4xf32>
    %cst_237 = arith.constant 1.562500e-02 : f32
    %591 = vector.broadcast %cst_237 : f32 to vector<4x4xf32>
    %592 = arith.mulf %590, %591 : vector<4x4xf32>
    %cst_238 = arith.constant dense<0xFF800000> : vector<4xf32>
    %593 = vector.multi_reduction <maximumf>, %592, %cst_238 [0] : vector<4x4xf32> to vector<4xf32>
    %594 = vector.shape_cast %593 : vector<4xf32> to vector<1x4xf32>
    %595 = vector.broadcast %594 : vector<1x4xf32> to vector<4x4xf32>
    %596 = arith.subf %592, %595 : vector<4x4xf32>
    %597 = math.exp %596 : vector<4x4xf32>
    %cst_239 = arith.constant dense<0.000000e+00> : vector<4xf32>
    %598 = vector.multi_reduction <add>, %597, %cst_239 [0] : vector<4x4xf32> to vector<4xf32>
    %599 = vector.shape_cast %598 : vector<4xf32> to vector<1x4xf32>
    %600 = tpu.reciprocal %599 {approx = true} : vector<1x4xf32> -> vector<1x4xf32>
    %601 = vector.broadcast %600 : vector<1x4xf32> to vector<4x4xf32>
    %602 = arith.mulf %597, %601 : vector<4x4xf32>
    %cst_240 = arith.constant dense<0.000000e+00> : vector<4x64xf32>
    %603 = tpu.matmul %602, %573, %cst_240 {dimension_numbers = #tpu.dot_dimension_numbers<[1], [0], [0], [1], [0, 0, 1, 1], [], []>} : vector<4x4xf32>, vector<4x64xf32>, vector<4x64xf32> -> vector<4x64xf32>
    %cst_241 = arith.constant 1.562500e-02 : f32
    %604 = vector.broadcast %cst_241 : f32 to vector<4x64xf32>
    %605 = arith.mulf %603, %604 : vector<4x64xf32>
    %c1_242 = arith.constant 1 : index
    %c0_243 = arith.constant 0 : index
    %c0_244 = arith.constant 0 : index
    %c0_245 = arith.constant 0 : index
    %606 = vector.load %arg5[%c1_242, %c0_243, %c0_244, %c0_245] : memref<3x2x64x64xf32, #tpu.memory_space<vmem>>, vector<1x1x64x64xf32>
    %607 = vector.shape_cast %606 : vector<1x1x64x64xf32> to vector<64x64xf32>
    %cst_246 = arith.constant dense<0.000000e+00> : vector<4x64xf32>
    %608 = tpu.matmul %527, %607, %cst_246 {dimension_numbers = #tpu.dot_dimension_numbers<[1], [0], [0], [1], [0, 0, 1, 1], [], []>} : vector<4x64xf32>, vector<64x64xf32>, vector<4x64xf32> -> vector<4x64xf32>
    %609 = vector.extract_strided_slice %443 {offsets = [10, 0], sizes = [1, 64], strides = [1, 1]} : vector<28x64xf32> to vector<1x64xf32>
    %610 = vector.broadcast %609 : vector<1x64xf32> to vector<4x64xf32>
    %611 = arith.addf %608, %610 : vector<4x64xf32>
    %612 = vector.extract_strided_slice %443 {offsets = [11, 0], sizes = [1, 64], strides = [1, 1]} : vector<28x64xf32> to vector<1x64xf32>
    %613 = vector.extract_strided_slice %443 {offsets = [12, 0], sizes = [1, 64], strides = [1, 1]} : vector<28x64xf32> to vector<1x64xf32>
    %cst_247 = arith.constant dense<0.000000e+00> : vector<4xf32>
    %614 = vector.multi_reduction <add>, %611, %cst_247 [1] : vector<4x64xf32> to vector<4xf32>
    %615 = vector.shape_cast %614 : vector<4xf32> to vector<4x1xf32>
    %cst_248 = arith.constant 6.400000e+01 : f32
    %616 = vector.broadcast %cst_248 : f32 to vector<4x1xf32>
    %617 = arith.divf %615, %616 : vector<4x1xf32>
    %618 = vector.broadcast %617 : vector<4x1xf32> to vector<4x64xf32>
    %619 = arith.subf %611, %618 : vector<4x64xf32>
    %620 = arith.mulf %619, %619 : vector<4x64xf32>
    %cst_249 = arith.constant dense<0.000000e+00> : vector<4xf32>
    %621 = vector.multi_reduction <add>, %620, %cst_249 [1] : vector<4x64xf32> to vector<4xf32>
    %622 = vector.shape_cast %621 : vector<4xf32> to vector<4x1xf32>
    %cst_250 = arith.constant 6.400000e+01 : f32
    %623 = vector.broadcast %cst_250 : f32 to vector<4x1xf32>
    %624 = arith.divf %622, %623 : vector<4x1xf32>
    %625 = vector.broadcast %617 : vector<4x1xf32> to vector<4x64xf32>
    %626 = arith.subf %611, %625 : vector<4x64xf32>
    %cst_251 = arith.constant 9.99999974E-6 : f32
    %627 = vector.broadcast %cst_251 : f32 to vector<4x1xf32>
    %628 = arith.addf %624, %627 : vector<4x1xf32>
    %629 = math.rsqrt %628 : vector<4x1xf32>
    %630 = vector.broadcast %629 : vector<4x1xf32> to vector<4x64xf32>
    %631 = arith.mulf %626, %630 : vector<4x64xf32>
    %632 = vector.broadcast %612 : vector<1x64xf32> to vector<4x64xf32>
    %633 = arith.mulf %631, %632 : vector<4x64xf32>
    %634 = vector.broadcast %613 : vector<1x64xf32> to vector<4x64xf32>
    %635 = arith.addf %633, %634 : vector<4x64xf32>
    %cst_252 = arith.constant 0.000000e+00 : f32
    %636 = vector.broadcast %cst_252 : f32 to vector<4x64xf32>
    %637 = arith.maximumf %635, %636 : vector<4x64xf32>
    %c1_253 = arith.constant 1 : index
    %c0_254 = arith.constant 0 : index
    %c0_255 = arith.constant 0 : index
    %c0_256 = arith.constant 0 : index
    %638 = vector.load %arg6[%c1_253, %c0_254, %c0_255, %c0_256] : memref<3x2x64x32xf32, #tpu.memory_space<vmem>>, vector<1x1x64x32xf32>
    %639 = vector.shape_cast %638 : vector<1x1x64x32xf32> to vector<64x32xf32>
    %cst_257 = arith.constant dense<0.000000e+00> : vector<4x32xf32>
    %640 = tpu.matmul %637, %639, %cst_257 {dimension_numbers = #tpu.dot_dimension_numbers<[1], [0], [0], [1], [0, 0, 1, 1], [], []>} : vector<4x64xf32>, vector<64x32xf32>, vector<4x32xf32> -> vector<4x32xf32>
    %641 = vector.extract_strided_slice %445 {offsets = [0, 0], sizes = [1, 32], strides = [1, 1]} : vector<6x32xf32> to vector<1x32xf32>
    %642 = vector.broadcast %641 : vector<1x32xf32> to vector<4x32xf32>
    %643 = arith.addf %640, %642 : vector<4x32xf32>
    %644 = vector.extract_strided_slice %445 {offsets = [1, 0], sizes = [1, 32], strides = [1, 1]} : vector<6x32xf32> to vector<1x32xf32>
    %645 = vector.extract_strided_slice %445 {offsets = [2, 0], sizes = [1, 32], strides = [1, 1]} : vector<6x32xf32> to vector<1x32xf32>
    %cst_258 = arith.constant dense<0.000000e+00> : vector<4xf32>
    %646 = vector.multi_reduction <add>, %643, %cst_258 [1] : vector<4x32xf32> to vector<4xf32>
    %647 = vector.shape_cast %646 : vector<4xf32> to vector<4x1xf32>
    %cst_259 = arith.constant 3.200000e+01 : f32
    %648 = vector.broadcast %cst_259 : f32 to vector<4x1xf32>
    %649 = arith.divf %647, %648 : vector<4x1xf32>
    %650 = vector.broadcast %649 : vector<4x1xf32> to vector<4x32xf32>
    %651 = arith.subf %643, %650 : vector<4x32xf32>
    %652 = arith.mulf %651, %651 : vector<4x32xf32>
    %cst_260 = arith.constant dense<0.000000e+00> : vector<4xf32>
    %653 = vector.multi_reduction <add>, %652, %cst_260 [1] : vector<4x32xf32> to vector<4xf32>
    %654 = vector.shape_cast %653 : vector<4xf32> to vector<4x1xf32>
    %cst_261 = arith.constant 3.200000e+01 : f32
    %655 = vector.broadcast %cst_261 : f32 to vector<4x1xf32>
    %656 = arith.divf %654, %655 : vector<4x1xf32>
    %657 = vector.broadcast %649 : vector<4x1xf32> to vector<4x32xf32>
    %658 = arith.subf %643, %657 : vector<4x32xf32>
    %cst_262 = arith.constant 9.99999974E-6 : f32
    %659 = vector.broadcast %cst_262 : f32 to vector<4x1xf32>
    %660 = arith.addf %656, %659 : vector<4x1xf32>
    %661 = math.rsqrt %660 : vector<4x1xf32>
    %662 = vector.broadcast %661 : vector<4x1xf32> to vector<4x32xf32>
    %663 = arith.mulf %658, %662 : vector<4x32xf32>
    %664 = vector.broadcast %644 : vector<1x32xf32> to vector<4x32xf32>
    %665 = arith.mulf %663, %664 : vector<4x32xf32>
    %666 = vector.broadcast %645 : vector<1x32xf32> to vector<4x32xf32>
    %667 = arith.addf %665, %666 : vector<4x32xf32>
    %cst_263 = arith.constant 0.000000e+00 : f32
    %668 = vector.broadcast %cst_263 : f32 to vector<4x32xf32>
    %669 = arith.maximumf %667, %668 : vector<4x32xf32>
    %cst_264 = arith.constant dense<0.000000e+00> : vector<32xf32>
    %670 = vector.multi_reduction <add>, %669, %cst_264 [0] : vector<4x32xf32> to vector<32xf32>
    %671 = vector.shape_cast %670 : vector<32xf32> to vector<1x32xf32>
    %cst_265 = arith.constant 4.000000e+00 : f32
    %672 = vector.broadcast %cst_265 : f32 to vector<1x32xf32>
    %673 = arith.divf %671, %672 : vector<1x32xf32>
    %674 = vector.shape_cast %673 : vector<1x32xf32> to vector<1x32xf32>
    %675 = vector.broadcast %674 : vector<1x32xf32> to vector<4x32xf32>
    %c1_266 = arith.constant 1 : index
    %c0_267 = arith.constant 0 : index
    %c0_268 = arith.constant 0 : index
    %c0_269 = arith.constant 0 : index
    %676 = vector.load %arg7[%c1_266, %c0_267, %c0_268, %c0_269] : memref<3x2x32x64xf32, #tpu.memory_space<vmem>>, vector<1x1x32x64xf32>
    %677 = vector.shape_cast %676 : vector<1x1x32x64xf32> to vector<32x64xf32>
    %cst_270 = arith.constant dense<0.000000e+00> : vector<4x64xf32>
    %678 = tpu.matmul %675, %677, %cst_270 {dimension_numbers = #tpu.dot_dimension_numbers<[1], [0], [0], [1], [0, 0, 1, 1], [], []>} : vector<4x32xf32>, vector<32x64xf32>, vector<4x64xf32> -> vector<4x64xf32>
    %679 = vector.extract_strided_slice %443 {offsets = [13, 0], sizes = [1, 64], strides = [1, 1]} : vector<28x64xf32> to vector<1x64xf32>
    %680 = vector.broadcast %679 : vector<1x64xf32> to vector<4x64xf32>
    %681 = arith.addf %678, %680 : vector<4x64xf32>
    %682 = vector.extract_strided_slice %443 {offsets = [14, 0], sizes = [1, 64], strides = [1, 1]} : vector<28x64xf32> to vector<1x64xf32>
    %683 = vector.extract_strided_slice %443 {offsets = [15, 0], sizes = [1, 64], strides = [1, 1]} : vector<28x64xf32> to vector<1x64xf32>
    %cst_271 = arith.constant dense<0.000000e+00> : vector<4xf32>
    %684 = vector.multi_reduction <add>, %681, %cst_271 [1] : vector<4x64xf32> to vector<4xf32>
    %685 = vector.shape_cast %684 : vector<4xf32> to vector<4x1xf32>
    %cst_272 = arith.constant 6.400000e+01 : f32
    %686 = vector.broadcast %cst_272 : f32 to vector<4x1xf32>
    %687 = arith.divf %685, %686 : vector<4x1xf32>
    %688 = vector.broadcast %687 : vector<4x1xf32> to vector<4x64xf32>
    %689 = arith.subf %681, %688 : vector<4x64xf32>
    %690 = arith.mulf %689, %689 : vector<4x64xf32>
    %cst_273 = arith.constant dense<0.000000e+00> : vector<4xf32>
    %691 = vector.multi_reduction <add>, %690, %cst_273 [1] : vector<4x64xf32> to vector<4xf32>
    %692 = vector.shape_cast %691 : vector<4xf32> to vector<4x1xf32>
    %cst_274 = arith.constant 6.400000e+01 : f32
    %693 = vector.broadcast %cst_274 : f32 to vector<4x1xf32>
    %694 = arith.divf %692, %693 : vector<4x1xf32>
    %695 = vector.broadcast %687 : vector<4x1xf32> to vector<4x64xf32>
    %696 = arith.subf %681, %695 : vector<4x64xf32>
    %cst_275 = arith.constant 9.99999974E-6 : f32
    %697 = vector.broadcast %cst_275 : f32 to vector<4x1xf32>
    %698 = arith.addf %694, %697 : vector<4x1xf32>
    %699 = math.rsqrt %698 : vector<4x1xf32>
    %700 = vector.broadcast %699 : vector<4x1xf32> to vector<4x64xf32>
    %701 = arith.mulf %696, %700 : vector<4x64xf32>
    %702 = vector.broadcast %682 : vector<1x64xf32> to vector<4x64xf32>
    %703 = arith.mulf %701, %702 : vector<4x64xf32>
    %704 = vector.broadcast %683 : vector<1x64xf32> to vector<4x64xf32>
    %705 = arith.addf %703, %704 : vector<4x64xf32>
    %cst_276 = arith.constant 0.000000e+00 : f32
    %706 = vector.broadcast %cst_276 : f32 to vector<4x64xf32>
    %707 = arith.maximumf %705, %706 : vector<4x64xf32>
    %c1_277 = arith.constant 1 : index
    %c0_278 = arith.constant 0 : index
    %c0_279 = arith.constant 0 : index
    %c0_280 = arith.constant 0 : index
    %708 = vector.load %arg8[%c1_277, %c0_278, %c0_279, %c0_280] : memref<3x2x64x64xf32, #tpu.memory_space<vmem>>, vector<1x1x64x64xf32>
    %709 = vector.shape_cast %708 : vector<1x1x64x64xf32> to vector<64x64xf32>
    %cst_281 = arith.constant dense<0.000000e+00> : vector<4x64xf32>
    %710 = tpu.matmul %707, %709, %cst_281 {dimension_numbers = #tpu.dot_dimension_numbers<[1], [0], [0], [1], [0, 0, 1, 1], [], []>} : vector<4x64xf32>, vector<64x64xf32>, vector<4x64xf32> -> vector<4x64xf32>
    %711 = vector.extract_strided_slice %443 {offsets = [16, 0], sizes = [1, 64], strides = [1, 1]} : vector<28x64xf32> to vector<1x64xf32>
    %712 = vector.broadcast %711 : vector<1x64xf32> to vector<4x64xf32>
    %713 = arith.addf %710, %712 : vector<4x64xf32>
    %c1_282 = arith.constant 1 : index
    %c1_283 = arith.constant 1 : index
    %c0_284 = arith.constant 0 : index
    %c0_285 = arith.constant 0 : index
    %714 = vector.load %arg5[%c1_282, %c1_283, %c0_284, %c0_285] : memref<3x2x64x64xf32, #tpu.memory_space<vmem>>, vector<1x1x64x64xf32>
    %715 = vector.shape_cast %714 : vector<1x1x64x64xf32> to vector<64x64xf32>
    %cst_286 = arith.constant dense<0.000000e+00> : vector<4x64xf32>
    %716 = tpu.matmul %557, %715, %cst_286 {dimension_numbers = #tpu.dot_dimension_numbers<[1], [0], [0], [1], [0, 0, 1, 1], [], []>} : vector<4x64xf32>, vector<64x64xf32>, vector<4x64xf32> -> vector<4x64xf32>
    %717 = vector.extract_strided_slice %443 {offsets = [17, 0], sizes = [1, 64], strides = [1, 1]} : vector<28x64xf32> to vector<1x64xf32>
    %718 = vector.broadcast %717 : vector<1x64xf32> to vector<4x64xf32>
    %719 = arith.addf %716, %718 : vector<4x64xf32>
    %720 = vector.extract_strided_slice %443 {offsets = [18, 0], sizes = [1, 64], strides = [1, 1]} : vector<28x64xf32> to vector<1x64xf32>
    %721 = vector.extract_strided_slice %443 {offsets = [19, 0], sizes = [1, 64], strides = [1, 1]} : vector<28x64xf32> to vector<1x64xf32>
    %cst_287 = arith.constant dense<0.000000e+00> : vector<4xf32>
    %722 = vector.multi_reduction <add>, %719, %cst_287 [1] : vector<4x64xf32> to vector<4xf32>
    %723 = vector.shape_cast %722 : vector<4xf32> to vector<4x1xf32>
    %cst_288 = arith.constant 6.400000e+01 : f32
    %724 = vector.broadcast %cst_288 : f32 to vector<4x1xf32>
    %725 = arith.divf %723, %724 : vector<4x1xf32>
    %726 = vector.broadcast %725 : vector<4x1xf32> to vector<4x64xf32>
    %727 = arith.subf %719, %726 : vector<4x64xf32>
    %728 = arith.mulf %727, %727 : vector<4x64xf32>
    %cst_289 = arith.constant dense<0.000000e+00> : vector<4xf32>
    %729 = vector.multi_reduction <add>, %728, %cst_289 [1] : vector<4x64xf32> to vector<4xf32>
    %730 = vector.shape_cast %729 : vector<4xf32> to vector<4x1xf32>
    %cst_290 = arith.constant 6.400000e+01 : f32
    %731 = vector.broadcast %cst_290 : f32 to vector<4x1xf32>
    %732 = arith.divf %730, %731 : vector<4x1xf32>
    %733 = vector.broadcast %725 : vector<4x1xf32> to vector<4x64xf32>
    %734 = arith.subf %719, %733 : vector<4x64xf32>
    %cst_291 = arith.constant 9.99999974E-6 : f32
    %735 = vector.broadcast %cst_291 : f32 to vector<4x1xf32>
    %736 = arith.addf %732, %735 : vector<4x1xf32>
    %737 = math.rsqrt %736 : vector<4x1xf32>
    %738 = vector.broadcast %737 : vector<4x1xf32> to vector<4x64xf32>
    %739 = arith.mulf %734, %738 : vector<4x64xf32>
    %740 = vector.broadcast %720 : vector<1x64xf32> to vector<4x64xf32>
    %741 = arith.mulf %739, %740 : vector<4x64xf32>
    %742 = vector.broadcast %721 : vector<1x64xf32> to vector<4x64xf32>
    %743 = arith.addf %741, %742 : vector<4x64xf32>
    %cst_292 = arith.constant 0.000000e+00 : f32
    %744 = vector.broadcast %cst_292 : f32 to vector<4x64xf32>
    %745 = arith.maximumf %743, %744 : vector<4x64xf32>
    %c1_293 = arith.constant 1 : index
    %c1_294 = arith.constant 1 : index
    %c0_295 = arith.constant 0 : index
    %c0_296 = arith.constant 0 : index
    %746 = vector.load %arg6[%c1_293, %c1_294, %c0_295, %c0_296] : memref<3x2x64x32xf32, #tpu.memory_space<vmem>>, vector<1x1x64x32xf32>
    %747 = vector.shape_cast %746 : vector<1x1x64x32xf32> to vector<64x32xf32>
    %cst_297 = arith.constant dense<0.000000e+00> : vector<4x32xf32>
    %748 = tpu.matmul %745, %747, %cst_297 {dimension_numbers = #tpu.dot_dimension_numbers<[1], [0], [0], [1], [0, 0, 1, 1], [], []>} : vector<4x64xf32>, vector<64x32xf32>, vector<4x32xf32> -> vector<4x32xf32>
    %749 = vector.extract_strided_slice %445 {offsets = [3, 0], sizes = [1, 32], strides = [1, 1]} : vector<6x32xf32> to vector<1x32xf32>
    %750 = vector.broadcast %749 : vector<1x32xf32> to vector<4x32xf32>
    %751 = arith.addf %748, %750 : vector<4x32xf32>
    %752 = vector.extract_strided_slice %445 {offsets = [4, 0], sizes = [1, 32], strides = [1, 1]} : vector<6x32xf32> to vector<1x32xf32>
    %753 = vector.extract_strided_slice %445 {offsets = [5, 0], sizes = [1, 32], strides = [1, 1]} : vector<6x32xf32> to vector<1x32xf32>
    %cst_298 = arith.constant dense<0.000000e+00> : vector<4xf32>
    %754 = vector.multi_reduction <add>, %751, %cst_298 [1] : vector<4x32xf32> to vector<4xf32>
    %755 = vector.shape_cast %754 : vector<4xf32> to vector<4x1xf32>
    %cst_299 = arith.constant 3.200000e+01 : f32
    %756 = vector.broadcast %cst_299 : f32 to vector<4x1xf32>
    %757 = arith.divf %755, %756 : vector<4x1xf32>
    %758 = vector.broadcast %757 : vector<4x1xf32> to vector<4x32xf32>
    %759 = arith.subf %751, %758 : vector<4x32xf32>
    %760 = arith.mulf %759, %759 : vector<4x32xf32>
    %cst_300 = arith.constant dense<0.000000e+00> : vector<4xf32>
    %761 = vector.multi_reduction <add>, %760, %cst_300 [1] : vector<4x32xf32> to vector<4xf32>
    %762 = vector.shape_cast %761 : vector<4xf32> to vector<4x1xf32>
    %cst_301 = arith.constant 3.200000e+01 : f32
    %763 = vector.broadcast %cst_301 : f32 to vector<4x1xf32>
    %764 = arith.divf %762, %763 : vector<4x1xf32>
    %765 = vector.broadcast %757 : vector<4x1xf32> to vector<4x32xf32>
    %766 = arith.subf %751, %765 : vector<4x32xf32>
    %cst_302 = arith.constant 9.99999974E-6 : f32
    %767 = vector.broadcast %cst_302 : f32 to vector<4x1xf32>
    %768 = arith.addf %764, %767 : vector<4x1xf32>
    %769 = math.rsqrt %768 : vector<4x1xf32>
    %770 = vector.broadcast %769 : vector<4x1xf32> to vector<4x32xf32>
    %771 = arith.mulf %766, %770 : vector<4x32xf32>
    %772 = vector.broadcast %752 : vector<1x32xf32> to vector<4x32xf32>
    %773 = arith.mulf %771, %772 : vector<4x32xf32>
    %774 = vector.broadcast %753 : vector<1x32xf32> to vector<4x32xf32>
    %775 = arith.addf %773, %774 : vector<4x32xf32>
    %cst_303 = arith.constant 0.000000e+00 : f32
    %776 = vector.broadcast %cst_303 : f32 to vector<4x32xf32>
    %777 = arith.maximumf %775, %776 : vector<4x32xf32>
    %cst_304 = arith.constant dense<0.000000e+00> : vector<32xf32>
    %778 = vector.multi_reduction <add>, %777, %cst_304 [0] : vector<4x32xf32> to vector<32xf32>
    %779 = vector.shape_cast %778 : vector<32xf32> to vector<1x32xf32>
    %cst_305 = arith.constant 4.000000e+00 : f32
    %780 = vector.broadcast %cst_305 : f32 to vector<1x32xf32>
    %781 = arith.divf %779, %780 : vector<1x32xf32>
    %782 = vector.shape_cast %781 : vector<1x32xf32> to vector<1x32xf32>
    %783 = vector.broadcast %782 : vector<1x32xf32> to vector<4x32xf32>
    %c1_306 = arith.constant 1 : index
    %c1_307 = arith.constant 1 : index
    %c0_308 = arith.constant 0 : index
    %c0_309 = arith.constant 0 : index
    %784 = vector.load %arg7[%c1_306, %c1_307, %c0_308, %c0_309] : memref<3x2x32x64xf32, #tpu.memory_space<vmem>>, vector<1x1x32x64xf32>
    %785 = vector.shape_cast %784 : vector<1x1x32x64xf32> to vector<32x64xf32>
    %cst_310 = arith.constant dense<0.000000e+00> : vector<4x64xf32>
    %786 = tpu.matmul %783, %785, %cst_310 {dimension_numbers = #tpu.dot_dimension_numbers<[1], [0], [0], [1], [0, 0, 1, 1], [], []>} : vector<4x32xf32>, vector<32x64xf32>, vector<4x64xf32> -> vector<4x64xf32>
    %787 = vector.extract_strided_slice %443 {offsets = [20, 0], sizes = [1, 64], strides = [1, 1]} : vector<28x64xf32> to vector<1x64xf32>
    %788 = vector.broadcast %787 : vector<1x64xf32> to vector<4x64xf32>
    %789 = arith.addf %786, %788 : vector<4x64xf32>
    %790 = vector.extract_strided_slice %443 {offsets = [21, 0], sizes = [1, 64], strides = [1, 1]} : vector<28x64xf32> to vector<1x64xf32>
    %791 = vector.extract_strided_slice %443 {offsets = [22, 0], sizes = [1, 64], strides = [1, 1]} : vector<28x64xf32> to vector<1x64xf32>
    %cst_311 = arith.constant dense<0.000000e+00> : vector<4xf32>
    %792 = vector.multi_reduction <add>, %789, %cst_311 [1] : vector<4x64xf32> to vector<4xf32>
    %793 = vector.shape_cast %792 : vector<4xf32> to vector<4x1xf32>
    %cst_312 = arith.constant 6.400000e+01 : f32
    %794 = vector.broadcast %cst_312 : f32 to vector<4x1xf32>
    %795 = arith.divf %793, %794 : vector<4x1xf32>
    %796 = vector.broadcast %795 : vector<4x1xf32> to vector<4x64xf32>
    %797 = arith.subf %789, %796 : vector<4x64xf32>
    %798 = arith.mulf %797, %797 : vector<4x64xf32>
    %cst_313 = arith.constant dense<0.000000e+00> : vector<4xf32>
    %799 = vector.multi_reduction <add>, %798, %cst_313 [1] : vector<4x64xf32> to vector<4xf32>
    %800 = vector.shape_cast %799 : vector<4xf32> to vector<4x1xf32>
    %cst_314 = arith.constant 6.400000e+01 : f32
    %801 = vector.broadcast %cst_314 : f32 to vector<4x1xf32>
    %802 = arith.divf %800, %801 : vector<4x1xf32>
    %803 = vector.broadcast %795 : vector<4x1xf32> to vector<4x64xf32>
    %804 = arith.subf %789, %803 : vector<4x64xf32>
    %cst_315 = arith.constant 9.99999974E-6 : f32
    %805 = vector.broadcast %cst_315 : f32 to vector<4x1xf32>
    %806 = arith.addf %802, %805 : vector<4x1xf32>
    %807 = math.rsqrt %806 : vector<4x1xf32>
    %808 = vector.broadcast %807 : vector<4x1xf32> to vector<4x64xf32>
    %809 = arith.mulf %804, %808 : vector<4x64xf32>
    %810 = vector.broadcast %790 : vector<1x64xf32> to vector<4x64xf32>
    %811 = arith.mulf %809, %810 : vector<4x64xf32>
    %812 = vector.broadcast %791 : vector<1x64xf32> to vector<4x64xf32>
    %813 = arith.addf %811, %812 : vector<4x64xf32>
    %cst_316 = arith.constant 0.000000e+00 : f32
    %814 = vector.broadcast %cst_316 : f32 to vector<4x64xf32>
    %815 = arith.maximumf %813, %814 : vector<4x64xf32>
    %c1_317 = arith.constant 1 : index
    %c1_318 = arith.constant 1 : index
    %c0_319 = arith.constant 0 : index
    %c0_320 = arith.constant 0 : index
    %816 = vector.load %arg8[%c1_317, %c1_318, %c0_319, %c0_320] : memref<3x2x64x64xf32, #tpu.memory_space<vmem>>, vector<1x1x64x64xf32>
    %817 = vector.shape_cast %816 : vector<1x1x64x64xf32> to vector<64x64xf32>
    %cst_321 = arith.constant dense<0.000000e+00> : vector<4x64xf32>
    %818 = tpu.matmul %815, %817, %cst_321 {dimension_numbers = #tpu.dot_dimension_numbers<[1], [0], [0], [1], [0, 0, 1, 1], [], []>} : vector<4x64xf32>, vector<64x64xf32>, vector<4x64xf32> -> vector<4x64xf32>
    %819 = vector.extract_strided_slice %443 {offsets = [23, 0], sizes = [1, 64], strides = [1, 1]} : vector<28x64xf32> to vector<1x64xf32>
    %820 = vector.broadcast %819 : vector<1x64xf32> to vector<4x64xf32>
    %821 = arith.addf %818, %820 : vector<4x64xf32>
    %cst_322 = arith.constant dense<0.000000e+00> : vector<4x4xf32>
    %822 = tpu.matmul %713, %570, %cst_322 {dimension_numbers = #tpu.dot_dimension_numbers<[1], [1], [0], [0], [0, 0, 1, 0], [], []>} : vector<4x64xf32>, vector<4x64xf32>, vector<4x4xf32> -> vector<4x4xf32>
    %cst_323 = arith.constant 1.562500e-02 : f32
    %823 = vector.broadcast %cst_323 : f32 to vector<4x4xf32>
    %824 = arith.mulf %822, %823 : vector<4x4xf32>
    %cst_324 = arith.constant dense<0xFF800000> : vector<4xf32>
    %825 = vector.multi_reduction <maximumf>, %824, %cst_324 [0] : vector<4x4xf32> to vector<4xf32>
    %826 = vector.shape_cast %825 : vector<4xf32> to vector<1x4xf32>
    %827 = vector.broadcast %826 : vector<1x4xf32> to vector<4x4xf32>
    %828 = arith.subf %824, %827 : vector<4x4xf32>
    %829 = math.exp %828 : vector<4x4xf32>
    %cst_325 = arith.constant dense<0.000000e+00> : vector<4xf32>
    %830 = vector.multi_reduction <add>, %829, %cst_325 [0] : vector<4x4xf32> to vector<4xf32>
    %831 = vector.shape_cast %830 : vector<4xf32> to vector<1x4xf32>
    %832 = tpu.reciprocal %831 {approx = true} : vector<1x4xf32> -> vector<1x4xf32>
    %833 = vector.broadcast %832 : vector<1x4xf32> to vector<4x4xf32>
    %834 = arith.mulf %829, %833 : vector<4x4xf32>
    %cst_326 = arith.constant dense<0.000000e+00> : vector<4x64xf32>
    %835 = tpu.matmul %834, %571, %cst_326 {dimension_numbers = #tpu.dot_dimension_numbers<[1], [0], [0], [1], [0, 0, 1, 1], [], []>} : vector<4x4xf32>, vector<4x64xf32>, vector<4x64xf32> -> vector<4x64xf32>
    %cst_327 = arith.constant 1.562500e-02 : f32
    %836 = vector.broadcast %cst_327 : f32 to vector<4x64xf32>
    %837 = arith.mulf %835, %836 : vector<4x64xf32>
    %cst_328 = arith.constant dense<0.000000e+00> : vector<4x4xf32>
    %838 = tpu.matmul %821, %572, %cst_328 {dimension_numbers = #tpu.dot_dimension_numbers<[1], [1], [0], [0], [0, 0, 1, 0], [], []>} : vector<4x64xf32>, vector<4x64xf32>, vector<4x4xf32> -> vector<4x4xf32>
    %cst_329 = arith.constant 1.562500e-02 : f32
    %839 = vector.broadcast %cst_329 : f32 to vector<4x4xf32>
    %840 = arith.mulf %838, %839 : vector<4x4xf32>
    %cst_330 = arith.constant dense<0xFF800000> : vector<4xf32>
    %841 = vector.multi_reduction <maximumf>, %840, %cst_330 [0] : vector<4x4xf32> to vector<4xf32>
    %842 = vector.shape_cast %841 : vector<4xf32> to vector<1x4xf32>
    %843 = vector.broadcast %842 : vector<1x4xf32> to vector<4x4xf32>
    %844 = arith.subf %840, %843 : vector<4x4xf32>
    %845 = math.exp %844 : vector<4x4xf32>
    %cst_331 = arith.constant dense<0.000000e+00> : vector<4xf32>
    %846 = vector.multi_reduction <add>, %845, %cst_331 [0] : vector<4x4xf32> to vector<4xf32>
    %847 = vector.shape_cast %846 : vector<4xf32> to vector<1x4xf32>
    %848 = tpu.reciprocal %847 {approx = true} : vector<1x4xf32> -> vector<1x4xf32>
    %849 = vector.broadcast %848 : vector<1x4xf32> to vector<4x4xf32>
    %850 = arith.mulf %845, %849 : vector<4x4xf32>
    %cst_332 = arith.constant dense<0.000000e+00> : vector<4x64xf32>
    %851 = tpu.matmul %850, %573, %cst_332 {dimension_numbers = #tpu.dot_dimension_numbers<[1], [0], [0], [1], [0, 0, 1, 1], [], []>} : vector<4x4xf32>, vector<4x64xf32>, vector<4x64xf32> -> vector<4x64xf32>
    %cst_333 = arith.constant 1.562500e-02 : f32
    %852 = vector.broadcast %cst_333 : f32 to vector<4x64xf32>
    %853 = arith.mulf %851, %852 : vector<4x64xf32>
    %c1_334 = arith.constant 1 : index
    %c0_335 = arith.constant 0 : index
    %c0_336 = arith.constant 0 : index
    %c0_337 = arith.constant 0 : index
    %854 = vector.load %arg9[%c1_334, %c0_335, %c0_336, %c0_337] : memref<3x4x64x64xf32, #tpu.memory_space<vmem>>, vector<1x1x64x64xf32>
    %855 = vector.shape_cast %854 : vector<1x1x64x64xf32> to vector<64x64xf32>
    %cst_338 = arith.constant dense<0.000000e+00> : vector<4x64xf32>
    %856 = tpu.matmul %837, %855, %cst_338 {dimension_numbers = #tpu.dot_dimension_numbers<[1], [0], [0], [1], [0, 0, 1, 1], [], []>} : vector<4x64xf32>, vector<64x64xf32>, vector<4x64xf32> -> vector<4x64xf32>
    %857 = vector.extract_strided_slice %443 {offsets = [24, 0], sizes = [1, 64], strides = [1, 1]} : vector<28x64xf32> to vector<1x64xf32>
    %858 = vector.broadcast %857 : vector<1x64xf32> to vector<4x64xf32>
    %859 = arith.addf %856, %858 : vector<4x64xf32>
    %c1_339 = arith.constant 1 : index
    %c1_340 = arith.constant 1 : index
    %c0_341 = arith.constant 0 : index
    %c0_342 = arith.constant 0 : index
    %860 = vector.load %arg9[%c1_339, %c1_340, %c0_341, %c0_342] : memref<3x4x64x64xf32, #tpu.memory_space<vmem>>, vector<1x1x64x64xf32>
    %861 = vector.shape_cast %860 : vector<1x1x64x64xf32> to vector<64x64xf32>
    %cst_343 = arith.constant dense<0.000000e+00> : vector<4x64xf32>
    %862 = tpu.matmul %853, %861, %cst_343 {dimension_numbers = #tpu.dot_dimension_numbers<[1], [0], [0], [1], [0, 0, 1, 1], [], []>} : vector<4x64xf32>, vector<64x64xf32>, vector<4x64xf32> -> vector<4x64xf32>
    %863 = vector.extract_strided_slice %443 {offsets = [25, 0], sizes = [1, 64], strides = [1, 1]} : vector<28x64xf32> to vector<1x64xf32>
    %864 = vector.broadcast %863 : vector<1x64xf32> to vector<4x64xf32>
    %865 = arith.addf %862, %864 : vector<4x64xf32>
    %c1_344 = arith.constant 1 : index
    %c2_345 = arith.constant 2 : index
    %c0_346 = arith.constant 0 : index
    %c0_347 = arith.constant 0 : index
    %866 = vector.load %arg9[%c1_344, %c2_345, %c0_346, %c0_347] : memref<3x4x64x64xf32, #tpu.memory_space<vmem>>, vector<1x1x64x64xf32>
    %867 = vector.shape_cast %866 : vector<1x1x64x64xf32> to vector<64x64xf32>
    %cst_348 = arith.constant dense<0.000000e+00> : vector<4x64xf32>
    %868 = tpu.matmul %589, %867, %cst_348 {dimension_numbers = #tpu.dot_dimension_numbers<[1], [0], [0], [1], [0, 0, 1, 1], [], []>} : vector<4x64xf32>, vector<64x64xf32>, vector<4x64xf32> -> vector<4x64xf32>
    %869 = vector.extract_strided_slice %443 {offsets = [26, 0], sizes = [1, 64], strides = [1, 1]} : vector<28x64xf32> to vector<1x64xf32>
    %870 = vector.broadcast %869 : vector<1x64xf32> to vector<4x64xf32>
    %871 = arith.addf %868, %870 : vector<4x64xf32>
    %c1_349 = arith.constant 1 : index
    %c3_350 = arith.constant 3 : index
    %c0_351 = arith.constant 0 : index
    %c0_352 = arith.constant 0 : index
    %872 = vector.load %arg9[%c1_349, %c3_350, %c0_351, %c0_352] : memref<3x4x64x64xf32, #tpu.memory_space<vmem>>, vector<1x1x64x64xf32>
    %873 = vector.shape_cast %872 : vector<1x1x64x64xf32> to vector<64x64xf32>
    %cst_353 = arith.constant dense<0.000000e+00> : vector<4x64xf32>
    %874 = tpu.matmul %605, %873, %cst_353 {dimension_numbers = #tpu.dot_dimension_numbers<[1], [0], [0], [1], [0, 0, 1, 1], [], []>} : vector<4x64xf32>, vector<64x64xf32>, vector<4x64xf32> -> vector<4x64xf32>
    %875 = vector.extract_strided_slice %443 {offsets = [27, 0], sizes = [1, 64], strides = [1, 1]} : vector<28x64xf32> to vector<1x64xf32>
    %876 = vector.broadcast %875 : vector<1x64xf32> to vector<4x64xf32>
    %877 = arith.addf %874, %876 : vector<4x64xf32>
    %878 = tpu.concatenate %859, %865, %871, %877 in 1 : vector<4x64xf32>, vector<4x64xf32>, vector<4x64xf32>, vector<4x64xf32> -> vector<4x256xf32>
    %c1_354 = arith.constant 1 : index
    %c0_355 = arith.constant 0 : index
    %c0_356 = arith.constant 0 : index
    %879 = vector.load %arg17[%c1_354, %c0_355, %c0_356] : memref<3x4x256xf32, #tpu.memory_space<vmem>>, vector<1x4x256xf32>
    %880 = vector.shape_cast %879 : vector<1x4x256xf32> to vector<4x256xf32>
    %881 = vector.shape_cast %878 : vector<4x256xf32> to vector<1x4x256xf32>
    tpu.vector_store %arg17[%c1_354, %c0_355, %c0_356], %881 {strides = array<i32>} : memref<3x4x256xf32, #tpu.memory_space<vmem>>, vector<1x4x256xf32>,
    %c2_357 = arith.constant 2 : index
    %c0_358 = arith.constant 0 : index
    %c0_359 = arith.constant 0 : index
    %882 = vector.load %arg10[%c2_357, %c0_358, %c0_359] : memref<3x28x64xf32, #tpu.memory_space<vmem>>, vector<1x28x64xf32>
    %883 = vector.shape_cast %882 : vector<1x28x64xf32> to vector<28x64xf32>
    %c2_360 = arith.constant 2 : index
    %c0_361 = arith.constant 0 : index
    %c0_362 = arith.constant 0 : index
    %884 = vector.load %arg12[%c2_360, %c0_361, %c0_362] : memref<3x6x32xf32, #tpu.memory_space<vmem>>, vector<1x6x32xf32>
    %885 = vector.shape_cast %884 : vector<1x6x32xf32> to vector<6x32xf32>
    %c2_363 = arith.constant 2 : index
    %c0_364 = arith.constant 0 : index
    %c0_365 = arith.constant 0 : index
    %886 = vector.load %arg11[%c2_363, %c0_364, %c0_365] : memref<3x2x128xf32, #tpu.memory_space<vmem>>, vector<1x2x128xf32>
    %887 = vector.shape_cast %886 : vector<1x2x128xf32> to vector<2x128xf32>
    %c2_366 = arith.constant 2 : index
    %c0_367 = arith.constant 0 : index
    %c0_368 = arith.constant 0 : index
    %888 = vector.load %arg2[%c2_366, %c0_367, %c0_368] : memref<3x4x64xf32, #tpu.memory_space<vmem>>, vector<1x4x64xf32>
    %889 = vector.shape_cast %888 : vector<1x4x64xf32> to vector<4x64xf32>
    %890 = vector.extract_strided_slice %883 {offsets = [0, 0], sizes = [1, 64], strides = [1, 1]} : vector<28x64xf32> to vector<1x64xf32>
    %891 = vector.extract_strided_slice %883 {offsets = [1, 0], sizes = [1, 64], strides = [1, 1]} : vector<28x64xf32> to vector<1x64xf32>
    %cst_369 = arith.constant dense<0.000000e+00> : vector<4xf32>
    %892 = vector.multi_reduction <add>, %859, %cst_369 [1] : vector<4x64xf32> to vector<4xf32>
    %893 = vector.shape_cast %892 : vector<4xf32> to vector<4x1xf32>
    %cst_370 = arith.constant 6.400000e+01 : f32
    %894 = vector.broadcast %cst_370 : f32 to vector<4x1xf32>
    %895 = arith.divf %893, %894 : vector<4x1xf32>
    %896 = vector.broadcast %895 : vector<4x1xf32> to vector<4x64xf32>
    %897 = arith.subf %859, %896 : vector<4x64xf32>
    %898 = arith.mulf %897, %897 : vector<4x64xf32>
    %cst_371 = arith.constant dense<0.000000e+00> : vector<4xf32>
    %899 = vector.multi_reduction <add>, %898, %cst_371 [1] : vector<4x64xf32> to vector<4xf32>
    %900 = vector.shape_cast %899 : vector<4xf32> to vector<4x1xf32>
    %cst_372 = arith.constant 6.400000e+01 : f32
    %901 = vector.broadcast %cst_372 : f32 to vector<4x1xf32>
    %902 = arith.divf %900, %901 : vector<4x1xf32>
    %903 = vector.broadcast %895 : vector<4x1xf32> to vector<4x64xf32>
    %904 = arith.subf %859, %903 : vector<4x64xf32>
    %cst_373 = arith.constant 9.99999974E-6 : f32
    %905 = vector.broadcast %cst_373 : f32 to vector<4x1xf32>
    %906 = arith.addf %902, %905 : vector<4x1xf32>
    %907 = math.rsqrt %906 : vector<4x1xf32>
    %908 = vector.broadcast %907 : vector<4x1xf32> to vector<4x64xf32>
    %909 = arith.mulf %904, %908 : vector<4x64xf32>
    %910 = vector.broadcast %890 : vector<1x64xf32> to vector<4x64xf32>
    %911 = arith.mulf %909, %910 : vector<4x64xf32>
    %912 = vector.broadcast %891 : vector<1x64xf32> to vector<4x64xf32>
    %913 = arith.addf %911, %912 : vector<4x64xf32>
    %914 = vector.extract_strided_slice %883 {offsets = [2, 0], sizes = [1, 64], strides = [1, 1]} : vector<28x64xf32> to vector<1x64xf32>
    %915 = vector.extract_strided_slice %883 {offsets = [3, 0], sizes = [1, 64], strides = [1, 1]} : vector<28x64xf32> to vector<1x64xf32>
    %cst_374 = arith.constant dense<0.000000e+00> : vector<4xf32>
    %916 = vector.multi_reduction <add>, %865, %cst_374 [1] : vector<4x64xf32> to vector<4xf32>
    %917 = vector.shape_cast %916 : vector<4xf32> to vector<4x1xf32>
    %cst_375 = arith.constant 6.400000e+01 : f32
    %918 = vector.broadcast %cst_375 : f32 to vector<4x1xf32>
    %919 = arith.divf %917, %918 : vector<4x1xf32>
    %920 = vector.broadcast %919 : vector<4x1xf32> to vector<4x64xf32>
    %921 = arith.subf %865, %920 : vector<4x64xf32>
    %922 = arith.mulf %921, %921 : vector<4x64xf32>
    %cst_376 = arith.constant dense<0.000000e+00> : vector<4xf32>
    %923 = vector.multi_reduction <add>, %922, %cst_376 [1] : vector<4x64xf32> to vector<4xf32>
    %924 = vector.shape_cast %923 : vector<4xf32> to vector<4x1xf32>
    %cst_377 = arith.constant 6.400000e+01 : f32
    %925 = vector.broadcast %cst_377 : f32 to vector<4x1xf32>
    %926 = arith.divf %924, %925 : vector<4x1xf32>
    %927 = vector.broadcast %919 : vector<4x1xf32> to vector<4x64xf32>
    %928 = arith.subf %865, %927 : vector<4x64xf32>
    %cst_378 = arith.constant 9.99999974E-6 : f32
    %929 = vector.broadcast %cst_378 : f32 to vector<4x1xf32>
    %930 = arith.addf %926, %929 : vector<4x1xf32>
    %931 = math.rsqrt %930 : vector<4x1xf32>
    %932 = vector.broadcast %931 : vector<4x1xf32> to vector<4x64xf32>
    %933 = arith.mulf %928, %932 : vector<4x64xf32>
    %934 = vector.broadcast %914 : vector<1x64xf32> to vector<4x64xf32>
    %935 = arith.mulf %933, %934 : vector<4x64xf32>
    %936 = vector.broadcast %915 : vector<1x64xf32> to vector<4x64xf32>
    %937 = arith.addf %935, %936 : vector<4x64xf32>
    %938 = vector.extract_strided_slice %883 {offsets = [4, 0], sizes = [1, 64], strides = [1, 1]} : vector<28x64xf32> to vector<1x64xf32>
    %939 = vector.extract_strided_slice %883 {offsets = [5, 0], sizes = [1, 64], strides = [1, 1]} : vector<28x64xf32> to vector<1x64xf32>
    %cst_379 = arith.constant dense<0.000000e+00> : vector<4xf32>
    %940 = vector.multi_reduction <add>, %889, %cst_379 [1] : vector<4x64xf32> to vector<4xf32>
    %941 = vector.shape_cast %940 : vector<4xf32> to vector<4x1xf32>
    %cst_380 = arith.constant 6.400000e+01 : f32
    %942 = vector.broadcast %cst_380 : f32 to vector<4x1xf32>
    %943 = arith.divf %941, %942 : vector<4x1xf32>
    %944 = vector.broadcast %943 : vector<4x1xf32> to vector<4x64xf32>
    %945 = arith.subf %889, %944 : vector<4x64xf32>
    %946 = arith.mulf %945, %945 : vector<4x64xf32>
    %cst_381 = arith.constant dense<0.000000e+00> : vector<4xf32>
    %947 = vector.multi_reduction <add>, %946, %cst_381 [1] : vector<4x64xf32> to vector<4xf32>
    %948 = vector.shape_cast %947 : vector<4xf32> to vector<4x1xf32>
    %cst_382 = arith.constant 6.400000e+01 : f32
    %949 = vector.broadcast %cst_382 : f32 to vector<4x1xf32>
    %950 = arith.divf %948, %949 : vector<4x1xf32>
    %951 = vector.broadcast %943 : vector<4x1xf32> to vector<4x64xf32>
    %952 = arith.subf %889, %951 : vector<4x64xf32>
    %cst_383 = arith.constant 9.99999974E-6 : f32
    %953 = vector.broadcast %cst_383 : f32 to vector<4x1xf32>
    %954 = arith.addf %950, %953 : vector<4x1xf32>
    %955 = math.rsqrt %954 : vector<4x1xf32>
    %956 = vector.broadcast %955 : vector<4x1xf32> to vector<4x64xf32>
    %957 = arith.mulf %952, %956 : vector<4x64xf32>
    %958 = vector.broadcast %938 : vector<1x64xf32> to vector<4x64xf32>
    %959 = arith.mulf %957, %958 : vector<4x64xf32>
    %960 = vector.broadcast %939 : vector<1x64xf32> to vector<4x64xf32>
    %961 = arith.addf %959, %960 : vector<4x64xf32>
    %c2_384 = arith.constant 2 : index
    %c0_385 = arith.constant 0 : index
    %c0_386 = arith.constant 0 : index
    %c0_387 = arith.constant 0 : index
    %962 = vector.load %arg3[%c2_384, %c0_385, %c0_386, %c0_387] : memref<3x2x64x64xf32, #tpu.memory_space<vmem>>, vector<1x1x64x64xf32>
    %963 = vector.shape_cast %962 : vector<1x1x64x64xf32> to vector<64x64xf32>
    %cst_388 = arith.constant dense<0.000000e+00> : vector<4x64xf32>
    %964 = tpu.matmul %961, %963, %cst_388 {dimension_numbers = #tpu.dot_dimension_numbers<[1], [0], [0], [1], [0, 0, 1, 1], [], []>} : vector<4x64xf32>, vector<64x64xf32>, vector<4x64xf32> -> vector<4x64xf32>
    %965 = vector.extract_strided_slice %883 {offsets = [6, 0], sizes = [1, 64], strides = [1, 1]} : vector<28x64xf32> to vector<1x64xf32>
    %966 = vector.broadcast %965 : vector<1x64xf32> to vector<4x64xf32>
    %967 = arith.addf %964, %966 : vector<4x64xf32>
    %968 = vector.extract_strided_slice %883 {offsets = [7, 0], sizes = [1, 64], strides = [1, 1]} : vector<28x64xf32> to vector<1x64xf32>
    %969 = vector.extract_strided_slice %883 {offsets = [8, 0], sizes = [1, 64], strides = [1, 1]} : vector<28x64xf32> to vector<1x64xf32>
    %cst_389 = arith.constant dense<0.000000e+00> : vector<4xf32>
    %970 = vector.multi_reduction <add>, %889, %cst_389 [1] : vector<4x64xf32> to vector<4xf32>
    %971 = vector.shape_cast %970 : vector<4xf32> to vector<4x1xf32>
    %cst_390 = arith.constant 6.400000e+01 : f32
    %972 = vector.broadcast %cst_390 : f32 to vector<4x1xf32>
    %973 = arith.divf %971, %972 : vector<4x1xf32>
    %974 = vector.broadcast %973 : vector<4x1xf32> to vector<4x64xf32>
    %975 = arith.subf %889, %974 : vector<4x64xf32>
    %976 = arith.mulf %975, %975 : vector<4x64xf32>
    %cst_391 = arith.constant dense<0.000000e+00> : vector<4xf32>
    %977 = vector.multi_reduction <add>, %976, %cst_391 [1] : vector<4x64xf32> to vector<4xf32>
    %978 = vector.shape_cast %977 : vector<4xf32> to vector<4x1xf32>
    %cst_392 = arith.constant 6.400000e+01 : f32
    %979 = vector.broadcast %cst_392 : f32 to vector<4x1xf32>
    %980 = arith.divf %978, %979 : vector<4x1xf32>
    %981 = vector.broadcast %973 : vector<4x1xf32> to vector<4x64xf32>
    %982 = arith.subf %889, %981 : vector<4x64xf32>
    %cst_393 = arith.constant 9.99999974E-6 : f32
    %983 = vector.broadcast %cst_393 : f32 to vector<4x1xf32>
    %984 = arith.addf %980, %983 : vector<4x1xf32>
    %985 = math.rsqrt %984 : vector<4x1xf32>
    %986 = vector.broadcast %985 : vector<4x1xf32> to vector<4x64xf32>
    %987 = arith.mulf %982, %986 : vector<4x64xf32>
    %988 = vector.broadcast %968 : vector<1x64xf32> to vector<4x64xf32>
    %989 = arith.mulf %987, %988 : vector<4x64xf32>
    %990 = vector.broadcast %969 : vector<1x64xf32> to vector<4x64xf32>
    %991 = arith.addf %989, %990 : vector<4x64xf32>
    %c2_394 = arith.constant 2 : index
    %c1_395 = arith.constant 1 : index
    %c0_396 = arith.constant 0 : index
    %c0_397 = arith.constant 0 : index
    %992 = vector.load %arg3[%c2_394, %c1_395, %c0_396, %c0_397] : memref<3x2x64x64xf32, #tpu.memory_space<vmem>>, vector<1x1x64x64xf32>
    %993 = vector.shape_cast %992 : vector<1x1x64x64xf32> to vector<64x64xf32>
    %cst_398 = arith.constant dense<0.000000e+00> : vector<4x64xf32>
    %994 = tpu.matmul %991, %993, %cst_398 {dimension_numbers = #tpu.dot_dimension_numbers<[1], [0], [0], [1], [0, 0, 1, 1], [], []>} : vector<4x64xf32>, vector<64x64xf32>, vector<4x64xf32> -> vector<4x64xf32>
    %995 = vector.extract_strided_slice %883 {offsets = [9, 0], sizes = [1, 64], strides = [1, 1]} : vector<28x64xf32> to vector<1x64xf32>
    %996 = vector.broadcast %995 : vector<1x64xf32> to vector<4x64xf32>
    %997 = arith.addf %994, %996 : vector<4x64xf32>
    %c2_399 = arith.constant 2 : index
    %c0_400 = arith.constant 0 : index
    %c0_401 = arith.constant 0 : index
    %c0_402 = arith.constant 0 : index
    %998 = vector.load %arg4[%c2_399, %c0_400, %c0_401, %c0_402] : memref<3x2x64x128xf32, #tpu.memory_space<vmem>>, vector<1x1x64x128xf32>
    %999 = vector.shape_cast %998 : vector<1x1x64x128xf32> to vector<64x128xf32>
    %cst_403 = arith.constant dense<0.000000e+00> : vector<4x128xf32>
    %1000 = tpu.matmul %913, %999, %cst_403 {dimension_numbers = #tpu.dot_dimension_numbers<[1], [0], [0], [1], [0, 0, 1, 1], [], []>} : vector<4x64xf32>, vector<64x128xf32>, vector<4x128xf32> -> vector<4x128xf32>
    %1001 = vector.extract_strided_slice %887 {offsets = [0, 0], sizes = [1, 128], strides = [1, 1]} : vector<2x128xf32> to vector<1x128xf32>
    %1002 = vector.broadcast %1001 : vector<1x128xf32> to vector<4x128xf32>
    %1003 = arith.addf %1000, %1002 : vector<4x128xf32>
    %c2_404 = arith.constant 2 : index
    %c1_405 = arith.constant 1 : index
    %c0_406 = arith.constant 0 : index
    %c0_407 = arith.constant 0 : index
    %1004 = vector.load %arg4[%c2_404, %c1_405, %c0_406, %c0_407] : memref<3x2x64x128xf32, #tpu.memory_space<vmem>>, vector<1x1x64x128xf32>
    %1005 = vector.shape_cast %1004 : vector<1x1x64x128xf32> to vector<64x128xf32>
    %cst_408 = arith.constant dense<0.000000e+00> : vector<4x128xf32>
    %1006 = tpu.matmul %937, %1005, %cst_408 {dimension_numbers = #tpu.dot_dimension_numbers<[1], [0], [0], [1], [0, 0, 1, 1], [], []>} : vector<4x64xf32>, vector<64x128xf32>, vector<4x128xf32> -> vector<4x128xf32>
    %1007 = vector.extract_strided_slice %887 {offsets = [1, 0], sizes = [1, 128], strides = [1, 1]} : vector<2x128xf32> to vector<1x128xf32>
    %1008 = vector.broadcast %1007 : vector<1x128xf32> to vector<4x128xf32>
    %1009 = arith.addf %1006, %1008 : vector<4x128xf32>
    %1010 = vector.extract_strided_slice %1003 {offsets = [0, 0], sizes = [4, 64], strides = [1, 1]} : vector<4x128xf32> to vector<4x64xf32>
    %1011 = vector.extract_strided_slice %1003 {offsets = [0, 64], sizes = [4, 64], strides = [1, 1]} : vector<4x128xf32> to vector<4x64xf32>
    %1012 = vector.extract_strided_slice %1009 {offsets = [0, 0], sizes = [4, 64], strides = [1, 1]} : vector<4x128xf32> to vector<4x64xf32>
    %1013 = vector.extract_strided_slice %1009 {offsets = [0, 64], sizes = [4, 64], strides = [1, 1]} : vector<4x128xf32> to vector<4x64xf32>
    %cst_409 = arith.constant dense<0.000000e+00> : vector<4x4xf32>
    %1014 = tpu.matmul %967, %1010, %cst_409 {dimension_numbers = #tpu.dot_dimension_numbers<[1], [1], [0], [0], [0, 0, 1, 0], [], []>} : vector<4x64xf32>, vector<4x64xf32>, vector<4x4xf32> -> vector<4x4xf32>
    %cst_410 = arith.constant 1.562500e-02 : f32
    %1015 = vector.broadcast %cst_410 : f32 to vector<4x4xf32>
    %1016 = arith.mulf %1014, %1015 : vector<4x4xf32>
    %cst_411 = arith.constant dense<0xFF800000> : vector<4xf32>
    %1017 = vector.multi_reduction <maximumf>, %1016, %cst_411 [0] : vector<4x4xf32> to vector<4xf32>
    %1018 = vector.shape_cast %1017 : vector<4xf32> to vector<1x4xf32>
    %1019 = vector.broadcast %1018 : vector<1x4xf32> to vector<4x4xf32>
    %1020 = arith.subf %1016, %1019 : vector<4x4xf32>
    %1021 = math.exp %1020 : vector<4x4xf32>
    %cst_412 = arith.constant dense<0.000000e+00> : vector<4xf32>
    %1022 = vector.multi_reduction <add>, %1021, %cst_412 [0] : vector<4x4xf32> to vector<4xf32>
    %1023 = vector.shape_cast %1022 : vector<4xf32> to vector<1x4xf32>
    %1024 = tpu.reciprocal %1023 {approx = true} : vector<1x4xf32> -> vector<1x4xf32>
    %1025 = vector.broadcast %1024 : vector<1x4xf32> to vector<4x4xf32>
    %1026 = arith.mulf %1021, %1025 : vector<4x4xf32>
    %cst_413 = arith.constant dense<0.000000e+00> : vector<4x64xf32>
    %1027 = tpu.matmul %1026, %1011, %cst_413 {dimension_numbers = #tpu.dot_dimension_numbers<[1], [0], [0], [1], [0, 0, 1, 1], [], []>} : vector<4x4xf32>, vector<4x64xf32>, vector<4x64xf32> -> vector<4x64xf32>
    %cst_414 = arith.constant 1.562500e-02 : f32
    %1028 = vector.broadcast %cst_414 : f32 to vector<4x64xf32>
    %1029 = arith.mulf %1027, %1028 : vector<4x64xf32>
    %cst_415 = arith.constant dense<0.000000e+00> : vector<4x4xf32>
    %1030 = tpu.matmul %997, %1012, %cst_415 {dimension_numbers = #tpu.dot_dimension_numbers<[1], [1], [0], [0], [0, 0, 1, 0], [], []>} : vector<4x64xf32>, vector<4x64xf32>, vector<4x4xf32> -> vector<4x4xf32>
    %cst_416 = arith.constant 1.562500e-02 : f32
    %1031 = vector.broadcast %cst_416 : f32 to vector<4x4xf32>
    %1032 = arith.mulf %1030, %1031 : vector<4x4xf32>
    %cst_417 = arith.constant dense<0xFF800000> : vector<4xf32>
    %1033 = vector.multi_reduction <maximumf>, %1032, %cst_417 [0] : vector<4x4xf32> to vector<4xf32>
    %1034 = vector.shape_cast %1033 : vector<4xf32> to vector<1x4xf32>
    %1035 = vector.broadcast %1034 : vector<1x4xf32> to vector<4x4xf32>
    %1036 = arith.subf %1032, %1035 : vector<4x4xf32>
    %1037 = math.exp %1036 : vector<4x4xf32>
    %cst_418 = arith.constant dense<0.000000e+00> : vector<4xf32>
    %1038 = vector.multi_reduction <add>, %1037, %cst_418 [0] : vector<4x4xf32> to vector<4xf32>
    %1039 = vector.shape_cast %1038 : vector<4xf32> to vector<1x4xf32>
    %1040 = tpu.reciprocal %1039 {approx = true} : vector<1x4xf32> -> vector<1x4xf32>
    %1041 = vector.broadcast %1040 : vector<1x4xf32> to vector<4x4xf32>
    %1042 = arith.mulf %1037, %1041 : vector<4x4xf32>
    %cst_419 = arith.constant dense<0.000000e+00> : vector<4x64xf32>
    %1043 = tpu.matmul %1042, %1013, %cst_419 {dimension_numbers = #tpu.dot_dimension_numbers<[1], [0], [0], [1], [0, 0, 1, 1], [], []>} : vector<4x4xf32>, vector<4x64xf32>, vector<4x64xf32> -> vector<4x64xf32>
    %cst_420 = arith.constant 1.562500e-02 : f32
    %1044 = vector.broadcast %cst_420 : f32 to vector<4x64xf32>
    %1045 = arith.mulf %1043, %1044 : vector<4x64xf32>
    %c2_421 = arith.constant 2 : index
    %c0_422 = arith.constant 0 : index
    %c0_423 = arith.constant 0 : index
    %c0_424 = arith.constant 0 : index
    %1046 = vector.load %arg5[%c2_421, %c0_422, %c0_423, %c0_424] : memref<3x2x64x64xf32, #tpu.memory_space<vmem>>, vector<1x1x64x64xf32>
    %1047 = vector.shape_cast %1046 : vector<1x1x64x64xf32> to vector<64x64xf32>
    %cst_425 = arith.constant dense<0.000000e+00> : vector<4x64xf32>
    %1048 = tpu.matmul %967, %1047, %cst_425 {dimension_numbers = #tpu.dot_dimension_numbers<[1], [0], [0], [1], [0, 0, 1, 1], [], []>} : vector<4x64xf32>, vector<64x64xf32>, vector<4x64xf32> -> vector<4x64xf32>
    %1049 = vector.extract_strided_slice %883 {offsets = [10, 0], sizes = [1, 64], strides = [1, 1]} : vector<28x64xf32> to vector<1x64xf32>
    %1050 = vector.broadcast %1049 : vector<1x64xf32> to vector<4x64xf32>
    %1051 = arith.addf %1048, %1050 : vector<4x64xf32>
    %1052 = vector.extract_strided_slice %883 {offsets = [11, 0], sizes = [1, 64], strides = [1, 1]} : vector<28x64xf32> to vector<1x64xf32>
    %1053 = vector.extract_strided_slice %883 {offsets = [12, 0], sizes = [1, 64], strides = [1, 1]} : vector<28x64xf32> to vector<1x64xf32>
    %cst_426 = arith.constant dense<0.000000e+00> : vector<4xf32>
    %1054 = vector.multi_reduction <add>, %1051, %cst_426 [1] : vector<4x64xf32> to vector<4xf32>
    %1055 = vector.shape_cast %1054 : vector<4xf32> to vector<4x1xf32>
    %cst_427 = arith.constant 6.400000e+01 : f32
    %1056 = vector.broadcast %cst_427 : f32 to vector<4x1xf32>
    %1057 = arith.divf %1055, %1056 : vector<4x1xf32>
    %1058 = vector.broadcast %1057 : vector<4x1xf32> to vector<4x64xf32>
    %1059 = arith.subf %1051, %1058 : vector<4x64xf32>
    %1060 = arith.mulf %1059, %1059 : vector<4x64xf32>
    %cst_428 = arith.constant dense<0.000000e+00> : vector<4xf32>
    %1061 = vector.multi_reduction <add>, %1060, %cst_428 [1] : vector<4x64xf32> to vector<4xf32>
    %1062 = vector.shape_cast %1061 : vector<4xf32> to vector<4x1xf32>
    %cst_429 = arith.constant 6.400000e+01 : f32
    %1063 = vector.broadcast %cst_429 : f32 to vector<4x1xf32>
    %1064 = arith.divf %1062, %1063 : vector<4x1xf32>
    %1065 = vector.broadcast %1057 : vector<4x1xf32> to vector<4x64xf32>
    %1066 = arith.subf %1051, %1065 : vector<4x64xf32>
    %cst_430 = arith.constant 9.99999974E-6 : f32
    %1067 = vector.broadcast %cst_430 : f32 to vector<4x1xf32>
    %1068 = arith.addf %1064, %1067 : vector<4x1xf32>
    %1069 = math.rsqrt %1068 : vector<4x1xf32>
    %1070 = vector.broadcast %1069 : vector<4x1xf32> to vector<4x64xf32>
    %1071 = arith.mulf %1066, %1070 : vector<4x64xf32>
    %1072 = vector.broadcast %1052 : vector<1x64xf32> to vector<4x64xf32>
    %1073 = arith.mulf %1071, %1072 : vector<4x64xf32>
    %1074 = vector.broadcast %1053 : vector<1x64xf32> to vector<4x64xf32>
    %1075 = arith.addf %1073, %1074 : vector<4x64xf32>
    %cst_431 = arith.constant 0.000000e+00 : f32
    %1076 = vector.broadcast %cst_431 : f32 to vector<4x64xf32>
    %1077 = arith.maximumf %1075, %1076 : vector<4x64xf32>
    %c2_432 = arith.constant 2 : index
    %c0_433 = arith.constant 0 : index
    %c0_434 = arith.constant 0 : index
    %c0_435 = arith.constant 0 : index
    %1078 = vector.load %arg6[%c2_432, %c0_433, %c0_434, %c0_435] : memref<3x2x64x32xf32, #tpu.memory_space<vmem>>, vector<1x1x64x32xf32>
    %1079 = vector.shape_cast %1078 : vector<1x1x64x32xf32> to vector<64x32xf32>
    %cst_436 = arith.constant dense<0.000000e+00> : vector<4x32xf32>
    %1080 = tpu.matmul %1077, %1079, %cst_436 {dimension_numbers = #tpu.dot_dimension_numbers<[1], [0], [0], [1], [0, 0, 1, 1], [], []>} : vector<4x64xf32>, vector<64x32xf32>, vector<4x32xf32> -> vector<4x32xf32>
    %1081 = vector.extract_strided_slice %885 {offsets = [0, 0], sizes = [1, 32], strides = [1, 1]} : vector<6x32xf32> to vector<1x32xf32>
    %1082 = vector.broadcast %1081 : vector<1x32xf32> to vector<4x32xf32>
    %1083 = arith.addf %1080, %1082 : vector<4x32xf32>
    %1084 = vector.extract_strided_slice %885 {offsets = [1, 0], sizes = [1, 32], strides = [1, 1]} : vector<6x32xf32> to vector<1x32xf32>
    %1085 = vector.extract_strided_slice %885 {offsets = [2, 0], sizes = [1, 32], strides = [1, 1]} : vector<6x32xf32> to vector<1x32xf32>
    %cst_437 = arith.constant dense<0.000000e+00> : vector<4xf32>
    %1086 = vector.multi_reduction <add>, %1083, %cst_437 [1] : vector<4x32xf32> to vector<4xf32>
    %1087 = vector.shape_cast %1086 : vector<4xf32> to vector<4x1xf32>
    %cst_438 = arith.constant 3.200000e+01 : f32
    %1088 = vector.broadcast %cst_438 : f32 to vector<4x1xf32>
    %1089 = arith.divf %1087, %1088 : vector<4x1xf32>
    %1090 = vector.broadcast %1089 : vector<4x1xf32> to vector<4x32xf32>
    %1091 = arith.subf %1083, %1090 : vector<4x32xf32>
    %1092 = arith.mulf %1091, %1091 : vector<4x32xf32>
    %cst_439 = arith.constant dense<0.000000e+00> : vector<4xf32>
    %1093 = vector.multi_reduction <add>, %1092, %cst_439 [1] : vector<4x32xf32> to vector<4xf32>
    %1094 = vector.shape_cast %1093 : vector<4xf32> to vector<4x1xf32>
    %cst_440 = arith.constant 3.200000e+01 : f32
    %1095 = vector.broadcast %cst_440 : f32 to vector<4x1xf32>
    %1096 = arith.divf %1094, %1095 : vector<4x1xf32>
    %1097 = vector.broadcast %1089 : vector<4x1xf32> to vector<4x32xf32>
    %1098 = arith.subf %1083, %1097 : vector<4x32xf32>
    %cst_441 = arith.constant 9.99999974E-6 : f32
    %1099 = vector.broadcast %cst_441 : f32 to vector<4x1xf32>
    %1100 = arith.addf %1096, %1099 : vector<4x1xf32>
    %1101 = math.rsqrt %1100 : vector<4x1xf32>
    %1102 = vector.broadcast %1101 : vector<4x1xf32> to vector<4x32xf32>
    %1103 = arith.mulf %1098, %1102 : vector<4x32xf32>
    %1104 = vector.broadcast %1084 : vector<1x32xf32> to vector<4x32xf32>
    %1105 = arith.mulf %1103, %1104 : vector<4x32xf32>
    %1106 = vector.broadcast %1085 : vector<1x32xf32> to vector<4x32xf32>
    %1107 = arith.addf %1105, %1106 : vector<4x32xf32>
    %cst_442 = arith.constant 0.000000e+00 : f32
    %1108 = vector.broadcast %cst_442 : f32 to vector<4x32xf32>
    %1109 = arith.maximumf %1107, %1108 : vector<4x32xf32>
    %cst_443 = arith.constant dense<0.000000e+00> : vector<32xf32>
    %1110 = vector.multi_reduction <add>, %1109, %cst_443 [0] : vector<4x32xf32> to vector<32xf32>
    %1111 = vector.shape_cast %1110 : vector<32xf32> to vector<1x32xf32>
    %cst_444 = arith.constant 4.000000e+00 : f32
    %1112 = vector.broadcast %cst_444 : f32 to vector<1x32xf32>
    %1113 = arith.divf %1111, %1112 : vector<1x32xf32>
    %1114 = vector.shape_cast %1113 : vector<1x32xf32> to vector<1x32xf32>
    %1115 = vector.broadcast %1114 : vector<1x32xf32> to vector<4x32xf32>
    %c2_445 = arith.constant 2 : index
    %c0_446 = arith.constant 0 : index
    %c0_447 = arith.constant 0 : index
    %c0_448 = arith.constant 0 : index
    %1116 = vector.load %arg7[%c2_445, %c0_446, %c0_447, %c0_448] : memref<3x2x32x64xf32, #tpu.memory_space<vmem>>, vector<1x1x32x64xf32>
    %1117 = vector.shape_cast %1116 : vector<1x1x32x64xf32> to vector<32x64xf32>
    %cst_449 = arith.constant dense<0.000000e+00> : vector<4x64xf32>
    %1118 = tpu.matmul %1115, %1117, %cst_449 {dimension_numbers = #tpu.dot_dimension_numbers<[1], [0], [0], [1], [0, 0, 1, 1], [], []>} : vector<4x32xf32>, vector<32x64xf32>, vector<4x64xf32> -> vector<4x64xf32>
    %1119 = vector.extract_strided_slice %883 {offsets = [13, 0], sizes = [1, 64], strides = [1, 1]} : vector<28x64xf32> to vector<1x64xf32>
    %1120 = vector.broadcast %1119 : vector<1x64xf32> to vector<4x64xf32>
    %1121 = arith.addf %1118, %1120 : vector<4x64xf32>
    %1122 = vector.extract_strided_slice %883 {offsets = [14, 0], sizes = [1, 64], strides = [1, 1]} : vector<28x64xf32> to vector<1x64xf32>
    %1123 = vector.extract_strided_slice %883 {offsets = [15, 0], sizes = [1, 64], strides = [1, 1]} : vector<28x64xf32> to vector<1x64xf32>
    %cst_450 = arith.constant dense<0.000000e+00> : vector<4xf32>
    %1124 = vector.multi_reduction <add>, %1121, %cst_450 [1] : vector<4x64xf32> to vector<4xf32>
    %1125 = vector.shape_cast %1124 : vector<4xf32> to vector<4x1xf32>
    %cst_451 = arith.constant 6.400000e+01 : f32
    %1126 = vector.broadcast %cst_451 : f32 to vector<4x1xf32>
    %1127 = arith.divf %1125, %1126 : vector<4x1xf32>
    %1128 = vector.broadcast %1127 : vector<4x1xf32> to vector<4x64xf32>
    %1129 = arith.subf %1121, %1128 : vector<4x64xf32>
    %1130 = arith.mulf %1129, %1129 : vector<4x64xf32>
    %cst_452 = arith.constant dense<0.000000e+00> : vector<4xf32>
    %1131 = vector.multi_reduction <add>, %1130, %cst_452 [1] : vector<4x64xf32> to vector<4xf32>
    %1132 = vector.shape_cast %1131 : vector<4xf32> to vector<4x1xf32>
    %cst_453 = arith.constant 6.400000e+01 : f32
    %1133 = vector.broadcast %cst_453 : f32 to vector<4x1xf32>
    %1134 = arith.divf %1132, %1133 : vector<4x1xf32>
    %1135 = vector.broadcast %1127 : vector<4x1xf32> to vector<4x64xf32>
    %1136 = arith.subf %1121, %1135 : vector<4x64xf32>
    %cst_454 = arith.constant 9.99999974E-6 : f32
    %1137 = vector.broadcast %cst_454 : f32 to vector<4x1xf32>
    %1138 = arith.addf %1134, %1137 : vector<4x1xf32>
    %1139 = math.rsqrt %1138 : vector<4x1xf32>
    %1140 = vector.broadcast %1139 : vector<4x1xf32> to vector<4x64xf32>
    %1141 = arith.mulf %1136, %1140 : vector<4x64xf32>
    %1142 = vector.broadcast %1122 : vector<1x64xf32> to vector<4x64xf32>
    %1143 = arith.mulf %1141, %1142 : vector<4x64xf32>
    %1144 = vector.broadcast %1123 : vector<1x64xf32> to vector<4x64xf32>
    %1145 = arith.addf %1143, %1144 : vector<4x64xf32>
    %cst_455 = arith.constant 0.000000e+00 : f32
    %1146 = vector.broadcast %cst_455 : f32 to vector<4x64xf32>
    %1147 = arith.maximumf %1145, %1146 : vector<4x64xf32>
    %c2_456 = arith.constant 2 : index
    %c0_457 = arith.constant 0 : index
    %c0_458 = arith.constant 0 : index
    %c0_459 = arith.constant 0 : index
    %1148 = vector.load %arg8[%c2_456, %c0_457, %c0_458, %c0_459] : memref<3x2x64x64xf32, #tpu.memory_space<vmem>>, vector<1x1x64x64xf32>
    %1149 = vector.shape_cast %1148 : vector<1x1x64x64xf32> to vector<64x64xf32>
    %cst_460 = arith.constant dense<0.000000e+00> : vector<4x64xf32>
    %1150 = tpu.matmul %1147, %1149, %cst_460 {dimension_numbers = #tpu.dot_dimension_numbers<[1], [0], [0], [1], [0, 0, 1, 1], [], []>} : vector<4x64xf32>, vector<64x64xf32>, vector<4x64xf32> -> vector<4x64xf32>
    %1151 = vector.extract_strided_slice %883 {offsets = [16, 0], sizes = [1, 64], strides = [1, 1]} : vector<28x64xf32> to vector<1x64xf32>
    %1152 = vector.broadcast %1151 : vector<1x64xf32> to vector<4x64xf32>
    %1153 = arith.addf %1150, %1152 : vector<4x64xf32>
    %c2_461 = arith.constant 2 : index
    %c1_462 = arith.constant 1 : index
    %c0_463 = arith.constant 0 : index
    %c0_464 = arith.constant 0 : index
    %1154 = vector.load %arg5[%c2_461, %c1_462, %c0_463, %c0_464] : memref<3x2x64x64xf32, #tpu.memory_space<vmem>>, vector<1x1x64x64xf32>
    %1155 = vector.shape_cast %1154 : vector<1x1x64x64xf32> to vector<64x64xf32>
    %cst_465 = arith.constant dense<0.000000e+00> : vector<4x64xf32>
    %1156 = tpu.matmul %997, %1155, %cst_465 {dimension_numbers = #tpu.dot_dimension_numbers<[1], [0], [0], [1], [0, 0, 1, 1], [], []>} : vector<4x64xf32>, vector<64x64xf32>, vector<4x64xf32> -> vector<4x64xf32>
    %1157 = vector.extract_strided_slice %883 {offsets = [17, 0], sizes = [1, 64], strides = [1, 1]} : vector<28x64xf32> to vector<1x64xf32>
    %1158 = vector.broadcast %1157 : vector<1x64xf32> to vector<4x64xf32>
    %1159 = arith.addf %1156, %1158 : vector<4x64xf32>
    %1160 = vector.extract_strided_slice %883 {offsets = [18, 0], sizes = [1, 64], strides = [1, 1]} : vector<28x64xf32> to vector<1x64xf32>
    %1161 = vector.extract_strided_slice %883 {offsets = [19, 0], sizes = [1, 64], strides = [1, 1]} : vector<28x64xf32> to vector<1x64xf32>
    %cst_466 = arith.constant dense<0.000000e+00> : vector<4xf32>
    %1162 = vector.multi_reduction <add>, %1159, %cst_466 [1] : vector<4x64xf32> to vector<4xf32>
    %1163 = vector.shape_cast %1162 : vector<4xf32> to vector<4x1xf32>
    %cst_467 = arith.constant 6.400000e+01 : f32
    %1164 = vector.broadcast %cst_467 : f32 to vector<4x1xf32>
    %1165 = arith.divf %1163, %1164 : vector<4x1xf32>
    %1166 = vector.broadcast %1165 : vector<4x1xf32> to vector<4x64xf32>
    %1167 = arith.subf %1159, %1166 : vector<4x64xf32>
    %1168 = arith.mulf %1167, %1167 : vector<4x64xf32>
    %cst_468 = arith.constant dense<0.000000e+00> : vector<4xf32>
    %1169 = vector.multi_reduction <add>, %1168, %cst_468 [1] : vector<4x64xf32> to vector<4xf32>
    %1170 = vector.shape_cast %1169 : vector<4xf32> to vector<4x1xf32>
    %cst_469 = arith.constant 6.400000e+01 : f32
    %1171 = vector.broadcast %cst_469 : f32 to vector<4x1xf32>
    %1172 = arith.divf %1170, %1171 : vector<4x1xf32>
    %1173 = vector.broadcast %1165 : vector<4x1xf32> to vector<4x64xf32>
    %1174 = arith.subf %1159, %1173 : vector<4x64xf32>
    %cst_470 = arith.constant 9.99999974E-6 : f32
    %1175 = vector.broadcast %cst_470 : f32 to vector<4x1xf32>
    %1176 = arith.addf %1172, %1175 : vector<4x1xf32>
    %1177 = math.rsqrt %1176 : vector<4x1xf32>
    %1178 = vector.broadcast %1177 : vector<4x1xf32> to vector<4x64xf32>
    %1179 = arith.mulf %1174, %1178 : vector<4x64xf32>
    %1180 = vector.broadcast %1160 : vector<1x64xf32> to vector<4x64xf32>
    %1181 = arith.mulf %1179, %1180 : vector<4x64xf32>
    %1182 = vector.broadcast %1161 : vector<1x64xf32> to vector<4x64xf32>
    %1183 = arith.addf %1181, %1182 : vector<4x64xf32>
    %cst_471 = arith.constant 0.000000e+00 : f32
    %1184 = vector.broadcast %cst_471 : f32 to vector<4x64xf32>
    %1185 = arith.maximumf %1183, %1184 : vector<4x64xf32>
    %c2_472 = arith.constant 2 : index
    %c1_473 = arith.constant 1 : index
    %c0_474 = arith.constant 0 : index
    %c0_475 = arith.constant 0 : index
    %1186 = vector.load %arg6[%c2_472, %c1_473, %c0_474, %c0_475] : memref<3x2x64x32xf32, #tpu.memory_space<vmem>>, vector<1x1x64x32xf32>
    %1187 = vector.shape_cast %1186 : vector<1x1x64x32xf32> to vector<64x32xf32>
    %cst_476 = arith.constant dense<0.000000e+00> : vector<4x32xf32>
    %1188 = tpu.matmul %1185, %1187, %cst_476 {dimension_numbers = #tpu.dot_dimension_numbers<[1], [0], [0], [1], [0, 0, 1, 1], [], []>} : vector<4x64xf32>, vector<64x32xf32>, vector<4x32xf32> -> vector<4x32xf32>
    %1189 = vector.extract_strided_slice %885 {offsets = [3, 0], sizes = [1, 32], strides = [1, 1]} : vector<6x32xf32> to vector<1x32xf32>
    %1190 = vector.broadcast %1189 : vector<1x32xf32> to vector<4x32xf32>
    %1191 = arith.addf %1188, %1190 : vector<4x32xf32>
    %1192 = vector.extract_strided_slice %885 {offsets = [4, 0], sizes = [1, 32], strides = [1, 1]} : vector<6x32xf32> to vector<1x32xf32>
    %1193 = vector.extract_strided_slice %885 {offsets = [5, 0], sizes = [1, 32], strides = [1, 1]} : vector<6x32xf32> to vector<1x32xf32>
    %cst_477 = arith.constant dense<0.000000e+00> : vector<4xf32>
    %1194 = vector.multi_reduction <add>, %1191, %cst_477 [1] : vector<4x32xf32> to vector<4xf32>
    %1195 = vector.shape_cast %1194 : vector<4xf32> to vector<4x1xf32>
    %cst_478 = arith.constant 3.200000e+01 : f32
    %1196 = vector.broadcast %cst_478 : f32 to vector<4x1xf32>
    %1197 = arith.divf %1195, %1196 : vector<4x1xf32>
    %1198 = vector.broadcast %1197 : vector<4x1xf32> to vector<4x32xf32>
    %1199 = arith.subf %1191, %1198 : vector<4x32xf32>
    %1200 = arith.mulf %1199, %1199 : vector<4x32xf32>
    %cst_479 = arith.constant dense<0.000000e+00> : vector<4xf32>
    %1201 = vector.multi_reduction <add>, %1200, %cst_479 [1] : vector<4x32xf32> to vector<4xf32>
    %1202 = vector.shape_cast %1201 : vector<4xf32> to vector<4x1xf32>
    %cst_480 = arith.constant 3.200000e+01 : f32
    %1203 = vector.broadcast %cst_480 : f32 to vector<4x1xf32>
    %1204 = arith.divf %1202, %1203 : vector<4x1xf32>
    %1205 = vector.broadcast %1197 : vector<4x1xf32> to vector<4x32xf32>
    %1206 = arith.subf %1191, %1205 : vector<4x32xf32>
    %cst_481 = arith.constant 9.99999974E-6 : f32
    %1207 = vector.broadcast %cst_481 : f32 to vector<4x1xf32>
    %1208 = arith.addf %1204, %1207 : vector<4x1xf32>
    %1209 = math.rsqrt %1208 : vector<4x1xf32>
    %1210 = vector.broadcast %1209 : vector<4x1xf32> to vector<4x32xf32>
    %1211 = arith.mulf %1206, %1210 : vector<4x32xf32>
    %1212 = vector.broadcast %1192 : vector<1x32xf32> to vector<4x32xf32>
    %1213 = arith.mulf %1211, %1212 : vector<4x32xf32>
    %1214 = vector.broadcast %1193 : vector<1x32xf32> to vector<4x32xf32>
    %1215 = arith.addf %1213, %1214 : vector<4x32xf32>
    %cst_482 = arith.constant 0.000000e+00 : f32
    %1216 = vector.broadcast %cst_482 : f32 to vector<4x32xf32>
    %1217 = arith.maximumf %1215, %1216 : vector<4x32xf32>
    %cst_483 = arith.constant dense<0.000000e+00> : vector<32xf32>
    %1218 = vector.multi_reduction <add>, %1217, %cst_483 [0] : vector<4x32xf32> to vector<32xf32>
    %1219 = vector.shape_cast %1218 : vector<32xf32> to vector<1x32xf32>
    %cst_484 = arith.constant 4.000000e+00 : f32
    %1220 = vector.broadcast %cst_484 : f32 to vector<1x32xf32>
    %1221 = arith.divf %1219, %1220 : vector<1x32xf32>
    %1222 = vector.shape_cast %1221 : vector<1x32xf32> to vector<1x32xf32>
    %1223 = vector.broadcast %1222 : vector<1x32xf32> to vector<4x32xf32>
    %c2_485 = arith.constant 2 : index
    %c1_486 = arith.constant 1 : index
    %c0_487 = arith.constant 0 : index
    %c0_488 = arith.constant 0 : index
    %1224 = vector.load %arg7[%c2_485, %c1_486, %c0_487, %c0_488] : memref<3x2x32x64xf32, #tpu.memory_space<vmem>>, vector<1x1x32x64xf32>
    %1225 = vector.shape_cast %1224 : vector<1x1x32x64xf32> to vector<32x64xf32>
    %cst_489 = arith.constant dense<0.000000e+00> : vector<4x64xf32>
    %1226 = tpu.matmul %1223, %1225, %cst_489 {dimension_numbers = #tpu.dot_dimension_numbers<[1], [0], [0], [1], [0, 0, 1, 1], [], []>} : vector<4x32xf32>, vector<32x64xf32>, vector<4x64xf32> -> vector<4x64xf32>
    %1227 = vector.extract_strided_slice %883 {offsets = [20, 0], sizes = [1, 64], strides = [1, 1]} : vector<28x64xf32> to vector<1x64xf32>
    %1228 = vector.broadcast %1227 : vector<1x64xf32> to vector<4x64xf32>
    %1229 = arith.addf %1226, %1228 : vector<4x64xf32>
    %1230 = vector.extract_strided_slice %883 {offsets = [21, 0], sizes = [1, 64], strides = [1, 1]} : vector<28x64xf32> to vector<1x64xf32>
    %1231 = vector.extract_strided_slice %883 {offsets = [22, 0], sizes = [1, 64], strides = [1, 1]} : vector<28x64xf32> to vector<1x64xf32>
    %cst_490 = arith.constant dense<0.000000e+00> : vector<4xf32>
    %1232 = vector.multi_reduction <add>, %1229, %cst_490 [1] : vector<4x64xf32> to vector<4xf32>
    %1233 = vector.shape_cast %1232 : vector<4xf32> to vector<4x1xf32>
    %cst_491 = arith.constant 6.400000e+01 : f32
    %1234 = vector.broadcast %cst_491 : f32 to vector<4x1xf32>
    %1235 = arith.divf %1233, %1234 : vector<4x1xf32>
    %1236 = vector.broadcast %1235 : vector<4x1xf32> to vector<4x64xf32>
    %1237 = arith.subf %1229, %1236 : vector<4x64xf32>
    %1238 = arith.mulf %1237, %1237 : vector<4x64xf32>
    %cst_492 = arith.constant dense<0.000000e+00> : vector<4xf32>
    %1239 = vector.multi_reduction <add>, %1238, %cst_492 [1] : vector<4x64xf32> to vector<4xf32>
    %1240 = vector.shape_cast %1239 : vector<4xf32> to vector<4x1xf32>
    %cst_493 = arith.constant 6.400000e+01 : f32
    %1241 = vector.broadcast %cst_493 : f32 to vector<4x1xf32>
    %1242 = arith.divf %1240, %1241 : vector<4x1xf32>
    %1243 = vector.broadcast %1235 : vector<4x1xf32> to vector<4x64xf32>
    %1244 = arith.subf %1229, %1243 : vector<4x64xf32>
    %cst_494 = arith.constant 9.99999974E-6 : f32
    %1245 = vector.broadcast %cst_494 : f32 to vector<4x1xf32>
    %1246 = arith.addf %1242, %1245 : vector<4x1xf32>
    %1247 = math.rsqrt %1246 : vector<4x1xf32>
    %1248 = vector.broadcast %1247 : vector<4x1xf32> to vector<4x64xf32>
    %1249 = arith.mulf %1244, %1248 : vector<4x64xf32>
    %1250 = vector.broadcast %1230 : vector<1x64xf32> to vector<4x64xf32>
    %1251 = arith.mulf %1249, %1250 : vector<4x64xf32>
    %1252 = vector.broadcast %1231 : vector<1x64xf32> to vector<4x64xf32>
    %1253 = arith.addf %1251, %1252 : vector<4x64xf32>
    %cst_495 = arith.constant 0.000000e+00 : f32
    %1254 = vector.broadcast %cst_495 : f32 to vector<4x64xf32>
    %1255 = arith.maximumf %1253, %1254 : vector<4x64xf32>
    %c2_496 = arith.constant 2 : index
    %c1_497 = arith.constant 1 : index
    %c0_498 = arith.constant 0 : index
    %c0_499 = arith.constant 0 : index
    %1256 = vector.load %arg8[%c2_496, %c1_497, %c0_498, %c0_499] : memref<3x2x64x64xf32, #tpu.memory_space<vmem>>, vector<1x1x64x64xf32>
    %1257 = vector.shape_cast %1256 : vector<1x1x64x64xf32> to vector<64x64xf32>
    %cst_500 = arith.constant dense<0.000000e+00> : vector<4x64xf32>
    %1258 = tpu.matmul %1255, %1257, %cst_500 {dimension_numbers = #tpu.dot_dimension_numbers<[1], [0], [0], [1], [0, 0, 1, 1], [], []>} : vector<4x64xf32>, vector<64x64xf32>, vector<4x64xf32> -> vector<4x64xf32>
    %1259 = vector.extract_strided_slice %883 {offsets = [23, 0], sizes = [1, 64], strides = [1, 1]} : vector<28x64xf32> to vector<1x64xf32>
    %1260 = vector.broadcast %1259 : vector<1x64xf32> to vector<4x64xf32>
    %1261 = arith.addf %1258, %1260 : vector<4x64xf32>
    %cst_501 = arith.constant dense<0.000000e+00> : vector<4x4xf32>
    %1262 = tpu.matmul %1153, %1010, %cst_501 {dimension_numbers = #tpu.dot_dimension_numbers<[1], [1], [0], [0], [0, 0, 1, 0], [], []>} : vector<4x64xf32>, vector<4x64xf32>, vector<4x4xf32> -> vector<4x4xf32>
    %cst_502 = arith.constant 1.562500e-02 : f32
    %1263 = vector.broadcast %cst_502 : f32 to vector<4x4xf32>
    %1264 = arith.mulf %1262, %1263 : vector<4x4xf32>
    %cst_503 = arith.constant dense<0xFF800000> : vector<4xf32>
    %1265 = vector.multi_reduction <maximumf>, %1264, %cst_503 [0] : vector<4x4xf32> to vector<4xf32>
    %1266 = vector.shape_cast %1265 : vector<4xf32> to vector<1x4xf32>
    %1267 = vector.broadcast %1266 : vector<1x4xf32> to vector<4x4xf32>
    %1268 = arith.subf %1264, %1267 : vector<4x4xf32>
    %1269 = math.exp %1268 : vector<4x4xf32>
    %cst_504 = arith.constant dense<0.000000e+00> : vector<4xf32>
    %1270 = vector.multi_reduction <add>, %1269, %cst_504 [0] : vector<4x4xf32> to vector<4xf32>
    %1271 = vector.shape_cast %1270 : vector<4xf32> to vector<1x4xf32>
    %1272 = tpu.reciprocal %1271 {approx = true} : vector<1x4xf32> -> vector<1x4xf32>
    %1273 = vector.broadcast %1272 : vector<1x4xf32> to vector<4x4xf32>
    %1274 = arith.mulf %1269, %1273 : vector<4x4xf32>
    %cst_505 = arith.constant dense<0.000000e+00> : vector<4x64xf32>
    %1275 = tpu.matmul %1274, %1011, %cst_505 {dimension_numbers = #tpu.dot_dimension_numbers<[1], [0], [0], [1], [0, 0, 1, 1], [], []>} : vector<4x4xf32>, vector<4x64xf32>, vector<4x64xf32> -> vector<4x64xf32>
    %cst_506 = arith.constant 1.562500e-02 : f32
    %1276 = vector.broadcast %cst_506 : f32 to vector<4x64xf32>
    %1277 = arith.mulf %1275, %1276 : vector<4x64xf32>
    %cst_507 = arith.constant dense<0.000000e+00> : vector<4x4xf32>
    %1278 = tpu.matmul %1261, %1012, %cst_507 {dimension_numbers = #tpu.dot_dimension_numbers<[1], [1], [0], [0], [0, 0, 1, 0], [], []>} : vector<4x64xf32>, vector<4x64xf32>, vector<4x4xf32> -> vector<4x4xf32>
    %cst_508 = arith.constant 1.562500e-02 : f32
    %1279 = vector.broadcast %cst_508 : f32 to vector<4x4xf32>
    %1280 = arith.mulf %1278, %1279 : vector<4x4xf32>
    %cst_509 = arith.constant dense<0xFF800000> : vector<4xf32>
    %1281 = vector.multi_reduction <maximumf>, %1280, %cst_509 [0] : vector<4x4xf32> to vector<4xf32>
    %1282 = vector.shape_cast %1281 : vector<4xf32> to vector<1x4xf32>
    %1283 = vector.broadcast %1282 : vector<1x4xf32> to vector<4x4xf32>
    %1284 = arith.subf %1280, %1283 : vector<4x4xf32>
    %1285 = math.exp %1284 : vector<4x4xf32>
    %cst_510 = arith.constant dense<0.000000e+00> : vector<4xf32>
    %1286 = vector.multi_reduction <add>, %1285, %cst_510 [0] : vector<4x4xf32> to vector<4xf32>
    %1287 = vector.shape_cast %1286 : vector<4xf32> to vector<1x4xf32>
    %1288 = tpu.reciprocal %1287 {approx = true} : vector<1x4xf32> -> vector<1x4xf32>
    %1289 = vector.broadcast %1288 : vector<1x4xf32> to vector<4x4xf32>
    %1290 = arith.mulf %1285, %1289 : vector<4x4xf32>
    %cst_511 = arith.constant dense<0.000000e+00> : vector<4x64xf32>
    %1291 = tpu.matmul %1290, %1013, %cst_511 {dimension_numbers = #tpu.dot_dimension_numbers<[1], [0], [0], [1], [0, 0, 1, 1], [], []>} : vector<4x4xf32>, vector<4x64xf32>, vector<4x64xf32> -> vector<4x64xf32>
    %cst_512 = arith.constant 1.562500e-02 : f32
    %1292 = vector.broadcast %cst_512 : f32 to vector<4x64xf32>
    %1293 = arith.mulf %1291, %1292 : vector<4x64xf32>
    %c2_513 = arith.constant 2 : index
    %c0_514 = arith.constant 0 : index
    %c0_515 = arith.constant 0 : index
    %c0_516 = arith.constant 0 : index
    %1294 = vector.load %arg9[%c2_513, %c0_514, %c0_515, %c0_516] : memref<3x4x64x64xf32, #tpu.memory_space<vmem>>, vector<1x1x64x64xf32>
    %1295 = vector.shape_cast %1294 : vector<1x1x64x64xf32> to vector<64x64xf32>
    %cst_517 = arith.constant dense<0.000000e+00> : vector<4x64xf32>
    %1296 = tpu.matmul %1277, %1295, %cst_517 {dimension_numbers = #tpu.dot_dimension_numbers<[1], [0], [0], [1], [0, 0, 1, 1], [], []>} : vector<4x64xf32>, vector<64x64xf32>, vector<4x64xf32> -> vector<4x64xf32>
    %1297 = vector.extract_strided_slice %883 {offsets = [24, 0], sizes = [1, 64], strides = [1, 1]} : vector<28x64xf32> to vector<1x64xf32>
    %1298 = vector.broadcast %1297 : vector<1x64xf32> to vector<4x64xf32>
    %1299 = arith.addf %1296, %1298 : vector<4x64xf32>
    %c2_518 = arith.constant 2 : index
    %c1_519 = arith.constant 1 : index
    %c0_520 = arith.constant 0 : index
    %c0_521 = arith.constant 0 : index
    %1300 = vector.load %arg9[%c2_518, %c1_519, %c0_520, %c0_521] : memref<3x4x64x64xf32, #tpu.memory_space<vmem>>, vector<1x1x64x64xf32>
    %1301 = vector.shape_cast %1300 : vector<1x1x64x64xf32> to vector<64x64xf32>
    %cst_522 = arith.constant dense<0.000000e+00> : vector<4x64xf32>
    %1302 = tpu.matmul %1293, %1301, %cst_522 {dimension_numbers = #tpu.dot_dimension_numbers<[1], [0], [0], [1], [0, 0, 1, 1], [], []>} : vector<4x64xf32>, vector<64x64xf32>, vector<4x64xf32> -> vector<4x64xf32>
    %1303 = vector.extract_strided_slice %883 {offsets = [25, 0], sizes = [1, 64], strides = [1, 1]} : vector<28x64xf32> to vector<1x64xf32>
    %1304 = vector.broadcast %1303 : vector<1x64xf32> to vector<4x64xf32>
    %1305 = arith.addf %1302, %1304 : vector<4x64xf32>
    %c2_523 = arith.constant 2 : index
    %c2_524 = arith.constant 2 : index
    %c0_525 = arith.constant 0 : index
    %c0_526 = arith.constant 0 : index
    %1306 = vector.load %arg9[%c2_523, %c2_524, %c0_525, %c0_526] : memref<3x4x64x64xf32, #tpu.memory_space<vmem>>, vector<1x1x64x64xf32>
    %1307 = vector.shape_cast %1306 : vector<1x1x64x64xf32> to vector<64x64xf32>
    %cst_527 = arith.constant dense<0.000000e+00> : vector<4x64xf32>
    %1308 = tpu.matmul %1029, %1307, %cst_527 {dimension_numbers = #tpu.dot_dimension_numbers<[1], [0], [0], [1], [0, 0, 1, 1], [], []>} : vector<4x64xf32>, vector<64x64xf32>, vector<4x64xf32> -> vector<4x64xf32>
    %1309 = vector.extract_strided_slice %883 {offsets = [26, 0], sizes = [1, 64], strides = [1, 1]} : vector<28x64xf32> to vector<1x64xf32>
    %1310 = vector.broadcast %1309 : vector<1x64xf32> to vector<4x64xf32>
    %1311 = arith.addf %1308, %1310 : vector<4x64xf32>
    %c2_528 = arith.constant 2 : index
    %c3_529 = arith.constant 3 : index
    %c0_530 = arith.constant 0 : index
    %c0_531 = arith.constant 0 : index
    %1312 = vector.load %arg9[%c2_528, %c3_529, %c0_530, %c0_531] : memref<3x4x64x64xf32, #tpu.memory_space<vmem>>, vector<1x1x64x64xf32>
    %1313 = vector.shape_cast %1312 : vector<1x1x64x64xf32> to vector<64x64xf32>
    %cst_532 = arith.constant dense<0.000000e+00> : vector<4x64xf32>
    %1314 = tpu.matmul %1045, %1313, %cst_532 {dimension_numbers = #tpu.dot_dimension_numbers<[1], [0], [0], [1], [0, 0, 1, 1], [], []>} : vector<4x64xf32>, vector<64x64xf32>, vector<4x64xf32> -> vector<4x64xf32>
    %1315 = vector.extract_strided_slice %883 {offsets = [27, 0], sizes = [1, 64], strides = [1, 1]} : vector<28x64xf32> to vector<1x64xf32>
    %1316 = vector.broadcast %1315 : vector<1x64xf32> to vector<4x64xf32>
    %1317 = arith.addf %1314, %1316 : vector<4x64xf32>
    %1318 = tpu.concatenate %1299, %1305, %1311, %1317 in 1 : vector<4x64xf32>, vector<4x64xf32>, vector<4x64xf32>, vector<4x64xf32> -> vector<4x256xf32>
    %c2_533 = arith.constant 2 : index
    %c0_534 = arith.constant 0 : index
    %c0_535 = arith.constant 0 : index
    %1319 = vector.load %arg17[%c2_533, %c0_534, %c0_535] : memref<3x4x256xf32, #tpu.memory_space<vmem>>, vector<1x4x256xf32>
    %1320 = vector.shape_cast %1319 : vector<1x4x256xf32> to vector<4x256xf32>
    %1321 = vector.shape_cast %1318 : vector<4x256xf32> to vector<1x4x256xf32>
    tpu.vector_store %arg17[%c2_533, %c0_534, %c0_535], %1321 {strides = array<i32>} : memref<3x4x256xf32, #tpu.memory_space<vmem>>, vector<1x4x256xf32>,
    %1322 = tpu.concatenate %1305, %437, %877, %1317, %1299 in 0 : vector<4x64xf32>, vector<4x64xf32>, vector<4x64xf32>, vector<4x64xf32>, vector<4x64xf32> -> vector<20x64xf32>
    %c0_536 = arith.constant 0 : index
    %c0_537 = arith.constant 0 : index
    %1323 = vector.load %arg13[%c0_536, %c0_537] : memref<64x256xf32, #tpu.memory_space<vmem>>, vector<64x256xf32>
    %cst_538 = arith.constant dense<0.000000e+00> : vector<20x256xf32>
    %1324 = tpu.matmul %1322, %1323, %cst_538 {dimension_numbers = #tpu.dot_dimension_numbers<[1], [0], [0], [1], [0, 0, 1, 1], [], []>} : vector<20x64xf32>, vector<64x256xf32>, vector<20x256xf32> -> vector<20x256xf32>
    %c0_539 = arith.constant 0 : index
    %c0_540 = arith.constant 0 : index
    %1325 = vector.load %arg14[%c0_539, %c0_540] : memref<1x256xf32, #tpu.memory_space<vmem>>, vector<1x256xf32>
    %1326 = vector.broadcast %1325 : vector<1x256xf32> to vector<20x256xf32>
    %1327 = arith.addf %1324, %1326 : vector<20x256xf32>
    %c0_541 = arith.constant 0 : index
    %c0_542 = arith.constant 0 : index
    %1328 = vector.load %arg16[%c0_541, %c0_542] : memref<1x2xf32, #tpu.memory_space<vmem>>, vector<1x2xf32>
    %c0_543 = arith.constant 0 : index
    %c0_544 = arith.constant 0 : index
    %c0_545 = arith.constant 0 : index
    %1329 = vector.load %arg15[%c0_543, %c0_544, %c0_545] : memref<2x20x256xf32, #tpu.memory_space<vmem>>, vector<1x20x256xf32>
    %1330 = vector.shape_cast %1329 : vector<1x20x256xf32> to vector<20x256xf32>
    %1331 = arith.mulf %1327, %1330 : vector<20x256xf32>
    %cst_546 = arith.constant dense<0.000000e+00> : vector<20xf32>
    %1332 = vector.multi_reduction <add>, %1331, %cst_546 [1] : vector<20x256xf32> to vector<20xf32>
    %1333 = vector.shape_cast %1332 : vector<20xf32> to vector<20x1xf32>
    %cst_547 = arith.constant dense<0.000000e+00> : vector<1xf32>
    %1334 = vector.multi_reduction <add>, %1333, %cst_547 [0] : vector<20x1xf32> to vector<1xf32>
    %1335 = vector.shape_cast %1334 : vector<1xf32> to vector<1x1xf32>
    %1336 = vector.extract_strided_slice %1328 {offsets = [0, 0], sizes = [1, 1], strides = [1, 1]} : vector<1x2xf32> to vector<1x1xf32>
    %1337 = arith.addf %1335, %1336 : vector<1x1xf32>
    %c0_548 = arith.constant 0 : index
    %c0_549 = arith.constant 0 : index
    %1338 = vector.load %arg18[%c0_548, %c0_549] : memref<1x2xf32, #tpu.memory_space<vmem>>, vector<1x1xf32>
    tpu.vector_store %arg18[%c0_548, %c0_549], %1337 {strides = array<i32>} : memref<1x2xf32, #tpu.memory_space<vmem>>, vector<1x1xf32>,
    %cst_550 = arith.constant 5.000000e-01 : f32
    %1339 = vector.broadcast %cst_550 : f32 to vector<1x1xf32>
    %1340 = arith.mulf %1339, %1337 : vector<1x1xf32>
    %1341 = math.tanh %1340 : vector<1x1xf32>
    %cst_551 = arith.constant 5.000000e-01 : f32
    %1342 = vector.broadcast %cst_551 : f32 to vector<1x1xf32>
    %1343 = arith.mulf %1342, %1341 : vector<1x1xf32>
    %cst_552 = arith.constant 5.000000e-01 : f32
    %1344 = vector.broadcast %cst_552 : f32 to vector<1x1xf32>
    %1345 = arith.addf %1343, %1344 : vector<1x1xf32>
    %c0_553 = arith.constant 0 : index
    %c0_554 = arith.constant 0 : index
    %1346 = vector.load %arg19[%c0_553, %c0_554] : memref<1x2xf32, #tpu.memory_space<vmem>>, vector<1x1xf32>
    tpu.vector_store %arg19[%c0_553, %c0_554], %1345 {strides = array<i32>} : memref<1x2xf32, #tpu.memory_space<vmem>>, vector<1x1xf32>,
    %c1_555 = arith.constant 1 : index
    %c0_556 = arith.constant 0 : index
    %c0_557 = arith.constant 0 : index
    %1347 = vector.load %arg15[%c1_555, %c0_556, %c0_557] : memref<2x20x256xf32, #tpu.memory_space<vmem>>, vector<1x20x256xf32>
    %1348 = vector.shape_cast %1347 : vector<1x20x256xf32> to vector<20x256xf32>
    %1349 = arith.mulf %1327, %1348 : vector<20x256xf32>
    %cst_558 = arith.constant dense<0.000000e+00> : vector<20xf32>
    %1350 = vector.multi_reduction <add>, %1349, %cst_558 [1] : vector<20x256xf32> to vector<20xf32>
    %1351 = vector.shape_cast %1350 : vector<20xf32> to vector<20x1xf32>
    %cst_559 = arith.constant dense<0.000000e+00> : vector<1xf32>
    %1352 = vector.multi_reduction <add>, %1351, %cst_559 [0] : vector<20x1xf32> to vector<1xf32>
    %1353 = vector.shape_cast %1352 : vector<1xf32> to vector<1x1xf32>
    %1354 = vector.extract_strided_slice %1328 {offsets = [0, 1], sizes = [1, 1], strides = [1, 1]} : vector<1x2xf32> to vector<1x1xf32>
    %1355 = arith.addf %1353, %1354 : vector<1x1xf32>
    %c0_560 = arith.constant 0 : index
    %c1_561 = arith.constant 1 : index
    %1356 = vector.load %arg18[%c0_560, %c1_561] : memref<1x2xf32, #tpu.memory_space<vmem>>, vector<1x1xf32>
    tpu.vector_store %arg18[%c0_560, %c1_561], %1355 {strides = array<i32>} : memref<1x2xf32, #tpu.memory_space<vmem>>, vector<1x1xf32>,
    %cst_562 = arith.constant 5.000000e-01 : f32
    %1357 = vector.broadcast %cst_562 : f32 to vector<1x1xf32>
    %1358 = arith.mulf %1357, %1355 : vector<1x1xf32>
    %1359 = math.tanh %1358 : vector<1x1xf32>
    %cst_563 = arith.constant 5.000000e-01 : f32
    %1360 = vector.broadcast %cst_563 : f32 to vector<1x1xf32>
    %1361 = arith.mulf %1360, %1359 : vector<1x1xf32>
    %cst_564 = arith.constant 5.000000e-01 : f32
    %1362 = vector.broadcast %cst_564 : f32 to vector<1x1xf32>
    %1363 = arith.addf %1361, %1362 : vector<1x1xf32>
    %c0_565 = arith.constant 0 : index
    %c1_566 = arith.constant 1 : index
    %1364 = vector.load %arg19[%c0_565, %c1_566] : memref<1x2xf32, #tpu.memory_space<vmem>>, vector<1x1xf32>
    tpu.vector_store %arg19[%c0_565, %c1_566], %1363 {strides = array<i32>} : memref<1x2xf32, #tpu.memory_space<vmem>>, vector<1x1xf32>,
    return
  }
}

</mosaic_0001>

<llo_original>
// kernel: lrenet_forward.1
$region0: #{lrenet_forward.1}
  #allocation0 [shape = 'u32[]', space=smem, size = 0x4, offset = 0x4, fixed_abs, tag = 'smem constant byte address 0x4 - core index']
  #allocation1 [shape = 'u32[72,128]{1,0:T(1,128)}', space=vmem, size = 0x9000, scoped, tag = 'internal scratch']
  %s0 = inlined_call_operand.hbm [shape: f32[8,64], index: 0, kind: input, shape index: {}]
  %s1 = inlined_call_operand.hbm [shape: f32[16,64], index: 1, kind: input, shape index: {}]
  %s2 = inlined_call_operand.hbm [shape: f32[3,4,64], index: 2, kind: input, shape index: {}]
  %s3 = inlined_call_operand.vmem [shape: f32[3,2,64,64], index: 3, kind: input, shape index: {}]
  %s4 = inlined_call_operand.hbm [shape: f32[3,2,64,128], index: 4, kind: input, shape index: {}]
  %s5 = inlined_call_operand.hbm [shape: f32[3,2,64,64], index: 5, kind: input, shape index: {}]
  %s6 = inlined_call_operand.vmem [shape: f32[3,2,64,32], index: 6, kind: input, shape index: {}]
  %s7 = inlined_call_operand.vmem [shape: f32[3,2,32,64], index: 7, kind: input, shape index: {}]
  %s8 = inlined_call_operand.hbm [shape: f32[3,2,64,64], index: 8, kind: input, shape index: {}]
  %s9 = inlined_call_operand.hbm [shape: f32[3,4,64,64], index: 9, kind: input, shape index: {}]
  %s10 = inlined_call_operand.vmem [shape: f32[3,28,64], index: 10, kind: input, shape index: {}]
  %s11 = inlined_call_operand.hbm [shape: f32[3,2,128], index: 11, kind: input, shape index: {}]
  %s12 = inlined_call_operand.hbm [shape: f32[3,6,32], index: 12, kind: input, shape index: {}]
  %s13 = inlined_call_operand.hbm [shape: f32[64,256], index: 13, kind: input, shape index: {}]
  %s14 = inlined_call_operand.vmem [shape: f32[1,256], index: 14, kind: input, shape index: {}]
  %s15 = inlined_call_operand.vmem [shape: f32[2,20,256], index: 15, kind: input, shape index: {}]
  %s16 = inlined_call_operand.vmem [shape: f32[1,2], index: 16, kind: input, shape index: {}]
  %s17 = inlined_call_operand.vmem [shape: f32[3,4,256], index: 17, kind: output, shape index: {0}]
  %s18 = inlined_call_operand.vmem [shape: f32[1,2], index: 18, kind: output, shape index: {1}]
  %s19 = inlined_call_operand.hbm [shape: f32[1,2], index: 19, kind: output, shape index: {2}]
  %20 = xla_tuple %s17, %s18, %s19
  %s21 = sld [smem:[#allocation0]]
  $region134: #{lrenet_forward.1} parent=0
    _
  %s23 = ssub.s32 1, %s21
  %s24 = scalar_select 0, %s23, %s21
  $region1: #{lrenet_forward.1} parent=0
    #allocation2 [shape = 'u8[4096]{0}', space=vmem, size = 0x1000, scoped, tag = 'input window, operand 0, single buffered']
    #allocation3 [shape = 's32[1]{0}', space=sflag, size = 0x4, scoped, tag = 'scoped memory for lrenet_forward.1']
    #allocation4 [shape = 's32[1]{0}', space=sflag, size = 0x4, scoped, tag = 'scoped memory for lrenet_forward.1']
    #allocation5 [shape = 'u8[8192]{0}', space=vmem, size = 0x2000, scoped, tag = 'input window, operand 1, single buffered']
    #allocation6 [shape = 's32[1]{0}', space=sflag, size = 0x4, scoped, tag = 'scoped memory for lrenet_forward.1']
    #allocation7 [shape = 'u8[6144]{0}', space=vmem, size = 0x1800, scoped, tag = 'input window, operand 2, single buffered']
    #allocation8 [shape = 'u8[196608]{0}', space=vmem, size = 0x30000, scoped, tag = 'input window, operand 4, single buffered']
    #allocation9 [shape = 's32[1]{0}', space=sflag, size = 0x4, scoped, tag = 'scoped memory for lrenet_forward.1']
    #allocation10 [shape = 'u8[196608]{0}', space=vmem, size = 0x30000, scoped, tag = 'input window, operand 5, single buffered']
    #allocation11 [shape = 'u8[196608]{0}', space=vmem, size = 0x30000, scoped, tag = 'input window, operand 8, single buffered']
    #allocation12 [shape = 's32[1]{0}', space=sflag, size = 0x4, scoped, tag = 'scoped memory for lrenet_forward.1']
    #allocation13 [shape = 'u8[393216]{0}', space=vmem, size = 0x60000, scoped, tag = 'input window, operand 9, single buffered']
    #allocation14 [shape = 'u8[3072]{0}', space=vmem, size = 0xc00, scoped, tag = 'input window, operand 11, single buffered']
    #allocation15 [shape = 's32[1]{0}', space=sflag, size = 0x4, scoped, tag = 'scoped memory for lrenet_forward.1']
    #allocation16 [shape = 'u8[12288]{0}', space=vmem, size = 0x3000, scoped, tag = 'input window, operand 12, single buffered']
    #allocation17 [shape = 'u8[65536]{0}', space=vmem, size = 0x10000, scoped, tag = 'input window, operand 13, single buffered']
    #allocation18 [shape = 's32[1]{0}', space=sflag, size = 0x4, scoped, tag = 'scoped memory for lrenet_forward.1']
    #allocation19 [shape = 'u8[512]{0}', space=vmem, size = 0x400, scoped, tag = 'output window, operand 2, single buffered']
    %25 = vsyncpa [#allocation3], 0
    %26 = vsyncpa [#allocation6], 0
    %27 = vsyncpa [#allocation9], 0
    %28 = vsyncpa [#allocation12], 0
    %29 = vsyncpa [#allocation15], 0
    %30 = vsyncpa [#allocation18], 0
    %31 = vsyncpa [#allocation4], 0
    // Predicated region
    $region2: #{lrenet_forward.1} parent=1 // pred_check
      _
    $region3: #{lrenet_forward.1} parent=1 // pred_check_branch
      %33 = sbr.rel (0) target = $region5
    $region4: #{lrenet_forward.1} parent=1 // pred_region
      %35 = vsyncadd [#allocation3], 0
      %s37 = sshll.u32 %s0, 4
      %s38 = int_to_ptr.hbm [resolvable:$true] %s37
      %s39 = sshll.u32 [#allocation2], 4
      %s40 = int_to_ptr.vmem [resolvable:$true] %s39
      %42 = dma.hbm_to_vmem [thread:$0]  %s38, 128, %s40, [#allocation3]
    $region5: #{lrenet_forward.1} parent=1 // pred_fallthru
      _
    // Predicated region
    $region6: #{lrenet_forward.1} parent=1 // pred_check
      _
    $region7: #{lrenet_forward.1} parent=1 // pred_check_branch
      %44 = sbr.rel (0) target = $region9
    $region8: #{lrenet_forward.1} parent=1 // pred_region
      %46 = vsyncadd [#allocation6], 0
      %s47 = sshll.u32 %s1, 4
      %s48 = int_to_ptr.hbm [resolvable:$true] %s47
      %s49 = sshll.u32 [#allocation5], 4
      %s50 = int_to_ptr.vmem [resolvable:$true] %s49
      %55 = dma.hbm_to_vmem [thread:$0]  %s48, 256, %s50, [#allocation6], 128, 128, 8
    $region9: #{lrenet_forward.1} parent=1 // pred_fallthru
      _
    // Predicated region
    $region10: #{lrenet_forward.1} parent=1 // pred_check
      _
    $region11: #{lrenet_forward.1} parent=1 // pred_check_branch
      %57 = sbr.rel (0) target = $region13
    $region12: #{lrenet_forward.1} parent=1 // pred_region
      %59 = vsyncadd [#allocation6], 0
      %s60 = sshll.u32 %s2, 4
      %s61 = int_to_ptr.hbm [resolvable:$true] %s60
      %s62 = sshll.u32 [#allocation7], 4
      %s63 = int_to_ptr.vmem [resolvable:$true] %s62
      %68 = dma.hbm_to_vmem [thread:$0]  %s61, 192, %s63, [#allocation6], 64, 64, 4
    $region13: #{lrenet_forward.1} parent=1 // pred_fallthru
      _
    // Predicated region
    $region14: #{lrenet_forward.1} parent=1 // pred_check
      _
    $region15: #{lrenet_forward.1} parent=1 // pred_check_branch
      %70 = sbr.rel (0) target = $region17
    $region16: #{lrenet_forward.1} parent=1 // pred_region
      _
    $region17: #{lrenet_forward.1} parent=1 // pred_fallthru
      _
    // Predicated region
    $region18: #{lrenet_forward.1} parent=1 // pred_check
      _
    $region19: #{lrenet_forward.1} parent=1 // pred_check_branch
      %72 = sbr.rel (0) target = $region21
    $region20: #{lrenet_forward.1} parent=1 // pred_region
      %74 = vsyncadd [#allocation9], 0
      %s75 = sshll.u32 %s4, 4
      %s76 = int_to_ptr.hbm [resolvable:$true] %s75
      %s77 = sshll.u32 [#allocation8], 4
      %s78 = int_to_ptr.vmem [resolvable:$true] %s77
      %83 = dma.hbm_to_vmem [thread:$0]  %s76, 6144, %s78, [#allocation9], 128, 128, 8
    $region21: #{lrenet_forward.1} parent=1 // pred_fallthru
      _
    // Predicated region
    $region22: #{lrenet_forward.1} parent=1 // pred_check
      _
    $region23: #{lrenet_forward.1} parent=1 // pred_check_branch
      %85 = sbr.rel (0) target = $region25
    $region24: #{lrenet_forward.1} parent=1 // pred_region
      %87 = vsyncadd [#allocation9], 0
      %s88 = sshll.u32 %s5, 4
      %s89 = int_to_ptr.hbm [resolvable:$true] %s88
      %s90 = sshll.u32 [#allocation10], 4
      %s91 = int_to_ptr.vmem [resolvable:$true] %s90
      %96 = dma.hbm_to_vmem [thread:$0]  %s89, 6144, %s91, [#allocation9], 128, 128, 8
    $region25: #{lrenet_forward.1} parent=1 // pred_fallthru
      _
    // Predicated region
    $region26: #{lrenet_forward.1} parent=1 // pred_check
      _
    $region27: #{lrenet_forward.1} parent=1 // pred_check_branch
      %98 = sbr.rel (0) target = $region29
    $region28: #{lrenet_forward.1} parent=1 // pred_region
      _
    $region29: #{lrenet_forward.1} parent=1 // pred_fallthru
      _
    // Predicated region
    $region30: #{lrenet_forward.1} parent=1 // pred_check
      _
    $region31: #{lrenet_forward.1} parent=1 // pred_check_branch
      %100 = sbr.rel (0) target = $region33
    $region32: #{lrenet_forward.1} parent=1 // pred_region
      _
    $region33: #{lrenet_forward.1} parent=1 // pred_fallthru
      _
    // Predicated region
    $region34: #{lrenet_forward.1} parent=1 // pred_check
      _
    $region35: #{lrenet_forward.1} parent=1 // pred_check_branch
      %102 = sbr.rel (0) target = $region37
    $region36: #{lrenet_forward.1} parent=1 // pred_region
      %104 = vsyncadd [#allocation12], 0
      %s105 = sshll.u32 %s8, 4
      %s106 = int_to_ptr.hbm [resolvable:$true] %s105
      %s107 = sshll.u32 [#allocation11], 4
      %s108 = int_to_ptr.vmem [resolvable:$true] %s107
      %113 = dma.hbm_to_vmem [thread:$0]  %s106, 6144, %s108, [#allocation12], 128, 128, 8
    $region37: #{lrenet_forward.1} parent=1 // pred_fallthru
      _
    // Predicated region
    $region38: #{lrenet_forward.1} parent=1 // pred_check
      _
    $region39: #{lrenet_forward.1} parent=1 // pred_check_branch
      %115 = sbr.rel (0) target = $region41
    $region40: #{lrenet_forward.1} parent=1 // pred_region
      %117 = vsyncadd [#allocation12], 0
      %s118 = sshll.u32 %s9, 4
      %s119 = int_to_ptr.hbm [resolvable:$true] %s118
      %s120 = sshll.u32 [#allocation13], 4
      %s121 = int_to_ptr.vmem [resolvable:$true] %s120
      %126 = dma.hbm_to_vmem [thread:$0]  %s119, 12288, %s121, [#allocation12], 128, 128, 8
    $region41: #{lrenet_forward.1} parent=1 // pred_fallthru
      _
    // Predicated region
    $region42: #{lrenet_forward.1} parent=1 // pred_check
      _
    $region43: #{lrenet_forward.1} parent=1 // pred_check_branch
      %128 = sbr.rel (0) target = $region45
    $region44: #{lrenet_forward.1} parent=1 // pred_region
      _
    $region45: #{lrenet_forward.1} parent=1 // pred_fallthru
      _
    // Predicated region
    $region46: #{lrenet_forward.1} parent=1 // pred_check
      _
    $region47: #{lrenet_forward.1} parent=1 // pred_check_branch
      %130 = sbr.rel (0) target = $region49
    $region48: #{lrenet_forward.1} parent=1 // pred_region
      %132 = vsyncadd [#allocation15], 0
      %s133 = sshll.u32 %s11, 4
      %s134 = int_to_ptr.hbm [resolvable:$true] %s133
      %s135 = sshll.u32 [#allocation14], 4
      %s136 = int_to_ptr.vmem [resolvable:$true] %s135
      %141 = dma.hbm_to_vmem [thread:$0]  %s134, 96, %s136, [#allocation15], 32, 32, 2
    $region49: #{lrenet_forward.1} parent=1 // pred_fallthru
      _
    // Predicated region
    $region50: #{lrenet_forward.1} parent=1 // pred_check
      _
    $region51: #{lrenet_forward.1} parent=1 // pred_check_branch
      %143 = sbr.rel (0) target = $region53
    $region52: #{lrenet_forward.1} parent=1 // pred_region
      %145 = vsyncadd [#allocation15], 0
      %s146 = sshll.u32 %s12, 4
      %s147 = int_to_ptr.hbm [resolvable:$true] %s146
      %s148 = sshll.u32 [#allocation16], 4
      %s149 = int_to_ptr.vmem [resolvable:$true] %s148
      %154 = dma.hbm_to_vmem [thread:$0]  %s147, 384, %s149, [#allocation15], 128, 128, 8
    $region53: #{lrenet_forward.1} parent=1 // pred_fallthru
      _
    // Predicated region
    $region54: #{lrenet_forward.1} parent=1 // pred_check
      _
    $region55: #{lrenet_forward.1} parent=1 // pred_check_branch
      %156 = sbr.rel (0) target = $region57
    $region56: #{lrenet_forward.1} parent=1 // pred_region
      %158 = vsyncadd [#allocation18], 0
      %s159 = sshll.u32 %s13, 4
      %s160 = int_to_ptr.hbm [resolvable:$true] %s159
      %s161 = sshll.u32 [#allocation17], 4
      %s162 = int_to_ptr.vmem [resolvable:$true] %s161
      %167 = dma.hbm_to_vmem [thread:$0]  %s160, 2048, %s162, [#allocation18], 256, 256, 16
    $region57: #{lrenet_forward.1} parent=1 // pred_fallthru
      _
    // Predicated region
    $region58: #{lrenet_forward.1} parent=1 // pred_check
      _
    $region59: #{lrenet_forward.1} parent=1 // pred_check_branch
      %169 = sbr.rel (0) target = $region61
    $region60: #{lrenet_forward.1} parent=1 // pred_region
      _
    $region61: #{lrenet_forward.1} parent=1 // pred_fallthru
      _
    // Predicated region
    $region62: #{lrenet_forward.1} parent=1 // pred_check
      _
    $region63: #{lrenet_forward.1} parent=1 // pred_check_branch
      %171 = sbr.rel (0) target = $region65
    $region64: #{lrenet_forward.1} parent=1 // pred_region
      _
    $region65: #{lrenet_forward.1} parent=1 // pred_fallthru
      _
    // Predicated region
    $region66: #{lrenet_forward.1} parent=1 // pred_check
      _
    $region67: #{lrenet_forward.1} parent=1 // pred_check_branch
      %173 = sbr.rel (0) target = $region69
    $region68: #{lrenet_forward.1} parent=1 // pred_region
      _
    $region69: #{lrenet_forward.1} parent=1 // pred_fallthru
      _
    // Predicated region
    $region70: #{lrenet_forward.1} parent=1 // pred_check
      _
    $region71: #{lrenet_forward.1} parent=1 // pred_check_branch
      %175 = sbr.rel (0) target = $region73
    $region72: #{lrenet_forward.1} parent=1 // pred_region
      %177 = dma.done [#allocation3], 128
    $region73: #{lrenet_forward.1} parent=1 // pred_fallthru
      _
    // Predicated region
    $region74: #{lrenet_forward.1} parent=1 // pred_check
      _
    $region75: #{lrenet_forward.1} parent=1 // pred_check_branch
      %179 = sbr.rel (0) target = $region77
    $region76: #{lrenet_forward.1} parent=1 // pred_region
      %181 = dma.done [#allocation6], 256
    $region77: #{lrenet_forward.1} parent=1 // pred_fallthru
      _
    // Predicated region
    $region78: #{lrenet_forward.1} parent=1 // pred_check
      _
    $region79: #{lrenet_forward.1} parent=1 // pred_check_branch
      %183 = sbr.rel (0) target = $region81
    $region80: #{lrenet_forward.1} parent=1 // pred_region
      %185 = dma.done [#allocation6], 192
    $region81: #{lrenet_forward.1} parent=1 // pred_fallthru
      _
    // Predicated region
    $region82: #{lrenet_forward.1} parent=1 // pred_check
      _
    $region83: #{lrenet_forward.1} parent=1 // pred_check_branch
      %187 = sbr.rel (0) target = $region85
    $region84: #{lrenet_forward.1} parent=1 // pred_region
      %189 = dma.done [#allocation9], 6144
    $region85: #{lrenet_forward.1} parent=1 // pred_fallthru
      _
    // Predicated region
    $region86: #{lrenet_forward.1} parent=1 // pred_check
      _
    $region87: #{lrenet_forward.1} parent=1 // pred_check_branch
      %191 = sbr.rel (0) target = $region89
    $region88: #{lrenet_forward.1} parent=1 // pred_region
      %193 = dma.done [#allocation9], 6144
    $region89: #{lrenet_forward.1} parent=1 // pred_fallthru
      _
    // Predicated region
    $region90: #{lrenet_forward.1} parent=1 // pred_check
      _
    $region91: #{lrenet_forward.1} parent=1 // pred_check_branch
      %195 = sbr.rel (0) target = $region93
    $region92: #{lrenet_forward.1} parent=1 // pred_region
      %197 = dma.done [#allocation12], 6144
    $region93: #{lrenet_forward.1} parent=1 // pred_fallthru
      _
    // Predicated region
    $region94: #{lrenet_forward.1} parent=1 // pred_check
      _
    $region95: #{lrenet_forward.1} parent=1 // pred_check_branch
      %199 = sbr.rel (0) target = $region97
    $region96: #{lrenet_forward.1} parent=1 // pred_region
      %201 = dma.done [#allocation12], 12288
    $region97: #{lrenet_forward.1} parent=1 // pred_fallthru
      _
    // Predicated region
    $region98: #{lrenet_forward.1} parent=1 // pred_check
      _
    $region99: #{lrenet_forward.1} parent=1 // pred_check_branch
      %203 = sbr.rel (0) target = $region101
    $region100: #{lrenet_forward.1} parent=1 // pred_region
      %205 = dma.done [#allocation15], 96
    $region101: #{lrenet_forward.1} parent=1 // pred_fallthru
      _
    // Predicated region
    $region102: #{lrenet_forward.1} parent=1 // pred_check
      _
    $region103: #{lrenet_forward.1} parent=1 // pred_check_branch
      %207 = sbr.rel (0) target = $region105
    $region104: #{lrenet_forward.1} parent=1 // pred_region
      %209 = dma.done [#allocation15], 384
    $region105: #{lrenet_forward.1} parent=1 // pred_fallthru
      _
    // Predicated region
    $region106: #{lrenet_forward.1} parent=1 // pred_check
      _
    $region107: #{lrenet_forward.1} parent=1 // pred_check_branch
      %211 = sbr.rel (0) target = $region109
    $region108: #{lrenet_forward.1} parent=1 // pred_region
      %213 = dma.done [#allocation18], 2048
    $region109: #{lrenet_forward.1} parent=1 // pred_fallthru
      _
    %v214 = vld [vmem:[#allocation2] sm:$0xff]
    %v215 = vld [vmem:[#allocation5] sm:$0xff]
    %v216 = vld [vmem:[#allocation5 + $0x8] sm:$0xff]
    %v217 = vld [vmem:[%s10] sm:$0xff]
    %v218 = vld [vmem:[%s10 + $0x8] sm:$0xff]
    %v219 = vld [vmem:[%s10 + $0x10] sm:$0xff]
    %v220 = vld [vmem:[%s10 + $0x18] sm:$0xf]
    %v221 = vld [vmem:[#allocation16] sm:$0x3f]
    %v222 = vld [vmem:[#allocation14] sm:$0x3]
    %v223 = vld [vmem:[#allocation7] sm:$0xf]
    %vm224 = vcmask 523264
    %v225 = vsel %vm224, %v214, 0.0
    %226 = vadd.xlane.f32.xlu0 %v225
    %v227 = vpop.xlane.xlu0 %226
    %v228 = vrcp.pop 64.0
    %v229 = vmul.f32 64.0, %v228
    %v230 = vsub.f32 1.0, %v229
    %v231 = vmul.f32 %v228, %v230
    %v232 = vadd.f32 %v228, %v231
    %vm233 = vweird.f32 %v228
    %v234 = vsel %vm233, %v228, %v232
    %v235 = vmul.f32 %v227, %v234
    %v236 = vsub.f32 %v214, %v235
    %v237 = vmul.f32 %v236, %v236
    %v238 = vsel %vm224, %v237, 0.0
    %239 = vadd.xlane.f32.xlu0 %v238
    %v240 = vpop.xlane.xlu0 %239
    %v241 = vmul.f32 %v240, %v234
    %v242 = vadd.f32 %v241, 1e-05
    %v243 = vrsqrt.pop %v242
    %v244 = vmul.f32 %v243, %v242
    %v245 = vmul.f32 %v244, %v243
    %v246 = vmul.f32 0.5, %v245
    %v247 = vsub.f32 1.5, %v246
    %v248 = vmul.f32 %v243, %v247
    %vm249 = vweird.f32 %v242
    %vm250 = vweird.f32 %v243
    %vm251 = vmor %vm249, %vm250
    %v252 = vsel %vm251, %v243, %v248
    %v253 = vmul.f32 %v236, %v252
    %v254 = vperm.slane %v217, 0
    %v255 = vmul.f32 %v253, %v254
    %v256 = vperm.slane %v217, 1
    %v257 = vadd.f32 %v255, %v256
    %v258 = vsel %vm224, %v215, 0.0
    %259 = vadd.xlane.f32.xlu0 %v258
    %v260 = vpop.xlane.xlu0 %259
    %v261 = vsel %vm224, %v216, 0.0
    %262 = vadd.xlane.f32.xlu0 %v261
    %v263 = vpop.xlane.xlu0 %262
    %v264 = vmul.f32 %v260, %v234
    %v265 = vmul.f32 %v263, %v234
    %v266 = vsub.f32 %v215, %v264
    %v267 = vsub.f32 %v216, %v265
    %v268 = vmul.f32 %v266, %v266
    %v269 = vmul.f32 %v267, %v267
    %v270 = vsel %vm224, %v268, 0.0
    %271 = vadd.xlane.f32.xlu0 %v270
    %v272 = vpop.xlane.xlu0 %271
    %v273 = vsel %vm224, %v269, 0.0
    %274 = vadd.xlane.f32.xlu0 %v273
    %v275 = vpop.xlane.xlu0 %274
    %v276 = vmul.f32 %v272, %v234
    %v277 = vmul.f32 %v275, %v234
    %v278 = vadd.f32 %v276, 1e-05
    %v279 = vadd.f32 %v277, 1e-05
    %v280 = vrsqrt.pop %v278
    %v281 = vmul.f32 %v280, %v278
    %v282 = vmul.f32 %v281, %v280
    %v283 = vmul.f32 0.5, %v282
    %v284 = vsub.f32 1.5, %v283
    %v285 = vmul.f32 %v280, %v284
    %vm286 = vweird.f32 %v278
    %vm287 = vweird.f32 %v280
    %vm288 = vmor %vm286, %vm287
    %v289 = vsel %vm288, %v280, %v285
    %v290 = vrsqrt.pop %v279
    %v291 = vmul.f32 %v290, %v279
    %v292 = vmul.f32 %v291, %v290
    %v293 = vmul.f32 0.5, %v292
    %v294 = vsub.f32 1.5, %v293
    %v295 = vmul.f32 %v290, %v294
    %vm296 = vweird.f32 %v279
    %vm297 = vweird.f32 %v290
    %vm298 = vmor %vm296, %vm297
    %v299 = vsel %vm298, %v290, %v295
    %v300 = vmul.f32 %v266, %v289
    %v301 = vmul.f32 %v267, %v299
    %v302 = vperm.slane %v217, 2
    %v303 = vmul.f32 %v300, %v302
    %v304 = vmul.f32 %v301, %v302
    %v305 = vperm.slane %v217, 3
    %v306 = vadd.f32 %v303, %v305
    %v307 = vadd.f32 %v304, %v305
    %vm308 = vcmask 519168
    %v309 = vsel %vm308, %v223, 0.0
    %310 = vadd.xlane.f32.xlu0 %v309
    %v311 = vpop.xlane.xlu0 %310
    %v312 = vmul.f32 %v311, %v234
    %v313 = vsub.f32 %v223, %v312
    %v314 = vmul.f32 %v313, %v313
    %v315 = vsel %vm308, %v314, 0.0
    %316 = vadd.xlane.f32.xlu0 %v315
    %v317 = vpop.xlane.xlu0 %316
    %v318 = vmul.f32 %v317, %v234
    %v319 = vadd.f32 %v318, 1e-05
    %v320 = vrsqrt.pop %v319
    %v321 = vmul.f32 %v320, %v319
    %v322 = vmul.f32 %v321, %v320
    %v323 = vmul.f32 0.5, %v322
    %v324 = vsub.f32 1.5, %v323
    %v325 = vmul.f32 %v320, %v324
    %vm326 = vweird.f32 %v319
    %vm327 = vweird.f32 %v320
    %vm328 = vmor %vm326, %vm327
    %v329 = vsel %vm328, %v320, %v325
    %v330 = vmul.f32 %v313, %v329
    %v331 = vperm.slane %v217, 4
    %v332 = vmul.f32 %v330, %v331
    %v333 = vperm.slane %v217, 5
    %v334 = vadd.f32 %v332, %v333
    %v335 = vld [vmem:[%s3] sm:$0xff]
    %v336 = vld [vmem:[%s3 + $0x8] sm:$0xff]
    %v337 = vld [vmem:[%s3 + $0x10] sm:$0xff]
    %v338 = vld [vmem:[%s3 + $0x18] sm:$0xff]
    %v339 = vld [vmem:[%s3 + $0x20] sm:$0xff]
    %v340 = vld [vmem:[%s3 + $0x28] sm:$0xff]
    %v341 = vld [vmem:[%s3 + $0x30] sm:$0xff]
    %v342 = vld [vmem:[%s3 + $0x38] sm:$0xff]
    %v343 = vperm.slane %v217, 6
    %v345 = vsel %vm224, %v334, 0
    %347 = vmatpush.msra.mxu0 0.0
    %348 = vmatpush.msra.mxu0 0.0
    %349 = vmatpush.msra.mxu0 0.0
    %350 = vmatpush.msra.mxu0 0.0
    %351 = vmatpush.msra.mxu0 0.0
    %352 = vmatpush.msra.mxu0 0.0
    %353 = vmatpush.msra.mxu0 0.0
    %354 = vmatpush.msra.mxu0 0.0
    %355 = vmatpush.msra.mxu0 %v342
    %356 = vmatpush.msra.mxu0 %v341
    %357 = vmatpush.msra.mxu0 %v340
    %358 = vmatpush.msra.mxu0 %v339
    %359 = vmatpush.msra.mxu0 %v338
    %360 = vmatpush.msra.mxu0 %v337
    %361 = vmatpush.msra.mxu0 %v336
    %362 = vmatpush.msra.mxu0 %v335
    %363 = vmatmul.f32.gmra.mxu0 %v345
    %v364 = vpop.f32.mrf.mxu0
    %v365 = vadd.f32 %v343, %v364
    %366 = vdwg.mxu0
    %v367 = vperm.slane %v217, 7
    %v368 = vmul.f32 %v330, %v367
    %v369 = vperm.slane %v218, 0
    %v370 = vadd.f32 %v368, %v369
    %s371 = scalar_lea.vmem %s3, 64
    %v372 = vld [vmem:[%s371] sm:$0xff]
    %v373 = vld [vmem:[%s371 + $0x8] sm:$0xff]
    %v374 = vld [vmem:[%s371 + $0x10] sm:$0xff]
    %v375 = vld [vmem:[%s371 + $0x18] sm:$0xff]
    %v376 = vld [vmem:[%s371 + $0x20] sm:$0xff]
    %v377 = vld [vmem:[%s371 + $0x28] sm:$0xff]
    %v378 = vld [vmem:[%s371 + $0x30] sm:$0xff]
    %v379 = vld [vmem:[%s371 + $0x38] sm:$0xff]
    %v380 = vperm.slane %v218, 1
    %v382 = vsel %vm224, %v370, 0
    %384 = vmatpush.msra.mxu0 0.0
    %385 = vmatpush.msra.mxu0 0.0
    %386 = vmatpush.msra.mxu0 0.0
    %387 = vmatpush.msra.mxu0 0.0
    %388 = vmatpush.msra.mxu0 0.0
    %389 = vmatpush.msra.mxu0 0.0
    %390 = vmatpush.msra.mxu0 0.0
    %391 = vmatpush.msra.mxu0 0.0
    %392 = vmatpush.msra.mxu0 %v379
    %393 = vmatpush.msra.mxu0 %v378
    %394 = vmatpush.msra.mxu0 %v377
    %395 = vmatpush.msra.mxu0 %v376
    %396 = vmatpush.msra.mxu0 %v375
    %397 = vmatpush.msra.mxu0 %v374
    %398 = vmatpush.msra.mxu0 %v373
    %399 = vmatpush.msra.mxu0 %v372
    %400 = vmatmul.f32.gmra.mxu0 %v382
    %v401 = vpop.f32.mrf.mxu0
    %v402 = vadd.f32 %v380, %v401
    %403 = vdwg.mxu0
    %v404 = vld [vmem:[#allocation8] sm:$0xff]
    %v405 = vld [vmem:[#allocation8 + $0x8] sm:$0xff]
    %v406 = vld [vmem:[#allocation8 + $0x10] sm:$0xff]
    %v407 = vld [vmem:[#allocation8 + $0x18] sm:$0xff]
    %v408 = vld [vmem:[#allocation8 + $0x20] sm:$0xff]
    %v409 = vld [vmem:[#allocation8 + $0x28] sm:$0xff]
    %v410 = vld [vmem:[#allocation8 + $0x30] sm:$0xff]
    %v411 = vld [vmem:[#allocation8 + $0x38] sm:$0xff]
    %v412 = vperm.slane %v222, 0
    %v414 = vsel %vm224, %v257, 0
    %416 = vmatpush.msra.mxu0 0.0
    %417 = vmatpush.msra.mxu0 0.0
    %418 = vmatpush.msra.mxu0 0.0
    %419 = vmatpush.msra.mxu0 0.0
    %420 = vmatpush.msra.mxu0 0.0
    %421 = vmatpush.msra.mxu0 0.0
    %422 = vmatpush.msra.mxu0 0.0
    %423 = vmatpush.msra.mxu0 0.0
    %424 = vmatpush.msra.mxu0 %v411
    %425 = vmatpush.msra.mxu0 %v410
    %426 = vmatpush.msra.mxu0 %v409
    %427 = vmatpush.msra.mxu0 %v408
    %428 = vmatpush.msra.mxu0 %v407
    %429 = vmatpush.msra.mxu0 %v406
    %430 = vmatpush.msra.mxu0 %v405
    %431 = vmatpush.msra.mxu0 %v404
    %432 = vmatmul.f32.gmra.mxu0 %v414
    %v433 = vpop.f32.mrf.mxu0
    %v434 = vadd.f32 %v412, %v433
    %435 = vdwg.mxu0
    %s436 = scalar_lea.vmem [#allocation8], 64
    %v437 = vld [vmem:[%s436] sm:$0xff]
    %v438 = vld [vmem:[%s436 + $0x8] sm:$0xff]
    %v439 = vld [vmem:[%s436 + $0x10] sm:$0xff]
    %v440 = vld [vmem:[%s436 + $0x18] sm:$0xff]
    %v441 = vld [vmem:[%s436 + $0x20] sm:$0xff]
    %v442 = vld [vmem:[%s436 + $0x28] sm:$0xff]
    %v443 = vld [vmem:[%s436 + $0x30] sm:$0xff]
    %v444 = vld [vmem:[%s436 + $0x38] sm:$0xff]
    %v445 = vperm.slane %v222, 1
    %v447 = vsel %vm224, %v306, 0
    %v450 = vsel %vm224, %v307, 0
    %452 = vmatpush.msra.mxu0 0.0
    %453 = vmatpush.msra.mxu0 0.0
    %454 = vmatpush.msra.mxu0 0.0
    %455 = vmatpush.msra.mxu0 0.0
    %456 = vmatpush.msra.mxu0 0.0
    %457 = vmatpush.msra.mxu0 0.0
    %458 = vmatpush.msra.mxu0 0.0
    %459 = vmatpush.msra.mxu0 0.0
    %460 = vmatpush.msra.mxu0 %v444
    %461 = vmatpush.msra.mxu0 %v443
    %462 = vmatpush.msra.mxu0 %v442
    %463 = vmatpush.msra.mxu0 %v441
    %464 = vmatpush.msra.mxu0 %v440
    %465 = vmatpush.msra.mxu0 %v439
    %466 = vmatpush.msra.mxu0 %v438
    %467 = vmatpush.msra.mxu0 %v437
    %468 = vmatmul.f32.gmra.mxu0 %v447
    %v469 = vpop.f32.mrf.mxu0
    %v470 = vadd.f32 %v445, %v469
    %471 = vmatmul.f32.gmra.mxu0 %v450
    %v472 = vpop.f32.mrf.mxu0
    %v473 = vadd.f32 %v445, %v472
    %474 = vdwg.mxu0
    %v476 = vsel %vm224, %v365, 0
    %v479 = vsel %vm224, %v434, 0
    %481 = vmatpush.xpose.msra.mxu0 0.0
    %482 = vmatpush.xpose.msra.mxu0 0.0
    %483 = vmatpush.xpose.msra.mxu0 0.0
    %484 = vmatpush.xpose.msra.mxu0 0.0
    %485 = vmatpush.xpose.msra.mxu0 0.0
    %486 = vmatpush.xpose.msra.mxu0 0.0
    %487 = vmatpush.xpose.msra.mxu0 0.0
    %488 = vmatpush.xpose.msra.mxu0 0.0
    %489 = vmatpush.xpose.msra.mxu0 0.0
    %490 = vmatpush.xpose.msra.mxu0 0.0
    %491 = vmatpush.xpose.msra.mxu0 0.0
    %492 = vmatpush.xpose.msra.mxu0 0.0
    %493 = vmatpush.xpose.msra.mxu0 0.0
    %494 = vmatpush.xpose.msra.mxu0 0.0
    %495 = vmatpush.xpose.msra.mxu0 0.0
    %496 = vmatpush.xpose.msra.mxu0 %v479
    %497 = vmatmul.f32.gmra.mxu0 %v476
    %v498 = vpop.f32.mrf.mxu0
    %v499 = vadd.f32 0.0, %v498
    %500 = vdwg.mxu0
    %v501 = vmul.f32 %v499, 0.015625
    %vm502 = vcmask 60416
    %v503 = vsel %vm502, %v501, -inf
    %v504 = vrot.slane %v503, 4
    %v505 = vmax.f32 %v503, %v504
    %v506 = vrot.slane %v505, 2
    %v507 = vmax.f32 %v505, %v506
    %v508 = vrot.slane %v507, 1
    %v509 = vmax.f32 %v507, %v508
    %v510 = vsub.f32 %v501, %v509
    %v511 = vmul.f32 %v510, 1.442695
    %v512 = vpow.pop %v511
    %v513 = vsel %vm502, %v512, 0.0
    %v514 = vrot.slane %v513, 4
    %v515 = vadd.f32 %v513, %v514
    %v516 = vrot.slane %v515, 2
    %v517 = vadd.f32 %v515, %v516
    %v518 = vrot.slane %v517, 1
    %v519 = vadd.f32 %v517, %v518
    %v520 = vrcp.pop %v519
    %v521 = vmul.f32 %v512, %v520
    %522 = vrot.lane.b32.xlu0 %v434, 64
    %v523 = vpop.permute.xlu0 %522
    %vm525 = vcmask 64512
    %v527 = vsel %vm525, %v521, 0
    %529 = vmatpush.msra.mxu0 0.0
    %530 = vmatpush.msra.mxu0 0.0
    %531 = vmatpush.msra.mxu0 0.0
    %532 = vmatpush.msra.mxu0 0.0
    %533 = vmatpush.msra.mxu0 0.0
    %534 = vmatpush.msra.mxu0 0.0
    %535 = vmatpush.msra.mxu0 0.0
    %536 = vmatpush.msra.mxu0 0.0
    %537 = vmatpush.msra.mxu0 0.0
    %538 = vmatpush.msra.mxu0 0.0
    %539 = vmatpush.msra.mxu0 0.0
    %540 = vmatpush.msra.mxu0 0.0
    %541 = vmatpush.msra.mxu0 0.0
    %542 = vmatpush.msra.mxu0 0.0
    %543 = vmatpush.msra.mxu0 0.0
    %544 = vmatpush.msra.mxu0 %v523
    %545 = vmatmul.f32.gmra.mxu0 %v527
    %v546 = vpop.f32.mrf.mxu0
    %v547 = vadd.f32 0.0, %v546
    %548 = vdwg.mxu0
    %v549 = vmul.f32 %v547, 0.015625
    %v551 = vsel %vm224, %v402, 0
    %v554 = vsel %vm224, %v470, 0
    %v557 = vsel %vm224, %v473, 0
    %559 = vmatpush.xpose.msra.mxu0 0.0
    %560 = vmatpush.xpose.msra.mxu0 0.0
    %561 = vmatpush.xpose.msra.mxu0 0.0
    %562 = vmatpush.xpose.msra.mxu0 0.0
    %563 = vmatpush.xpose.msra.mxu0 0.0
    %564 = vmatpush.xpose.msra.mxu0 0.0
    %565 = vmatpush.xpose.msra.mxu0 0.0
    %566 = vmatpush.xpose.msra.mxu0 0.0
    %567 = vmatpush.xpose.msra.mxu0 0.0
    %568 = vmatpush.xpose.msra.mxu0 0.0
    %569 = vmatpush.xpose.msra.mxu0 0.0
    %570 = vmatpush.xpose.msra.mxu0 0.0
    %571 = vmatpush.xpose.msra.mxu0 0.0
    %572 = vmatpush.xpose.msra.mxu0 0.0
    %573 = vmatpush.xpose.msra.mxu0 %v557
    %574 = vmatpush.xpose.msra.mxu0 %v554
    %575 = vmatmul.f32.gmra.mxu0 %v551
    %v576 = vpop.f32.mrf.mxu0
    %v577 = vadd.f32 0.0, %v576
    %578 = vdwg.mxu0
    %v579 = vmul.f32 %v577, 0.015625
    %vm580 = vcmask 125952
    %v581 = vsel %vm580, %v579, -inf
    %v582 = vrot.slane %v581, 4
    %v583 = vmax.f32 %v581, %v582
    %v584 = vrot.slane %v583, 2
    %v585 = vmax.f32 %v583, %v584
    %v586 = vrot.slane %v585, 1
    %v587 = vmax.f32 %v585, %v586
    %v588 = vsub.f32 %v579, %v587
    %v589 = vmul.f32 %v588, 1.442695
    %v590 = vpow.pop %v589
    %v591 = vsel %vm580, %v590, 0.0
    %v592 = vrot.slane %v591, 4
    %v593 = vadd.f32 %v591, %v592
    %v594 = vrot.slane %v593, 2
    %v595 = vadd.f32 %v593, %v594
    %v596 = vrot.slane %v595, 1
    %v597 = vadd.f32 %v595, %v596
    %v598 = vrcp.pop %v597
    %v599 = vmul.f32 %v590, %v598
    %600 = vrot.lane.b32.xlu0 %v470, 64
    %v601 = vpop.permute.xlu0 %600
    %602 = vrot.lane.b32.xlu0 %v473, 64
    %v603 = vpop.permute.xlu0 %602
    %vm606 = vcmask 130048
    %v608 = vsel %vm606, %v599, 0
    %610 = vmatpush.msra.mxu0 0.0
    %611 = vmatpush.msra.mxu0 0.0
    %612 = vmatpush.msra.mxu0 0.0
    %613 = vmatpush.msra.mxu0 0.0
    %614 = vmatpush.msra.mxu0 0.0
    %615 = vmatpush.msra.mxu0 0.0
    %616 = vmatpush.msra.mxu0 0.0
    %617 = vmatpush.msra.mxu0 0.0
    %618 = vmatpush.msra.mxu0 0.0
    %619 = vmatpush.msra.mxu0 0.0
    %620 = vmatpush.msra.mxu0 0.0
    %621 = vmatpush.msra.mxu0 0.0
    %622 = vmatpush.msra.mxu0 0.0
    %623 = vmatpush.msra.mxu0 0.0
    %624 = vmatpush.msra.mxu0 %v603
    %625 = vmatpush.msra.mxu0 %v601
    %626 = vmatmul.f32.gmra.mxu0 %v608
    %v627 = vpop.f32.mrf.mxu0
    %v628 = vadd.f32 0.0, %v627
    %629 = vdwg.mxu0
    %v630 = vmul.f32 %v628, 0.015625
    %v631 = vld [vmem:[#allocation10] sm:$0xff]
    %v632 = vld [vmem:[#allocation10 + $0x8] sm:$0xff]
    %v633 = vld [vmem:[#allocation10 + $0x10] sm:$0xff]
    %v634 = vld [vmem:[#allocation10 + $0x18] sm:$0xff]
    %v635 = vld [vmem:[#allocation10 + $0x20] sm:$0xff]
    %v636 = vld [vmem:[#allocation10 + $0x28] sm:$0xff]
    %v637 = vld [vmem:[#allocation10 + $0x30] sm:$0xff]
    %v638 = vld [vmem:[#allocation10 + $0x38] sm:$0xff]
    %v639 = vperm.slane %v218, 2
    %640 = vmatpush.msra.mxu0 0.0
    %641 = vmatpush.msra.mxu0 0.0
    %642 = vmatpush.msra.mxu0 0.0
    %643 = vmatpush.msra.mxu0 0.0
    %644 = vmatpush.msra.mxu0 0.0
    %645 = vmatpush.msra.mxu0 0.0
    %646 = vmatpush.msra.mxu0 0.0
    %647 = vmatpush.msra.mxu0 0.0
    %648 = vmatpush.msra.mxu0 %v638
    %649 = vmatpush.msra.mxu0 %v637
    %650 = vmatpush.msra.mxu0 %v636
    %651 = vmatpush.msra.mxu0 %v635
    %652 = vmatpush.msra.mxu0 %v634
    %653 = vmatpush.msra.mxu0 %v633
    %654 = vmatpush.msra.mxu0 %v632
    %655 = vmatpush.msra.mxu0 %v631
    %656 = vmatmul.f32.gmra.mxu0 %v476
    %v657 = vpop.f32.mrf.mxu0
    %v658 = vadd.f32 %v639, %v657
    %659 = vdwg.mxu0
    %v660 = vsel %vm308, %v658, 0.0
    %661 = vadd.xlane.f32.xlu0 %v660
    %v662 = vpop.xlane.xlu0 %661
    %v663 = vmul.f32 %v662, %v234
    %v664 = vsub.f32 %v658, %v663
    %v665 = vmul.f32 %v664, %v664
    %v666 = vsel %vm308, %v665, 0.0
    %667 = vadd.xlane.f32.xlu0 %v666
    %v668 = vpop.xlane.xlu0 %667
    %v669 = vmul.f32 %v668, %v234
    %v670 = vadd.f32 %v669, 1e-05
    %v671 = vrsqrt.pop %v670
    %v672 = vmul.f32 %v671, %v670
    %v673 = vmul.f32 %v672, %v671
    %v674 = vmul.f32 0.5, %v673
    %v675 = vsub.f32 1.5, %v674
    %v676 = vmul.f32 %v671, %v675
    %vm677 = vweird.f32 %v670
    %vm678 = vweird.f32 %v671
    %vm679 = vmor %vm677, %vm678
    %v680 = vsel %vm679, %v671, %v676
    %v681 = vmul.f32 %v664, %v680
    %v682 = vperm.slane %v218, 3
    %v683 = vmul.f32 %v681, %v682
    %v684 = vperm.slane %v218, 4
    %v685 = vadd.f32 %v683, %v684
    %v686 = vmax.f32 %v685, 0.0
    %v687 = vld [vmem:[%s6] sm:$0xff]
    %v688 = vld [vmem:[%s6 + $0x8] sm:$0xff]
    %v689 = vld [vmem:[%s6 + $0x10] sm:$0xff]
    %v690 = vld [vmem:[%s6 + $0x18] sm:$0xff]
    %v691 = vld [vmem:[%s6 + $0x20] sm:$0xff]
    %v692 = vld [vmem:[%s6 + $0x28] sm:$0xff]
    %v693 = vld [vmem:[%s6 + $0x30] sm:$0xff]
    %v694 = vld [vmem:[%s6 + $0x38] sm:$0xff]
    %v695 = vperm.slane %v221, 0
    %v697 = vsel %vm224, %v686, 0
    %699 = vmatpush.msra.mxu0 0.0
    %700 = vmatpush.msra.mxu0 0.0
    %701 = vmatpush.msra.mxu0 0.0
    %702 = vmatpush.msra.mxu0 0.0
    %703 = vmatpush.msra.mxu0 0.0
    %704 = vmatpush.msra.mxu0 0.0
    %705 = vmatpush.msra.mxu0 0.0
    %706 = vmatpush.msra.mxu0 0.0
    %707 = vmatpush.msra.mxu0 %v694
    %708 = vmatpush.msra.mxu0 %v693
    %709 = vmatpush.msra.mxu0 %v692
    %710 = vmatpush.msra.mxu0 %v691
    %711 = vmatpush.msra.mxu0 %v690
    %712 = vmatpush.msra.mxu0 %v689
    %713 = vmatpush.msra.mxu0 %v688
    %714 = vmatpush.msra.mxu0 %v687
    %715 = vmatmul.f32.gmra.mxu0 %v697
    %v716 = vpop.f32.mrf.mxu0
    %v717 = vadd.f32 %v695, %v716
    %718 = vdwg.mxu0
    %vm719 = vcmask 257024
    %v720 = vsel %vm719, %v717, 0.0
    %721 = vadd.xlane.f32.xlu0 %v720
    %v722 = vpop.xlane.xlu0 %721
    %v723 = vrcp.pop 32.0
    %v724 = vmul.f32 32.0, %v723
    %v725 = vsub.f32 1.0, %v724
    %v726 = vmul.f32 %v723, %v725
    %v727 = vadd.f32 %v723, %v726
    %vm728 = vweird.f32 %v723
    %v729 = vsel %vm728, %v723, %v727
    %v730 = vmul.f32 %v722, %v729
    %v731 = vsub.f32 %v717, %v730
    %v732 = vmul.f32 %v731, %v731
    %v733 = vsel %vm719, %v732, 0.0
    %734 = vadd.xlane.f32.xlu0 %v733
    %v735 = vpop.xlane.xlu0 %734
    %v736 = vmul.f32 %v735, %v729
    %v737 = vadd.f32 %v736, 1e-05
    %v738 = vrsqrt.pop %v737
    %v739 = vmul.f32 %v738, %v737
    %v740 = vmul.f32 %v739, %v738
    %v741 = vmul.f32 0.5, %v740
    %v742 = vsub.f32 1.5, %v741
    %v743 = vmul.f32 %v738, %v742
    %vm744 = vweird.f32 %v737
    %vm745 = vweird.f32 %v738
    %vm746 = vmor %vm744, %vm745
    %v747 = vsel %vm746, %v738, %v743
    %v748 = vmul.f32 %v731, %v747
    %v749 = vperm.slane %v221, 1
    %v750 = vmul.f32 %v748, %v749
    %v751 = vperm.slane %v221, 2
    %v752 = vadd.f32 %v750, %v751
    %v753 = vmax.f32 %v752, 0.0
    %v754 = vsel %vm719, %v753, 0.0
    %v755 = vrot.slane %v754, 4
    %v756 = vadd.f32 %v754, %v755
    %v757 = vrot.slane %v756, 2
    %v758 = vadd.f32 %v756, %v757
    %v759 = vrot.slane %v758, 1
    %v760 = vadd.f32 %v758, %v759
    %v761 = vrcp.pop 4.0
    %v762 = vmul.f32 4.0, %v761
    %v763 = vsub.f32 1.0, %v762
    %v764 = vmul.f32 %v761, %v763
    %v765 = vadd.f32 %v761, %v764
    %vm766 = vweird.f32 %v761
    %v767 = vsel %vm766, %v761, %v765
    %v768 = vmul.f32 %v760, %v767
    %v769 = vld [vmem:[%s7] sm:$0xff]
    %v770 = vld [vmem:[%s7 + $0x8] sm:$0xff]
    %v771 = vld [vmem:[%s7 + $0x10] sm:$0xff]
    %v772 = vld [vmem:[%s7 + $0x18] sm:$0xff]
    %v773 = vperm.slane %v218, 5
    %vm774 = vcmask 261120
    %v776 = vsel %vm774, %v768, 0
    %778 = vmatpush.msra.mxu0 0.0
    %779 = vmatpush.msra.mxu0 0.0
    %780 = vmatpush.msra.mxu0 0.0
    %781 = vmatpush.msra.mxu0 0.0
    %782 = vmatpush.msra.mxu0 0.0
    %783 = vmatpush.msra.mxu0 0.0
    %784 = vmatpush.msra.mxu0 0.0
    %785 = vmatpush.msra.mxu0 0.0
    %786 = vmatpush.msra.mxu0 0.0
    %787 = vmatpush.msra.mxu0 0.0
    %788 = vmatpush.msra.mxu0 0.0
    %789 = vmatpush.msra.mxu0 0.0
    %790 = vmatpush.msra.mxu0 %v772
    %791 = vmatpush.msra.mxu0 %v771
    %792 = vmatpush.msra.mxu0 %v770
    %793 = vmatpush.msra.mxu0 %v769
    %794 = vmatmul.f32.gmra.mxu0 %v776
    %v795 = vpop.f32.mrf.mxu0
    %v796 = vadd.f32 %v773, %v795
    %797 = vdwg.mxu0
    %v798 = vsel %vm308, %v796, 0.0
    %799 = vadd.xlane.f32.xlu0 %v798
    %v800 = vpop.xlane.xlu0 %799
    %v801 = vmul.f32 %v800, %v234
    %v802 = vsub.f32 %v796, %v801
    %v803 = vmul.f32 %v802, %v802
    %v804 = vsel %vm308, %v803, 0.0
    %805 = vadd.xlane.f32.xlu0 %v804
    %v806 = vpop.xlane.xlu0 %805
    %v807 = vmul.f32 %v806, %v234
    %v808 = vadd.f32 %v807, 1e-05
    %v809 = vrsqrt.pop %v808
    %v810 = vmul.f32 %v809, %v808
    %v811 = vmul.f32 %v810, %v809
    %v812 = vmul.f32 0.5, %v811
    %v813 = vsub.f32 1.5, %v812
    %v814 = vmul.f32 %v809, %v813
    %vm815 = vweird.f32 %v808
    %vm816 = vweird.f32 %v809
    %vm817 = vmor %vm815, %vm816
    %v818 = vsel %vm817, %v809, %v814
    %v819 = vmul.f32 %v802, %v818
    %v820 = vperm.slane %v218, 6
    %v821 = vmul.f32 %v819, %v820
    %v822 = vperm.slane %v218, 7
    %v823 = vadd.f32 %v821, %v822
    %v824 = vmax.f32 %v823, 0.0
    %v825 = vld [vmem:[#allocation11] sm:$0xff]
    %v826 = vld [vmem:[#allocation11 + $0x8] sm:$0xff]
    %v827 = vld [vmem:[#allocation11 + $0x10] sm:$0xff]
    %v828 = vld [vmem:[#allocation11 + $0x18] sm:$0xff]
    %v829 = vld [vmem:[#allocation11 + $0x20] sm:$0xff]
    %v830 = vld [vmem:[#allocation11 + $0x28] sm:$0xff]
    %v831 = vld [vmem:[#allocation11 + $0x30] sm:$0xff]
    %v832 = vld [vmem:[#allocation11 + $0x38] sm:$0xff]
    %v833 = vperm.slane %v219, 0
    %v835 = vsel %vm224, %v824, 0
    %837 = vmatpush.msra.mxu0 0.0
    %838 = vmatpush.msra.mxu0 0.0
    %839 = vmatpush.msra.mxu0 0.0
    %840 = vmatpush.msra.mxu0 0.0
    %841 = vmatpush.msra.mxu0 0.0
    %842 = vmatpush.msra.mxu0 0.0
    %843 = vmatpush.msra.mxu0 0.0
    %844 = vmatpush.msra.mxu0 0.0
    %845 = vmatpush.msra.mxu0 %v832
    %846 = vmatpush.msra.mxu0 %v831
    %847 = vmatpush.msra.mxu0 %v830
    %848 = vmatpush.msra.mxu0 %v829
    %849 = vmatpush.msra.mxu0 %v828
    %850 = vmatpush.msra.mxu0 %v827
    %851 = vmatpush.msra.mxu0 %v826
    %852 = vmatpush.msra.mxu0 %v825
    %853 = vmatmul.f32.gmra.mxu0 %v835
    %v854 = vpop.f32.mrf.mxu0
    %v855 = vadd.f32 %v833, %v854
    %856 = vdwg.mxu0
    %s857 = scalar_lea.vmem [#allocation10], 64
    %v858 = vld [vmem:[%s857] sm:$0xff]
    %v859 = vld [vmem:[%s857 + $0x8] sm:$0xff]
    %v860 = vld [vmem:[%s857 + $0x10] sm:$0xff]
    %v861 = vld [vmem:[%s857 + $0x18] sm:$0xff]
    %v862 = vld [vmem:[%s857 + $0x20] sm:$0xff]
    %v863 = vld [vmem:[%s857 + $0x28] sm:$0xff]
    %v864 = vld [vmem:[%s857 + $0x30] sm:$0xff]
    %v865 = vld [vmem:[%s857 + $0x38] sm:$0xff]
    %v866 = vperm.slane %v219, 1
    %867 = vmatpush.msra.mxu0 0.0
    %868 = vmatpush.msra.mxu0 0.0
    %869 = vmatpush.msra.mxu0 0.0
    %870 = vmatpush.msra.mxu0 0.0
    %871 = vmatpush.msra.mxu0 0.0
    %872 = vmatpush.msra.mxu0 0.0
    %873 = vmatpush.msra.mxu0 0.0
    %874 = vmatpush.msra.mxu0 0.0
    %875 = vmatpush.msra.mxu0 %v865
    %876 = vmatpush.msra.mxu0 %v864
    %877 = vmatpush.msra.mxu0 %v863
    %878 = vmatpush.msra.mxu0 %v862
    %879 = vmatpush.msra.mxu0 %v861
    %880 = vmatpush.msra.mxu0 %v860
    %881 = vmatpush.msra.mxu0 %v859
    %882 = vmatpush.msra.mxu0 %v858
    %883 = vmatmul.f32.gmra.mxu0 %v551
    %v884 = vpop.f32.mrf.mxu0
    %v885 = vadd.f32 %v866, %v884
    %886 = vdwg.mxu0
    %v887 = vsel %vm308, %v885, 0.0
    %888 = vadd.xlane.f32.xlu0 %v887
    %v889 = vpop.xlane.xlu0 %888
    %v890 = vmul.f32 %v889, %v234
    %v891 = vsub.f32 %v885, %v890
    %v892 = vmul.f32 %v891, %v891
    %v893 = vsel %vm308, %v892, 0.0
    %894 = vadd.xlane.f32.xlu0 %v893
    %v895 = vpop.xlane.xlu0 %894
    %v896 = vmul.f32 %v895, %v234
    %v897 = vadd.f32 %v896, 1e-05
    %v898 = vrsqrt.pop %v897
    %v899 = vmul.f32 %v898, %v897
    %v900 = vmul.f32 %v899, %v898
    %v901 = vmul.f32 0.5, %v900
    %v902 = vsub.f32 1.5, %v901
    %v903 = vmul.f32 %v898, %v902
    %vm904 = vweird.f32 %v897
    %vm905 = vweird.f32 %v898
    %vm906 = vmor %vm904, %vm905
    %v907 = vsel %vm906, %v898, %v903
    %v908 = vmul.f32 %v891, %v907
    %v909 = vperm.slane %v219, 2
    %v910 = vmul.f32 %v908, %v909
    %v911 = vperm.slane %v219, 3
    %v912 = vadd.f32 %v910, %v911
    %v913 = vmax.f32 %v912, 0.0
    %s914 = scalar_lea.vmem %s6, 64
    %v915 = vld [vmem:[%s914] sm:$0xff]
    %v916 = vld [vmem:[%s914 + $0x8] sm:$0xff]
    %v917 = vld [vmem:[%s914 + $0x10] sm:$0xff]
    %v918 = vld [vmem:[%s914 + $0x18] sm:$0xff]
    %v919 = vld [vmem:[%s914 + $0x20] sm:$0xff]
    %v920 = vld [vmem:[%s914 + $0x28] sm:$0xff]
    %v921 = vld [vmem:[%s914 + $0x30] sm:$0xff]
    %v922 = vld [vmem:[%s914 + $0x38] sm:$0xff]
    %v923 = vperm.slane %v221, 3
    %v925 = vsel %vm224, %v913, 0
    %927 = vmatpush.msra.mxu0 0.0
    %928 = vmatpush.msra.mxu0 0.0
    %929 = vmatpush.msra.mxu0 0.0
    %930 = vmatpush.msra.mxu0 0.0
    %931 = vmatpush.msra.mxu0 0.0
    %932 = vmatpush.msra.mxu0 0.0
    %933 = vmatpush.msra.mxu0 0.0
    %934 = vmatpush.msra.mxu0 0.0
    %935 = vmatpush.msra.mxu0 %v922
    %936 = vmatpush.msra.mxu0 %v921
    %937 = vmatpush.msra.mxu0 %v920
    %938 = vmatpush.msra.mxu0 %v919
    %939 = vmatpush.msra.mxu0 %v918
    %940 = vmatpush.msra.mxu0 %v917
    %941 = vmatpush.msra.mxu0 %v916
    %942 = vmatpush.msra.mxu0 %v915
    %943 = vmatmul.f32.gmra.mxu0 %v925
    %v944 = vpop.f32.mrf.mxu0
    %v945 = vadd.f32 %v923, %v944
    %946 = vdwg.mxu0
    %v947 = vsel %vm719, %v945, 0.0
    %948 = vadd.xlane.f32.xlu0 %v947
    %v949 = vpop.xlane.xlu0 %948
    %v950 = vmul.f32 %v949, %v729
    %v951 = vsub.f32 %v945, %v950
    %v952 = vmul.f32 %v951, %v951
    %v953 = vsel %vm719, %v952, 0.0
    %954 = vadd.xlane.f32.xlu0 %v953
    %v955 = vpop.xlane.xlu0 %954
    %v956 = vmul.f32 %v955, %v729
    %v957 = vadd.f32 %v956, 1e-05
    %v958 = vrsqrt.pop %v957
    %v959 = vmul.f32 %v958, %v957
    %v960 = vmul.f32 %v959, %v958
    %v961 = vmul.f32 0.5, %v960
    %v962 = vsub.f32 1.5, %v961
    %v963 = vmul.f32 %v958, %v962
    %vm964 = vweird.f32 %v957
    %vm965 = vweird.f32 %v958
    %vm966 = vmor %vm964, %vm965
    %v967 = vsel %vm966, %v958, %v963
    %v968 = vmul.f32 %v951, %v967
    %v969 = vperm.slane %v221, 4
    %v970 = vmul.f32 %v968, %v969
    %v971 = vperm.slane %v221, 5
    %v972 = vadd.f32 %v970, %v971
    %v973 = vmax.f32 %v972, 0.0
    %v974 = vsel %vm719, %v973, 0.0
    %v975 = vrot.slane %v974, 4
    %v976 = vadd.f32 %v974, %v975
    %v977 = vrot.slane %v976, 2
    %v978 = vadd.f32 %v976, %v977
    %v979 = vrot.slane %v978, 1
    %v980 = vadd.f32 %v978, %v979
    %v981 = vmul.f32 %v980, %v767
    %s982 = scalar_lea.vmem %s7, 32
    %v983 = vld [vmem:[%s982] sm:$0xff]
    %v984 = vld [vmem:[%s982 + $0x8] sm:$0xff]
    %v985 = vld [vmem:[%s982 + $0x10] sm:$0xff]
    %v986 = vld [vmem:[%s982 + $0x18] sm:$0xff]
    %v987 = vperm.slane %v219, 4
    %v989 = vsel %vm774, %v981, 0
    %991 = vmatpush.msra.mxu0 0.0
    %992 = vmatpush.msra.mxu0 0.0
    %993 = vmatpush.msra.mxu0 0.0
    %994 = vmatpush.msra.mxu0 0.0
    %995 = vmatpush.msra.mxu0 0.0
    %996 = vmatpush.msra.mxu0 0.0
    %997 = vmatpush.msra.mxu0 0.0
    %998 = vmatpush.msra.mxu0 0.0
    %999 = vmatpush.msra.mxu0 0.0
    %1000 = vmatpush.msra.mxu0 0.0
    %1001 = vmatpush.msra.mxu0 0.0
    %1002 = vmatpush.msra.mxu0 0.0
    %1003 = vmatpush.msra.mxu0 %v986
    %1004 = vmatpush.msra.mxu0 %v985
    %1005 = vmatpush.msra.mxu0 %v984
    %1006 = vmatpush.msra.mxu0 %v983
    %1007 = vmatmul.f32.gmra.mxu0 %v989
    %v1008 = vpop.f32.mrf.mxu0
    %v1009 = vadd.f32 %v987, %v1008
    %1010 = vdwg.mxu0
    %v1011 = vsel %vm308, %v1009, 0.0
    %1012 = vadd.xlane.f32.xlu0 %v1011
    %v1013 = vpop.xlane.xlu0 %1012
    %v1014 = vmul.f32 %v1013, %v234
    %v1015 = vsub.f32 %v1009, %v1014
    %v1016 = vmul.f32 %v1015, %v1015
    %v1017 = vsel %vm308, %v1016, 0.0
    %1018 = vadd.xlane.f32.xlu0 %v1017
    %v1019 = vpop.xlane.xlu0 %1018
    %v1020 = vmul.f32 %v1019, %v234
    %v1021 = vadd.f32 %v1020, 1e-05
    %v1022 = vrsqrt.pop %v1021
    %v1023 = vmul.f32 %v1022, %v1021
    %v1024 = vmul.f32 %v1023, %v1022
    %v1025 = vmul.f32 0.5, %v1024
    %v1026 = vsub.f32 1.5, %v1025
    %v1027 = vmul.f32 %v1022, %v1026
    %vm1028 = vweird.f32 %v1021
    %vm1029 = vweird.f32 %v1022
    %vm1030 = vmor %vm1028, %vm1029
    %v1031 = vsel %vm1030, %v1022, %v1027
    %v1032 = vmul.f32 %v1015, %v1031
    %v1033 = vperm.slane %v219, 5
    %v1034 = vmul.f32 %v1032, %v1033
    %v1035 = vperm.slane %v219, 6
    %v1036 = vadd.f32 %v1034, %v1035
    %v1037 = vmax.f32 %v1036, 0.0
    %s1038 = scalar_lea.vmem [#allocation11], 64
    %v1039 = vld [vmem:[%s1038] sm:$0xff]
    %v1040 = vld [vmem:[%s1038 + $0x8] sm:$0xff]
    %v1041 = vld [vmem:[%s1038 + $0x10] sm:$0xff]
    %v1042 = vld [vmem:[%s1038 + $0x18] sm:$0xff]
    %v1043 = vld [vmem:[%s1038 + $0x20] sm:$0xff]
    %v1044 = vld [vmem:[%s1038 + $0x28] sm:$0xff]
    %v1045 = vld [vmem:[%s1038 + $0x30] sm:$0xff]
    %v1046 = vld [vmem:[%s1038 + $0x38] sm:$0xff]
    %v1047 = vperm.slane %v219, 7
    %v1049 = vsel %vm224, %v1037, 0
    %1051 = vmatpush.msra.mxu0 0.0
    %1052 = vmatpush.msra.mxu0 0.0
    %1053 = vmatpush.msra.mxu0 0.0
    %1054 = vmatpush.msra.mxu0 0.0
    %1055 = vmatpush.msra.mxu0 0.0
    %1056 = vmatpush.msra.mxu0 0.0
    %1057 = vmatpush.msra.mxu0 0.0
    %1058 = vmatpush.msra.mxu0 0.0
    %1059 = vmatpush.msra.mxu0 %v1046
    %1060 = vmatpush.msra.mxu0 %v1045
    %1061 = vmatpush.msra.mxu0 %v1044
    %1062 = vmatpush.msra.mxu0 %v1043
    %1063 = vmatpush.msra.mxu0 %v1042
    %1064 = vmatpush.msra.mxu0 %v1041
    %1065 = vmatpush.msra.mxu0 %v1040
    %1066 = vmatpush.msra.mxu0 %v1039
    %1067 = vmatmul.f32.gmra.mxu0 %v1049
    %v1068 = vpop.f32.mrf.mxu0
    %v1069 = vadd.f32 %v1047, %v1068
    %1070 = vdwg.mxu0
    %v1072 = vsel %vm224, %v855, 0
    %1074 = vmatpush.xpose.msra.mxu0 0.0
    %1075 = vmatpush.xpose.msra.mxu0 0.0
    %1076 = vmatpush.xpose.msra.mxu0 0.0
    %1077 = vmatpush.xpose.msra.mxu0 0.0
    %1078 = vmatpush.xpose.msra.mxu0 0.0
    %1079 = vmatpush.xpose.msra.mxu0 0.0
    %1080 = vmatpush.xpose.msra.mxu0 0.0
    %1081 = vmatpush.xpose.msra.mxu0 0.0
    %1082 = vmatpush.xpose.msra.mxu0 0.0
    %1083 = vmatpush.xpose.msra.mxu0 0.0
    %1084 = vmatpush.xpose.msra.mxu0 0.0
    %1085 = vmatpush.xpose.msra.mxu0 0.0
    %1086 = vmatpush.xpose.msra.mxu0 0.0
    %1087 = vmatpush.xpose.msra.mxu0 0.0
    %1088 = vmatpush.xpose.msra.mxu0 0.0
    %1089 = vmatpush.xpose.msra.mxu0 %v479
    %1090 = vmatmul.f32.gmra.mxu0 %v1072
    %v1091 = vpop.f32.mrf.mxu0
    %v1092 = vadd.f32 0.0, %v1091
    %1093 = vdwg.mxu0
    %v1094 = vmul.f32 %v1092, 0.015625
    %v1095 = vsel %vm502, %v1094, -inf
    %v1096 = vrot.slane %v1095, 4
    %v1097 = vmax.f32 %v1095, %v1096
    %v1098 = vrot.slane %v1097, 2
    %v1099 = vmax.f32 %v1097, %v1098
    %v1100 = vrot.slane %v1099, 1
    %v1101 = vmax.f32 %v1099, %v1100
    %v1102 = vsub.f32 %v1094, %v1101
    %v1103 = vmul.f32 %v1102, 1.442695
    %v1104 = vpow.pop %v1103
    %v1105 = vsel %vm502, %v1104, 0.0
    %v1106 = vrot.slane %v1105, 4
    %v1107 = vadd.f32 %v1105, %v1106
    %v1108 = vrot.slane %v1107, 2
    %v1109 = vadd.f32 %v1107, %v1108
    %v1110 = vrot.slane %v1109, 1
    %v1111 = vadd.f32 %v1109, %v1110
    %v1112 = vrcp.pop %v1111
    %v1113 = vmul.f32 %v1104, %v1112
    %v1115 = vsel %vm525, %v1113, 0
    %1117 = vmatpush.msra.mxu0 0.0
    %1118 = vmatpush.msra.mxu0 0.0
    %1119 = vmatpush.msra.mxu0 0.0
    %1120 = vmatpush.msra.mxu0 0.0
    %1121 = vmatpush.msra.mxu0 0.0
    %1122 = vmatpush.msra.mxu0 0.0
    %1123 = vmatpush.msra.mxu0 0.0
    %1124 = vmatpush.msra.mxu0 0.0
    %1125 = vmatpush.msra.mxu0 0.0
    %1126 = vmatpush.msra.mxu0 0.0
    %1127 = vmatpush.msra.mxu0 0.0
    %1128 = vmatpush.msra.mxu0 0.0
    %1129 = vmatpush.msra.mxu0 0.0
    %1130 = vmatpush.msra.mxu0 0.0
    %1131 = vmatpush.msra.mxu0 0.0
    %1132 = vmatpush.msra.mxu0 %v523
    %1133 = vmatmul.f32.gmra.mxu0 %v1115
    %v1134 = vpop.f32.mrf.mxu0
    %v1135 = vadd.f32 0.0, %v1134
    %1136 = vdwg.mxu0
    %v1137 = vmul.f32 %v1135, 0.015625
    %v1139 = vsel %vm224, %v1069, 0
    %1141 = vmatpush.xpose.msra.mxu0 0.0
    %1142 = vmatpush.xpose.msra.mxu0 0.0
    %1143 = vmatpush.xpose.msra.mxu0 0.0
    %1144 = vmatpush.xpose.msra.mxu0 0.0
    %1145 = vmatpush.xpose.msra.mxu0 0.0
    %1146 = vmatpush.xpose.msra.mxu0 0.0
    %1147 = vmatpush.xpose.msra.mxu0 0.0
    %1148 = vmatpush.xpose.msra.mxu0 0.0
    %1149 = vmatpush.xpose.msra.mxu0 0.0
    %1150 = vmatpush.xpose.msra.mxu0 0.0
    %1151 = vmatpush.xpose.msra.mxu0 0.0
    %1152 = vmatpush.xpose.msra.mxu0 0.0
    %1153 = vmatpush.xpose.msra.mxu0 0.0
    %1154 = vmatpush.xpose.msra.mxu0 0.0
    %1155 = vmatpush.xpose.msra.mxu0 %v557
    %1156 = vmatpush.xpose.msra.mxu0 %v554
    %1157 = vmatmul.f32.gmra.mxu0 %v1139
    %v1158 = vpop.f32.mrf.mxu0
    %v1159 = vadd.f32 0.0, %v1158
    %1160 = vdwg.mxu0
    %v1161 = vmul.f32 %v1159, 0.015625
    %v1162 = vsel %vm580, %v1161, -inf
    %v1163 = vrot.slane %v1162, 4
    %v1164 = vmax.f32 %v1162, %v1163
    %v1165 = vrot.slane %v1164, 2
    %v1166 = vmax.f32 %v1164, %v1165
    %v1167 = vrot.slane %v1166, 1
    %v1168 = vmax.f32 %v1166, %v1167
    %v1169 = vsub.f32 %v1161, %v1168
    %v1170 = vmul.f32 %v1169, 1.442695
    %v1171 = vpow.pop %v1170
    %v1172 = vsel %vm580, %v1171, 0.0
    %v1173 = vrot.slane %v1172, 4
    %v1174 = vadd.f32 %v1172, %v1173
    %v1175 = vrot.slane %v1174, 2
    %v1176 = vadd.f32 %v1174, %v1175
    %v1177 = vrot.slane %v1176, 1
    %v1178 = vadd.f32 %v1176, %v1177
    %v1179 = vrcp.pop %v1178
    %v1180 = vmul.f32 %v1171, %v1179
    %v1182 = vsel %vm606, %v1180, 0
    %1184 = vmatpush.msra.mxu0 0.0
    %1185 = vmatpush.msra.mxu0 0.0
    %1186 = vmatpush.msra.mxu0 0.0
    %1187 = vmatpush.msra.mxu0 0.0
    %1188 = vmatpush.msra.mxu0 0.0
    %1189 = vmatpush.msra.mxu0 0.0
    %1190 = vmatpush.msra.mxu0 0.0
    %1191 = vmatpush.msra.mxu0 0.0
    %1192 = vmatpush.msra.mxu0 0.0
    %1193 = vmatpush.msra.mxu0 0.0
    %1194 = vmatpush.msra.mxu0 0.0
    %1195 = vmatpush.msra.mxu0 0.0
    %1196 = vmatpush.msra.mxu0 0.0
    %1197 = vmatpush.msra.mxu0 0.0
    %1198 = vmatpush.msra.mxu0 %v603
    %1199 = vmatpush.msra.mxu0 %v601
    %1200 = vmatmul.f32.gmra.mxu0 %v1182
    %v1201 = vpop.f32.mrf.mxu0
    %v1202 = vadd.f32 0.0, %v1201
    %1203 = vdwg.mxu0
    %v1204 = vmul.f32 %v1202, 0.015625
    %v1205 = vld [vmem:[#allocation13] sm:$0xff]
    %v1206 = vld [vmem:[#allocation13 + $0x8] sm:$0xff]
    %v1207 = vld [vmem:[#allocation13 + $0x10] sm:$0xff]
    %v1208 = vld [vmem:[#allocation13 + $0x18] sm:$0xff]
    %v1209 = vld [vmem:[#allocation13 + $0x20] sm:$0xff]
    %v1210 = vld [vmem:[#allocation13 + $0x28] sm:$0xff]
    %v1211 = vld [vmem:[#allocation13 + $0x30] sm:$0xff]
    %v1212 = vld [vmem:[#allocation13 + $0x38] sm:$0xff]
    %v1213 = vperm.slane %v220, 0
    %v1215 = vsel %vm224, %v1137, 0
    %1217 = vmatpush.msra.mxu0 0.0
    %1218 = vmatpush.msra.mxu0 0.0
    %1219 = vmatpush.msra.mxu0 0.0
    %1220 = vmatpush.msra.mxu0 0.0
    %1221 = vmatpush.msra.mxu0 0.0
    %1222 = vmatpush.msra.mxu0 0.0
    %1223 = vmatpush.msra.mxu0 0.0
    %1224 = vmatpush.msra.mxu0 0.0
    %1225 = vmatpush.msra.mxu0 %v1212
    %1226 = vmatpush.msra.mxu0 %v1211
    %1227 = vmatpush.msra.mxu0 %v1210
    %1228 = vmatpush.msra.mxu0 %v1209
    %1229 = vmatpush.msra.mxu0 %v1208
    %1230 = vmatpush.msra.mxu0 %v1207
    %1231 = vmatpush.msra.mxu0 %v1206
    %1232 = vmatpush.msra.mxu0 %v1205
    %1233 = vmatmul.f32.gmra.mxu0 %v1215
    %v1234 = vpop.f32.mrf.mxu0
    %v1235 = vadd.f32 %v1213, %v1234
    %1236 = vdwg.mxu0
    %s1237 = scalar_lea.vmem [#allocation13], 64
    %v1238 = vld [vmem:[%s1237] sm:$0xff]
    %v1239 = vld [vmem:[%s1237 + $0x8] sm:$0xff]
    %v1240 = vld [vmem:[%s1237 + $0x10] sm:$0xff]
    %v1241 = vld [vmem:[%s1237 + $0x18] sm:$0xff]
    %v1242 = vld [vmem:[%s1237 + $0x20] sm:$0xff]
    %v1243 = vld [vmem:[%s1237 + $0x28] sm:$0xff]
    %v1244 = vld [vmem:[%s1237 + $0x30] sm:$0xff]
    %v1245 = vld [vmem:[%s1237 + $0x38] sm:$0xff]
    %v1246 = vperm.slane %v220, 1
    %v1248 = vsel %vm224, %v1204, 0
    %1250 = vmatpush.msra.mxu0 0.0
    %1251 = vmatpush.msra.mxu0 0.0
    %1252 = vmatpush.msra.mxu0 0.0
    %1253 = vmatpush.msra.mxu0 0.0
    %1254 = vmatpush.msra.mxu0 0.0
    %1255 = vmatpush.msra.mxu0 0.0
    %1256 = vmatpush.msra.mxu0 0.0
    %1257 = vmatpush.msra.mxu0 0.0
    %1258 = vmatpush.msra.mxu0 %v1245
    %1259 = vmatpush.msra.mxu0 %v1244
    %1260 = vmatpush.msra.mxu0 %v1243
    %1261 = vmatpush.msra.mxu0 %v1242
    %1262 = vmatpush.msra.mxu0 %v1241
    %1263 = vmatpush.msra.mxu0 %v1240
    %1264 = vmatpush.msra.mxu0 %v1239
    %1265 = vmatpush.msra.mxu0 %v1238
    %1266 = vmatmul.f32.gmra.mxu0 %v1248
    %v1267 = vpop.f32.mrf.mxu0
    %v1268 = vadd.f32 %v1246, %v1267
    %1269 = vdwg.mxu0
    %s1270 = scalar_lea.vmem [#allocation13], 128
    %v1271 = vld [vmem:[%s1270] sm:$0xff]
    %v1272 = vld [vmem:[%s1270 + $0x8] sm:$0xff]
    %v1273 = vld [vmem:[%s1270 + $0x10] sm:$0xff]
    %v1274 = vld [vmem:[%s1270 + $0x18] sm:$0xff]
    %v1275 = vld [vmem:[%s1270 + $0x20] sm:$0xff]
    %v1276 = vld [vmem:[%s1270 + $0x28] sm:$0xff]
    %v1277 = vld [vmem:[%s1270 + $0x30] sm:$0xff]
    %v1278 = vld [vmem:[%s1270 + $0x38] sm:$0xff]
    %v1279 = vperm.slane %v220, 2
    %v1281 = vsel %vm224, %v549, 0
    %1283 = vmatpush.msra.mxu0 0.0
    %1284 = vmatpush.msra.mxu0 0.0
    %1285 = vmatpush.msra.mxu0 0.0
    %1286 = vmatpush.msra.mxu0 0.0
    %1287 = vmatpush.msra.mxu0 0.0
    %1288 = vmatpush.msra.mxu0 0.0
    %1289 = vmatpush.msra.mxu0 0.0
    %1290 = vmatpush.msra.mxu0 0.0
    %1291 = vmatpush.msra.mxu0 %v1278
    %1292 = vmatpush.msra.mxu0 %v1277
    %1293 = vmatpush.msra.mxu0 %v1276
    %1294 = vmatpush.msra.mxu0 %v1275
    %1295 = vmatpush.msra.mxu0 %v1274
    %1296 = vmatpush.msra.mxu0 %v1273
    %1297 = vmatpush.msra.mxu0 %v1272
    %1298 = vmatpush.msra.mxu0 %v1271
    %1299 = vmatmul.f32.gmra.mxu0 %v1281
    %v1300 = vpop.f32.mrf.mxu0
    %v1301 = vadd.f32 %v1279, %v1300
    %1302 = vdwg.mxu0
    %s1303 = scalar_lea.vmem [#allocation13], 192
    %v1304 = vld [vmem:[%s1303] sm:$0xff]
    %v1305 = vld [vmem:[%s1303 + $0x8] sm:$0xff]
    %v1306 = vld [vmem:[%s1303 + $0x10] sm:$0xff]
    %v1307 = vld [vmem:[%s1303 + $0x18] sm:$0xff]
    %v1308 = vld [vmem:[%s1303 + $0x20] sm:$0xff]
    %v1309 = vld [vmem:[%s1303 + $0x28] sm:$0xff]
    %v1310 = vld [vmem:[%s1303 + $0x30] sm:$0xff]
    %v1311 = vld [vmem:[%s1303 + $0x38] sm:$0xff]
    %v1312 = vperm.slane %v220, 3
    %v1314 = vsel %vm224, %v630, 0
    %1316 = vmatpush.msra.mxu0 0.0
    %1317 = vmatpush.msra.mxu0 0.0
    %1318 = vmatpush.msra.mxu0 0.0
    %1319 = vmatpush.msra.mxu0 0.0
    %1320 = vmatpush.msra.mxu0 0.0
    %1321 = vmatpush.msra.mxu0 0.0
    %1322 = vmatpush.msra.mxu0 0.0
    %1323 = vmatpush.msra.mxu0 0.0
    %1324 = vmatpush.msra.mxu0 %v1311
    %1325 = vmatpush.msra.mxu0 %v1310
    %1326 = vmatpush.msra.mxu0 %v1309
    %1327 = vmatpush.msra.mxu0 %v1308
    %1328 = vmatpush.msra.mxu0 %v1307
    %1329 = vmatpush.msra.mxu0 %v1306
    %1330 = vmatpush.msra.mxu0 %v1305
    %1331 = vmatpush.msra.mxu0 %v1304
    %1332 = vmatmul.f32.gmra.mxu0 %v1314
    %v1333 = vpop.f32.mrf.mxu0
    %v1334 = vadd.f32 %v1312, %v1333
    %1335 = vdwg.mxu0
    %1337 = vrot.lane.b32.xlu0 %v1268, 64
    %v1338 = vpop.permute.xlu0 %1337
    %1341 = vrot.lane.b32.xlu0 %v1334, 64
    %v1342 = vpop.permute.xlu0 %1341
    %v1344 = vsel %vm224, %v1235, %v1338
    %v1345 = vsel %vm224, %v1301, %v1342
    %v1348 = vrot.slane %v1345, 4
    %vm1349 = vcmask 1043456
    %v1350 = vsel %vm1349, %v1344, %v1348
    %1352 = vst [vmem:[%s17] sm:$0xff] %v1350
    %s1353 = scalar_lea.vmem %s10, 32
    %v1354 = vld [vmem:[%s1353] sm:$0xff]
    %v1355 = vld [vmem:[%s1353 + $0x8] sm:$0xff]
    %v1356 = vld [vmem:[%s1353 + $0x10] sm:$0xff]
    %v1357 = vld [vmem:[%s1353 + $0x18] sm:$0xf]
    %s1358 = scalar_lea.vmem [#allocation16], 8
    %v1359 = vld [vmem:[%s1358] sm:$0x3f]
    %s1360 = scalar_lea.vmem [#allocation14], 2
    %v1361 = vld [vmem:[%s1360] sm:$0x3]
    %s1362 = scalar_lea.vmem [#allocation7], 4
    %v1363 = vld [vmem:[%s1362] sm:$0xf]
    %v1364 = vsel %vm308, %v1235, 0.0
    %1365 = vadd.xlane.f32.xlu0 %v1364
    %v1366 = vpop.xlane.xlu0 %1365
    %v1367 = vmul.f32 %v1366, %v234
    %v1368 = vsub.f32 %v1235, %v1367
    %v1369 = vmul.f32 %v1368, %v1368
    %v1370 = vsel %vm308, %v1369, 0.0
    %1371 = vadd.xlane.f32.xlu0 %v1370
    %v1372 = vpop.xlane.xlu0 %1371
    %v1373 = vmul.f32 %v1372, %v234
    %v1374 = vadd.f32 %v1373, 1e-05
    %v1375 = vrsqrt.pop %v1374
    %v1376 = vmul.f32 %v1375, %v1374
    %v1377 = vmul.f32 %v1376, %v1375
    %v1378 = vmul.f32 0.5, %v1377
    %v1379 = vsub.f32 1.5, %v1378
    %v1380 = vmul.f32 %v1375, %v1379
    %vm1381 = vweird.f32 %v1374
    %vm1382 = vweird.f32 %v1375
    %vm1383 = vmor %vm1381, %vm1382
    %v1384 = vsel %vm1383, %v1375, %v1380
    %v1385 = vmul.f32 %v1368, %v1384
    %v1386 = vperm.slane %v1354, 0
    %v1387 = vmul.f32 %v1385, %v1386
    %v1388 = vperm.slane %v1354, 1
    %v1389 = vadd.f32 %v1387, %v1388
    %v1390 = vsel %vm308, %v1268, 0.0
    %1391 = vadd.xlane.f32.xlu0 %v1390
    %v1392 = vpop.xlane.xlu0 %1391
    %v1393 = vmul.f32 %v1392, %v234
    %v1394 = vsub.f32 %v1268, %v1393
    %v1395 = vmul.f32 %v1394, %v1394
    %v1396 = vsel %vm308, %v1395, 0.0
    %1397 = vadd.xlane.f32.xlu0 %v1396
    %v1398 = vpop.xlane.xlu0 %1397
    %v1399 = vmul.f32 %v1398, %v234
    %v1400 = vadd.f32 %v1399, 1e-05
    %v1401 = vrsqrt.pop %v1400
    %v1402 = vmul.f32 %v1401, %v1400
    %v1403 = vmul.f32 %v1402, %v1401
    %v1404 = vmul.f32 0.5, %v1403
    %v1405 = vsub.f32 1.5, %v1404
    %v1406 = vmul.f32 %v1401, %v1405
    %vm1407 = vweird.f32 %v1400
    %vm1408 = vweird.f32 %v1401
    %vm1409 = vmor %vm1407, %vm1408
    %v1410 = vsel %vm1409, %v1401, %v1406
    %v1411 = vmul.f32 %v1394, %v1410
    %v1412 = vperm.slane %v1354, 2
    %v1413 = vmul.f32 %v1411, %v1412
    %v1414 = vperm.slane %v1354, 3
    %v1415 = vadd.f32 %v1413, %v1414
    %v1416 = vsel %vm308, %v1363, 0.0
    %1417 = vadd.xlane.f32.xlu0 %v1416
    %v1418 = vpop.xlane.xlu0 %1417
    %v1419 = vmul.f32 %v1418, %v234
    %v1420 = vsub.f32 %v1363, %v1419
    %v1421 = vmul.f32 %v1420, %v1420
    %v1422 = vsel %vm308, %v1421, 0.0
    %1423 = vadd.xlane.f32.xlu0 %v1422
    %v1424 = vpop.xlane.xlu0 %1423
    %v1425 = vmul.f32 %v1424, %v234
    %v1426 = vadd.f32 %v1425, 1e-05
    %v1427 = vrsqrt.pop %v1426
    %v1428 = vmul.f32 %v1427, %v1426
    %v1429 = vmul.f32 %v1428, %v1427
    %v1430 = vmul.f32 0.5, %v1429
    %v1431 = vsub.f32 1.5, %v1430
    %v1432 = vmul.f32 %v1427, %v1431
    %vm1433 = vweird.f32 %v1426
    %vm1434 = vweird.f32 %v1427
    %vm1435 = vmor %vm1433, %vm1434
    %v1436 = vsel %vm1435, %v1427, %v1432
    %v1437 = vmul.f32 %v1420, %v1436
    %v1438 = vperm.slane %v1354, 4
    %v1439 = vmul.f32 %v1437, %v1438
    %v1440 = vperm.slane %v1354, 5
    %v1441 = vadd.f32 %v1439, %v1440
    %s1442 = scalar_lea.vmem %s3, 128
    %v1443 = vld [vmem:[%s1442] sm:$0xff]
    %v1444 = vld [vmem:[%s1442 + $0x8] sm:$0xff]
    %v1445 = vld [vmem:[%s1442 + $0x10] sm:$0xff]
    %v1446 = vld [vmem:[%s1442 + $0x18] sm:$0xff]
    %v1447 = vld [vmem:[%s1442 + $0x20] sm:$0xff]
    %v1448 = vld [vmem:[%s1442 + $0x28] sm:$0xff]
    %v1449 = vld [vmem:[%s1442 + $0x30] sm:$0xff]
    %v1450 = vld [vmem:[%s1442 + $0x38] sm:$0xff]
    %v1451 = vperm.slane %v1354, 6
    %v1453 = vsel %vm224, %v1441, 0
    %1455 = vmatpush.msra.mxu0 0.0
    %1456 = vmatpush.msra.mxu0 0.0
    %1457 = vmatpush.msra.mxu0 0.0
    %1458 = vmatpush.msra.mxu0 0.0
    %1459 = vmatpush.msra.mxu0 0.0
    %1460 = vmatpush.msra.mxu0 0.0
    %1461 = vmatpush.msra.mxu0 0.0
    %1462 = vmatpush.msra.mxu0 0.0
    %1463 = vmatpush.msra.mxu0 %v1450
    %1464 = vmatpush.msra.mxu0 %v1449
    %1465 = vmatpush.msra.mxu0 %v1448
    %1466 = vmatpush.msra.mxu0 %v1447
    %1467 = vmatpush.msra.mxu0 %v1446
    %1468 = vmatpush.msra.mxu0 %v1445
    %1469 = vmatpush.msra.mxu0 %v1444
    %1470 = vmatpush.msra.mxu0 %v1443
    %1471 = vmatmul.f32.gmra.mxu0 %v1453
    %v1472 = vpop.f32.mrf.mxu0
    %v1473 = vadd.f32 %v1451, %v1472
    %1474 = vdwg.mxu0
    %v1475 = vperm.slane %v1354, 7
    %v1476 = vmul.f32 %v1437, %v1475
    %v1477 = vperm.slane %v1355, 0
    %v1478 = vadd.f32 %v1476, %v1477
    %s1479 = scalar_lea.vmem %s3, 192
    %v1480 = vld [vmem:[%s1479] sm:$0xff]
    %v1481 = vld [vmem:[%s1479 + $0x8] sm:$0xff]
    %v1482 = vld [vmem:[%s1479 + $0x10] sm:$0xff]
    %v1483 = vld [vmem:[%s1479 + $0x18] sm:$0xff]
    %v1484 = vld [vmem:[%s1479 + $0x20] sm:$0xff]
    %v1485 = vld [vmem:[%s1479 + $0x28] sm:$0xff]
    %v1486 = vld [vmem:[%s1479 + $0x30] sm:$0xff]
    %v1487 = vld [vmem:[%s1479 + $0x38] sm:$0xff]
    %v1488 = vperm.slane %v1355, 1
    %v1490 = vsel %vm224, %v1478, 0
    %1492 = vmatpush.msra.mxu0 0.0
    %1493 = vmatpush.msra.mxu0 0.0
    %1494 = vmatpush.msra.mxu0 0.0
    %1495 = vmatpush.msra.mxu0 0.0
    %1496 = vmatpush.msra.mxu0 0.0
    %1497 = vmatpush.msra.mxu0 0.0
    %1498 = vmatpush.msra.mxu0 0.0
    %1499 = vmatpush.msra.mxu0 0.0
    %1500 = vmatpush.msra.mxu0 %v1487
    %1501 = vmatpush.msra.mxu0 %v1486
    %1502 = vmatpush.msra.mxu0 %v1485
    %1503 = vmatpush.msra.mxu0 %v1484
    %1504 = vmatpush.msra.mxu0 %v1483
    %1505 = vmatpush.msra.mxu0 %v1482
    %1506 = vmatpush.msra.mxu0 %v1481
    %1507 = vmatpush.msra.mxu0 %v1480
    %1508 = vmatmul.f32.gmra.mxu0 %v1490
    %v1509 = vpop.f32.mrf.mxu0
    %v1510 = vadd.f32 %v1488, %v1509
    %1511 = vdwg.mxu0
    %s1512 = scalar_lea.vmem [#allocation8], 128
    %v1513 = vld [vmem:[%s1512] sm:$0xff]
    %v1514 = vld [vmem:[%s1512 + $0x8] sm:$0xff]
    %v1515 = vld [vmem:[%s1512 + $0x10] sm:$0xff]
    %v1516 = vld [vmem:[%s1512 + $0x18] sm:$0xff]
    %v1517 = vld [vmem:[%s1512 + $0x20] sm:$0xff]
    %v1518 = vld [vmem:[%s1512 + $0x28] sm:$0xff]
    %v1519 = vld [vmem:[%s1512 + $0x30] sm:$0xff]
    %v1520 = vld [vmem:[%s1512 + $0x38] sm:$0xff]
    %v1521 = vperm.slane %v1361, 0
    %v1523 = vsel %vm224, %v1389, 0
    %1525 = vmatpush.msra.mxu0 0.0
    %1526 = vmatpush.msra.mxu0 0.0
    %1527 = vmatpush.msra.mxu0 0.0
    %1528 = vmatpush.msra.mxu0 0.0
    %1529 = vmatpush.msra.mxu0 0.0
    %1530 = vmatpush.msra.mxu0 0.0
    %1531 = vmatpush.msra.mxu0 0.0
    %1532 = vmatpush.msra.mxu0 0.0
    %1533 = vmatpush.msra.mxu0 %v1520
    %1534 = vmatpush.msra.mxu0 %v1519
    %1535 = vmatpush.msra.mxu0 %v1518
    %1536 = vmatpush.msra.mxu0 %v1517
    %1537 = vmatpush.msra.mxu0 %v1516
    %1538 = vmatpush.msra.mxu0 %v1515
    %1539 = vmatpush.msra.mxu0 %v1514
    %1540 = vmatpush.msra.mxu0 %v1513
    %1541 = vmatmul.f32.gmra.mxu0 %v1523
    %v1542 = vpop.f32.mrf.mxu0
    %v1543 = vadd.f32 %v1521, %v1542
    %1544 = vdwg.mxu0
    %s1545 = scalar_lea.vmem [#allocation8], 192
    %v1546 = vld [vmem:[%s1545] sm:$0xff]
    %v1547 = vld [vmem:[%s1545 + $0x8] sm:$0xff]
    %v1548 = vld [vmem:[%s1545 + $0x10] sm:$0xff]
    %v1549 = vld [vmem:[%s1545 + $0x18] sm:$0xff]
    %v1550 = vld [vmem:[%s1545 + $0x20] sm:$0xff]
    %v1551 = vld [vmem:[%s1545 + $0x28] sm:$0xff]
    %v1552 = vld [vmem:[%s1545 + $0x30] sm:$0xff]
    %v1553 = vld [vmem:[%s1545 + $0x38] sm:$0xff]
    %v1554 = vperm.slane %v1361, 1
    %v1556 = vsel %vm224, %v1415, 0
    %1558 = vmatpush.msra.mxu0 0.0
    %1559 = vmatpush.msra.mxu0 0.0
    %1560 = vmatpush.msra.mxu0 0.0
    %1561 = vmatpush.msra.mxu0 0.0
    %1562 = vmatpush.msra.mxu0 0.0
    %1563 = vmatpush.msra.mxu0 0.0
    %1564 = vmatpush.msra.mxu0 0.0
    %1565 = vmatpush.msra.mxu0 0.0
    %1566 = vmatpush.msra.mxu0 %v1553
    %1567 = vmatpush.msra.mxu0 %v1552
    %1568 = vmatpush.msra.mxu0 %v1551
    %1569 = vmatpush.msra.mxu0 %v1550
    %1570 = vmatpush.msra.mxu0 %v1549
    %1571 = vmatpush.msra.mxu0 %v1548
    %1572 = vmatpush.msra.mxu0 %v1547
    %1573 = vmatpush.msra.mxu0 %v1546
    %1574 = vmatmul.f32.gmra.mxu0 %v1556
    %v1575 = vpop.f32.mrf.mxu0
    %v1576 = vadd.f32 %v1554, %v1575
    %1577 = vdwg.mxu0
    %v1579 = vsel %vm224, %v1473, 0
    %v1582 = vsel %vm224, %v1543, 0
    %1584 = vmatpush.xpose.msra.mxu0 0.0
    %1585 = vmatpush.xpose.msra.mxu0 0.0
    %1586 = vmatpush.xpose.msra.mxu0 0.0
    %1587 = vmatpush.xpose.msra.mxu0 0.0
    %1588 = vmatpush.xpose.msra.mxu0 0.0
    %1589 = vmatpush.xpose.msra.mxu0 0.0
    %1590 = vmatpush.xpose.msra.mxu0 0.0
    %1591 = vmatpush.xpose.msra.mxu0 0.0
    %1592 = vmatpush.xpose.msra.mxu0 0.0
    %1593 = vmatpush.xpose.msra.mxu0 0.0
    %1594 = vmatpush.xpose.msra.mxu0 0.0
    %1595 = vmatpush.xpose.msra.mxu0 0.0
    %1596 = vmatpush.xpose.msra.mxu0 0.0
    %1597 = vmatpush.xpose.msra.mxu0 0.0
    %1598 = vmatpush.xpose.msra.mxu0 0.0
    %1599 = vmatpush.xpose.msra.mxu0 %v1582
    %1600 = vmatmul.f32.gmra.mxu0 %v1579
    %v1601 = vpop.f32.mrf.mxu0
    %v1602 = vadd.f32 0.0, %v1601
    %1603 = vdwg.mxu0
    %v1604 = vmul.f32 %v1602, 0.015625
    %vm1605 = vcmask 27648
    %v1606 = vsel %vm1605, %v1604, -inf
    %v1607 = vrot.slane %v1606, 4
    %v1608 = vmax.f32 %v1606, %v1607
    %v1609 = vrot.slane %v1608, 2
    %v1610 = vmax.f32 %v1608, %v1609
    %v1611 = vrot.slane %v1610, 1
    %v1612 = vmax.f32 %v1610, %v1611
    %v1613 = vsub.f32 %v1604, %v1612
    %v1614 = vmul.f32 %v1613, 1.442695
    %v1615 = vpow.pop %v1614
    %v1616 = vsel %vm1605, %v1615, 0.0
    %v1617 = vrot.slane %v1616, 4
    %v1618 = vadd.f32 %v1616, %v1617
    %v1619 = vrot.slane %v1618, 2
    %v1620 = vadd.f32 %v1618, %v1619
    %v1621 = vrot.slane %v1620, 1
    %v1622 = vadd.f32 %v1620, %v1621
    %v1623 = vrcp.pop %v1622
    %v1624 = vmul.f32 %v1615, %v1623
    %1625 = vrot.lane.b32.xlu0 %v1543, 64
    %v1626 = vpop.permute.xlu0 %1625
    %vm1627 = vcmask 31744
    %v1629 = vsel %vm1627, %v1624, 0
    %v1631 = vsel %vm1349, %v1626, 0
    %1633 = vmatpush.msra.mxu0 0.0
    %1634 = vmatpush.msra.mxu0 0.0
    %1635 = vmatpush.msra.mxu0 0.0
    %1636 = vmatpush.msra.mxu0 0.0
    %1637 = vmatpush.msra.mxu0 0.0
    %1638 = vmatpush.msra.mxu0 0.0
    %1639 = vmatpush.msra.mxu0 0.0
    %1640 = vmatpush.msra.mxu0 0.0
    %1641 = vmatpush.msra.mxu0 0.0
    %1642 = vmatpush.msra.mxu0 0.0
    %1643 = vmatpush.msra.mxu0 0.0
    %1644 = vmatpush.msra.mxu0 0.0
    %1645 = vmatpush.msra.mxu0 0.0
    %1646 = vmatpush.msra.mxu0 0.0
    %1647 = vmatpush.msra.mxu0 0.0
    %1648 = vmatpush.msra.mxu0 %v1631
    %1649 = vmatmul.f32.gmra.mxu0 %v1629
    %v1650 = vpop.f32.mrf.mxu0
    %v1651 = vadd.f32 0.0, %v1650
    %1652 = vdwg.mxu0
    %v1653 = vmul.f32 %v1651, 0.015625
    %v1655 = vsel %vm224, %v1510, 0
    %v1658 = vsel %vm224, %v1576, 0
    %1660 = vmatpush.xpose.msra.mxu0 0.0
    %1661 = vmatpush.xpose.msra.mxu0 0.0
    %1662 = vmatpush.xpose.msra.mxu0 0.0
    %1663 = vmatpush.xpose.msra.mxu0 0.0
    %1664 = vmatpush.xpose.msra.mxu0 0.0
    %1665 = vmatpush.xpose.msra.mxu0 0.0
    %1666 = vmatpush.xpose.msra.mxu0 0.0
    %1667 = vmatpush.xpose.msra.mxu0 0.0
    %1668 = vmatpush.xpose.msra.mxu0 0.0
    %1669 = vmatpush.xpose.msra.mxu0 0.0
    %1670 = vmatpush.xpose.msra.mxu0 0.0
    %1671 = vmatpush.xpose.msra.mxu0 0.0
    %1672 = vmatpush.xpose.msra.mxu0 0.0
    %1673 = vmatpush.xpose.msra.mxu0 0.0
    %1674 = vmatpush.xpose.msra.mxu0 0.0
    %1675 = vmatpush.xpose.msra.mxu0 %v1658
    %1676 = vmatmul.f32.gmra.mxu0 %v1655
    %v1677 = vpop.f32.mrf.mxu0
    %v1678 = vadd.f32 0.0, %v1677
    %1679 = vdwg.mxu0
    %v1680 = vmul.f32 %v1678, 0.015625
    %v1681 = vsel %vm1605, %v1680, -inf
    %v1682 = vrot.slane %v1681, 4
    %v1683 = vmax.f32 %v1681, %v1682
    %v1684 = vrot.slane %v1683, 2
    %v1685 = vmax.f32 %v1683, %v1684
    %v1686 = vrot.slane %v1685, 1
    %v1687 = vmax.f32 %v1685, %v1686
    %v1688 = vsub.f32 %v1680, %v1687
    %v1689 = vmul.f32 %v1688, 1.442695
    %v1690 = vpow.pop %v1689
    %v1691 = vsel %vm1605, %v1690, 0.0
    %v1692 = vrot.slane %v1691, 4
    %v1693 = vadd.f32 %v1691, %v1692
    %v1694 = vrot.slane %v1693, 2
    %v1695 = vadd.f32 %v1693, %v1694
    %v1696 = vrot.slane %v1695, 1
    %v1697 = vadd.f32 %v1695, %v1696
    %v1698 = vrcp.pop %v1697
    %v1699 = vmul.f32 %v1690, %v1698
    %1700 = vrot.lane.b32.xlu0 %v1576, 64
    %v1701 = vpop.permute.xlu0 %1700
    %v1703 = vsel %vm1627, %v1699, 0
    %v1705 = vsel %vm1349, %v1701, 0
    %1707 = vmatpush.msra.mxu0 0.0
    %1708 = vmatpush.msra.mxu0 0.0
    %1709 = vmatpush.msra.mxu0 0.0
    %1710 = vmatpush.msra.mxu0 0.0
    %1711 = vmatpush.msra.mxu0 0.0
    %1712 = vmatpush.msra.mxu0 0.0
    %1713 = vmatpush.msra.mxu0 0.0
    %1714 = vmatpush.msra.mxu0 0.0
    %1715 = vmatpush.msra.mxu0 0.0
    %1716 = vmatpush.msra.mxu0 0.0
    %1717 = vmatpush.msra.mxu0 0.0
    %1718 = vmatpush.msra.mxu0 0.0
    %1719 = vmatpush.msra.mxu0 0.0
    %1720 = vmatpush.msra.mxu0 0.0
    %1721 = vmatpush.msra.mxu0 0.0
    %1722 = vmatpush.msra.mxu0 %v1705
    %1723 = vmatmul.f32.gmra.mxu0 %v1703
    %v1724 = vpop.f32.mrf.mxu0
    %v1725 = vadd.f32 0.0, %v1724
    %1726 = vdwg.mxu0
    %v1727 = vmul.f32 %v1725, 0.015625
    %s1728 = scalar_lea.vmem [#allocation10], 128
    %v1729 = vld [vmem:[%s1728] sm:$0xff]
    %v1730 = vld [vmem:[%s1728 + $0x8] sm:$0xff]
    %v1731 = vld [vmem:[%s1728 + $0x10] sm:$0xff]
    %v1732 = vld [vmem:[%s1728 + $0x18] sm:$0xff]
    %v1733 = vld [vmem:[%s1728 + $0x20] sm:$0xff]
    %v1734 = vld [vmem:[%s1728 + $0x28] sm:$0xff]
    %v1735 = vld [vmem:[%s1728 + $0x30] sm:$0xff]
    %v1736 = vld [vmem:[%s1728 + $0x38] sm:$0xff]
    %v1737 = vperm.slane %v1355, 2
    %1738 = vmatpush.msra.mxu0 0.0
    %1739 = vmatpush.msra.mxu0 0.0
    %1740 = vmatpush.msra.mxu0 0.0
    %1741 = vmatpush.msra.mxu0 0.0
    %1742 = vmatpush.msra.mxu0 0.0
    %1743 = vmatpush.msra.mxu0 0.0
    %1744 = vmatpush.msra.mxu0 0.0
    %1745 = vmatpush.msra.mxu0 0.0
    %1746 = vmatpush.msra.mxu0 %v1736
    %1747 = vmatpush.msra.mxu0 %v1735
    %1748 = vmatpush.msra.mxu0 %v1734
    %1749 = vmatpush.msra.mxu0 %v1733
    %1750 = vmatpush.msra.mxu0 %v1732
    %1751 = vmatpush.msra.mxu0 %v1731
    %1752 = vmatpush.msra.mxu0 %v1730
    %1753 = vmatpush.msra.mxu0 %v1729
    %1754 = vmatmul.f32.gmra.mxu0 %v1579
    %v1755 = vpop.f32.mrf.mxu0
    %v1756 = vadd.f32 %v1737, %v1755
    %1757 = vdwg.mxu0
    %v1758 = vsel %vm308, %v1756, 0.0
    %1759 = vadd.xlane.f32.xlu0 %v1758
    %v1760 = vpop.xlane.xlu0 %1759
    %v1761 = vmul.f32 %v1760, %v234
    %v1762 = vsub.f32 %v1756, %v1761
    %v1763 = vmul.f32 %v1762, %v1762
    %v1764 = vsel %vm308, %v1763, 0.0
    %1765 = vadd.xlane.f32.xlu0 %v1764
    %v1766 = vpop.xlane.xlu0 %1765
    %v1767 = vmul.f32 %v1766, %v234
    %v1768 = vadd.f32 %v1767, 1e-05
    %v1769 = vrsqrt.pop %v1768
    %v1770 = vmul.f32 %v1769, %v1768
    %v1771 = vmul.f32 %v1770, %v1769
    %v1772 = vmul.f32 0.5, %v1771
    %v1773 = vsub.f32 1.5, %v1772
    %v1774 = vmul.f32 %v1769, %v1773
    %vm1775 = vweird.f32 %v1768
    %vm1776 = vweird.f32 %v1769
    %vm1777 = vmor %vm1775, %vm1776
    %v1778 = vsel %vm1777, %v1769, %v1774
    %v1779 = vmul.f32 %v1762, %v1778
    %v1780 = vperm.slane %v1355, 3
    %v1781 = vmul.f32 %v1779, %v1780
    %v1782 = vperm.slane %v1355, 4
    %v1783 = vadd.f32 %v1781, %v1782
    %v1784 = vmax.f32 %v1783, 0.0
    %s1785 = scalar_lea.vmem %s6, 128
    %v1786 = vld [vmem:[%s1785] sm:$0xff]
    %v1787 = vld [vmem:[%s1785 + $0x8] sm:$0xff]
    %v1788 = vld [vmem:[%s1785 + $0x10] sm:$0xff]
    %v1789 = vld [vmem:[%s1785 + $0x18] sm:$0xff]
    %v1790 = vld [vmem:[%s1785 + $0x20] sm:$0xff]
    %v1791 = vld [vmem:[%s1785 + $0x28] sm:$0xff]
    %v1792 = vld [vmem:[%s1785 + $0x30] sm:$0xff]
    %v1793 = vld [vmem:[%s1785 + $0x38] sm:$0xff]
    %v1794 = vperm.slane %v1359, 0
    %v1796 = vsel %vm224, %v1784, 0
    %1798 = vmatpush.msra.mxu0 0.0
    %1799 = vmatpush.msra.mxu0 0.0
    %1800 = vmatpush.msra.mxu0 0.0
    %1801 = vmatpush.msra.mxu0 0.0
    %1802 = vmatpush.msra.mxu0 0.0
    %1803 = vmatpush.msra.mxu0 0.0
    %1804 = vmatpush.msra.mxu0 0.0
    %1805 = vmatpush.msra.mxu0 0.0
    %1806 = vmatpush.msra.mxu0 %v1793
    %1807 = vmatpush.msra.mxu0 %v1792
    %1808 = vmatpush.msra.mxu0 %v1791
    %1809 = vmatpush.msra.mxu0 %v1790
    %1810 = vmatpush.msra.mxu0 %v1789
    %1811 = vmatpush.msra.mxu0 %v1788
    %1812 = vmatpush.msra.mxu0 %v1787
    %1813 = vmatpush.msra.mxu0 %v1786
    %1814 = vmatmul.f32.gmra.mxu0 %v1796
    %v1815 = vpop.f32.mrf.mxu0
    %v1816 = vadd.f32 %v1794, %v1815
    %1817 = vdwg.mxu0
    %v1818 = vsel %vm719, %v1816, 0.0
    %1819 = vadd.xlane.f32.xlu0 %v1818
    %v1820 = vpop.xlane.xlu0 %1819
    %v1821 = vmul.f32 %v1820, %v729
    %v1822 = vsub.f32 %v1816, %v1821
    %v1823 = vmul.f32 %v1822, %v1822
    %v1824 = vsel %vm719, %v1823, 0.0
    %1825 = vadd.xlane.f32.xlu0 %v1824
    %v1826 = vpop.xlane.xlu0 %1825
    %v1827 = vmul.f32 %v1826, %v729
    %v1828 = vadd.f32 %v1827, 1e-05
    %v1829 = vrsqrt.pop %v1828
    %v1830 = vmul.f32 %v1829, %v1828
    %v1831 = vmul.f32 %v1830, %v1829
    %v1832 = vmul.f32 0.5, %v1831
    %v1833 = vsub.f32 1.5, %v1832
    %v1834 = vmul.f32 %v1829, %v1833
    %vm1835 = vweird.f32 %v1828
    %vm1836 = vweird.f32 %v1829
    %vm1837 = vmor %vm1835, %vm1836
    %v1838 = vsel %vm1837, %v1829, %v1834
    %v1839 = vmul.f32 %v1822, %v1838
    %v1840 = vperm.slane %v1359, 1
    %v1841 = vmul.f32 %v1839, %v1840
    %v1842 = vperm.slane %v1359, 2
    %v1843 = vadd.f32 %v1841, %v1842
    %v1844 = vmax.f32 %v1843, 0.0
    %v1845 = vsel %vm719, %v1844, 0.0
    %v1846 = vrot.slane %v1845, 4
    %v1847 = vadd.f32 %v1845, %v1846
    %v1848 = vrot.slane %v1847, 2
    %v1849 = vadd.f32 %v1847, %v1848
    %v1850 = vrot.slane %v1849, 1
    %v1851 = vadd.f32 %v1849, %v1850
    %v1852 = vmul.f32 %v1851, %v767
    %s1853 = scalar_lea.vmem %s7, 64
    %v1854 = vld [vmem:[%s1853] sm:$0xff]
    %v1855 = vld [vmem:[%s1853 + $0x8] sm:$0xff]
    %v1856 = vld [vmem:[%s1853 + $0x10] sm:$0xff]
    %v1857 = vld [vmem:[%s1853 + $0x18] sm:$0xff]
    %v1858 = vperm.slane %v1355, 5
    %v1860 = vsel %vm774, %v1852, 0
    %1862 = vmatpush.msra.mxu0 0.0
    %1863 = vmatpush.msra.mxu0 0.0
    %1864 = vmatpush.msra.mxu0 0.0
    %1865 = vmatpush.msra.mxu0 0.0
    %1866 = vmatpush.msra.mxu0 0.0
    %1867 = vmatpush.msra.mxu0 0.0
    %1868 = vmatpush.msra.mxu0 0.0
    %1869 = vmatpush.msra.mxu0 0.0
    %1870 = vmatpush.msra.mxu0 0.0
    %1871 = vmatpush.msra.mxu0 0.0
    %1872 = vmatpush.msra.mxu0 0.0
    %1873 = vmatpush.msra.mxu0 0.0
    %1874 = vmatpush.msra.mxu0 %v1857
    %1875 = vmatpush.msra.mxu0 %v1856
    %1876 = vmatpush.msra.mxu0 %v1855
    %1877 = vmatpush.msra.mxu0 %v1854
    %1878 = vmatmul.f32.gmra.mxu0 %v1860
    %v1879 = vpop.f32.mrf.mxu0
    %v1880 = vadd.f32 %v1858, %v1879
    %1881 = vdwg.mxu0
    %v1882 = vsel %vm308, %v1880, 0.0
    %1883 = vadd.xlane.f32.xlu0 %v1882
    %v1884 = vpop.xlane.xlu0 %1883
    %v1885 = vmul.f32 %v1884, %v234
    %v1886 = vsub.f32 %v1880, %v1885
    %v1887 = vmul.f32 %v1886, %v1886
    %v1888 = vsel %vm308, %v1887, 0.0
    %1889 = vadd.xlane.f32.xlu0 %v1888
    %v1890 = vpop.xlane.xlu0 %1889
    %v1891 = vmul.f32 %v1890, %v234
    %v1892 = vadd.f32 %v1891, 1e-05
    %v1893 = vrsqrt.pop %v1892
    %v1894 = vmul.f32 %v1893, %v1892
    %v1895 = vmul.f32 %v1894, %v1893
    %v1896 = vmul.f32 0.5, %v1895
    %v1897 = vsub.f32 1.5, %v1896
    %v1898 = vmul.f32 %v1893, %v1897
    %vm1899 = vweird.f32 %v1892
    %vm1900 = vweird.f32 %v1893
    %vm1901 = vmor %vm1899, %vm1900
    %v1902 = vsel %vm1901, %v1893, %v1898
    %v1903 = vmul.f32 %v1886, %v1902
    %v1904 = vperm.slane %v1355, 6
    %v1905 = vmul.f32 %v1903, %v1904
    %v1906 = vperm.slane %v1355, 7
    %v1907 = vadd.f32 %v1905, %v1906
    %v1908 = vmax.f32 %v1907, 0.0
    %s1909 = scalar_lea.vmem [#allocation11], 128
    %v1910 = vld [vmem:[%s1909] sm:$0xff]
    %v1911 = vld [vmem:[%s1909 + $0x8] sm:$0xff]
    %v1912 = vld [vmem:[%s1909 + $0x10] sm:$0xff]
    %v1913 = vld [vmem:[%s1909 + $0x18] sm:$0xff]
    %v1914 = vld [vmem:[%s1909 + $0x20] sm:$0xff]
    %v1915 = vld [vmem:[%s1909 + $0x28] sm:$0xff]
    %v1916 = vld [vmem:[%s1909 + $0x30] sm:$0xff]
    %v1917 = vld [vmem:[%s1909 + $0x38] sm:$0xff]
    %v1918 = vperm.slane %v1356, 0
    %v1920 = vsel %vm224, %v1908, 0
    %1922 = vmatpush.msra.mxu0 0.0
    %1923 = vmatpush.msra.mxu0 0.0
    %1924 = vmatpush.msra.mxu0 0.0
    %1925 = vmatpush.msra.mxu0 0.0
    %1926 = vmatpush.msra.mxu0 0.0
    %1927 = vmatpush.msra.mxu0 0.0
    %1928 = vmatpush.msra.mxu0 0.0
    %1929 = vmatpush.msra.mxu0 0.0
    %1930 = vmatpush.msra.mxu0 %v1917
    %1931 = vmatpush.msra.mxu0 %v1916
    %1932 = vmatpush.msra.mxu0 %v1915
    %1933 = vmatpush.msra.mxu0 %v1914
    %1934 = vmatpush.msra.mxu0 %v1913
    %1935 = vmatpush.msra.mxu0 %v1912
    %1936 = vmatpush.msra.mxu0 %v1911
    %1937 = vmatpush.msra.mxu0 %v1910
    %1938 = vmatmul.f32.gmra.mxu0 %v1920
    %v1939 = vpop.f32.mrf.mxu0
    %v1940 = vadd.f32 %v1918, %v1939
    %1941 = vdwg.mxu0
    %s1942 = scalar_lea.vmem [#allocation10], 192
    %v1943 = vld [vmem:[%s1942] sm:$0xff]
    %v1944 = vld [vmem:[%s1942 + $0x8] sm:$0xff]
    %v1945 = vld [vmem:[%s1942 + $0x10] sm:$0xff]
    %v1946 = vld [vmem:[%s1942 + $0x18] sm:$0xff]
    %v1947 = vld [vmem:[%s1942 + $0x20] sm:$0xff]
    %v1948 = vld [vmem:[%s1942 + $0x28] sm:$0xff]
    %v1949 = vld [vmem:[%s1942 + $0x30] sm:$0xff]
    %v1950 = vld [vmem:[%s1942 + $0x38] sm:$0xff]
    %v1951 = vperm.slane %v1356, 1
    %1952 = vmatpush.msra.mxu0 0.0
    %1953 = vmatpush.msra.mxu0 0.0
    %1954 = vmatpush.msra.mxu0 0.0
    %1955 = vmatpush.msra.mxu0 0.0
    %1956 = vmatpush.msra.mxu0 0.0
    %1957 = vmatpush.msra.mxu0 0.0
    %1958 = vmatpush.msra.mxu0 0.0
    %1959 = vmatpush.msra.mxu0 0.0
    %1960 = vmatpush.msra.mxu0 %v1950
    %1961 = vmatpush.msra.mxu0 %v1949
    %1962 = vmatpush.msra.mxu0 %v1948
    %1963 = vmatpush.msra.mxu0 %v1947
    %1964 = vmatpush.msra.mxu0 %v1946
    %1965 = vmatpush.msra.mxu0 %v1945
    %1966 = vmatpush.msra.mxu0 %v1944
    %1967 = vmatpush.msra.mxu0 %v1943
    %1968 = vmatmul.f32.gmra.mxu0 %v1655
    %v1969 = vpop.f32.mrf.mxu0
    %v1970 = vadd.f32 %v1951, %v1969
    %1971 = vdwg.mxu0
    %v1972 = vsel %vm308, %v1970, 0.0
    %1973 = vadd.xlane.f32.xlu0 %v1972
    %v1974 = vpop.xlane.xlu0 %1973
    %v1975 = vmul.f32 %v1974, %v234
    %v1976 = vsub.f32 %v1970, %v1975
    %v1977 = vmul.f32 %v1976, %v1976
    %v1978 = vsel %vm308, %v1977, 0.0
    %1979 = vadd.xlane.f32.xlu0 %v1978
    %v1980 = vpop.xlane.xlu0 %1979
    %v1981 = vmul.f32 %v1980, %v234
    %v1982 = vadd.f32 %v1981, 1e-05
    %v1983 = vrsqrt.pop %v1982
    %v1984 = vmul.f32 %v1983, %v1982
    %v1985 = vmul.f32 %v1984, %v1983
    %v1986 = vmul.f32 0.5, %v1985
    %v1987 = vsub.f32 1.5, %v1986
    %v1988 = vmul.f32 %v1983, %v1987
    %vm1989 = vweird.f32 %v1982
    %vm1990 = vweird.f32 %v1983
    %vm1991 = vmor %vm1989, %vm1990
    %v1992 = vsel %vm1991, %v1983, %v1988
    %v1993 = vmul.f32 %v1976, %v1992
    %v1994 = vperm.slane %v1356, 2
    %v1995 = vmul.f32 %v1993, %v1994
    %v1996 = vperm.slane %v1356, 3
    %v1997 = vadd.f32 %v1995, %v1996
    %v1998 = vmax.f32 %v1997, 0.0
    %s1999 = scalar_lea.vmem %s6, 192
    %v2000 = vld [vmem:[%s1999] sm:$0xff]
    %v2001 = vld [vmem:[%s1999 + $0x8] sm:$0xff]
    %v2002 = vld [vmem:[%s1999 + $0x10] sm:$0xff]
    %v2003 = vld [vmem:[%s1999 + $0x18] sm:$0xff]
    %v2004 = vld [vmem:[%s1999 + $0x20] sm:$0xff]
    %v2005 = vld [vmem:[%s1999 + $0x28] sm:$0xff]
    %v2006 = vld [vmem:[%s1999 + $0x30] sm:$0xff]
    %v2007 = vld [vmem:[%s1999 + $0x38] sm:$0xff]
    %v2008 = vperm.slane %v1359, 3
    %v2010 = vsel %vm224, %v1998, 0
    %2012 = vmatpush.msra.mxu0 0.0
    %2013 = vmatpush.msra.mxu0 0.0
    %2014 = vmatpush.msra.mxu0 0.0
    %2015 = vmatpush.msra.mxu0 0.0
    %2016 = vmatpush.msra.mxu0 0.0
    %2017 = vmatpush.msra.mxu0 0.0
    %2018 = vmatpush.msra.mxu0 0.0
    %2019 = vmatpush.msra.mxu0 0.0
    %2020 = vmatpush.msra.mxu0 %v2007
    %2021 = vmatpush.msra.mxu0 %v2006
    %2022 = vmatpush.msra.mxu0 %v2005
    %2023 = vmatpush.msra.mxu0 %v2004
    %2024 = vmatpush.msra.mxu0 %v2003
    %2025 = vmatpush.msra.mxu0 %v2002
    %2026 = vmatpush.msra.mxu0 %v2001
    %2027 = vmatpush.msra.mxu0 %v2000
    %2028 = vmatmul.f32.gmra.mxu0 %v2010
    %v2029 = vpop.f32.mrf.mxu0
    %v2030 = vadd.f32 %v2008, %v2029
    %2031 = vdwg.mxu0
    %v2032 = vsel %vm719, %v2030, 0.0
    %2033 = vadd.xlane.f32.xlu0 %v2032
    %v2034 = vpop.xlane.xlu0 %2033
    %v2035 = vmul.f32 %v2034, %v729
    %v2036 = vsub.f32 %v2030, %v2035
    %v2037 = vmul.f32 %v2036, %v2036
    %v2038 = vsel %vm719, %v2037, 0.0
    %2039 = vadd.xlane.f32.xlu0 %v2038
    %v2040 = vpop.xlane.xlu0 %2039
    %v2041 = vmul.f32 %v2040, %v729
    %v2042 = vadd.f32 %v2041, 1e-05
    %v2043 = vrsqrt.pop %v2042
    %v2044 = vmul.f32 %v2043, %v2042
    %v2045 = vmul.f32 %v2044, %v2043
    %v2046 = vmul.f32 0.5, %v2045
    %v2047 = vsub.f32 1.5, %v2046
    %v2048 = vmul.f32 %v2043, %v2047
    %vm2049 = vweird.f32 %v2042
    %vm2050 = vweird.f32 %v2043
    %vm2051 = vmor %vm2049, %vm2050
    %v2052 = vsel %vm2051, %v2043, %v2048
    %v2053 = vmul.f32 %v2036, %v2052
    %v2054 = vperm.slane %v1359, 4
    %v2055 = vmul.f32 %v2053, %v2054
    %v2056 = vperm.slane %v1359, 5
    %v2057 = vadd.f32 %v2055, %v2056
    %v2058 = vmax.f32 %v2057, 0.0
    %v2059 = vsel %vm719, %v2058, 0.0
    %v2060 = vrot.slane %v2059, 4
    %v2061 = vadd.f32 %v2059, %v2060
    %v2062 = vrot.slane %v2061, 2
    %v2063 = vadd.f32 %v2061, %v2062
    %v2064 = vrot.slane %v2063, 1
    %v2065 = vadd.f32 %v2063, %v2064
    %v2066 = vmul.f32 %v2065, %v767
    %s2067 = scalar_lea.vmem %s7, 96
    %v2068 = vld [vmem:[%s2067] sm:$0xff]
    %v2069 = vld [vmem:[%s2067 + $0x8] sm:$0xff]
    %v2070 = vld [vmem:[%s2067 + $0x10] sm:$0xff]
    %v2071 = vld [vmem:[%s2067 + $0x18] sm:$0xff]
    %v2072 = vperm.slane %v1356, 4
    %v2074 = vsel %vm774, %v2066, 0
    %2076 = vmatpush.msra.mxu0 0.0
    %2077 = vmatpush.msra.mxu0 0.0
    %2078 = vmatpush.msra.mxu0 0.0
    %2079 = vmatpush.msra.mxu0 0.0
    %2080 = vmatpush.msra.mxu0 0.0
    %2081 = vmatpush.msra.mxu0 0.0
    %2082 = vmatpush.msra.mxu0 0.0
    %2083 = vmatpush.msra.mxu0 0.0
    %2084 = vmatpush.msra.mxu0 0.0
    %2085 = vmatpush.msra.mxu0 0.0
    %2086 = vmatpush.msra.mxu0 0.0
    %2087 = vmatpush.msra.mxu0 0.0
    %2088 = vmatpush.msra.mxu0 %v2071
    %2089 = vmatpush.msra.mxu0 %v2070
    %2090 = vmatpush.msra.mxu0 %v2069
    %2091 = vmatpush.msra.mxu0 %v2068
    %2092 = vmatmul.f32.gmra.mxu0 %v2074
    %v2093 = vpop.f32.mrf.mxu0
    %v2094 = vadd.f32 %v2072, %v2093
    %2095 = vdwg.mxu0
    %v2096 = vsel %vm308, %v2094, 0.0
    %2097 = vadd.xlane.f32.xlu0 %v2096
    %v2098 = vpop.xlane.xlu0 %2097
    %v2099 = vmul.f32 %v2098, %v234
    %v2100 = vsub.f32 %v2094, %v2099
    %v2101 = vmul.f32 %v2100, %v2100
    %v2102 = vsel %vm308, %v2101, 0.0
    %2103 = vadd.xlane.f32.xlu0 %v2102
    %v2104 = vpop.xlane.xlu0 %2103
    %v2105 = vmul.f32 %v2104, %v234
    %v2106 = vadd.f32 %v2105, 1e-05
    %v2107 = vrsqrt.pop %v2106
    %v2108 = vmul.f32 %v2107, %v2106
    %v2109 = vmul.f32 %v2108, %v2107
    %v2110 = vmul.f32 0.5, %v2109
    %v2111 = vsub.f32 1.5, %v2110
    %v2112 = vmul.f32 %v2107, %v2111
    %vm2113 = vweird.f32 %v2106
    %vm2114 = vweird.f32 %v2107
    %vm2115 = vmor %vm2113, %vm2114
    %v2116 = vsel %vm2115, %v2107, %v2112
    %v2117 = vmul.f32 %v2100, %v2116
    %v2118 = vperm.slane %v1356, 5
    %v2119 = vmul.f32 %v2117, %v2118
    %v2120 = vperm.slane %v1356, 6
    %v2121 = vadd.f32 %v2119, %v2120
    %v2122 = vmax.f32 %v2121, 0.0
    %s2123 = scalar_lea.vmem [#allocation11], 192
    %v2124 = vld [vmem:[%s2123] sm:$0xff]
    %v2125 = vld [vmem:[%s2123 + $0x8] sm:$0xff]
    %v2126 = vld [vmem:[%s2123 + $0x10] sm:$0xff]
    %v2127 = vld [vmem:[%s2123 + $0x18] sm:$0xff]
    %v2128 = vld [vmem:[%s2123 + $0x20] sm:$0xff]
    %v2129 = vld [vmem:[%s2123 + $0x28] sm:$0xff]
    %v2130 = vld [vmem:[%s2123 + $0x30] sm:$0xff]
    %v2131 = vld [vmem:[%s2123 + $0x38] sm:$0xff]
    %v2132 = vperm.slane %v1356, 7
    %v2134 = vsel %vm224, %v2122, 0
    %2136 = vmatpush.msra.mxu0 0.0
    %2137 = vmatpush.msra.mxu0 0.0
    %2138 = vmatpush.msra.mxu0 0.0
    %2139 = vmatpush.msra.mxu0 0.0
    %2140 = vmatpush.msra.mxu0 0.0
    %2141 = vmatpush.msra.mxu0 0.0
    %2142 = vmatpush.msra.mxu0 0.0
    %2143 = vmatpush.msra.mxu0 0.0
    %2144 = vmatpush.msra.mxu0 %v2131
    %2145 = vmatpush.msra.mxu0 %v2130
    %2146 = vmatpush.msra.mxu0 %v2129
    %2147 = vmatpush.msra.mxu0 %v2128
    %2148 = vmatpush.msra.mxu0 %v2127
    %2149 = vmatpush.msra.mxu0 %v2126
    %2150 = vmatpush.msra.mxu0 %v2125
    %2151 = vmatpush.msra.mxu0 %v2124
    %2152 = vmatmul.f32.gmra.mxu0 %v2134
    %v2153 = vpop.f32.mrf.mxu0
    %v2154 = vadd.f32 %v2132, %v2153
    %2155 = vdwg.mxu0
    %v2157 = vsel %vm224, %v1940, 0
    %2159 = vmatpush.xpose.msra.mxu0 0.0
    %2160 = vmatpush.xpose.msra.mxu0 0.0
    %2161 = vmatpush.xpose.msra.mxu0 0.0
    %2162 = vmatpush.xpose.msra.mxu0 0.0
    %2163 = vmatpush.xpose.msra.mxu0 0.0
    %2164 = vmatpush.xpose.msra.mxu0 0.0
    %2165 = vmatpush.xpose.msra.mxu0 0.0
    %2166 = vmatpush.xpose.msra.mxu0 0.0
    %2167 = vmatpush.xpose.msra.mxu0 0.0
    %2168 = vmatpush.xpose.msra.mxu0 0.0
    %2169 = vmatpush.xpose.msra.mxu0 0.0
    %2170 = vmatpush.xpose.msra.mxu0 0.0
    %2171 = vmatpush.xpose.msra.mxu0 0.0
    %2172 = vmatpush.xpose.msra.mxu0 0.0
    %2173 = vmatpush.xpose.msra.mxu0 0.0
    %2174 = vmatpush.xpose.msra.mxu0 %v1582
    %2175 = vmatmul.f32.gmra.mxu0 %v2157
    %v2176 = vpop.f32.mrf.mxu0
    %v2177 = vadd.f32 0.0, %v2176
    %2178 = vdwg.mxu0
    %v2179 = vmul.f32 %v2177, 0.015625
    %v2180 = vsel %vm1605, %v2179, -inf
    %v2181 = vrot.slane %v2180, 4
    %v2182 = vmax.f32 %v2180, %v2181
    %v2183 = vrot.slane %v2182, 2
    %v2184 = vmax.f32 %v2182, %v2183
    %v2185 = vrot.slane %v2184, 1
    %v2186 = vmax.f32 %v2184, %v2185
    %v2187 = vsub.f32 %v2179, %v2186
    %v2188 = vmul.f32 %v2187, 1.442695
    %v2189 = vpow.pop %v2188
    %v2190 = vsel %vm1605, %v2189, 0.0
    %v2191 = vrot.slane %v2190, 4
    %v2192 = vadd.f32 %v2190, %v2191
    %v2193 = vrot.slane %v2192, 2
    %v2194 = vadd.f32 %v2192, %v2193
    %v2195 = vrot.slane %v2194, 1
    %v2196 = vadd.f32 %v2194, %v2195
    %v2197 = vrcp.pop %v2196
    %v2198 = vmul.f32 %v2189, %v2197
    %v2200 = vsel %vm1627, %v2198, 0
    %2202 = vmatpush.msra.mxu0 0.0
    %2203 = vmatpush.msra.mxu0 0.0
    %2204 = vmatpush.msra.mxu0 0.0
    %2205 = vmatpush.msra.mxu0 0.0
    %2206 = vmatpush.msra.mxu0 0.0
    %2207 = vmatpush.msra.mxu0 0.0
    %2208 = vmatpush.msra.mxu0 0.0
    %2209 = vmatpush.msra.mxu0 0.0
    %2210 = vmatpush.msra.mxu0 0.0
    %2211 = vmatpush.msra.mxu0 0.0
    %2212 = vmatpush.msra.mxu0 0.0
    %2213 = vmatpush.msra.mxu0 0.0
    %2214 = vmatpush.msra.mxu0 0.0
    %2215 = vmatpush.msra.mxu0 0.0
    %2216 = vmatpush.msra.mxu0 0.0
    %2217 = vmatpush.msra.mxu0 %v1631
    %2218 = vmatmul.f32.gmra.mxu0 %v2200
    %v2219 = vpop.f32.mrf.mxu0
    %v2220 = vadd.f32 0.0, %v2219
    %2221 = vdwg.mxu0
    %v2222 = vmul.f32 %v2220, 0.015625
    %v2224 = vsel %vm224, %v2154, 0
    %2226 = vmatpush.xpose.msra.mxu0 0.0
    %2227 = vmatpush.xpose.msra.mxu0 0.0
    %2228 = vmatpush.xpose.msra.mxu0 0.0
    %2229 = vmatpush.xpose.msra.mxu0 0.0
    %2230 = vmatpush.xpose.msra.mxu0 0.0
    %2231 = vmatpush.xpose.msra.mxu0 0.0
    %2232 = vmatpush.xpose.msra.mxu0 0.0
    %2233 = vmatpush.xpose.msra.mxu0 0.0
    %2234 = vmatpush.xpose.msra.mxu0 0.0
    %2235 = vmatpush.xpose.msra.mxu0 0.0
    %2236 = vmatpush.xpose.msra.mxu0 0.0
    %2237 = vmatpush.xpose.msra.mxu0 0.0
    %2238 = vmatpush.xpose.msra.mxu0 0.0
    %2239 = vmatpush.xpose.msra.mxu0 0.0
    %2240 = vmatpush.xpose.msra.mxu0 0.0
    %2241 = vmatpush.xpose.msra.mxu0 %v1658
    %2242 = vmatmul.f32.gmra.mxu0 %v2224
    %v2243 = vpop.f32.mrf.mxu0
    %v2244 = vadd.f32 0.0, %v2243
    %2245 = vdwg.mxu0
    %v2246 = vmul.f32 %v2244, 0.015625
    %v2247 = vsel %vm1605, %v2246, -inf
    %v2248 = vrot.slane %v2247, 4
    %v2249 = vmax.f32 %v2247, %v2248
    %v2250 = vrot.slane %v2249, 2
    %v2251 = vmax.f32 %v2249, %v2250
    %v2252 = vrot.slane %v2251, 1
    %v2253 = vmax.f32 %v2251, %v2252
    %v2254 = vsub.f32 %v2246, %v2253
    %v2255 = vmul.f32 %v2254, 1.442695
    %v2256 = vpow.pop %v2255
    %v2257 = vsel %vm1605, %v2256, 0.0
    %v2258 = vrot.slane %v2257, 4
    %v2259 = vadd.f32 %v2257, %v2258
    %v2260 = vrot.slane %v2259, 2
    %v2261 = vadd.f32 %v2259, %v2260
    %v2262 = vrot.slane %v2261, 1
    %v2263 = vadd.f32 %v2261, %v2262
    %v2264 = vrcp.pop %v2263
    %v2265 = vmul.f32 %v2256, %v2264
    %v2267 = vsel %vm1627, %v2265, 0
    %2269 = vmatpush.msra.mxu0 0.0
    %2270 = vmatpush.msra.mxu0 0.0
    %2271 = vmatpush.msra.mxu0 0.0
    %2272 = vmatpush.msra.mxu0 0.0
    %2273 = vmatpush.msra.mxu0 0.0
    %2274 = vmatpush.msra.mxu0 0.0
    %2275 = vmatpush.msra.mxu0 0.0
    %2276 = vmatpush.msra.mxu0 0.0
    %2277 = vmatpush.msra.mxu0 0.0
    %2278 = vmatpush.msra.mxu0 0.0
    %2279 = vmatpush.msra.mxu0 0.0
    %2280 = vmatpush.msra.mxu0 0.0
    %2281 = vmatpush.msra.mxu0 0.0
    %2282 = vmatpush.msra.mxu0 0.0
    %2283 = vmatpush.msra.mxu0 0.0
    %2284 = vmatpush.msra.mxu0 %v1705
    %2285 = vmatmul.f32.gmra.mxu0 %v2267
    %v2286 = vpop.f32.mrf.mxu0
    %v2287 = vadd.f32 0.0, %v2286
    %2288 = vdwg.mxu0
    %v2289 = vmul.f32 %v2287, 0.015625
    %s2290 = scalar_lea.vmem [#allocation13], 256
    %v2291 = vld [vmem:[%s2290] sm:$0xff]
    %v2292 = vld [vmem:[%s2290 + $0x8] sm:$0xff]
    %v2293 = vld [vmem:[%s2290 + $0x10] sm:$0xff]
    %v2294 = vld [vmem:[%s2290 + $0x18] sm:$0xff]
    %v2295 = vld [vmem:[%s2290 + $0x20] sm:$0xff]
    %v2296 = vld [vmem:[%s2290 + $0x28] sm:$0xff]
    %v2297 = vld [vmem:[%s2290 + $0x30] sm:$0xff]
    %v2298 = vld [vmem:[%s2290 + $0x38] sm:$0xff]
    %v2299 = vperm.slane %v1357, 0
    %v2301 = vsel %vm224, %v2222, 0
    %2303 = vmatpush.msra.mxu0 0.0
    %2304 = vmatpush.msra.mxu0 0.0
    %2305 = vmatpush.msra.mxu0 0.0
    %2306 = vmatpush.msra.mxu0 0.0
    %2307 = vmatpush.msra.mxu0 0.0
    %2308 = vmatpush.msra.mxu0 0.0
    %2309 = vmatpush.msra.mxu0 0.0
    %2310 = vmatpush.msra.mxu0 0.0
    %2311 = vmatpush.msra.mxu0 %v2298
    %2312 = vmatpush.msra.mxu0 %v2297
    %2313 = vmatpush.msra.mxu0 %v2296
    %2314 = vmatpush.msra.mxu0 %v2295
    %2315 = vmatpush.msra.mxu0 %v2294
    %2316 = vmatpush.msra.mxu0 %v2293
    %2317 = vmatpush.msra.mxu0 %v2292
    %2318 = vmatpush.msra.mxu0 %v2291
    %2319 = vmatmul.f32.gmra.mxu0 %v2301
    %v2320 = vpop.f32.mrf.mxu0
    %v2321 = vadd.f32 %v2299, %v2320
    %2322 = vdwg.mxu0
    %s2323 = scalar_lea.vmem [#allocation13], 320
    %v2324 = vld [vmem:[%s2323] sm:$0xff]
    %v2325 = vld [vmem:[%s2323 + $0x8] sm:$0xff]
    %v2326 = vld [vmem:[%s2323 + $0x10] sm:$0xff]
    %v2327 = vld [vmem:[%s2323 + $0x18] sm:$0xff]
    %v2328 = vld [vmem:[%s2323 + $0x20] sm:$0xff]
    %v2329 = vld [vmem:[%s2323 + $0x28] sm:$0xff]
    %v2330 = vld [vmem:[%s2323 + $0x30] sm:$0xff]
    %v2331 = vld [vmem:[%s2323 + $0x38] sm:$0xff]
    %v2332 = vperm.slane %v1357, 1
    %v2334 = vsel %vm224, %v2289, 0
    %2336 = vmatpush.msra.mxu0 0.0
    %2337 = vmatpush.msra.mxu0 0.0
    %2338 = vmatpush.msra.mxu0 0.0
    %2339 = vmatpush.msra.mxu0 0.0
    %2340 = vmatpush.msra.mxu0 0.0
    %2341 = vmatpush.msra.mxu0 0.0
    %2342 = vmatpush.msra.mxu0 0.0
    %2343 = vmatpush.msra.mxu0 0.0
    %2344 = vmatpush.msra.mxu0 %v2331
    %2345 = vmatpush.msra.mxu0 %v2330
    %2346 = vmatpush.msra.mxu0 %v2329
    %2347 = vmatpush.msra.mxu0 %v2328
    %2348 = vmatpush.msra.mxu0 %v2327
    %2349 = vmatpush.msra.mxu0 %v2326
    %2350 = vmatpush.msra.mxu0 %v2325
    %2351 = vmatpush.msra.mxu0 %v2324
    %2352 = vmatmul.f32.gmra.mxu0 %v2334
    %v2353 = vpop.f32.mrf.mxu0
    %v2354 = vadd.f32 %v2332, %v2353
    %2355 = vdwg.mxu0
    %s2356 = scalar_lea.vmem [#allocation13], 384
    %v2357 = vld [vmem:[%s2356] sm:$0xff]
    %v2358 = vld [vmem:[%s2356 + $0x8] sm:$0xff]
    %v2359 = vld [vmem:[%s2356 + $0x10] sm:$0xff]
    %v2360 = vld [vmem:[%s2356 + $0x18] sm:$0xff]
    %v2361 = vld [vmem:[%s2356 + $0x20] sm:$0xff]
    %v2362 = vld [vmem:[%s2356 + $0x28] sm:$0xff]
    %v2363 = vld [vmem:[%s2356 + $0x30] sm:$0xff]
    %v2364 = vld [vmem:[%s2356 + $0x38] sm:$0xff]
    %v2365 = vperm.slane %v1357, 2
    %v2367 = vsel %vm224, %v1653, 0
    %2369 = vmatpush.msra.mxu0 0.0
    %2370 = vmatpush.msra.mxu0 0.0
    %2371 = vmatpush.msra.mxu0 0.0
    %2372 = vmatpush.msra.mxu0 0.0
    %2373 = vmatpush.msra.mxu0 0.0
    %2374 = vmatpush.msra.mxu0 0.0
    %2375 = vmatpush.msra.mxu0 0.0
    %2376 = vmatpush.msra.mxu0 0.0
    %2377 = vmatpush.msra.mxu0 %v2364
    %2378 = vmatpush.msra.mxu0 %v2363
    %2379 = vmatpush.msra.mxu0 %v2362
    %2380 = vmatpush.msra.mxu0 %v2361
    %2381 = vmatpush.msra.mxu0 %v2360
    %2382 = vmatpush.msra.mxu0 %v2359
    %2383 = vmatpush.msra.mxu0 %v2358
    %2384 = vmatpush.msra.mxu0 %v2357
    %2385 = vmatmul.f32.gmra.mxu0 %v2367
    %v2386 = vpop.f32.mrf.mxu0
    %v2387 = vadd.f32 %v2365, %v2386
    %2388 = vdwg.mxu0
    %s2389 = scalar_lea.vmem [#allocation13], 448
    %v2390 = vld [vmem:[%s2389] sm:$0xff]
    %v2391 = vld [vmem:[%s2389 + $0x8] sm:$0xff]
    %v2392 = vld [vmem:[%s2389 + $0x10] sm:$0xff]
    %v2393 = vld [vmem:[%s2389 + $0x18] sm:$0xff]
    %v2394 = vld [vmem:[%s2389 + $0x20] sm:$0xff]
    %v2395 = vld [vmem:[%s2389 + $0x28] sm:$0xff]
    %v2396 = vld [vmem:[%s2389 + $0x30] sm:$0xff]
    %v2397 = vld [vmem:[%s2389 + $0x38] sm:$0xff]
    %v2398 = vperm.slane %v1357, 3
    %v2400 = vsel %vm224, %v1727, 0
    %2402 = vmatpush.msra.mxu0 0.0
    %2403 = vmatpush.msra.mxu0 0.0
    %2404 = vmatpush.msra.mxu0 0.0
    %2405 = vmatpush.msra.mxu0 0.0
    %2406 = vmatpush.msra.mxu0 0.0
    %2407 = vmatpush.msra.mxu0 0.0
    %2408 = vmatpush.msra.mxu0 0.0
    %2409 = vmatpush.msra.mxu0 0.0
    %2410 = vmatpush.msra.mxu0 %v2397
    %2411 = vmatpush.msra.mxu0 %v2396
    %2412 = vmatpush.msra.mxu0 %v2395
    %2413 = vmatpush.msra.mxu0 %v2394
    %2414 = vmatpush.msra.mxu0 %v2393
    %2415 = vmatpush.msra.mxu0 %v2392
    %2416 = vmatpush.msra.mxu0 %v2391
    %2417 = vmatpush.msra.mxu0 %v2390
    %2418 = vmatmul.f32.gmra.mxu0 %v2400
    %v2419 = vpop.f32.mrf.mxu0
    %v2420 = vadd.f32 %v2398, %v2419
    %2421 = vdwg.mxu0
    %2423 = vrot.lane.b32.xlu0 %v2354, 64
    %v2424 = vpop.permute.xlu0 %2423
    %2427 = vrot.lane.b32.xlu0 %v2420, 64
    %v2428 = vpop.permute.xlu0 %2427
    %v2430 = vsel %vm224, %v2321, %v2424
    %v2431 = vsel %vm224, %v2387, %v2428
    %v2434 = vrot.slane %v2431, 4
    %v2435 = vsel %vm1349, %v2430, %v2434
    %s2437 = scalar_lea.vmem %s17, 8
    %2438 = vst [vmem:[%s2437] sm:$0xff] %v2435
    %s2439 = scalar_lea.vmem %s10, 64
    %v2440 = vld [vmem:[%s2439] sm:$0xff]
    %v2441 = vld [vmem:[%s2439 + $0x8] sm:$0xff]
    %v2442 = vld [vmem:[%s2439 + $0x10] sm:$0xff]
    %v2443 = vld [vmem:[%s2439 + $0x18] sm:$0xf]
    %s2444 = scalar_lea.vmem [#allocation16], 16
    %v2445 = vld [vmem:[%s2444] sm:$0x3f]
    %s2446 = scalar_lea.vmem [#allocation14], 4
    %v2447 = vld [vmem:[%s2446] sm:$0x3]
    %s2448 = scalar_lea.vmem [#allocation7], 8
    %v2449 = vld [vmem:[%s2448] sm:$0xf]
    %v2450 = vsel %vm308, %v2321, 0.0
    %2451 = vadd.xlane.f32.xlu0 %v2450
    %v2452 = vpop.xlane.xlu0 %2451
    %v2453 = vmul.f32 %v2452, %v234
    %v2454 = vsub.f32 %v2321, %v2453
    %v2455 = vmul.f32 %v2454, %v2454
    %v2456 = vsel %vm308, %v2455, 0.0
    %2457 = vadd.xlane.f32.xlu0 %v2456
    %v2458 = vpop.xlane.xlu0 %2457
    %v2459 = vmul.f32 %v2458, %v234
    %v2460 = vadd.f32 %v2459, 1e-05
    %v2461 = vrsqrt.pop %v2460
    %v2462 = vmul.f32 %v2461, %v2460
    %v2463 = vmul.f32 %v2462, %v2461
    %v2464 = vmul.f32 0.5, %v2463
    %v2465 = vsub.f32 1.5, %v2464
    %v2466 = vmul.f32 %v2461, %v2465
    %vm2467 = vweird.f32 %v2460
    %vm2468 = vweird.f32 %v2461
    %vm2469 = vmor %vm2467, %vm2468
    %v2470 = vsel %vm2469, %v2461, %v2466
    %v2471 = vmul.f32 %v2454, %v2470
    %v2472 = vperm.slane %v2440, 0
    %v2473 = vmul.f32 %v2471, %v2472
    %v2474 = vperm.slane %v2440, 1
    %v2475 = vadd.f32 %v2473, %v2474
    %v2476 = vsel %vm308, %v2354, 0.0
    %2477 = vadd.xlane.f32.xlu0 %v2476
    %v2478 = vpop.xlane.xlu0 %2477
    %v2479 = vmul.f32 %v2478, %v234
    %v2480 = vsub.f32 %v2354, %v2479
    %v2481 = vmul.f32 %v2480, %v2480
    %v2482 = vsel %vm308, %v2481, 0.0
    %2483 = vadd.xlane.f32.xlu0 %v2482
    %v2484 = vpop.xlane.xlu0 %2483
    %v2485 = vmul.f32 %v2484, %v234
    %v2486 = vadd.f32 %v2485, 1e-05
    %v2487 = vrsqrt.pop %v2486
    %v2488 = vmul.f32 %v2487, %v2486
    %v2489 = vmul.f32 %v2488, %v2487
    %v2490 = vmul.f32 0.5, %v2489
    %v2491 = vsub.f32 1.5, %v2490
    %v2492 = vmul.f32 %v2487, %v2491
    %vm2493 = vweird.f32 %v2486
    %vm2494 = vweird.f32 %v2487
    %vm2495 = vmor %vm2493, %vm2494
    %v2496 = vsel %vm2495, %v2487, %v2492
    %v2497 = vmul.f32 %v2480, %v2496
    %v2498 = vperm.slane %v2440, 2
    %v2499 = vmul.f32 %v2497, %v2498
    %v2500 = vperm.slane %v2440, 3
    %v2501 = vadd.f32 %v2499, %v2500
    %v2502 = vsel %vm308, %v2449, 0.0
    %2503 = vadd.xlane.f32.xlu0 %v2502
    %v2504 = vpop.xlane.xlu0 %2503
    %v2505 = vmul.f32 %v2504, %v234
    %v2506 = vsub.f32 %v2449, %v2505
    %v2507 = vmul.f32 %v2506, %v2506
    %v2508 = vsel %vm308, %v2507, 0.0
    %2509 = vadd.xlane.f32.xlu0 %v2508
    %v2510 = vpop.xlane.xlu0 %2509
    %v2511 = vmul.f32 %v2510, %v234
    %v2512 = vadd.f32 %v2511, 1e-05
    %v2513 = vrsqrt.pop %v2512
    %v2514 = vmul.f32 %v2513, %v2512
    %v2515 = vmul.f32 %v2514, %v2513
    %v2516 = vmul.f32 0.5, %v2515
    %v2517 = vsub.f32 1.5, %v2516
    %v2518 = vmul.f32 %v2513, %v2517
    %vm2519 = vweird.f32 %v2512
    %vm2520 = vweird.f32 %v2513
    %vm2521 = vmor %vm2519, %vm2520
    %v2522 = vsel %vm2521, %v2513, %v2518
    %v2523 = vmul.f32 %v2506, %v2522
    %v2524 = vperm.slane %v2440, 4
    %v2525 = vmul.f32 %v2523, %v2524
    %v2526 = vperm.slane %v2440, 5
    %v2527 = vadd.f32 %v2525, %v2526
    %s2528 = scalar_lea.vmem %s3, 256
    %v2529 = vld [vmem:[%s2528] sm:$0xff]
    %v2530 = vld [vmem:[%s2528 + $0x8] sm:$0xff]
    %v2531 = vld [vmem:[%s2528 + $0x10] sm:$0xff]
    %v2532 = vld [vmem:[%s2528 + $0x18] sm:$0xff]
    %v2533 = vld [vmem:[%s2528 + $0x20] sm:$0xff]
    %v2534 = vld [vmem:[%s2528 + $0x28] sm:$0xff]
    %v2535 = vld [vmem:[%s2528 + $0x30] sm:$0xff]
    %v2536 = vld [vmem:[%s2528 + $0x38] sm:$0xff]
    %v2537 = vperm.slane %v2440, 6
    %v2539 = vsel %vm224, %v2527, 0
    %2541 = vmatpush.msra.mxu0 0.0
    %2542 = vmatpush.msra.mxu0 0.0
    %2543 = vmatpush.msra.mxu0 0.0
    %2544 = vmatpush.msra.mxu0 0.0
    %2545 = vmatpush.msra.mxu0 0.0
    %2546 = vmatpush.msra.mxu0 0.0
    %2547 = vmatpush.msra.mxu0 0.0
    %2548 = vmatpush.msra.mxu0 0.0
    %2549 = vmatpush.msra.mxu0 %v2536
    %2550 = vmatpush.msra.mxu0 %v2535
    %2551 = vmatpush.msra.mxu0 %v2534
    %2552 = vmatpush.msra.mxu0 %v2533
    %2553 = vmatpush.msra.mxu0 %v2532
    %2554 = vmatpush.msra.mxu0 %v2531
    %2555 = vmatpush.msra.mxu0 %v2530
    %2556 = vmatpush.msra.mxu0 %v2529
    %2557 = vmatmul.f32.gmra.mxu0 %v2539
    %v2558 = vpop.f32.mrf.mxu0
    %v2559 = vadd.f32 %v2537, %v2558
    %2560 = vdwg.mxu0
    %v2561 = vperm.slane %v2440, 7
    %v2562 = vmul.f32 %v2523, %v2561
    %v2563 = vperm.slane %v2441, 0
    %v2564 = vadd.f32 %v2562, %v2563
    %s2565 = scalar_lea.vmem %s3, 320
    %v2566 = vld [vmem:[%s2565] sm:$0xff]
    %v2567 = vld [vmem:[%s2565 + $0x8] sm:$0xff]
    %v2568 = vld [vmem:[%s2565 + $0x10] sm:$0xff]
    %v2569 = vld [vmem:[%s2565 + $0x18] sm:$0xff]
    %v2570 = vld [vmem:[%s2565 + $0x20] sm:$0xff]
    %v2571 = vld [vmem:[%s2565 + $0x28] sm:$0xff]
    %v2572 = vld [vmem:[%s2565 + $0x30] sm:$0xff]
    %v2573 = vld [vmem:[%s2565 + $0x38] sm:$0xff]
    %v2574 = vperm.slane %v2441, 1
    %v2576 = vsel %vm224, %v2564, 0
    %2578 = vmatpush.msra.mxu0 0.0
    %2579 = vmatpush.msra.mxu0 0.0
    %2580 = vmatpush.msra.mxu0 0.0
    %2581 = vmatpush.msra.mxu0 0.0
    %2582 = vmatpush.msra.mxu0 0.0
    %2583 = vmatpush.msra.mxu0 0.0
    %2584 = vmatpush.msra.mxu0 0.0
    %2585 = vmatpush.msra.mxu0 0.0
    %2586 = vmatpush.msra.mxu0 %v2573
    %2587 = vmatpush.msra.mxu0 %v2572
    %2588 = vmatpush.msra.mxu0 %v2571
    %2589 = vmatpush.msra.mxu0 %v2570
    %2590 = vmatpush.msra.mxu0 %v2569
    %2591 = vmatpush.msra.mxu0 %v2568
    %2592 = vmatpush.msra.mxu0 %v2567
    %2593 = vmatpush.msra.mxu0 %v2566
    %2594 = vmatmul.f32.gmra.mxu0 %v2576
    %v2595 = vpop.f32.mrf.mxu0
    %v2596 = vadd.f32 %v2574, %v2595
    %2597 = vdwg.mxu0
    %s2598 = scalar_lea.vmem [#allocation8], 256
    %v2599 = vld [vmem:[%s2598] sm:$0xff]
    %v2600 = vld [vmem:[%s2598 + $0x8] sm:$0xff]
    %v2601 = vld [vmem:[%s2598 + $0x10] sm:$0xff]
    %v2602 = vld [vmem:[%s2598 + $0x18] sm:$0xff]
    %v2603 = vld [vmem:[%s2598 + $0x20] sm:$0xff]
    %v2604 = vld [vmem:[%s2598 + $0x28] sm:$0xff]
    %v2605 = vld [vmem:[%s2598 + $0x30] sm:$0xff]
    %v2606 = vld [vmem:[%s2598 + $0x38] sm:$0xff]
    %v2607 = vperm.slane %v2447, 0
    %v2609 = vsel %vm224, %v2475, 0
    %2611 = vmatpush.msra.mxu0 0.0
    %2612 = vmatpush.msra.mxu0 0.0
    %2613 = vmatpush.msra.mxu0 0.0
    %2614 = vmatpush.msra.mxu0 0.0
    %2615 = vmatpush.msra.mxu0 0.0
    %2616 = vmatpush.msra.mxu0 0.0
    %2617 = vmatpush.msra.mxu0 0.0
    %2618 = vmatpush.msra.mxu0 0.0
    %2619 = vmatpush.msra.mxu0 %v2606
    %2620 = vmatpush.msra.mxu0 %v2605
    %2621 = vmatpush.msra.mxu0 %v2604
    %2622 = vmatpush.msra.mxu0 %v2603
    %2623 = vmatpush.msra.mxu0 %v2602
    %2624 = vmatpush.msra.mxu0 %v2601
    %2625 = vmatpush.msra.mxu0 %v2600
    %2626 = vmatpush.msra.mxu0 %v2599
    %2627 = vmatmul.f32.gmra.mxu0 %v2609
    %v2628 = vpop.f32.mrf.mxu0
    %v2629 = vadd.f32 %v2607, %v2628
    %2630 = vdwg.mxu0
    %s2631 = scalar_lea.vmem [#allocation8], 320
    %v2632 = vld [vmem:[%s2631] sm:$0xff]
    %v2633 = vld [vmem:[%s2631 + $0x8] sm:$0xff]
    %v2634 = vld [vmem:[%s2631 + $0x10] sm:$0xff]
    %v2635 = vld [vmem:[%s2631 + $0x18] sm:$0xff]
    %v2636 = vld [vmem:[%s2631 + $0x20] sm:$0xff]
    %v2637 = vld [vmem:[%s2631 + $0x28] sm:$0xff]
    %v2638 = vld [vmem:[%s2631 + $0x30] sm:$0xff]
    %v2639 = vld [vmem:[%s2631 + $0x38] sm:$0xff]
    %v2640 = vperm.slane %v2447, 1
    %v2642 = vsel %vm224, %v2501, 0
    %2644 = vmatpush.msra.mxu0 0.0
    %2645 = vmatpush.msra.mxu0 0.0
    %2646 = vmatpush.msra.mxu0 0.0
    %2647 = vmatpush.msra.mxu0 0.0
    %2648 = vmatpush.msra.mxu0 0.0
    %2649 = vmatpush.msra.mxu0 0.0
    %2650 = vmatpush.msra.mxu0 0.0
    %2651 = vmatpush.msra.mxu0 0.0
    %2652 = vmatpush.msra.mxu0 %v2639
    %2653 = vmatpush.msra.mxu0 %v2638
    %2654 = vmatpush.msra.mxu0 %v2637
    %2655 = vmatpush.msra.mxu0 %v2636
    %2656 = vmatpush.msra.mxu0 %v2635
    %2657 = vmatpush.msra.mxu0 %v2634
    %2658 = vmatpush.msra.mxu0 %v2633
    %2659 = vmatpush.msra.mxu0 %v2632
    %2660 = vmatmul.f32.gmra.mxu0 %v2642
    %v2661 = vpop.f32.mrf.mxu0
    %v2662 = vadd.f32 %v2640, %v2661
    %2663 = vdwg.mxu0
    %v2665 = vsel %vm224, %v2559, 0
    %v2668 = vsel %vm224, %v2629, 0
    %2670 = vmatpush.xpose.msra.mxu0 0.0
    %2671 = vmatpush.xpose.msra.mxu0 0.0
    %2672 = vmatpush.xpose.msra.mxu0 0.0
    %2673 = vmatpush.xpose.msra.mxu0 0.0
    %2674 = vmatpush.xpose.msra.mxu0 0.0
    %2675 = vmatpush.xpose.msra.mxu0 0.0
    %2676 = vmatpush.xpose.msra.mxu0 0.0
    %2677 = vmatpush.xpose.msra.mxu0 0.0
    %2678 = vmatpush.xpose.msra.mxu0 0.0
    %2679 = vmatpush.xpose.msra.mxu0 0.0
    %2680 = vmatpush.xpose.msra.mxu0 0.0
    %2681 = vmatpush.xpose.msra.mxu0 0.0
    %2682 = vmatpush.xpose.msra.mxu0 0.0
    %2683 = vmatpush.xpose.msra.mxu0 0.0
    %2684 = vmatpush.xpose.msra.mxu0 0.0
    %2685 = vmatpush.xpose.msra.mxu0 %v2668
    %2686 = vmatmul.f32.gmra.mxu0 %v2665
    %v2687 = vpop.f32.mrf.mxu0
    %v2688 = vadd.f32 0.0, %v2687
    %2689 = vdwg.mxu0
    %v2690 = vmul.f32 %v2688, 0.015625
    %v2691 = vsel %vm1605, %v2690, -inf
    %v2692 = vrot.slane %v2691, 4
    %v2693 = vmax.f32 %v2691, %v2692
    %v2694 = vrot.slane %v2693, 2
    %v2695 = vmax.f32 %v2693, %v2694
    %v2696 = vrot.slane %v2695, 1
    %v2697 = vmax.f32 %v2695, %v2696
    %v2698 = vsub.f32 %v2690, %v2697
    %v2699 = vmul.f32 %v2698, 1.442695
    %v2700 = vpow.pop %v2699
    %v2701 = vsel %vm1605, %v2700, 0.0
    %v2702 = vrot.slane %v2701, 4
    %v2703 = vadd.f32 %v2701, %v2702
    %v2704 = vrot.slane %v2703, 2
    %v2705 = vadd.f32 %v2703, %v2704
    %v2706 = vrot.slane %v2705, 1
    %v2707 = vadd.f32 %v2705, %v2706
    %v2708 = vrcp.pop %v2707
    %v2709 = vmul.f32 %v2700, %v2708
    %2710 = vrot.lane.b32.xlu0 %v2629, 64
    %v2711 = vpop.permute.xlu0 %2710
    %v2713 = vsel %vm1627, %v2709, 0
    %v2715 = vsel %vm1349, %v2711, 0
    %2717 = vmatpush.msra.mxu0 0.0
    %2718 = vmatpush.msra.mxu0 0.0
    %2719 = vmatpush.msra.mxu0 0.0
    %2720 = vmatpush.msra.mxu0 0.0
    %2721 = vmatpush.msra.mxu0 0.0
    %2722 = vmatpush.msra.mxu0 0.0
    %2723 = vmatpush.msra.mxu0 0.0
    %2724 = vmatpush.msra.mxu0 0.0
    %2725 = vmatpush.msra.mxu0 0.0
    %2726 = vmatpush.msra.mxu0 0.0
    %2727 = vmatpush.msra.mxu0 0.0
    %2728 = vmatpush.msra.mxu0 0.0
    %2729 = vmatpush.msra.mxu0 0.0
    %2730 = vmatpush.msra.mxu0 0.0
    %2731 = vmatpush.msra.mxu0 0.0
    %2732 = vmatpush.msra.mxu0 %v2715
    %2733 = vmatmul.f32.gmra.mxu0 %v2713
    %v2734 = vpop.f32.mrf.mxu0
    %v2735 = vadd.f32 0.0, %v2734
    %2736 = vdwg.mxu0
    %v2737 = vmul.f32 %v2735, 0.015625
    %v2739 = vsel %vm224, %v2596, 0
    %v2742 = vsel %vm224, %v2662, 0
    %2744 = vmatpush.xpose.msra.mxu0 0.0
    %2745 = vmatpush.xpose.msra.mxu0 0.0
    %2746 = vmatpush.xpose.msra.mxu0 0.0
    %2747 = vmatpush.xpose.msra.mxu0 0.0
    %2748 = vmatpush.xpose.msra.mxu0 0.0
    %2749 = vmatpush.xpose.msra.mxu0 0.0
    %2750 = vmatpush.xpose.msra.mxu0 0.0
    %2751 = vmatpush.xpose.msra.mxu0 0.0
    %2752 = vmatpush.xpose.msra.mxu0 0.0
    %2753 = vmatpush.xpose.msra.mxu0 0.0
    %2754 = vmatpush.xpose.msra.mxu0 0.0
    %2755 = vmatpush.xpose.msra.mxu0 0.0
    %2756 = vmatpush.xpose.msra.mxu0 0.0
    %2757 = vmatpush.xpose.msra.mxu0 0.0
    %2758 = vmatpush.xpose.msra.mxu0 0.0
    %2759 = vmatpush.xpose.msra.mxu0 %v2742
    %2760 = vmatmul.f32.gmra.mxu0 %v2739
    %v2761 = vpop.f32.mrf.mxu0
    %v2762 = vadd.f32 0.0, %v2761
    %2763 = vdwg.mxu0
    %v2764 = vmul.f32 %v2762, 0.015625
    %v2765 = vsel %vm1605, %v2764, -inf
    %v2766 = vrot.slane %v2765, 4
    %v2767 = vmax.f32 %v2765, %v2766
    %v2768 = vrot.slane %v2767, 2
    %v2769 = vmax.f32 %v2767, %v2768
    %v2770 = vrot.slane %v2769, 1
    %v2771 = vmax.f32 %v2769, %v2770
    %v2772 = vsub.f32 %v2764, %v2771
    %v2773 = vmul.f32 %v2772, 1.442695
    %v2774 = vpow.pop %v2773
    %v2775 = vsel %vm1605, %v2774, 0.0
    %v2776 = vrot.slane %v2775, 4
    %v2777 = vadd.f32 %v2775, %v2776
    %v2778 = vrot.slane %v2777, 2
    %v2779 = vadd.f32 %v2777, %v2778
    %v2780 = vrot.slane %v2779, 1
    %v2781 = vadd.f32 %v2779, %v2780
    %v2782 = vrcp.pop %v2781
    %v2783 = vmul.f32 %v2774, %v2782
    %2784 = vrot.lane.b32.xlu0 %v2662, 64
    %v2785 = vpop.permute.xlu0 %2784
    %v2787 = vsel %vm1627, %v2783, 0
    %v2789 = vsel %vm1349, %v2785, 0
    %2791 = vmatpush.msra.mxu0 0.0
    %2792 = vmatpush.msra.mxu0 0.0
    %2793 = vmatpush.msra.mxu0 0.0
    %2794 = vmatpush.msra.mxu0 0.0
    %2795 = vmatpush.msra.mxu0 0.0
    %2796 = vmatpush.msra.mxu0 0.0
    %2797 = vmatpush.msra.mxu0 0.0
    %2798 = vmatpush.msra.mxu0 0.0
    %2799 = vmatpush.msra.mxu0 0.0
    %2800 = vmatpush.msra.mxu0 0.0
    %2801 = vmatpush.msra.mxu0 0.0
    %2802 = vmatpush.msra.mxu0 0.0
    %2803 = vmatpush.msra.mxu0 0.0
    %2804 = vmatpush.msra.mxu0 0.0
    %2805 = vmatpush.msra.mxu0 0.0
    %2806 = vmatpush.msra.mxu0 %v2789
    %2807 = vmatmul.f32.gmra.mxu0 %v2787
    %v2808 = vpop.f32.mrf.mxu0
    %v2809 = vadd.f32 0.0, %v2808
    %2810 = vdwg.mxu0
    %v2811 = vmul.f32 %v2809, 0.015625
    %s2812 = scalar_lea.vmem [#allocation10], 256
    %v2813 = vld [vmem:[%s2812] sm:$0xff]
    %v2814 = vld [vmem:[%s2812 + $0x8] sm:$0xff]
    %v2815 = vld [vmem:[%s2812 + $0x10] sm:$0xff]
    %v2816 = vld [vmem:[%s2812 + $0x18] sm:$0xff]
    %v2817 = vld [vmem:[%s2812 + $0x20] sm:$0xff]
    %v2818 = vld [vmem:[%s2812 + $0x28] sm:$0xff]
    %v2819 = vld [vmem:[%s2812 + $0x30] sm:$0xff]
    %v2820 = vld [vmem:[%s2812 + $0x38] sm:$0xff]
    %v2821 = vperm.slane %v2441, 2
    %2822 = vmatpush.msra.mxu0 0.0
    %2823 = vmatpush.msra.mxu0 0.0
    %2824 = vmatpush.msra.mxu0 0.0
    %2825 = vmatpush.msra.mxu0 0.0
    %2826 = vmatpush.msra.mxu0 0.0
    %2827 = vmatpush.msra.mxu0 0.0
    %2828 = vmatpush.msra.mxu0 0.0
    %2829 = vmatpush.msra.mxu0 0.0
    %2830 = vmatpush.msra.mxu0 %v2820
    %2831 = vmatpush.msra.mxu0 %v2819
    %2832 = vmatpush.msra.mxu0 %v2818
    %2833 = vmatpush.msra.mxu0 %v2817
    %2834 = vmatpush.msra.mxu0 %v2816
    %2835 = vmatpush.msra.mxu0 %v2815
    %2836 = vmatpush.msra.mxu0 %v2814
    %2837 = vmatpush.msra.mxu0 %v2813
    %2838 = vmatmul.f32.gmra.mxu0 %v2665
    %v2839 = vpop.f32.mrf.mxu0
    %v2840 = vadd.f32 %v2821, %v2839
    %2841 = vdwg.mxu0
    %v2842 = vsel %vm308, %v2840, 0.0
    %2843 = vadd.xlane.f32.xlu0 %v2842
    %v2844 = vpop.xlane.xlu0 %2843
    %v2845 = vmul.f32 %v2844, %v234
    %v2846 = vsub.f32 %v2840, %v2845
    %v2847 = vmul.f32 %v2846, %v2846
    %v2848 = vsel %vm308, %v2847, 0.0
    %2849 = vadd.xlane.f32.xlu0 %v2848
    %v2850 = vpop.xlane.xlu0 %2849
    %v2851 = vmul.f32 %v2850, %v234
    %v2852 = vadd.f32 %v2851, 1e-05
    %v2853 = vrsqrt.pop %v2852
    %v2854 = vmul.f32 %v2853, %v2852
    %v2855 = vmul.f32 %v2854, %v2853
    %v2856 = vmul.f32 0.5, %v2855
    %v2857 = vsub.f32 1.5, %v2856
    %v2858 = vmul.f32 %v2853, %v2857
    %vm2859 = vweird.f32 %v2852
    %vm2860 = vweird.f32 %v2853
    %vm2861 = vmor %vm2859, %vm2860
    %v2862 = vsel %vm2861, %v2853, %v2858
    %v2863 = vmul.f32 %v2846, %v2862
    %v2864 = vperm.slane %v2441, 3
    %v2865 = vmul.f32 %v2863, %v2864
    %v2866 = vperm.slane %v2441, 4
    %v2867 = vadd.f32 %v2865, %v2866
    %v2868 = vmax.f32 %v2867, 0.0
    %s2869 = scalar_lea.vmem %s6, 256
    %v2870 = vld [vmem:[%s2869] sm:$0xff]
    %v2871 = vld [vmem:[%s2869 + $0x8] sm:$0xff]
    %v2872 = vld [vmem:[%s2869 + $0x10] sm:$0xff]
    %v2873 = vld [vmem:[%s2869 + $0x18] sm:$0xff]
    %v2874 = vld [vmem:[%s2869 + $0x20] sm:$0xff]
    %v2875 = vld [vmem:[%s2869 + $0x28] sm:$0xff]
    %v2876 = vld [vmem:[%s2869 + $0x30] sm:$0xff]
    %v2877 = vld [vmem:[%s2869 + $0x38] sm:$0xff]
    %v2878 = vperm.slane %v2445, 0
    %v2880 = vsel %vm224, %v2868, 0
    %2882 = vmatpush.msra.mxu0 0.0
    %2883 = vmatpush.msra.mxu0 0.0
    %2884 = vmatpush.msra.mxu0 0.0
    %2885 = vmatpush.msra.mxu0 0.0
    %2886 = vmatpush.msra.mxu0 0.0
    %2887 = vmatpush.msra.mxu0 0.0
    %2888 = vmatpush.msra.mxu0 0.0
    %2889 = vmatpush.msra.mxu0 0.0
    %2890 = vmatpush.msra.mxu0 %v2877
    %2891 = vmatpush.msra.mxu0 %v2876
    %2892 = vmatpush.msra.mxu0 %v2875
    %2893 = vmatpush.msra.mxu0 %v2874
    %2894 = vmatpush.msra.mxu0 %v2873
    %2895 = vmatpush.msra.mxu0 %v2872
    %2896 = vmatpush.msra.mxu0 %v2871
    %2897 = vmatpush.msra.mxu0 %v2870
    %2898 = vmatmul.f32.gmra.mxu0 %v2880
    %v2899 = vpop.f32.mrf.mxu0
    %v2900 = vadd.f32 %v2878, %v2899
    %2901 = vdwg.mxu0
    %v2902 = vsel %vm719, %v2900, 0.0
    %2903 = vadd.xlane.f32.xlu0 %v2902
    %v2904 = vpop.xlane.xlu0 %2903
    %v2905 = vmul.f32 %v2904, %v729
    %v2906 = vsub.f32 %v2900, %v2905
    %v2907 = vmul.f32 %v2906, %v2906
    %v2908 = vsel %vm719, %v2907, 0.0
    %2909 = vadd.xlane.f32.xlu0 %v2908
    %v2910 = vpop.xlane.xlu0 %2909
    %v2911 = vmul.f32 %v2910, %v729
    %v2912 = vadd.f32 %v2911, 1e-05
    %v2913 = vrsqrt.pop %v2912
    %v2914 = vmul.f32 %v2913, %v2912
    %v2915 = vmul.f32 %v2914, %v2913
    %v2916 = vmul.f32 0.5, %v2915
    %v2917 = vsub.f32 1.5, %v2916
    %v2918 = vmul.f32 %v2913, %v2917
    %vm2919 = vweird.f32 %v2912
    %vm2920 = vweird.f32 %v2913
    %vm2921 = vmor %vm2919, %vm2920
    %v2922 = vsel %vm2921, %v2913, %v2918
    %v2923 = vmul.f32 %v2906, %v2922
    %v2924 = vperm.slane %v2445, 1
    %v2925 = vmul.f32 %v2923, %v2924
    %v2926 = vperm.slane %v2445, 2
    %v2927 = vadd.f32 %v2925, %v2926
    %v2928 = vmax.f32 %v2927, 0.0
    %v2929 = vsel %vm719, %v2928, 0.0
    %v2930 = vrot.slane %v2929, 4
    %v2931 = vadd.f32 %v2929, %v2930
    %v2932 = vrot.slane %v2931, 2
    %v2933 = vadd.f32 %v2931, %v2932
    %v2934 = vrot.slane %v2933, 1
    %v2935 = vadd.f32 %v2933, %v2934
    %v2936 = vmul.f32 %v2935, %v767
    %s2937 = scalar_lea.vmem %s7, 128
    %v2938 = vld [vmem:[%s2937] sm:$0xff]
    %v2939 = vld [vmem:[%s2937 + $0x8] sm:$0xff]
    %v2940 = vld [vmem:[%s2937 + $0x10] sm:$0xff]
    %v2941 = vld [vmem:[%s2937 + $0x18] sm:$0xff]
    %v2942 = vperm.slane %v2441, 5
    %v2944 = vsel %vm774, %v2936, 0
    %2946 = vmatpush.msra.mxu0 0.0
    %2947 = vmatpush.msra.mxu0 0.0
    %2948 = vmatpush.msra.mxu0 0.0
    %2949 = vmatpush.msra.mxu0 0.0
    %2950 = vmatpush.msra.mxu0 0.0
    %2951 = vmatpush.msra.mxu0 0.0
    %2952 = vmatpush.msra.mxu0 0.0
    %2953 = vmatpush.msra.mxu0 0.0
    %2954 = vmatpush.msra.mxu0 0.0
    %2955 = vmatpush.msra.mxu0 0.0
    %2956 = vmatpush.msra.mxu0 0.0
    %2957 = vmatpush.msra.mxu0 0.0
    %2958 = vmatpush.msra.mxu0 %v2941
    %2959 = vmatpush.msra.mxu0 %v2940
    %2960 = vmatpush.msra.mxu0 %v2939
    %2961 = vmatpush.msra.mxu0 %v2938
    %2962 = vmatmul.f32.gmra.mxu0 %v2944
    %v2963 = vpop.f32.mrf.mxu0
    %v2964 = vadd.f32 %v2942, %v2963
    %2965 = vdwg.mxu0
    %v2966 = vsel %vm308, %v2964, 0.0
    %2967 = vadd.xlane.f32.xlu0 %v2966
    %v2968 = vpop.xlane.xlu0 %2967
    %v2969 = vmul.f32 %v2968, %v234
    %v2970 = vsub.f32 %v2964, %v2969
    %v2971 = vmul.f32 %v2970, %v2970
    %v2972 = vsel %vm308, %v2971, 0.0
    %2973 = vadd.xlane.f32.xlu0 %v2972
    %v2974 = vpop.xlane.xlu0 %2973
    %v2975 = vmul.f32 %v2974, %v234
    %v2976 = vadd.f32 %v2975, 1e-05
    %v2977 = vrsqrt.pop %v2976
    %v2978 = vmul.f32 %v2977, %v2976
    %v2979 = vmul.f32 %v2978, %v2977
    %v2980 = vmul.f32 0.5, %v2979
    %v2981 = vsub.f32 1.5, %v2980
    %v2982 = vmul.f32 %v2977, %v2981
    %vm2983 = vweird.f32 %v2976
    %vm2984 = vweird.f32 %v2977
    %vm2985 = vmor %vm2983, %vm2984
    %v2986 = vsel %vm2985, %v2977, %v2982
    %v2987 = vmul.f32 %v2970, %v2986
    %v2988 = vperm.slane %v2441, 6
    %v2989 = vmul.f32 %v2987, %v2988
    %v2990 = vperm.slane %v2441, 7
    %v2991 = vadd.f32 %v2989, %v2990
    %v2992 = vmax.f32 %v2991, 0.0
    %s2993 = scalar_lea.vmem [#allocation11], 256
    %v2994 = vld [vmem:[%s2993] sm:$0xff]
    %v2995 = vld [vmem:[%s2993 + $0x8] sm:$0xff]
    %v2996 = vld [vmem:[%s2993 + $0x10] sm:$0xff]
    %v2997 = vld [vmem:[%s2993 + $0x18] sm:$0xff]
    %v2998 = vld [vmem:[%s2993 + $0x20] sm:$0xff]
    %v2999 = vld [vmem:[%s2993 + $0x28] sm:$0xff]
    %v3000 = vld [vmem:[%s2993 + $0x30] sm:$0xff]
    %v3001 = vld [vmem:[%s2993 + $0x38] sm:$0xff]
    %v3002 = vperm.slane %v2442, 0
    %v3004 = vsel %vm224, %v2992, 0
    %3006 = vmatpush.msra.mxu0 0.0
    %3007 = vmatpush.msra.mxu0 0.0
    %3008 = vmatpush.msra.mxu0 0.0
    %3009 = vmatpush.msra.mxu0 0.0
    %3010 = vmatpush.msra.mxu0 0.0
    %3011 = vmatpush.msra.mxu0 0.0
    %3012 = vmatpush.msra.mxu0 0.0
    %3013 = vmatpush.msra.mxu0 0.0
    %3014 = vmatpush.msra.mxu0 %v3001
    %3015 = vmatpush.msra.mxu0 %v3000
    %3016 = vmatpush.msra.mxu0 %v2999
    %3017 = vmatpush.msra.mxu0 %v2998
    %3018 = vmatpush.msra.mxu0 %v2997
    %3019 = vmatpush.msra.mxu0 %v2996
    %3020 = vmatpush.msra.mxu0 %v2995
    %3021 = vmatpush.msra.mxu0 %v2994
    %3022 = vmatmul.f32.gmra.mxu0 %v3004
    %v3023 = vpop.f32.mrf.mxu0
    %v3024 = vadd.f32 %v3002, %v3023
    %3025 = vdwg.mxu0
    %s3026 = scalar_lea.vmem [#allocation10], 320
    %v3027 = vld [vmem:[%s3026] sm:$0xff]
    %v3028 = vld [vmem:[%s3026 + $0x8] sm:$0xff]
    %v3029 = vld [vmem:[%s3026 + $0x10] sm:$0xff]
    %v3030 = vld [vmem:[%s3026 + $0x18] sm:$0xff]
    %v3031 = vld [vmem:[%s3026 + $0x20] sm:$0xff]
    %v3032 = vld [vmem:[%s3026 + $0x28] sm:$0xff]
    %v3033 = vld [vmem:[%s3026 + $0x30] sm:$0xff]
    %v3034 = vld [vmem:[%s3026 + $0x38] sm:$0xff]
    %v3035 = vperm.slane %v2442, 1
    %3036 = vmatpush.msra.mxu0 0.0
    %3037 = vmatpush.msra.mxu0 0.0
    %3038 = vmatpush.msra.mxu0 0.0
    %3039 = vmatpush.msra.mxu0 0.0
    %3040 = vmatpush.msra.mxu0 0.0
    %3041 = vmatpush.msra.mxu0 0.0
    %3042 = vmatpush.msra.mxu0 0.0
    %3043 = vmatpush.msra.mxu0 0.0
    %3044 = vmatpush.msra.mxu0 %v3034
    %3045 = vmatpush.msra.mxu0 %v3033
    %3046 = vmatpush.msra.mxu0 %v3032
    %3047 = vmatpush.msra.mxu0 %v3031
    %3048 = vmatpush.msra.mxu0 %v3030
    %3049 = vmatpush.msra.mxu0 %v3029
    %3050 = vmatpush.msra.mxu0 %v3028
    %3051 = vmatpush.msra.mxu0 %v3027
    %3052 = vmatmul.f32.gmra.mxu0 %v2739
    %v3053 = vpop.f32.mrf.mxu0
    %v3054 = vadd.f32 %v3035, %v3053
    %3055 = vdwg.mxu0
    %v3056 = vsel %vm308, %v3054, 0.0
    %3057 = vadd.xlane.f32.xlu0 %v3056
    %v3058 = vpop.xlane.xlu0 %3057
    %v3059 = vmul.f32 %v3058, %v234
    %v3060 = vsub.f32 %v3054, %v3059
    %v3061 = vmul.f32 %v3060, %v3060
    %v3062 = vsel %vm308, %v3061, 0.0
    %3063 = vadd.xlane.f32.xlu0 %v3062
    %v3064 = vpop.xlane.xlu0 %3063
    %v3065 = vmul.f32 %v3064, %v234
    %v3066 = vadd.f32 %v3065, 1e-05
    %v3067 = vrsqrt.pop %v3066
    %v3068 = vmul.f32 %v3067, %v3066
    %v3069 = vmul.f32 %v3068, %v3067
    %v3070 = vmul.f32 0.5, %v3069
    %v3071 = vsub.f32 1.5, %v3070
    %v3072 = vmul.f32 %v3067, %v3071
    %vm3073 = vweird.f32 %v3066
    %vm3074 = vweird.f32 %v3067
    %vm3075 = vmor %vm3073, %vm3074
    %v3076 = vsel %vm3075, %v3067, %v3072
    %v3077 = vmul.f32 %v3060, %v3076
    %v3078 = vperm.slane %v2442, 2
    %v3079 = vmul.f32 %v3077, %v3078
    %v3080 = vperm.slane %v2442, 3
    %v3081 = vadd.f32 %v3079, %v3080
    %v3082 = vmax.f32 %v3081, 0.0
    %s3083 = scalar_lea.vmem %s6, 320
    %v3084 = vld [vmem:[%s3083] sm:$0xff]
    %v3085 = vld [vmem:[%s3083 + $0x8] sm:$0xff]
    %v3086 = vld [vmem:[%s3083 + $0x10] sm:$0xff]
    %v3087 = vld [vmem:[%s3083 + $0x18] sm:$0xff]
    %v3088 = vld [vmem:[%s3083 + $0x20] sm:$0xff]
    %v3089 = vld [vmem:[%s3083 + $0x28] sm:$0xff]
    %v3090 = vld [vmem:[%s3083 + $0x30] sm:$0xff]
    %v3091 = vld [vmem:[%s3083 + $0x38] sm:$0xff]
    %v3092 = vperm.slane %v2445, 3
    %v3094 = vsel %vm224, %v3082, 0
    %3096 = vmatpush.msra.mxu0 0.0
    %3097 = vmatpush.msra.mxu0 0.0
    %3098 = vmatpush.msra.mxu0 0.0
    %3099 = vmatpush.msra.mxu0 0.0
    %3100 = vmatpush.msra.mxu0 0.0
    %3101 = vmatpush.msra.mxu0 0.0
    %3102 = vmatpush.msra.mxu0 0.0
    %3103 = vmatpush.msra.mxu0 0.0
    %3104 = vmatpush.msra.mxu0 %v3091
    %3105 = vmatpush.msra.mxu0 %v3090
    %3106 = vmatpush.msra.mxu0 %v3089
    %3107 = vmatpush.msra.mxu0 %v3088
    %3108 = vmatpush.msra.mxu0 %v3087
    %3109 = vmatpush.msra.mxu0 %v3086
    %3110 = vmatpush.msra.mxu0 %v3085
    %3111 = vmatpush.msra.mxu0 %v3084
    %3112 = vmatmul.f32.gmra.mxu0 %v3094
    %v3113 = vpop.f32.mrf.mxu0
    %v3114 = vadd.f32 %v3092, %v3113
    %3115 = vdwg.mxu0
    %v3116 = vsel %vm719, %v3114, 0.0
    %3117 = vadd.xlane.f32.xlu0 %v3116
    %v3118 = vpop.xlane.xlu0 %3117
    %v3119 = vmul.f32 %v3118, %v729
    %v3120 = vsub.f32 %v3114, %v3119
    %v3121 = vmul.f32 %v3120, %v3120
    %v3122 = vsel %vm719, %v3121, 0.0
    %3123 = vadd.xlane.f32.xlu0 %v3122
    %v3124 = vpop.xlane.xlu0 %3123
    %v3125 = vmul.f32 %v3124, %v729
    %v3126 = vadd.f32 %v3125, 1e-05
    %v3127 = vrsqrt.pop %v3126
    %v3128 = vmul.f32 %v3127, %v3126
    %v3129 = vmul.f32 %v3128, %v3127
    %v3130 = vmul.f32 0.5, %v3129
    %v3131 = vsub.f32 1.5, %v3130
    %v3132 = vmul.f32 %v3127, %v3131
    %vm3133 = vweird.f32 %v3126
    %vm3134 = vweird.f32 %v3127
    %vm3135 = vmor %vm3133, %vm3134
    %v3136 = vsel %vm3135, %v3127, %v3132
    %v3137 = vmul.f32 %v3120, %v3136
    %v3138 = vperm.slane %v2445, 4
    %v3139 = vmul.f32 %v3137, %v3138
    %v3140 = vperm.slane %v2445, 5
    %v3141 = vadd.f32 %v3139, %v3140
    %v3142 = vmax.f32 %v3141, 0.0
    %v3143 = vsel %vm719, %v3142, 0.0
    %v3144 = vrot.slane %v3143, 4
    %v3145 = vadd.f32 %v3143, %v3144
    %v3146 = vrot.slane %v3145, 2
    %v3147 = vadd.f32 %v3145, %v3146
    %v3148 = vrot.slane %v3147, 1
    %v3149 = vadd.f32 %v3147, %v3148
    %v3150 = vmul.f32 %v3149, %v767
    %s3151 = scalar_lea.vmem %s7, 160
    %v3152 = vld [vmem:[%s3151] sm:$0xff]
    %v3153 = vld [vmem:[%s3151 + $0x8] sm:$0xff]
    %v3154 = vld [vmem:[%s3151 + $0x10] sm:$0xff]
    %v3155 = vld [vmem:[%s3151 + $0x18] sm:$0xff]
    %v3156 = vperm.slane %v2442, 4
    %v3158 = vsel %vm774, %v3150, 0
    %3160 = vmatpush.msra.mxu0 0.0
    %3161 = vmatpush.msra.mxu0 0.0
    %3162 = vmatpush.msra.mxu0 0.0
    %3163 = vmatpush.msra.mxu0 0.0
    %3164 = vmatpush.msra.mxu0 0.0
    %3165 = vmatpush.msra.mxu0 0.0
    %3166 = vmatpush.msra.mxu0 0.0
    %3167 = vmatpush.msra.mxu0 0.0
    %3168 = vmatpush.msra.mxu0 0.0
    %3169 = vmatpush.msra.mxu0 0.0
    %3170 = vmatpush.msra.mxu0 0.0
    %3171 = vmatpush.msra.mxu0 0.0
    %3172 = vmatpush.msra.mxu0 %v3155
    %3173 = vmatpush.msra.mxu0 %v3154
    %3174 = vmatpush.msra.mxu0 %v3153
    %3175 = vmatpush.msra.mxu0 %v3152
    %3176 = vmatmul.f32.gmra.mxu0 %v3158
    %v3177 = vpop.f32.mrf.mxu0
    %v3178 = vadd.f32 %v3156, %v3177
    %3179 = vdwg.mxu0
    %v3180 = vsel %vm308, %v3178, 0.0
    %3181 = vadd.xlane.f32.xlu0 %v3180
    %v3182 = vpop.xlane.xlu0 %3181
    %v3183 = vmul.f32 %v3182, %v234
    %v3184 = vsub.f32 %v3178, %v3183
    %v3185 = vmul.f32 %v3184, %v3184
    %v3186 = vsel %vm308, %v3185, 0.0
    %3187 = vadd.xlane.f32.xlu0 %v3186
    %v3188 = vpop.xlane.xlu0 %3187
    %v3189 = vmul.f32 %v3188, %v234
    %v3190 = vadd.f32 %v3189, 1e-05
    %v3191 = vrsqrt.pop %v3190
    %v3192 = vmul.f32 %v3191, %v3190
    %v3193 = vmul.f32 %v3192, %v3191
    %v3194 = vmul.f32 0.5, %v3193
    %v3195 = vsub.f32 1.5, %v3194
    %v3196 = vmul.f32 %v3191, %v3195
    %vm3197 = vweird.f32 %v3190
    %vm3198 = vweird.f32 %v3191
    %vm3199 = vmor %vm3197, %vm3198
    %v3200 = vsel %vm3199, %v3191, %v3196
    %v3201 = vmul.f32 %v3184, %v3200
    %v3202 = vperm.slane %v2442, 5
    %v3203 = vmul.f32 %v3201, %v3202
    %v3204 = vperm.slane %v2442, 6
    %v3205 = vadd.f32 %v3203, %v3204
    %v3206 = vmax.f32 %v3205, 0.0
    %s3207 = scalar_lea.vmem [#allocation11], 320
    %v3208 = vld [vmem:[%s3207] sm:$0xff]
    %v3209 = vld [vmem:[%s3207 + $0x8] sm:$0xff]
    %v3210 = vld [vmem:[%s3207 + $0x10] sm:$0xff]
    %v3211 = vld [vmem:[%s3207 + $0x18] sm:$0xff]
    %v3212 = vld [vmem:[%s3207 + $0x20] sm:$0xff]
    %v3213 = vld [vmem:[%s3207 + $0x28] sm:$0xff]
    %v3214 = vld [vmem:[%s3207 + $0x30] sm:$0xff]
    %v3215 = vld [vmem:[%s3207 + $0x38] sm:$0xff]
    %v3216 = vperm.slane %v2442, 7
    %v3218 = vsel %vm224, %v3206, 0
    %3220 = vmatpush.msra.mxu0 0.0
    %3221 = vmatpush.msra.mxu0 0.0
    %3222 = vmatpush.msra.mxu0 0.0
    %3223 = vmatpush.msra.mxu0 0.0
    %3224 = vmatpush.msra.mxu0 0.0
    %3225 = vmatpush.msra.mxu0 0.0
    %3226 = vmatpush.msra.mxu0 0.0
    %3227 = vmatpush.msra.mxu0 0.0
    %3228 = vmatpush.msra.mxu0 %v3215
    %3229 = vmatpush.msra.mxu0 %v3214
    %3230 = vmatpush.msra.mxu0 %v3213
    %3231 = vmatpush.msra.mxu0 %v3212
    %3232 = vmatpush.msra.mxu0 %v3211
    %3233 = vmatpush.msra.mxu0 %v3210
    %3234 = vmatpush.msra.mxu0 %v3209
    %3235 = vmatpush.msra.mxu0 %v3208
    %3236 = vmatmul.f32.gmra.mxu0 %v3218
    %v3237 = vpop.f32.mrf.mxu0
    %v3238 = vadd.f32 %v3216, %v3237
    %3239 = vdwg.mxu0
    %v3241 = vsel %vm224, %v3024, 0
    %3243 = vmatpush.xpose.msra.mxu0 0.0
    %3244 = vmatpush.xpose.msra.mxu0 0.0
    %3245 = vmatpush.xpose.msra.mxu0 0.0
    %3246 = vmatpush.xpose.msra.mxu0 0.0
    %3247 = vmatpush.xpose.msra.mxu0 0.0
    %3248 = vmatpush.xpose.msra.mxu0 0.0
    %3249 = vmatpush.xpose.msra.mxu0 0.0
    %3250 = vmatpush.xpose.msra.mxu0 0.0
    %3251 = vmatpush.xpose.msra.mxu0 0.0
    %3252 = vmatpush.xpose.msra.mxu0 0.0
    %3253 = vmatpush.xpose.msra.mxu0 0.0
    %3254 = vmatpush.xpose.msra.mxu0 0.0
    %3255 = vmatpush.xpose.msra.mxu0 0.0
    %3256 = vmatpush.xpose.msra.mxu0 0.0
    %3257 = vmatpush.xpose.msra.mxu0 0.0
    %3258 = vmatpush.xpose.msra.mxu0 %v2668
    %3259 = vmatmul.f32.gmra.mxu0 %v3241
    %v3260 = vpop.f32.mrf.mxu0
    %v3261 = vadd.f32 0.0, %v3260
    %3262 = vdwg.mxu0
    %v3263 = vmul.f32 %v3261, 0.015625
    %v3264 = vsel %vm1605, %v3263, -inf
    %v3265 = vrot.slane %v3264, 4
    %v3266 = vmax.f32 %v3264, %v3265
    %v3267 = vrot.slane %v3266, 2
    %v3268 = vmax.f32 %v3266, %v3267
    %v3269 = vrot.slane %v3268, 1
    %v3270 = vmax.f32 %v3268, %v3269
    %v3271 = vsub.f32 %v3263, %v3270
    %v3272 = vmul.f32 %v3271, 1.442695
    %v3273 = vpow.pop %v3272
    %v3274 = vsel %vm1605, %v3273, 0.0
    %v3275 = vrot.slane %v3274, 4
    %v3276 = vadd.f32 %v3274, %v3275
    %v3277 = vrot.slane %v3276, 2
    %v3278 = vadd.f32 %v3276, %v3277
    %v3279 = vrot.slane %v3278, 1
    %v3280 = vadd.f32 %v3278, %v3279
    %v3281 = vrcp.pop %v3280
    %v3282 = vmul.f32 %v3273, %v3281
    %v3284 = vsel %vm1627, %v3282, 0
    %3286 = vmatpush.msra.mxu0 0.0
    %3287 = vmatpush.msra.mxu0 0.0
    %3288 = vmatpush.msra.mxu0 0.0
    %3289 = vmatpush.msra.mxu0 0.0
    %3290 = vmatpush.msra.mxu0 0.0
    %3291 = vmatpush.msra.mxu0 0.0
    %3292 = vmatpush.msra.mxu0 0.0
    %3293 = vmatpush.msra.mxu0 0.0
    %3294 = vmatpush.msra.mxu0 0.0
    %3295 = vmatpush.msra.mxu0 0.0
    %3296 = vmatpush.msra.mxu0 0.0
    %3297 = vmatpush.msra.mxu0 0.0
    %3298 = vmatpush.msra.mxu0 0.0
    %3299 = vmatpush.msra.mxu0 0.0
    %3300 = vmatpush.msra.mxu0 0.0
    %3301 = vmatpush.msra.mxu0 %v2715
    %3302 = vmatmul.f32.gmra.mxu0 %v3284
    %v3303 = vpop.f32.mrf.mxu0
    %v3304 = vadd.f32 0.0, %v3303
    %3305 = vdwg.mxu0
    %v3306 = vmul.f32 %v3304, 0.015625
    %v3308 = vsel %vm224, %v3238, 0
    %3310 = vmatpush.xpose.msra.mxu0 0.0
    %3311 = vmatpush.xpose.msra.mxu0 0.0
    %3312 = vmatpush.xpose.msra.mxu0 0.0
    %3313 = vmatpush.xpose.msra.mxu0 0.0
    %3314 = vmatpush.xpose.msra.mxu0 0.0
    %3315 = vmatpush.xpose.msra.mxu0 0.0
    %3316 = vmatpush.xpose.msra.mxu0 0.0
    %3317 = vmatpush.xpose.msra.mxu0 0.0
    %3318 = vmatpush.xpose.msra.mxu0 0.0
    %3319 = vmatpush.xpose.msra.mxu0 0.0
    %3320 = vmatpush.xpose.msra.mxu0 0.0
    %3321 = vmatpush.xpose.msra.mxu0 0.0
    %3322 = vmatpush.xpose.msra.mxu0 0.0
    %3323 = vmatpush.xpose.msra.mxu0 0.0
    %3324 = vmatpush.xpose.msra.mxu0 0.0
    %3325 = vmatpush.xpose.msra.mxu0 %v2742
    %3326 = vmatmul.f32.gmra.mxu0 %v3308
    %v3327 = vpop.f32.mrf.mxu0
    %v3328 = vadd.f32 0.0, %v3327
    %3329 = vdwg.mxu0
    %v3330 = vmul.f32 %v3328, 0.015625
    %v3331 = vsel %vm1605, %v3330, -inf
    %v3332 = vrot.slane %v3331, 4
    %v3333 = vmax.f32 %v3331, %v3332
    %v3334 = vrot.slane %v3333, 2
    %v3335 = vmax.f32 %v3333, %v3334
    %v3336 = vrot.slane %v3335, 1
    %v3337 = vmax.f32 %v3335, %v3336
    %v3338 = vsub.f32 %v3330, %v3337
    %v3339 = vmul.f32 %v3338, 1.442695
    %v3340 = vpow.pop %v3339
    %v3341 = vsel %vm1605, %v3340, 0.0
    %v3342 = vrot.slane %v3341, 4
    %v3343 = vadd.f32 %v3341, %v3342
    %v3344 = vrot.slane %v3343, 2
    %v3345 = vadd.f32 %v3343, %v3344
    %v3346 = vrot.slane %v3345, 1
    %v3347 = vadd.f32 %v3345, %v3346
    %v3348 = vrcp.pop %v3347
    %v3349 = vmul.f32 %v3340, %v3348
    %v3351 = vsel %vm1627, %v3349, 0
    %3353 = vmatpush.msra.mxu0 0.0
    %3354 = vmatpush.msra.mxu0 0.0
    %3355 = vmatpush.msra.mxu0 0.0
    %3356 = vmatpush.msra.mxu0 0.0
    %3357 = vmatpush.msra.mxu0 0.0
    %3358 = vmatpush.msra.mxu0 0.0
    %3359 = vmatpush.msra.mxu0 0.0
    %3360 = vmatpush.msra.mxu0 0.0
    %3361 = vmatpush.msra.mxu0 0.0
    %3362 = vmatpush.msra.mxu0 0.0
    %3363 = vmatpush.msra.mxu0 0.0
    %3364 = vmatpush.msra.mxu0 0.0
    %3365 = vmatpush.msra.mxu0 0.0
    %3366 = vmatpush.msra.mxu0 0.0
    %3367 = vmatpush.msra.mxu0 0.0
    %3368 = vmatpush.msra.mxu0 %v2789
    %3369 = vmatmul.f32.gmra.mxu0 %v3351
    %v3370 = vpop.f32.mrf.mxu0
    %v3371 = vadd.f32 0.0, %v3370
    %3372 = vdwg.mxu0
    %v3373 = vmul.f32 %v3371, 0.015625
    %s3374 = scalar_lea.vmem [#allocation13], 512
    %v3375 = vld [vmem:[%s3374] sm:$0xff]
    %v3376 = vld [vmem:[%s3374 + $0x8] sm:$0xff]
    %v3377 = vld [vmem:[%s3374 + $0x10] sm:$0xff]
    %v3378 = vld [vmem:[%s3374 + $0x18] sm:$0xff]
    %v3379 = vld [vmem:[%s3374 + $0x20] sm:$0xff]
    %v3380 = vld [vmem:[%s3374 + $0x28] sm:$0xff]
    %v3381 = vld [vmem:[%s3374 + $0x30] sm:$0xff]
    %v3382 = vld [vmem:[%s3374 + $0x38] sm:$0xff]
    %v3383 = vperm.slane %v2443, 0
    %v3385 = vsel %vm224, %v3306, 0
    %3387 = vmatpush.msra.mxu0 0.0
    %3388 = vmatpush.msra.mxu0 0.0
    %3389 = vmatpush.msra.mxu0 0.0
    %3390 = vmatpush.msra.mxu0 0.0
    %3391 = vmatpush.msra.mxu0 0.0
    %3392 = vmatpush.msra.mxu0 0.0
    %3393 = vmatpush.msra.mxu0 0.0
    %3394 = vmatpush.msra.mxu0 0.0
    %3395 = vmatpush.msra.mxu0 %v3382
    %3396 = vmatpush.msra.mxu0 %v3381
    %3397 = vmatpush.msra.mxu0 %v3380
    %3398 = vmatpush.msra.mxu0 %v3379
    %3399 = vmatpush.msra.mxu0 %v3378
    %3400 = vmatpush.msra.mxu0 %v3377
    %3401 = vmatpush.msra.mxu0 %v3376
    %3402 = vmatpush.msra.mxu0 %v3375
    %3403 = vmatmul.f32.gmra.mxu0 %v3385
    %v3404 = vpop.f32.mrf.mxu0
    %v3405 = vadd.f32 %v3383, %v3404
    %3406 = vdwg.mxu0
    %s3407 = scalar_lea.vmem [#allocation13], 576
    %v3408 = vld [vmem:[%s3407] sm:$0xff]
    %v3409 = vld [vmem:[%s3407 + $0x8] sm:$0xff]
    %v3410 = vld [vmem:[%s3407 + $0x10] sm:$0xff]
    %v3411 = vld [vmem:[%s3407 + $0x18] sm:$0xff]
    %v3412 = vld [vmem:[%s3407 + $0x20] sm:$0xff]
    %v3413 = vld [vmem:[%s3407 + $0x28] sm:$0xff]
    %v3414 = vld [vmem:[%s3407 + $0x30] sm:$0xff]
    %v3415 = vld [vmem:[%s3407 + $0x38] sm:$0xff]
    %v3416 = vperm.slane %v2443, 1
    %v3418 = vsel %vm224, %v3373, 0
    %3420 = vmatpush.msra.mxu0 0.0
    %3421 = vmatpush.msra.mxu0 0.0
    %3422 = vmatpush.msra.mxu0 0.0
    %3423 = vmatpush.msra.mxu0 0.0
    %3424 = vmatpush.msra.mxu0 0.0
    %3425 = vmatpush.msra.mxu0 0.0
    %3426 = vmatpush.msra.mxu0 0.0
    %3427 = vmatpush.msra.mxu0 0.0
    %3428 = vmatpush.msra.mxu0 %v3415
    %3429 = vmatpush.msra.mxu0 %v3414
    %3430 = vmatpush.msra.mxu0 %v3413
    %3431 = vmatpush.msra.mxu0 %v3412
    %3432 = vmatpush.msra.mxu0 %v3411
    %3433 = vmatpush.msra.mxu0 %v3410
    %3434 = vmatpush.msra.mxu0 %v3409
    %3435 = vmatpush.msra.mxu0 %v3408
    %3436 = vmatmul.f32.gmra.mxu0 %v3418
    %v3437 = vpop.f32.mrf.mxu0
    %v3438 = vadd.f32 %v3416, %v3437
    %3439 = vdwg.mxu0
    %s3440 = scalar_lea.vmem [#allocation13], 640
    %v3441 = vld [vmem:[%s3440] sm:$0xff]
    %v3442 = vld [vmem:[%s3440 + $0x8] sm:$0xff]
    %v3443 = vld [vmem:[%s3440 + $0x10] sm:$0xff]
    %v3444 = vld [vmem:[%s3440 + $0x18] sm:$0xff]
    %v3445 = vld [vmem:[%s3440 + $0x20] sm:$0xff]
    %v3446 = vld [vmem:[%s3440 + $0x28] sm:$0xff]
    %v3447 = vld [vmem:[%s3440 + $0x30] sm:$0xff]
    %v3448 = vld [vmem:[%s3440 + $0x38] sm:$0xff]
    %v3449 = vperm.slane %v2443, 2
    %v3451 = vsel %vm224, %v2737, 0
    %3453 = vmatpush.msra.mxu0 0.0
    %3454 = vmatpush.msra.mxu0 0.0
    %3455 = vmatpush.msra.mxu0 0.0
    %3456 = vmatpush.msra.mxu0 0.0
    %3457 = vmatpush.msra.mxu0 0.0
    %3458 = vmatpush.msra.mxu0 0.0
    %3459 = vmatpush.msra.mxu0 0.0
    %3460 = vmatpush.msra.mxu0 0.0
    %3461 = vmatpush.msra.mxu0 %v3448
    %3462 = vmatpush.msra.mxu0 %v3447
    %3463 = vmatpush.msra.mxu0 %v3446
    %3464 = vmatpush.msra.mxu0 %v3445
    %3465 = vmatpush.msra.mxu0 %v3444
    %3466 = vmatpush.msra.mxu0 %v3443
    %3467 = vmatpush.msra.mxu0 %v3442
    %3468 = vmatpush.msra.mxu0 %v3441
    %3469 = vmatmul.f32.gmra.mxu0 %v3451
    %v3470 = vpop.f32.mrf.mxu0
    %v3471 = vadd.f32 %v3449, %v3470
    %3472 = vdwg.mxu0
    %s3473 = scalar_lea.vmem [#allocation13], 704
    %v3474 = vld [vmem:[%s3473] sm:$0xff]
    %v3475 = vld [vmem:[%s3473 + $0x8] sm:$0xff]
    %v3476 = vld [vmem:[%s3473 + $0x10] sm:$0xff]
    %v3477 = vld [vmem:[%s3473 + $0x18] sm:$0xff]
    %v3478 = vld [vmem:[%s3473 + $0x20] sm:$0xff]
    %v3479 = vld [vmem:[%s3473 + $0x28] sm:$0xff]
    %v3480 = vld [vmem:[%s3473 + $0x30] sm:$0xff]
    %v3481 = vld [vmem:[%s3473 + $0x38] sm:$0xff]
    %v3482 = vperm.slane %v2443, 3
    %v3484 = vsel %vm224, %v2811, 0
    %3486 = vmatpush.msra.mxu0 0.0
    %3487 = vmatpush.msra.mxu0 0.0
    %3488 = vmatpush.msra.mxu0 0.0
    %3489 = vmatpush.msra.mxu0 0.0
    %3490 = vmatpush.msra.mxu0 0.0
    %3491 = vmatpush.msra.mxu0 0.0
    %3492 = vmatpush.msra.mxu0 0.0
    %3493 = vmatpush.msra.mxu0 0.0
    %3494 = vmatpush.msra.mxu0 %v3481
    %3495 = vmatpush.msra.mxu0 %v3480
    %3496 = vmatpush.msra.mxu0 %v3479
    %3497 = vmatpush.msra.mxu0 %v3478
    %3498 = vmatpush.msra.mxu0 %v3477
    %3499 = vmatpush.msra.mxu0 %v3476
    %3500 = vmatpush.msra.mxu0 %v3475
    %3501 = vmatpush.msra.mxu0 %v3474
    %3502 = vmatmul.f32.gmra.mxu0 %v3484
    %v3503 = vpop.f32.mrf.mxu0
    %v3504 = vadd.f32 %v3482, %v3503
    %3505 = vdwg.mxu0
    %3507 = vrot.lane.b32.xlu0 %v3438, 64
    %v3508 = vpop.permute.xlu0 %3507
    %3511 = vrot.lane.b32.xlu0 %v3504, 64
    %v3512 = vpop.permute.xlu0 %3511
    %v3514 = vsel %vm224, %v3405, %v3508
    %v3515 = vsel %vm224, %v3471, %v3512
    %v3518 = vrot.slane %v3515, 4
    %v3519 = vsel %vm1349, %v3514, %v3518
    %s3521 = scalar_lea.vmem %s17, 16
    %3522 = vst [vmem:[%s3521] sm:$0xff] %v3519
    %v3523 = vrot.slane %v1334, 4
    %v3525 = vrot.slane %v3504, 4
    %v3527 = vsel %vm1349, %v3438, %v3523
    %v3528 = vsel %vm1349, %v2420, %v3525
    %v3529 = vld [vmem:[#allocation17] sm:$0xff]
    %v3530 = vld [vmem:[#allocation17 + $0x8] sm:$0xff]
    %v3531 = vld [vmem:[#allocation17 + $0x10] sm:$0xff]
    %v3532 = vld [vmem:[#allocation17 + $0x18] sm:$0xff]
    %v3533 = vld [vmem:[#allocation17 + $0x20] sm:$0xff]
    %v3534 = vld [vmem:[#allocation17 + $0x28] sm:$0xff]
    %v3535 = vld [vmem:[#allocation17 + $0x30] sm:$0xff]
    %v3536 = vld [vmem:[#allocation17 + $0x38] sm:$0xff]
    %v3537 = vld [vmem:[#allocation17 + $0x40] sm:$0xff]
    %v3538 = vld [vmem:[#allocation17 + $0x48] sm:$0xff]
    %v3539 = vld [vmem:[#allocation17 + $0x50] sm:$0xff]
    %v3540 = vld [vmem:[#allocation17 + $0x58] sm:$0xff]
    %v3541 = vld [vmem:[#allocation17 + $0x60] sm:$0xff]
    %v3542 = vld [vmem:[#allocation17 + $0x68] sm:$0xff]
    %v3543 = vld [vmem:[#allocation17 + $0x70] sm:$0xff]
    %v3544 = vld [vmem:[#allocation17 + $0x78] sm:$0xff]
    %v3545 = vld [vmem:[%s14] sm:$0x3]
    %v3547 = vperm.slane %v3545, 0
    %v3548 = vperm.slane %v3545, 1
    %v3552 = vsel %vm224, %v3527, 0
    %v3555 = vsel %vm224, %v3528, 0
    %v3558 = vsel %vm224, %v3405, 0
    %3560 = vmatpush.msra.mxu0 0.0
    %3561 = vmatpush.msra.mxu0 0.0
    %3562 = vmatpush.msra.mxu0 0.0
    %3563 = vmatpush.msra.mxu0 0.0
    %3564 = vmatpush.msra.mxu0 0.0
    %3565 = vmatpush.msra.mxu0 0.0
    %3566 = vmatpush.msra.mxu0 0.0
    %3567 = vmatpush.msra.mxu0 0.0
    %3568 = vmatpush.msra.mxu0 %v3543
    %3569 = vmatpush.msra.mxu0 %v3541
    %3570 = vmatpush.msra.mxu0 %v3539
    %3571 = vmatpush.msra.mxu0 %v3537
    %3572 = vmatpush.msra.mxu0 %v3535
    %3573 = vmatpush.msra.mxu0 %v3533
    %3574 = vmatpush.msra.mxu0 %v3531
    %3575 = vmatpush.msra.mxu0 %v3529
    %3576 = vmatmul.f32.gmra.mxu0 %v3552
    %v3577 = vpop.f32.mrf.mxu0
    %v3578 = vadd.f32 %v3547, %v3577
    %3579 = vmatmul.f32.gmra.mxu0 %v3555
    %v3580 = vpop.f32.mrf.mxu0
    %v3581 = vadd.f32 %v3547, %v3580
    %3582 = vmatmul.f32.gmra.mxu0 %v3558
    %v3583 = vpop.f32.mrf.mxu0
    %v3584 = vadd.f32 %v3547, %v3583
    %3585 = vdwg.mxu0
    %3586 = vmatpush.msra.mxu0 0.0
    %3587 = vmatpush.msra.mxu0 0.0
    %3588 = vmatpush.msra.mxu0 0.0
    %3589 = vmatpush.msra.mxu0 0.0
    %3590 = vmatpush.msra.mxu0 0.0
    %3591 = vmatpush.msra.mxu0 0.0
    %3592 = vmatpush.msra.mxu0 0.0
    %3593 = vmatpush.msra.mxu0 0.0
    %3594 = vmatpush.msra.mxu0 %v3544
    %3595 = vmatpush.msra.mxu0 %v3542
    %3596 = vmatpush.msra.mxu0 %v3540
    %3597 = vmatpush.msra.mxu0 %v3538
    %3598 = vmatpush.msra.mxu0 %v3536
    %3599 = vmatpush.msra.mxu0 %v3534
    %3600 = vmatpush.msra.mxu0 %v3532
    %3601 = vmatpush.msra.mxu0 %v3530
    %3602 = vmatmul.f32.gmra.mxu0 %v3552
    %v3603 = vpop.f32.mrf.mxu0
    %v3604 = vadd.f32 %v3548, %v3603
    %3605 = vmatmul.f32.gmra.mxu0 %v3555
    %v3606 = vpop.f32.mrf.mxu0
    %v3607 = vadd.f32 %v3548, %v3606
    %3608 = vmatmul.f32.gmra.mxu0 %v3558
    %v3609 = vpop.f32.mrf.mxu0
    %v3610 = vadd.f32 %v3548, %v3609
    %3611 = vdwg.mxu0
    %v3612 = vld [vmem:[%s16] sm:$0x1]
    %v3613 = vld [vmem:[%s15] sm:$0xff]
    %v3614 = vld [vmem:[%s15 + $0x8] sm:$0xff]
    %v3615 = vld [vmem:[%s15 + $0x10] sm:$0xff]
    %v3616 = vld [vmem:[%s15 + $0x18] sm:$0xff]
    %v3617 = vld [vmem:[%s15 + $0x20] sm:$0xf]
    %v3618 = vld [vmem:[%s15 + $0x28] sm:$0xf]
    %v3619 = vmul.f32 %v3578, %v3613
    %v3620 = vmul.f32 %v3604, %v3614
    %v3621 = vmul.f32 %v3581, %v3615
    %v3622 = vmul.f32 %v3607, %v3616
    %v3623 = vmul.f32 %v3584, %v3617
    %v3624 = vmul.f32 %v3610, %v3618
    %v3625 = vadd.f32 %v3619, %v3620
    %3626 = vadd.xlane.f32.xlu0 %v3625
    %v3627 = vpop.xlane.xlu0 %3626
    %v3628 = vadd.f32 %v3621, %v3622
    %3629 = vadd.xlane.f32.xlu0 %v3628
    %v3630 = vpop.xlane.xlu0 %3629
    %v3631 = vsel %vm1349, %v3623, 0.0
    %v3632 = vsel %vm1349, %v3624, 0.0
    %v3633 = vadd.f32 %v3631, %v3632
    %3634 = vadd.xlane.f32.xlu0 %v3633
    %v3635 = vpop.xlane.xlu0 %3634
    %v3636 = vadd.f32 %v3627, %v3630
    %v3637 = vsel %vm1349, %v3635, 0.0
    %v3638 = vadd.f32 %v3636, %v3637
    %v3639 = vrot.slane %v3638, 4
    %v3640 = vadd.f32 %v3638, %v3639
    %v3641 = vrot.slane %v3640, 2
    %v3642 = vadd.f32 %v3640, %v3641
    %v3643 = vrot.slane %v3642, 1
    %v3644 = vadd.f32 %v3642, %v3643
    %v3645 = vadd.f32 %v3644, %v3612
    %vm3646 = vcmask 0
    %3647 = vst.msk [vmem:[%s18] sm:$0x1] %vm3646, %v3645
    %v3648 = vmul.f32 %v3645, 0.5
    %v3649 = vtanh.pop %v3648
    %v3650 = vmul.f32 %v3649, 0.5
    %v3651 = vadd.f32 %v3650, 0.5
    %3652 = vst.msk [vmem:[#allocation19] sm:$0x1] %vm3646, %v3651
    %s3653 = scalar_lea.vmem %s15, 48
    %v3654 = vld [vmem:[%s3653] sm:$0xff]
    %v3655 = vld [vmem:[%s3653 + $0x8] sm:$0xff]
    %v3656 = vld [vmem:[%s3653 + $0x10] sm:$0xff]
    %v3657 = vld [vmem:[%s3653 + $0x18] sm:$0xff]
    %v3658 = vld [vmem:[%s3653 + $0x20] sm:$0xf]
    %v3659 = vld [vmem:[%s3653 + $0x28] sm:$0xf]
    %v3660 = vmul.f32 %v3578, %v3654
    %v3661 = vmul.f32 %v3604, %v3655
    %v3662 = vmul.f32 %v3581, %v3656
    %v3663 = vmul.f32 %v3607, %v3657
    %v3664 = vmul.f32 %v3584, %v3658
    %v3665 = vmul.f32 %v3610, %v3659
    %v3666 = vadd.f32 %v3660, %v3661
    %3667 = vadd.xlane.f32.xlu0 %v3666
    %v3668 = vpop.xlane.xlu0 %3667
    %v3669 = vadd.f32 %v3662, %v3663
    %3670 = vadd.xlane.f32.xlu0 %v3669
    %v3671 = vpop.xlane.xlu0 %3670
    %v3672 = vsel %vm1349, %v3664, 0.0
    %v3673 = vsel %vm1349, %v3665, 0.0
    %v3674 = vadd.f32 %v3672, %v3673
    %3675 = vadd.xlane.f32.xlu0 %v3674
    %v3676 = vpop.xlane.xlu0 %3675
    %v3677 = vadd.f32 %v3668, %v3671
    %v3678 = vsel %vm1349, %v3676, 0.0
    %v3679 = vadd.f32 %v3677, %v3678
    %v3680 = vrot.slane %v3679, 4
    %v3681 = vadd.f32 %v3679, %v3680
    %v3682 = vrot.slane %v3681, 2
    %v3683 = vadd.f32 %v3681, %v3682
    %v3684 = vrot.slane %v3683, 1
    %v3685 = vadd.f32 %v3683, %v3684
    %v3686 = vadd.f32 %v3685, %v3612
    %vm3687 = vcmask 8200
    %3688 = vst.msk [vmem:[%s18] sm:$0x1] %vm3687, %v3686
    %v3689 = vmul.f32 %v3686, 0.5
    %v3690 = vtanh.pop %v3689
    %v3691 = vmul.f32 %v3690, 0.5
    %v3692 = vadd.f32 %v3691, 0.5
    %3693 = vst.msk [vmem:[#allocation19] sm:$0x1] %vm3687, %v3692
    // Predicated region
    $region110: #{lrenet_forward.1} parent=1 // pred_check
      _
    $region111: #{lrenet_forward.1} parent=1 // pred_check_branch
      %3695 = sbr.rel (0) target = $region113
    $region112: #{lrenet_forward.1} parent=1 // pred_region
      _
    $region113: #{lrenet_forward.1} parent=1 // pred_fallthru
      _
    // Predicated region
    $region114: #{lrenet_forward.1} parent=1 // pred_check
      _
    $region115: #{lrenet_forward.1} parent=1 // pred_check_branch
      %3697 = sbr.rel (0) target = $region117
    $region116: #{lrenet_forward.1} parent=1 // pred_region
      _
    $region117: #{lrenet_forward.1} parent=1 // pred_fallthru
      _
    // Predicated region
    $region118: #{lrenet_forward.1} parent=1 // pred_check
      _
    $region119: #{lrenet_forward.1} parent=1 // pred_check_branch
      %3699 = sbr.rel (0) target = $region121
    $region120: #{lrenet_forward.1} parent=1 // pred_region
      %3701 = vsyncadd [#allocation4], 0
      %s3703 = sshll.u32 [#allocation19], 4
      %s3704 = int_to_ptr.vmem [resolvable:$true] %s3703
      %s3705 = sshll.u32 %s19, 4
      %s3706 = int_to_ptr.hbm [resolvable:$true] %s3705
      %3708 = dma.vmem_to_hbm [thread:$0]  %s3704, 16, %s3706, [#allocation4]
    $region121: #{lrenet_forward.1} parent=1 // pred_fallthru
      _
    // Predicated region
    $region122: #{lrenet_forward.1} parent=1 // pred_check
      _
    $region123: #{lrenet_forward.1} parent=1 // pred_check_branch
      %3710 = sbr.rel (0) target = $region125
    $region124: #{lrenet_forward.1} parent=1 // pred_region
      _
    $region125: #{lrenet_forward.1} parent=1 // pred_fallthru
      _
    // Predicated region
    $region126: #{lrenet_forward.1} parent=1 // pred_check
      _
    $region127: #{lrenet_forward.1} parent=1 // pred_check_branch
      %3712 = sbr.rel (0) target = $region129
    $region128: #{lrenet_forward.1} parent=1 // pred_region
      _
    $region129: #{lrenet_forward.1} parent=1 // pred_fallthru
      _
    // Predicated region
    $region130: #{lrenet_forward.1} parent=1 // pred_check
      _
    $region131: #{lrenet_forward.1} parent=1 // pred_check_branch
      %3714 = sbr.rel (0) target = $region133
    $region132: #{lrenet_forward.1} parent=1 // pred_region
      %3716 = dma.done [#allocation4], 16
    $region133: #{lrenet_forward.1} parent=1 // pred_fallthru
      _
    %3717 = vsyncpa [#allocation3], 1
    %3718 = vsyncpa [#allocation6], 1
    %3719 = vsyncpa [#allocation9], 1
    %3720 = vsyncpa [#allocation12], 1
    %3721 = vsyncpa [#allocation15], 1
    %3722 = vsyncpa [#allocation18], 1
    %3723 = vsyncpa [#allocation4], 1

</llo_original>
